<compile_context>
chip_gen: v7x
topology: tpu7x:2x2x1
jax: 0.10.0
libtpu: 0.0.40
codegen_flags: <defaults>
</compile_context>

<pallas_src>
import functools

import jax
import jax.numpy as jnp
from jax.experimental import pallas as pl
from jax.experimental.pallas import tpu as pltpu


# ----------------------------------------------------------------------------
# Per-generation VMEM budget (v7x: 64 MiB, v5e/v6e: 128 MiB)
# ----------------------------------------------------------------------------
def _detect_vmem_capacity():
    try:
        info = pltpu.get_tpu_info()
        cap = getattr(info, "vmem_capacity_bytes", None)
        if cap:
            return int(cap)
    except Exception:
        pass
    return 64 * 1024 * 1024        # conservative fallback (safe on every gen)


_VMEM_PHYS = _detect_vmem_capacity()
_VMEM_LIMIT = int(min(96 * 1024 * 1024, (_VMEM_PHYS * 3) // 4))

_COMPILER_PARAMS = pltpu.CompilerParams(
    dimension_semantics=("parallel",),      # single grid axis, megacore-shardable
    vmem_limit_bytes=_VMEM_LIMIT,
)

_MAX_LANE_TILE = 16384                      # absolute lane-tile cap (compile sanity)


def _pick_lane_tile(lanes_padded, bytes_per_lane, fixed_bytes=0):
    """Pick the lane tile TS for a padded lane extent.

    lanes_padded is a multiple of 128; the returned TS is a multiple of 128 that
    divides lanes_padded (never an 'arbitrary' divisor), sized from the
    generation's VMEM budget, and chosen so there are >=2 grid steps whenever
    lanes_padded >= 256 (pipelining overlap + both v7x TensorCores)."""
    m = lanes_padded // 128
    budget = max(_VMEM_LIMIT - fixed_bytes - (4 << 20), 2 << 20)
    cap = min(budget // max(1, bytes_per_lane), _MAX_LANE_TILE)
    cap128 = max(1, min(cap // 128, m))
    if m >= 2:
        cap128 = max(1, min(cap128, m // 2))
    best, d = 1, 1
    while d * d <= m:
        if m % d == 0:
            if d <= cap128 and d > best:
                best = d
            q = m // d
            if q <= cap128 and q > best:
                best = q
        d += 1
    return best * 128


def _flatten_pad(x, cast_dtype=jnp.bfloat16):
    """(C, *spatial) -> (C, L_pad) bf16 with the lane axis padded to a 128 multiple."""
    c = int(x.shape[0])
    x2 = x.reshape(c, -1).astype(cast_dtype)
    L0 = int(x2.shape[1])
    Lp = -(-L0 // 128) * 128
    if Lp != L0:
        x2 = jnp.pad(x2, ((0, 0), (0, Lp - L0)))
    return x2, L0, Lp


# ----------------------------------------------------------------------------
# Pallas kernels
# ----------------------------------------------------------------------------
def _apply_epilogue(acc, epilogue):
    if epilogue == "none":
        return acc
    if epilogue == "relu":
        return jnp.maximum(acc, 0.0)
    if epilogue == "relu6_div6":                       # torch.nn.ReLU6()(x) / 6
        return jnp.clip(acc, 0.0, 6.0) * (1.0 / 6.0)
    raise ValueError(epilogue)


def _conv1x1_kernel(*refs, n_in, epilogue):
    """out(Cout, TS) = sum_k W_k(Cout, C_k) @ x_k(C_k, TS) + b, then epilogue.

    Multiple (x_k, W_k) pairs express a channel-concat (split-K accumulation)
    without materializing the concatenated tensor in HBM."""
    x_refs = refs[:n_in]
    w_refs = refs[n_in:2 * n_in]
    b_ref = refs[2 * n_in]
    o_ref = refs[2 * n_in + 1]

    acc = jnp.dot(w_refs[0][...], x_refs[0][...],
                  preferred_element_type=jnp.float32)
    for k in range(1, n_in):
        acc = acc + jnp.dot(w_refs[k][...], x_refs[k][...],
                            preferred_element_type=jnp.float32)
    acc = acc + b_ref[...]                 # (Cout, 1) f32, broadcast along lanes
    acc = _apply_epilogue(acc, epilogue)
    o_ref[...] = acc.astype(o_ref.dtype)


def _cond_cat_kernel(s15_ref, sot_ref, w15_ref, wot_ref, wsn1_ref, wsn2_ref,
                     b15_ref, bot_ref, bsn_ref, o_ref):
    """Fused 'cat' conditioning path for one scale:
         h1 = relu(W15 @ s15 + b15)                (conditioning_stack_15 conv)
         h2 = relu(Wot @ sot + bot)                (conditioning_stack_others conv)
         o  = Wsn[:, :Ch] @ h1 + Wsn[:, Ch:] @ h2 + bsn   (SN 1x1 conv on the concat)
    h1 / h2 / the concat never touch HBM."""
    h1 = jnp.dot(w15_ref[...], s15_ref[...], preferred_element_type=jnp.float32)
    h1 = jnp.maximum(h1 + b15_ref[...], 0.0).astype(jnp.bfloat16)
    h2 = jnp.dot(wot_ref[...], sot_ref[...], preferred_element_type=jnp.float32)
    h2 = jnp.maximum(h2 + bot_ref[...], 0.0).astype(jnp.bfloat16)
    acc = jnp.dot(wsn1_ref[...], h1, preferred_element_type=jnp.float32)
    acc = acc + jnp.dot(wsn2_ref[...], h2, preferred_element_type=jnp.float32)
    acc = acc + bsn_ref[...]
    o_ref[...] = acc.astype(o_ref.dtype)


# ----------------------------------------------------------------------------
# Kernel wrappers (channel-major, batch merged onto lanes, 1-D grid)
# ----------------------------------------------------------------------------
def conv1x1(xs, ws, b, *, epilogue="none", out_dtype=jnp.bfloat16):
    """Fused multi-input 1x1 conv.

    xs: list of (C_k, *spatial) tensors (logically channel-concatenated, same spatial)
    ws: list of (Cout, C_k) weights     b: (Cout,)
    returns (Cout, *spatial) in out_dtype."""
    trailing = xs[0].shape[1:]
    for x in xs[1:]:
        assert x.shape[1:] == trailing
    Cout = int(ws[0].shape[0])
    cins = [int(x.shape[0]) for x in xs]

    flats, L0, Lp = [], None, None
    for x in xs:
        f, l0, lp = _flatten_pad(x)
        flats.append(f)
        L0, Lp = l0, lp

    out_bytes = jnp.dtype(out_dtype).itemsize
    bpl = 2 * sum(cins) * 2 + 2 * Cout * out_bytes + Cout * 4
    fixed = 2 * (sum(Cout * c for c in cins) * 2 + Cout * 4)
    TS = _pick_lane_tile(Lp, bpl, fixed)
    n_s = Lp // TS

    ws2 = [w.astype(jnp.bfloat16) for w in ws]
    b2 = b.reshape(Cout, 1).astype(jnp.float32)

    in_specs = (
        [pl.BlockSpec((c, TS), lambda j: (0, j)) for c in cins]
        + [pl.BlockSpec((Cout, c), lambda j: (0, 0)) for c in cins]
        + [pl.BlockSpec((Cout, 1), lambda j: (0, 0))]
    )
    out = pl.pallas_call(
        functools.partial(_conv1x1_kernel, n_in=len(flats), epilogue=epilogue),
        grid=(n_s,),
        in_specs=in_specs,
        out_specs=pl.BlockSpec((Cout, TS), lambda j: (0, j)),
        out_shape=jax.ShapeDtypeStruct((Cout, Lp), out_dtype),
        compiler_params=_COMPILER_PARAMS,
    )(*flats, *ws2, b2)
    if Lp != L0:
        out = out[:, :L0]
    return out.reshape((Cout,) + tuple(trailing))


def cond_cat_scale(s15, sot, w15, b15, wot, bot, wsn, bsn):
    """One scale of the 'cat' encode path, fully fused into a single kernel."""
    C15 = int(s15.shape[0])
    Cot = int(sot.shape[0])
    trailing = s15.shape[1:]
    assert sot.shape[1:] == trailing
    Ch = int(w15.shape[0])              # HALF_CH[i]; also Cout of the SN 1x1 conv

    s15f, L0, Lp = _flatten_pad(s15)
    sotf, L0b, Lpb = _flatten_pad(sot)
    assert (L0, Lp) == (L0b, Lpb)

    bpl = 2 * (C15 + Cot) * 2 + 2 * Ch * 2 + 3 * Ch * 4
    fixed = 2 * ((Ch * C15 + Ch * Cot + 2 * Ch * Ch) * 2 + 3 * Ch * 4)
    TS = _pick_lane_tile(Lp, bpl, fixed)
    n_s = Lp // TS

    w15f = w15.astype(jnp.bfloat16)
    wotf = wot.astype(jnp.bfloat16)
    wsn1 = wsn[:, :Ch].astype(jnp.bfloat16)     # columns multiplying c15 (cat order)
    wsn2 = wsn[:, Ch:].astype(jnp.bfloat16)     # columns multiplying c_others
    b15f = b15.reshape(Ch, 1).astype(jnp.float32)
    botf = bot.reshape(Ch, 1).astype(jnp.float32)
    bsnf = bsn.reshape(Ch, 1).astype(jnp.float32)

    in_specs = [
        pl.BlockSpec((C15, TS), lambda j: (0, j)),
        pl.BlockSpec((Cot, TS), lambda j: (0, j)),
        pl.BlockSpec((Ch, C15), lambda j: (0, 0)),
        pl.BlockSpec((Ch, Cot), lambda j: (0, 0)),
        pl.BlockSpec((Ch, Ch), lambda j: (0, 0)),
        pl.BlockSpec((Ch, Ch), lambda j: (0, 0)),
        pl.BlockSpec((Ch, 1), lambda j: (0, 0)),
        pl.BlockSpec((Ch, 1), lambda j: (0, 0)),
        pl.BlockSpec((Ch, 1), lambda j: (0, 0)),
    ]
    out = pl.pallas_call(
        _cond_cat_kernel,
        grid=(n_s,),
        in_specs=in_specs,
        out_specs=pl.BlockSpec((Ch, TS), lambda j: (0, j)),
        out_shape=jax.ShapeDtypeStruct((Ch, Lp), jnp.bfloat16),
        compiler_params=_COMPILER_PARAMS,
    )(s15f, sotf, w15f, wotf, wsn1, wsn2, b15f, botf, bsnf)
    if Lp != L0:
        out = out[:, :L0]
    return out.reshape((Ch,) + tuple(trailing))


# ----------------------------------------------------------------------------
# Glue (layout transforms / parameter setup) — plain JAX
# ----------------------------------------------------------------------------
def space_to_depth_cm(x_nchw, f):
    """(B, C, H, W) -> (C*f*f, B, H/f, W/f): channel-major output, channel order
    (c, fh, fw), so downstream kernels see (Cin, B*S) with zero extra transposes."""
    B, C, H, W = x_nchw.shape
    x = x_nchw.reshape(B, C, H // f, f, W // f, f)
    x = jnp.transpose(x, (1, 3, 5, 0, 2, 4))         # (C, f, f, B, Hc, Wc)
    return x.reshape(C * f * f, B, H // f, W // f)


def spectral_normalize(w_cout_cin, n_iter=5, eps=1e-4):
    """Deterministic power-iteration spectral norm on a (Cout, Cin) weight.
    TODO(synk): PyTorch uses a persistent random u and eps=1e-12; this stand-in
    is deterministic and will not match a real checkpoint bit-for-bit."""
    cout = w_cout_cin.shape[0]
    u = jnp.ones((cout,), jnp.float32) / jnp.sqrt(float(cout))
    v = None
    for _ in range(n_iter):
        v = w_cout_cin.T @ u
        v = v / (jnp.linalg.norm(v) + eps)
        u = w_cout_cin @ v
        u = u / (jnp.linalg.norm(u) + eps)
    sigma = u @ (w_cout_cin @ v)
    return w_cout_cin / (sigma + eps)


def _init_linear(key, cout, cin):
    kw, kb = jax.random.split(key)
    w = jax.random.normal(kw, (cout, cin), jnp.float32) / jnp.sqrt(float(cin))
    b = 0.01 * jax.random.normal(kb, (cout,), jnp.float32)
    return w, b


HALF_CH = [20, 40, 80, 160]          # per-stack conditioning channels
CAT_CH = [40, 80, 160, 320]          # after channel concat ('cat' mode)
LATENT_CH = 8
SAMPLER_HID = [16, 16, 32, 32]       # indexed by scale i (0..3)
T_OUT = 2


def init_params(key, T, C_in):
    keys = iter(jax.random.split(key, 64))
    p = {}

    def stack_params(cin_per_frame):
        ws, bs = [], []
        for i in range(4):
            f = 2 ** (i + 1)
            cin = T * cin_per_frame * f * f
            w, b = _init_linear(next(keys), HALF_CH[i], cin)
            ws.append(w)
            bs.append(b)
        return {"w": ws, "b": bs}

    p["cs_all"] = stack_params(C_in)          # 'allchannel' stack
    p["cs_15"] = stack_params(1)
    p["cs_others"] = stack_params(C_in - 1)

    # spectral-normed 1x1 convs of the Generator wrapper ('cat' mode)
    sn_w, sn_b = [], []
    for i in range(4):
        w, b = _init_linear(next(keys), CAT_CH[i] // 2, CAT_CH[i])
        w = spectral_normalize(w, n_iter=5, eps=1e-4)
        sn_w.append(w)
        sn_b.append(b)
    p["sn_w"], p["sn_b"] = sn_w, sn_b

    # latent stack: space-to-depth x16 then 1x1 conv -> LATENT_CH
    w, b = _init_linear(next(keys), LATENT_CH, T * C_in * 16 * 16)
    p["latent"] = {"w": w, "b": b}

    # sampler: coarse-to-fine 1x1 conv + x2 upsample
    sw, sb = [], []
    prev = LATENT_CH
    for i in range(3, -1, -1):
        w, b = _init_linear(next(keys), SAMPLER_HID[i], prev + HALF_CH[i])
        sw.insert(0, w)
        sb.insert(0, b)
        prev = SAMPLER_HID[i]
    wo, bo = _init_linear(next(keys), T_OUT, SAMPLER_HID[0])
    p["sampler"] = {"w": sw, "b": sb, "w_out": wo, "b_out": bo}
    return p


# ----------------------------------------------------------------------------
# Stand-in sub-modules (hot path = fused Pallas 1x1 conv kernels)
# ----------------------------------------------------------------------------
def sampler(cond_states, latent, params):
    z = latent                              # (LATENT_CH, B, H/16, W/16) bf16
    for i in range(3, -1, -1):
        cz = int(z.shape[0])
        w = params["w"][i]
        wz, wc = w[:, :cz], w[:, cz:]       # concat([z, cond[i]]) fused as split-K
        z = conv1x1([z, cond_states[i]], [wz, wc], params["b"][i],
                    epilogue="relu")
        # TODO(synk): nearest x2 upsample kept in XLA; fusing it into the next
        # kernel needs an in-kernel lane interleave (or a nested spatial
        # ordering threaded through every space_to_depth) — lowering risk.
        z = jnp.repeat(jnp.repeat(z, 2, axis=2), 2, axis=3)
    # final conv with the Generator's ReLU6(x)/6 fused into its epilogue
    out = conv1x1([z], [params["w_out"]], params["b_out"],
                  epilogue="relu6_div6", out_dtype=jnp.float32)
    Tc, B, H, W = out.shape
    return jnp.transpose(out, (1, 0, 2, 3)).reshape(B, Tc, 1, H, W)


# ----------------------------------------------------------------------------
# Generator forward (mirrors the PyTorch wrapper)
# ----------------------------------------------------------------------------
def generator_forward(x, params, encode_type="cat"):
    # x: (B, T, C, H, W)  (PyTorch convention)
    x = x.astype(jnp.bfloat16)
    B, T, C, H, W = x.shape
    x_m = x.reshape(B, T * C, H, W)
    x15 = x[:, :, 0:1].reshape(B, T, H, W)
    xot = x[:, :, 1:].reshape(B, T * (C - 1), H, W)

    lat_inputs, lat_ws = None, None
    cond = []

    if encode_type == "allchannel":
        for i in range(4):
            s2d = space_to_depth_cm(x_m, 2 ** (i + 1))
            if i == 3:
                # f=16 space_to_depth doubles as the latent-stack input (same
                # channel order) — one fewer full HBM pass over the input.
                lat_inputs, lat_ws = [s2d], [params["latent"]["w"]]
            cond.append(conv1x1([s2d], [params["cs_all"]["w"][i]],
                                params["cs_all"]["b"][i], epilogue="relu"))
    elif encode_type in ("add", "cat"):
        for i in range(4):
            f = 2 ** (i + 1)
            s15 = space_to_depth_cm(x15, f)
            sot = space_to_depth_cm(xot, f)
            if i == 3:
                # reuse the f=16 space_to_depth for the latent stack: split the
                # latent weight's input columns to match the (x15, xot) order.
                wl = params["latent"]["w"].reshape(LATENT_CH, T, C, 16 * 16)
                lat_inputs = [s15, sot]
                lat_ws = [wl[:, :, 0, :].reshape(LATENT_CH, T * 256),
                          wl[:, :, 1:, :].reshape(LATENT_CH, T * (C - 1) * 256)]
            if encode_type == "add":
                # TODO(synk): PyTorch's `list_a + list_b` concatenates lists; the
                # stand-in keeps the element-wise-add interpretation used before.
                a = conv1x1([s15], [params["cs_15"]["w"][i]],
                            params["cs_15"]["b"][i], epilogue="relu")
                b_ = conv1x1([sot], [params["cs_others"]["w"][i]],
                             params["cs_others"]["b"][i], epilogue="relu")
                cond.append(a + b_)
            else:  # 'cat' — fully fused per scale
                cond.append(cond_cat_scale(
                    s15, sot,
                    params["cs_15"]["w"][i], params["cs_15"]["b"][i],
                    params["cs_others"]["w"][i], params["cs_others"]["b"][i],
                    params["sn_w"][i], params["sn_b"][i]))
    else:
        raise ValueError(encode_type)

    lat = conv1x1(lat_inputs, lat_ws, params["latent"]["b"], epilogue="relu")
    out = sampler(cond, lat, params["sampler"])   # ReLU6/6 fused into last conv
    return out


# ----------------------------------------------------------------------------
if __name__ == "__main__":
    B, T, C, H, W = 2, 4, 2, 32, 32
    key = jax.random.PRNGKey(0)
    kx, kp = jax.random.split(key)
    x = jax.random.normal(kx, (B, T, C, H, W), jnp.float32)
    params = init_params(kp, T, C)

    fwd = jax.jit(functools.partial(generator_forward, encode_type="cat"))
    out = jax.block_until_ready(fwd(x, params))

    assert out.shape == (B, T_OUT, 1, H, W)
    assert out.dtype == jnp.float32
    assert bool(jnp.all(jnp.isfinite(out)))
    assert bool(jnp.all((out >= 0.0) & (out <= 1.0)))  # ReLU6/6 range
    print("KERNEL_OK")
</pallas_src>

<mosaic_0001>
module attributes {stable_mosaic.version = 11 : i64} {
  func.func @_cond_cat_kernel(%arg0: i32, %arg1: memref<1024x128xbf16, #tpu.memory_space<vmem>>, %arg2: memref<1024x128xbf16, #tpu.memory_space<vmem>>, %arg3: memref<160x1024xbf16, #tpu.memory_space<vmem>>, %arg4: memref<160x1024xbf16, #tpu.memory_space<vmem>>, %arg5: memref<160x160xbf16, #tpu.memory_space<vmem>>, %arg6: memref<160x160xbf16, #tpu.memory_space<vmem>>, %arg7: memref<160x1xf32, #tpu.memory_space<vmem>>, %arg8: memref<160x1xf32, #tpu.memory_space<vmem>>, %arg9: memref<160x1xf32, #tpu.memory_space<vmem>>, %arg10: memref<160x128xbf16, #tpu.memory_space<vmem>>) attributes {dimension_semantics = [#tpu.dimension_semantics<parallel>], iteration_bounds = array<i64: 1>, scalar_prefetch = 0 : i64, scratch_operands = 0 : i64, tpu.core_type = #tpu.core_type<tc>, window_params = [{transform_indices = @transform_0, window_bounds = array<i64: 1024, 128>}, {transform_indices = @transform_1, window_bounds = array<i64: 1024, 128>}, {pipeline_mode = #tpu.pipeline_mode<synchronous>, transform_indices = @transform_2, window_bounds = array<i64: 160, 1024>}, {pipeline_mode = #tpu.pipeline_mode<synchronous>, transform_indices = @transform_3, window_bounds = array<i64: 160, 1024>}, {pipeline_mode = #tpu.pipeline_mode<synchronous>, transform_indices = @transform_4, window_bounds = array<i64: 160, 160>}, {pipeline_mode = #tpu.pipeline_mode<synchronous>, transform_indices = @transform_5, window_bounds = array<i64: 160, 160>}, {pipeline_mode = #tpu.pipeline_mode<synchronous>, transform_indices = @transform_6, window_bounds = array<i64: 160, 1>}, {pipeline_mode = #tpu.pipeline_mode<synchronous>, transform_indices = @transform_7, window_bounds = array<i64: 160, 1>}, {pipeline_mode = #tpu.pipeline_mode<synchronous>, transform_indices = @transform_8, window_bounds = array<i64: 160, 1>}, {transform_indices = @transform_9, window_bounds = array<i64: 160, 128>}]} {
    %c0 = arith.constant 0 : index
    %c0_0 = arith.constant 0 : index
    %0 = vector.load %arg3[%c0, %c0_0] : memref<160x1024xbf16, #tpu.memory_space<vmem>>, vector<160x1024xbf16>
    %c0_1 = arith.constant 0 : index
    %c0_2 = arith.constant 0 : index
    %1 = vector.load %arg1[%c0_1, %c0_2] : memref<1024x128xbf16, #tpu.memory_space<vmem>>, vector<1024x128xbf16>
    %cst = arith.constant dense<0.000000e+00> : vector<160x128xf32>
    %2 = tpu.matmul %0, %1, %cst {dimension_numbers = #tpu.dot_dimension_numbers<[1], [0], [0], [1], [0, 0, 1, 1], [], []>} : vector<160x1024xbf16>, vector<1024x128xbf16>, vector<160x128xf32> -> vector<160x128xf32>
    %c0_3 = arith.constant 0 : index
    %c0_4 = arith.constant 0 : index
    %3 = vector.load %arg7[%c0_3, %c0_4] : memref<160x1xf32, #tpu.memory_space<vmem>>, vector<160x1xf32>
    %4 = vector.broadcast %3 : vector<160x1xf32> to vector<160x128xf32>
    %5 = arith.addf %2, %4 : vector<160x128xf32>
    %cst_5 = arith.constant 0.000000e+00 : f32
    %6 = vector.broadcast %cst_5 : f32 to vector<160x128xf32>
    %7 = arith.maximumf %5, %6 : vector<160x128xf32>
    %8 = arith.truncf %7 : vector<160x128xf32> to vector<160x128xbf16>
    %c0_6 = arith.constant 0 : index
    %c0_7 = arith.constant 0 : index
    %9 = vector.load %arg4[%c0_6, %c0_7] : memref<160x1024xbf16, #tpu.memory_space<vmem>>, vector<160x1024xbf16>
    %c0_8 = arith.constant 0 : index
    %c0_9 = arith.constant 0 : index
    %10 = vector.load %arg2[%c0_8, %c0_9] : memref<1024x128xbf16, #tpu.memory_space<vmem>>, vector<1024x128xbf16>
    %cst_10 = arith.constant dense<0.000000e+00> : vector<160x128xf32>
    %11 = tpu.matmul %9, %10, %cst_10 {dimension_numbers = #tpu.dot_dimension_numbers<[1], [0], [0], [1], [0, 0, 1, 1], [], []>} : vector<160x1024xbf16>, vector<1024x128xbf16>, vector<160x128xf32> -> vector<160x128xf32>
    %c0_11 = arith.constant 0 : index
    %c0_12 = arith.constant 0 : index
    %12 = vector.load %arg8[%c0_11, %c0_12] : memref<160x1xf32, #tpu.memory_space<vmem>>, vector<160x1xf32>
    %13 = vector.broadcast %12 : vector<160x1xf32> to vector<160x128xf32>
    %14 = arith.addf %11, %13 : vector<160x128xf32>
    %cst_13 = arith.constant 0.000000e+00 : f32
    %15 = vector.broadcast %cst_13 : f32 to vector<160x128xf32>
    %16 = arith.maximumf %14, %15 : vector<160x128xf32>
    %17 = arith.truncf %16 : vector<160x128xf32> to vector<160x128xbf16>
    %c0_14 = arith.constant 0 : index
    %c0_15 = arith.constant 0 : index
    %18 = vector.load %arg5[%c0_14, %c0_15] : memref<160x160xbf16, #tpu.memory_space<vmem>>, vector<160x160xbf16>
    %cst_16 = arith.constant dense<0.000000e+00> : vector<160x128xf32>
    %19 = tpu.matmul %18, %8, %cst_16 {dimension_numbers = #tpu.dot_dimension_numbers<[1], [0], [0], [1], [0, 0, 1, 1], [], []>} : vector<160x160xbf16>, vector<160x128xbf16>, vector<160x128xf32> -> vector<160x128xf32>
    %c0_17 = arith.constant 0 : index
    %c0_18 = arith.constant 0 : index
    %20 = vector.load %arg6[%c0_17, %c0_18] : memref<160x160xbf16, #tpu.memory_space<vmem>>, vector<160x160xbf16>
    %cst_19 = arith.constant dense<0.000000e+00> : vector<160x128xf32>
    %21 = tpu.matmul %20, %17, %cst_19 {dimension_numbers = #tpu.dot_dimension_numbers<[1], [0], [0], [1], [0, 0, 1, 1], [], []>} : vector<160x160xbf16>, vector<160x128xbf16>, vector<160x128xf32> -> vector<160x128xf32>
    %22 = arith.addf %19, %21 : vector<160x128xf32>
    %c0_20 = arith.constant 0 : index
    %c0_21 = arith.constant 0 : index
    %23 = vector.load %arg9[%c0_20, %c0_21] : memref<160x1xf32, #tpu.memory_space<vmem>>, vector<160x1xf32>
    %24 = vector.broadcast %23 : vector<160x1xf32> to vector<160x128xf32>
    %25 = arith.addf %22, %24 : vector<160x128xf32>
    %26 = arith.truncf %25 : vector<160x128xf32> to vector<160x128xbf16>
    %c0_22 = arith.constant 0 : index
    %c0_23 = arith.constant 0 : index
    %27 = vector.load %arg10[%c0_22, %c0_23] : memref<160x128xbf16, #tpu.memory_space<vmem>>, vector<160x128xbf16>
    tpu.vector_store %arg10[%c0_22, %c0_23], %26 {strides = array<i32>} : memref<160x128xbf16, #tpu.memory_space<vmem>>, vector<160x128xbf16>,
    return
  }
  func.func @transform_0(%arg0: i32) -> (i32, i32) {
    %c0_i32 = arith.constant 0 : i32
    %c0_i32_0 = arith.constant 0 : i32
    return %c0_i32, %arg0 : i32, i32
  }
  func.func @transform_1(%arg0: i32) -> (i32, i32) {
    %c0_i32 = arith.constant 0 : i32
    %c0_i32_0 = arith.constant 0 : i32
    return %c0_i32, %arg0 : i32, i32
  }
  func.func @transform_2(%arg0: i32) -> (i32, i32) {
    %c0_i32 = arith.constant 0 : i32
    %c0_i32_0 = arith.constant 0 : i32
    %c0_i32_1 = arith.constant 0 : i32
    return %c0_i32, %c0_i32_0 : i32, i32
  }
  func.func @transform_3(%arg0: i32) -> (i32, i32) {
    %c0_i32 = arith.constant 0 : i32
    %c0_i32_0 = arith.constant 0 : i32
    %c0_i32_1 = arith.constant 0 : i32
    return %c0_i32, %c0_i32_0 : i32, i32
  }
  func.func @transform_4(%arg0: i32) -> (i32, i32) {
    %c0_i32 = arith.constant 0 : i32
    %c0_i32_0 = arith.constant 0 : i32
    %c0_i32_1 = arith.constant 0 : i32
    return %c0_i32, %c0_i32_0 : i32, i32
  }
  func.func @transform_5(%arg0: i32) -> (i32, i32) {
    %c0_i32 = arith.constant 0 : i32
    %c0_i32_0 = arith.constant 0 : i32
    %c0_i32_1 = arith.constant 0 : i32
    return %c0_i32, %c0_i32_0 : i32, i32
  }
  func.func @transform_6(%arg0: i32) -> (i32, i32) {
    %c0_i32 = arith.constant 0 : i32
    %c0_i32_0 = arith.constant 0 : i32
    %c0_i32_1 = arith.constant 0 : i32
    return %c0_i32, %c0_i32_0 : i32, i32
  }
  func.func @transform_7(%arg0: i32) -> (i32, i32) {
    %c0_i32 = arith.constant 0 : i32
    %c0_i32_0 = arith.constant 0 : i32
    %c0_i32_1 = arith.constant 0 : i32
    return %c0_i32, %c0_i32_0 : i32, i32
  }
  func.func @transform_8(%arg0: i32) -> (i32, i32) {
    %c0_i32 = arith.constant 0 : i32
    %c0_i32_0 = arith.constant 0 : i32
    %c0_i32_1 = arith.constant 0 : i32
    return %c0_i32, %c0_i32_0 : i32, i32
  }
  func.func @transform_9(%arg0: i32) -> (i32, i32) {
    %c0_i32 = arith.constant 0 : i32
    %c0_i32_0 = arith.constant 0 : i32
    return %c0_i32, %arg0 : i32, i32
  }
}

module attributes {stable_mosaic.version = 11 : i64} {
  func.func @_conv1x1_kernel(%arg0: i32, %arg1: memref<1024x128xbf16, #tpu.memory_space<vmem>>, %arg2: memref<1024x128xbf16, #tpu.memory_space<vmem>>, %arg3: memref<8x1024xbf16, #tpu.memory_space<vmem>>, %arg4: memref<8x1024xbf16, #tpu.memory_space<vmem>>, %arg5: memref<8x1xf32, #tpu.memory_space<vmem>>, %arg6: memref<8x128xbf16, #tpu.memory_space<vmem>>) attributes {dimension_semantics = [#tpu.dimension_semantics<parallel>], iteration_bounds = array<i64: 1>, scalar_prefetch = 0 : i64, scratch_operands = 0 : i64, tpu.core_type = #tpu.core_type<tc>, window_params = [{transform_indices = @transform_0, window_bounds = array<i64: 1024, 128>}, {transform_indices = @transform_1, window_bounds = array<i64: 1024, 128>}, {pipeline_mode = #tpu.pipeline_mode<synchronous>, transform_indices = @transform_2, window_bounds = array<i64: 8, 1024>}, {pipeline_mode = #tpu.pipeline_mode<synchronous>, transform_indices = @transform_3, window_bounds = array<i64: 8, 1024>}, {pipeline_mode = #tpu.pipeline_mode<synchronous>, transform_indices = @transform_4, window_bounds = array<i64: 8, 1>}, {transform_indices = @transform_5, window_bounds = array<i64: 8, 128>}]} {
    %c0 = arith.constant 0 : index
    %c0_0 = arith.constant 0 : index
    %0 = vector.load %arg3[%c0, %c0_0] : memref<8x1024xbf16, #tpu.memory_space<vmem>>, vector<8x1024xbf16>
    %c0_1 = arith.constant 0 : index
    %c0_2 = arith.constant 0 : index
    %1 = vector.load %arg1[%c0_1, %c0_2] : memref<1024x128xbf16, #tpu.memory_space<vmem>>, vector<1024x128xbf16>
    %cst = arith.constant dense<0.000000e+00> : vector<8x128xf32>
    %2 = tpu.matmul %0, %1, %cst {dimension_numbers = #tpu.dot_dimension_numbers<[1], [0], [0], [1], [0, 0, 1, 1], [], []>} : vector<8x1024xbf16>, vector<1024x128xbf16>, vector<8x128xf32> -> vector<8x128xf32>
    %c0_3 = arith.constant 0 : index
    %c0_4 = arith.constant 0 : index
    %3 = vector.load %arg4[%c0_3, %c0_4] : memref<8x1024xbf16, #tpu.memory_space<vmem>>, vector<8x1024xbf16>
    %c0_5 = arith.constant 0 : index
    %c0_6 = arith.constant 0 : index
    %4 = vector.load %arg2[%c0_5, %c0_6] : memref<1024x128xbf16, #tpu.memory_space<vmem>>, vector<1024x128xbf16>
    %cst_7 = arith.constant dense<0.000000e+00> : vector<8x128xf32>
    %5 = tpu.matmul %3, %4, %cst_7 {dimension_numbers = #tpu.dot_dimension_numbers<[1], [0], [0], [1], [0, 0, 1, 1], [], []>} : vector<8x1024xbf16>, vector<1024x128xbf16>, vector<8x128xf32> -> vector<8x128xf32>
    %6 = arith.addf %2, %5 : vector<8x128xf32>
    %c0_8 = arith.constant 0 : index
    %c0_9 = arith.constant 0 : index
    %7 = vector.load %arg5[%c0_8, %c0_9] : memref<8x1xf32, #tpu.memory_space<vmem>>, vector<8x1xf32>
    %8 = vector.broadcast %7 : vector<8x1xf32> to vector<8x128xf32>
    %9 = arith.addf %6, %8 : vector<8x128xf32>
    %cst_10 = arith.constant 0.000000e+00 : f32
    %10 = vector.broadcast %cst_10 : f32 to vector<8x128xf32>
    %11 = arith.maximumf %9, %10 : vector<8x128xf32>
    %12 = arith.truncf %11 : vector<8x128xf32> to vector<8x128xbf16>
    %c0_11 = arith.constant 0 : index
    %c0_12 = arith.constant 0 : index
    %13 = vector.load %arg6[%c0_11, %c0_12] : memref<8x128xbf16, #tpu.memory_space<vmem>>, vector<8x128xbf16>
    tpu.vector_store %arg6[%c0_11, %c0_12], %12 {strides = array<i32>} : memref<8x128xbf16, #tpu.memory_space<vmem>>, vector<8x128xbf16>,
    return
  }
  func.func @transform_0(%arg0: i32) -> (i32, i32) {
    %c0_i32 = arith.constant 0 : i32
    %c0_i32_0 = arith.constant 0 : i32
    return %c0_i32, %arg0 : i32, i32
  }
  func.func @transform_1(%arg0: i32) -> (i32, i32) {
    %c0_i32 = arith.constant 0 : i32
    %c0_i32_0 = arith.constant 0 : i32
    return %c0_i32, %arg0 : i32, i32
  }
  func.func @transform_2(%arg0: i32) -> (i32, i32) {
    %c0_i32 = arith.constant 0 : i32
    %c0_i32_0 = arith.constant 0 : i32
    %c0_i32_1 = arith.constant 0 : i32
    return %c0_i32, %c0_i32_0 : i32, i32
  }
  func.func @transform_3(%arg0: i32) -> (i32, i32) {
    %c0_i32 = arith.constant 0 : i32
    %c0_i32_0 = arith.constant 0 : i32
    %c0_i32_1 = arith.constant 0 : i32
    return %c0_i32, %c0_i32_0 : i32, i32
  }
  func.func @transform_4(%arg0: i32) -> (i32, i32) {
    %c0_i32 = arith.constant 0 : i32
    %c0_i32_0 = arith.constant 0 : i32
    %c0_i32_1 = arith.constant 0 : i32
    return %c0_i32, %c0_i32_0 : i32, i32
  }
  func.func @transform_5(%arg0: i32) -> (i32, i32) {
    %c0_i32 = arith.constant 0 : i32
    %c0_i32_0 = arith.constant 0 : i32
    return %c0_i32, %arg0 : i32, i32
  }
}

module attributes {stable_mosaic.version = 11 : i64} {
  func.func @_conv1x1_kernel(%arg0: i32, %arg1: memref<8x128xbf16, #tpu.memory_space<vmem>>, %arg2: memref<160x128xbf16, #tpu.memory_space<vmem>>, %arg3: memref<32x8xbf16, #tpu.memory_space<vmem>>, %arg4: memref<32x160xbf16, #tpu.memory_space<vmem>>, %arg5: memref<32x1xf32, #tpu.memory_space<vmem>>, %arg6: memref<32x128xbf16, #tpu.memory_space<vmem>>) attributes {dimension_semantics = [#tpu.dimension_semantics<parallel>], iteration_bounds = array<i64: 1>, scalar_prefetch = 0 : i64, scratch_operands = 0 : i64, tpu.core_type = #tpu.core_type<tc>, window_params = [{transform_indices = @transform_0, window_bounds = array<i64: 8, 128>}, {transform_indices = @transform_1, window_bounds = array<i64: 160, 128>}, {pipeline_mode = #tpu.pipeline_mode<synchronous>, transform_indices = @transform_2, window_bounds = array<i64: 32, 8>}, {pipeline_mode = #tpu.pipeline_mode<synchronous>, transform_indices = @transform_3, window_bounds = array<i64: 32, 160>}, {pipeline_mode = #tpu.pipeline_mode<synchronous>, transform_indices = @transform_4, window_bounds = array<i64: 32, 1>}, {transform_indices = @transform_5, window_bounds = array<i64: 32, 128>}]} {
    %c0 = arith.constant 0 : index
    %c0_0 = arith.constant 0 : index
    %0 = vector.load %arg3[%c0, %c0_0] : memref<32x8xbf16, #tpu.memory_space<vmem>>, vector<32x8xbf16>
    %c0_1 = arith.constant 0 : index
    %c0_2 = arith.constant 0 : index
    %1 = vector.load %arg1[%c0_1, %c0_2] : memref<8x128xbf16, #tpu.memory_space<vmem>>, vector<8x128xbf16>
    %cst = arith.constant dense<0.000000e+00> : vector<32x128xf32>
    %2 = tpu.matmul %0, %1, %cst {dimension_numbers = #tpu.dot_dimension_numbers<[1], [0], [0], [1], [0, 0, 1, 1], [], []>} : vector<32x8xbf16>, vector<8x128xbf16>, vector<32x128xf32> -> vector<32x128xf32>
    %c0_3 = arith.constant 0 : index
    %c0_4 = arith.constant 0 : index
    %3 = vector.load %arg4[%c0_3, %c0_4] : memref<32x160xbf16, #tpu.memory_space<vmem>>, vector<32x160xbf16>
    %c0_5 = arith.constant 0 : index
    %c0_6 = arith.constant 0 : index
    %4 = vector.load %arg2[%c0_5, %c0_6] : memref<160x128xbf16, #tpu.memory_space<vmem>>, vector<160x128xbf16>
    %cst_7 = arith.constant dense<0.000000e+00> : vector<32x128xf32>
    %5 = tpu.matmul %3, %4, %cst_7 {dimension_numbers = #tpu.dot_dimension_numbers<[1], [0], [0], [1], [0, 0, 1, 1], [], []>} : vector<32x160xbf16>, vector<160x128xbf16>, vector<32x128xf32> -> vector<32x128xf32>
    %6 = arith.addf %2, %5 : vector<32x128xf32>
    %c0_8 = arith.constant 0 : index
    %c0_9 = arith.constant 0 : index
    %7 = vector.load %arg5[%c0_8, %c0_9] : memref<32x1xf32, #tpu.memory_space<vmem>>, vector<32x1xf32>
    %8 = vector.broadcast %7 : vector<32x1xf32> to vector<32x128xf32>
    %9 = arith.addf %6, %8 : vector<32x128xf32>
    %cst_10 = arith.constant 0.000000e+00 : f32
    %10 = vector.broadcast %cst_10 : f32 to vector<32x128xf32>
    %11 = arith.maximumf %9, %10 : vector<32x128xf32>
    %12 = arith.truncf %11 : vector<32x128xf32> to vector<32x128xbf16>
    %c0_11 = arith.constant 0 : index
    %c0_12 = arith.constant 0 : index
    %13 = vector.load %arg6[%c0_11, %c0_12] : memref<32x128xbf16, #tpu.memory_space<vmem>>, vector<32x128xbf16>
    tpu.vector_store %arg6[%c0_11, %c0_12], %12 {strides = array<i32>} : memref<32x128xbf16, #tpu.memory_space<vmem>>, vector<32x128xbf16>,
    return
  }
  func.func @transform_0(%arg0: i32) -> (i32, i32) {
    %c0_i32 = arith.constant 0 : i32
    %c0_i32_0 = arith.constant 0 : i32
    return %c0_i32, %arg0 : i32, i32
  }
  func.func @transform_1(%arg0: i32) -> (i32, i32) {
    %c0_i32 = arith.constant 0 : i32
    %c0_i32_0 = arith.constant 0 : i32
    return %c0_i32, %arg0 : i32, i32
  }
  func.func @transform_2(%arg0: i32) -> (i32, i32) {
    %c0_i32 = arith.constant 0 : i32
    %c0_i32_0 = arith.constant 0 : i32
    %c0_i32_1 = arith.constant 0 : i32
    return %c0_i32, %c0_i32_0 : i32, i32
  }
  func.func @transform_3(%arg0: i32) -> (i32, i32) {
    %c0_i32 = arith.constant 0 : i32
    %c0_i32_0 = arith.constant 0 : i32
    %c0_i32_1 = arith.constant 0 : i32
    return %c0_i32, %c0_i32_0 : i32, i32
  }
  func.func @transform_4(%arg0: i32) -> (i32, i32) {
    %c0_i32 = arith.constant 0 : i32
    %c0_i32_0 = arith.constant 0 : i32
    %c0_i32_1 = arith.constant 0 : i32
    return %c0_i32, %c0_i32_0 : i32, i32
  }
  func.func @transform_5(%arg0: i32) -> (i32, i32) {
    %c0_i32 = arith.constant 0 : i32
    %c0_i32_0 = arith.constant 0 : i32
    return %c0_i32, %arg0 : i32, i32
  }
}

module attributes {stable_mosaic.version = 11 : i64} {
  func.func @_conv1x1_kernel(%arg0: i32, %arg1: memref<32x128xbf16, #tpu.memory_space<vmem>>, %arg2: memref<80x128xbf16, #tpu.memory_space<vmem>>, %arg3: memref<32x32xbf16, #tpu.memory_space<vmem>>, %arg4: memref<32x80xbf16, #tpu.memory_space<vmem>>, %arg5: memref<32x1xf32, #tpu.memory_space<vmem>>, %arg6: memref<32x128xbf16, #tpu.memory_space<vmem>>) attributes {dimension_semantics = [#tpu.dimension_semantics<parallel>], iteration_bounds = array<i64: 1>, scalar_prefetch = 0 : i64, scratch_operands = 0 : i64, tpu.core_type = #tpu.core_type<tc>, window_params = [{transform_indices = @transform_0, window_bounds = array<i64: 32, 128>}, {transform_indices = @transform_1, window_bounds = array<i64: 80, 128>}, {pipeline_mode = #tpu.pipeline_mode<synchronous>, transform_indices = @transform_2, window_bounds = array<i64: 32, 32>}, {pipeline_mode = #tpu.pipeline_mode<synchronous>, transform_indices = @transform_3, window_bounds = array<i64: 32, 80>}, {pipeline_mode = #tpu.pipeline_mode<synchronous>, transform_indices = @transform_4, window_bounds = array<i64: 32, 1>}, {transform_indices = @transform_5, window_bounds = array<i64: 32, 128>}]} {
    %c0 = arith.constant 0 : index
    %c0_0 = arith.constant 0 : index
    %0 = vector.load %arg3[%c0, %c0_0] : memref<32x32xbf16, #tpu.memory_space<vmem>>, vector<32x32xbf16>
    %c0_1 = arith.constant 0 : index
    %c0_2 = arith.constant 0 : index
    %1 = vector.load %arg1[%c0_1, %c0_2] : memref<32x128xbf16, #tpu.memory_space<vmem>>, vector<32x128xbf16>
    %cst = arith.constant dense<0.000000e+00> : vector<32x128xf32>
    %2 = tpu.matmul %0, %1, %cst {dimension_numbers = #tpu.dot_dimension_numbers<[1], [0], [0], [1], [0, 0, 1, 1], [], []>} : vector<32x32xbf16>, vector<32x128xbf16>, vector<32x128xf32> -> vector<32x128xf32>
    %c0_3 = arith.constant 0 : index
    %c0_4 = arith.constant 0 : index
    %3 = vector.load %arg4[%c0_3, %c0_4] : memref<32x80xbf16, #tpu.memory_space<vmem>>, vector<32x80xbf16>
    %c0_5 = arith.constant 0 : index
    %c0_6 = arith.constant 0 : index
    %4 = vector.load %arg2[%c0_5, %c0_6] : memref<80x128xbf16, #tpu.memory_space<vmem>>, vector<80x128xbf16>
    %cst_7 = arith.constant dense<0.000000e+00> : vector<32x128xf32>
    %5 = tpu.matmul %3, %4, %cst_7 {dimension_numbers = #tpu.dot_dimension_numbers<[1], [0], [0], [1], [0, 0, 1, 1], [], []>} : vector<32x80xbf16>, vector<80x128xbf16>, vector<32x128xf32> -> vector<32x128xf32>
    %6 = arith.addf %2, %5 : vector<32x128xf32>
    %c0_8 = arith.constant 0 : index
    %c0_9 = arith.constant 0 : index
    %7 = vector.load %arg5[%c0_8, %c0_9] : memref<32x1xf32, #tpu.memory_space<vmem>>, vector<32x1xf32>
    %8 = vector.broadcast %7 : vector<32x1xf32> to vector<32x128xf32>
    %9 = arith.addf %6, %8 : vector<32x128xf32>
    %cst_10 = arith.constant 0.000000e+00 : f32
    %10 = vector.broadcast %cst_10 : f32 to vector<32x128xf32>
    %11 = arith.maximumf %9, %10 : vector<32x128xf32>
    %12 = arith.truncf %11 : vector<32x128xf32> to vector<32x128xbf16>
    %c0_11 = arith.constant 0 : index
    %c0_12 = arith.constant 0 : index
    %13 = vector.load %arg6[%c0_11, %c0_12] : memref<32x128xbf16, #tpu.memory_space<vmem>>, vector<32x128xbf16>
    tpu.vector_store %arg6[%c0_11, %c0_12], %12 {strides = array<i32>} : memref<32x128xbf16, #tpu.memory_space<vmem>>, vector<32x128xbf16>,
    return
  }
  func.func @transform_0(%arg0: i32) -> (i32, i32) {
    %c0_i32 = arith.constant 0 : i32
    %c0_i32_0 = arith.constant 0 : i32
    return %c0_i32, %arg0 : i32, i32
  }
  func.func @transform_1(%arg0: i32) -> (i32, i32) {
    %c0_i32 = arith.constant 0 : i32
    %c0_i32_0 = arith.constant 0 : i32
    return %c0_i32, %arg0 : i32, i32
  }
  func.func @transform_2(%arg0: i32) -> (i32, i32) {
    %c0_i32 = arith.constant 0 : i32
    %c0_i32_0 = arith.constant 0 : i32
    %c0_i32_1 = arith.constant 0 : i32
    return %c0_i32, %c0_i32_0 : i32, i32
  }
  func.func @transform_3(%arg0: i32) -> (i32, i32) {
    %c0_i32 = arith.constant 0 : i32
    %c0_i32_0 = arith.constant 0 : i32
    %c0_i32_1 = arith.constant 0 : i32
    return %c0_i32, %c0_i32_0 : i32, i32
  }
  func.func @transform_4(%arg0: i32) -> (i32, i32) {
    %c0_i32 = arith.constant 0 : i32
    %c0_i32_0 = arith.constant 0 : i32
    %c0_i32_1 = arith.constant 0 : i32
    return %c0_i32, %c0_i32_0 : i32, i32
  }
  func.func @transform_5(%arg0: i32) -> (i32, i32) {
    %c0_i32 = arith.constant 0 : i32
    %c0_i32_0 = arith.constant 0 : i32
    return %c0_i32, %arg0 : i32, i32
  }
}

module attributes {stable_mosaic.version = 11 : i64} {
  func.func @_cond_cat_kernel(%arg0: i32, %arg1: memref<256x128xbf16, #tpu.memory_space<vmem>>, %arg2: memref<256x128xbf16, #tpu.memory_space<vmem>>, %arg3: memref<80x256xbf16, #tpu.memory_space<vmem>>, %arg4: memref<80x256xbf16, #tpu.memory_space<vmem>>, %arg5: memref<80x80xbf16, #tpu.memory_space<vmem>>, %arg6: memref<80x80xbf16, #tpu.memory_space<vmem>>, %arg7: memref<80x1xf32, #tpu.memory_space<vmem>>, %arg8: memref<80x1xf32, #tpu.memory_space<vmem>>, %arg9: memref<80x1xf32, #tpu.memory_space<vmem>>, %arg10: memref<80x128xbf16, #tpu.memory_space<vmem>>) attributes {dimension_semantics = [#tpu.dimension_semantics<parallel>], iteration_bounds = array<i64: 1>, scalar_prefetch = 0 : i64, scratch_operands = 0 : i64, tpu.core_type = #tpu.core_type<tc>, window_params = [{transform_indices = @transform_0, window_bounds = array<i64: 256, 128>}, {transform_indices = @transform_1, window_bounds = array<i64: 256, 128>}, {pipeline_mode = #tpu.pipeline_mode<synchronous>, transform_indices = @transform_2, window_bounds = array<i64: 80, 256>}, {pipeline_mode = #tpu.pipeline_mode<synchronous>, transform_indices = @transform_3, window_bounds = array<i64: 80, 256>}, {pipeline_mode = #tpu.pipeline_mode<synchronous>, transform_indices = @transform_4, window_bounds = array<i64: 80, 80>}, {pipeline_mode = #tpu.pipeline_mode<synchronous>, transform_indices = @transform_5, window_bounds = array<i64: 80, 80>}, {pipeline_mode = #tpu.pipeline_mode<synchronous>, transform_indices = @transform_6, window_bounds = array<i64: 80, 1>}, {pipeline_mode = #tpu.pipeline_mode<synchronous>, transform_indices = @transform_7, window_bounds = array<i64: 80, 1>}, {pipeline_mode = #tpu.pipeline_mode<synchronous>, transform_indices = @transform_8, window_bounds = array<i64: 80, 1>}, {transform_indices = @transform_9, window_bounds = array<i64: 80, 128>}]} {
    %c0 = arith.constant 0 : index
    %c0_0 = arith.constant 0 : index
    %0 = vector.load %arg3[%c0, %c0_0] : memref<80x256xbf16, #tpu.memory_space<vmem>>, vector<80x256xbf16>
    %c0_1 = arith.constant 0 : index
    %c0_2 = arith.constant 0 : index
    %1 = vector.load %arg1[%c0_1, %c0_2] : memref<256x128xbf16, #tpu.memory_space<vmem>>, vector<256x128xbf16>
    %cst = arith.constant dense<0.000000e+00> : vector<80x128xf32>
    %2 = tpu.matmul %0, %1, %cst {dimension_numbers = #tpu.dot_dimension_numbers<[1], [0], [0], [1], [0, 0, 1, 1], [], []>} : vector<80x256xbf16>, vector<256x128xbf16>, vector<80x128xf32> -> vector<80x128xf32>
    %c0_3 = arith.constant 0 : index
    %c0_4 = arith.constant 0 : index
    %3 = vector.load %arg7[%c0_3, %c0_4] : memref<80x1xf32, #tpu.memory_space<vmem>>, vector<80x1xf32>
    %4 = vector.broadcast %3 : vector<80x1xf32> to vector<80x128xf32>
    %5 = arith.addf %2, %4 : vector<80x128xf32>
    %cst_5 = arith.constant 0.000000e+00 : f32
    %6 = vector.broadcast %cst_5 : f32 to vector<80x128xf32>
    %7 = arith.maximumf %5, %6 : vector<80x128xf32>
    %8 = arith.truncf %7 : vector<80x128xf32> to vector<80x128xbf16>
    %c0_6 = arith.constant 0 : index
    %c0_7 = arith.constant 0 : index
    %9 = vector.load %arg4[%c0_6, %c0_7] : memref<80x256xbf16, #tpu.memory_space<vmem>>, vector<80x256xbf16>
    %c0_8 = arith.constant 0 : index
    %c0_9 = arith.constant 0 : index
    %10 = vector.load %arg2[%c0_8, %c0_9] : memref<256x128xbf16, #tpu.memory_space<vmem>>, vector<256x128xbf16>
    %cst_10 = arith.constant dense<0.000000e+00> : vector<80x128xf32>
    %11 = tpu.matmul %9, %10, %cst_10 {dimension_numbers = #tpu.dot_dimension_numbers<[1], [0], [0], [1], [0, 0, 1, 1], [], []>} : vector<80x256xbf16>, vector<256x128xbf16>, vector<80x128xf32> -> vector<80x128xf32>
    %c0_11 = arith.constant 0 : index
    %c0_12 = arith.constant 0 : index
    %12 = vector.load %arg8[%c0_11, %c0_12] : memref<80x1xf32, #tpu.memory_space<vmem>>, vector<80x1xf32>
    %13 = vector.broadcast %12 : vector<80x1xf32> to vector<80x128xf32>
    %14 = arith.addf %11, %13 : vector<80x128xf32>
    %cst_13 = arith.constant 0.000000e+00 : f32
    %15 = vector.broadcast %cst_13 : f32 to vector<80x128xf32>
    %16 = arith.maximumf %14, %15 : vector<80x128xf32>
    %17 = arith.truncf %16 : vector<80x128xf32> to vector<80x128xbf16>
    %c0_14 = arith.constant 0 : index
    %c0_15 = arith.constant 0 : index
    %18 = vector.load %arg5[%c0_14, %c0_15] : memref<80x80xbf16, #tpu.memory_space<vmem>>, vector<80x80xbf16>
    %cst_16 = arith.constant dense<0.000000e+00> : vector<80x128xf32>
    %19 = tpu.matmul %18, %8, %cst_16 {dimension_numbers = #tpu.dot_dimension_numbers<[1], [0], [0], [1], [0, 0, 1, 1], [], []>} : vector<80x80xbf16>, vector<80x128xbf16>, vector<80x128xf32> -> vector<80x128xf32>
    %c0_17 = arith.constant 0 : index
    %c0_18 = arith.constant 0 : index
    %20 = vector.load %arg6[%c0_17, %c0_18] : memref<80x80xbf16, #tpu.memory_space<vmem>>, vector<80x80xbf16>
    %cst_19 = arith.constant dense<0.000000e+00> : vector<80x128xf32>
    %21 = tpu.matmul %20, %17, %cst_19 {dimension_numbers = #tpu.dot_dimension_numbers<[1], [0], [0], [1], [0, 0, 1, 1], [], []>} : vector<80x80xbf16>, vector<80x128xbf16>, vector<80x128xf32> -> vector<80x128xf32>
    %22 = arith.addf %19, %21 : vector<80x128xf32>
    %c0_20 = arith.constant 0 : index
    %c0_21 = arith.constant 0 : index
    %23 = vector.load %arg9[%c0_20, %c0_21] : memref<80x1xf32, #tpu.memory_space<vmem>>, vector<80x1xf32>
    %24 = vector.broadcast %23 : vector<80x1xf32> to vector<80x128xf32>
    %25 = arith.addf %22, %24 : vector<80x128xf32>
    %26 = arith.truncf %25 : vector<80x128xf32> to vector<80x128xbf16>
    %c0_22 = arith.constant 0 : index
    %c0_23 = arith.constant 0 : index
    %27 = vector.load %arg10[%c0_22, %c0_23] : memref<80x128xbf16, #tpu.memory_space<vmem>>, vector<80x128xbf16>
    tpu.vector_store %arg10[%c0_22, %c0_23], %26 {strides = array<i32>} : memref<80x128xbf16, #tpu.memory_space<vmem>>, vector<80x128xbf16>,
    return
  }
  func.func @transform_0(%arg0: i32) -> (i32, i32) {
    %c0_i32 = arith.constant 0 : i32
    %c0_i32_0 = arith.constant 0 : i32
    return %c0_i32, %arg0 : i32, i32
  }
  func.func @transform_1(%arg0: i32) -> (i32, i32) {
    %c0_i32 = arith.constant 0 : i32
    %c0_i32_0 = arith.constant 0 : i32
    return %c0_i32, %arg0 : i32, i32
  }
  func.func @transform_2(%arg0: i32) -> (i32, i32) {
    %c0_i32 = arith.constant 0 : i32
    %c0_i32_0 = arith.constant 0 : i32
    %c0_i32_1 = arith.constant 0 : i32
    return %c0_i32, %c0_i32_0 : i32, i32
  }
  func.func @transform_3(%arg0: i32) -> (i32, i32) {
    %c0_i32 = arith.constant 0 : i32
    %c0_i32_0 = arith.constant 0 : i32
    %c0_i32_1 = arith.constant 0 : i32
    return %c0_i32, %c0_i32_0 : i32, i32
  }
  func.func @transform_4(%arg0: i32) -> (i32, i32) {
    %c0_i32 = arith.constant 0 : i32
    %c0_i32_0 = arith.constant 0 : i32
    %c0_i32_1 = arith.constant 0 : i32
    return %c0_i32, %c0_i32_0 : i32, i32
  }
  func.func @transform_5(%arg0: i32) -> (i32, i32) {
    %c0_i32 = arith.constant 0 : i32
    %c0_i32_0 = arith.constant 0 : i32
    %c0_i32_1 = arith.constant 0 : i32
    return %c0_i32, %c0_i32_0 : i32, i32
  }
  func.func @transform_6(%arg0: i32) -> (i32, i32) {
    %c0_i32 = arith.constant 0 : i32
    %c0_i32_0 = arith.constant 0 : i32
    %c0_i32_1 = arith.constant 0 : i32
    return %c0_i32, %c0_i32_0 : i32, i32
  }
  func.func @transform_7(%arg0: i32) -> (i32, i32) {
    %c0_i32 = arith.constant 0 : i32
    %c0_i32_0 = arith.constant 0 : i32
    %c0_i32_1 = arith.constant 0 : i32
    return %c0_i32, %c0_i32_0 : i32, i32
  }
  func.func @transform_8(%arg0: i32) -> (i32, i32) {
    %c0_i32 = arith.constant 0 : i32
    %c0_i32_0 = arith.constant 0 : i32
    %c0_i32_1 = arith.constant 0 : i32
    return %c0_i32, %c0_i32_0 : i32, i32
  }
  func.func @transform_9(%arg0: i32) -> (i32, i32) {
    %c0_i32 = arith.constant 0 : i32
    %c0_i32_0 = arith.constant 0 : i32
    return %c0_i32, %arg0 : i32, i32
  }
}

module attributes {stable_mosaic.version = 11 : i64} {
  func.func @_cond_cat_kernel(%arg0: i32, %arg1: memref<64x128xbf16, #tpu.memory_space<vmem>>, %arg2: memref<64x128xbf16, #tpu.memory_space<vmem>>, %arg3: memref<40x64xbf16, #tpu.memory_space<vmem>>, %arg4: memref<40x64xbf16, #tpu.memory_space<vmem>>, %arg5: memref<40x40xbf16, #tpu.memory_space<vmem>>, %arg6: memref<40x40xbf16, #tpu.memory_space<vmem>>, %arg7: memref<40x1xf32, #tpu.memory_space<vmem>>, %arg8: memref<40x1xf32, #tpu.memory_space<vmem>>, %arg9: memref<40x1xf32, #tpu.memory_space<vmem>>, %arg10: memref<40x128xbf16, #tpu.memory_space<vmem>>) attributes {dimension_semantics = [#tpu.dimension_semantics<parallel>], iteration_bounds = array<i64: 1>, scalar_prefetch = 0 : i64, scratch_operands = 0 : i64, tpu.core_type = #tpu.core_type<tc>, window_params = [{transform_indices = @transform_0, window_bounds = array<i64: 64, 128>}, {transform_indices = @transform_1, window_bounds = array<i64: 64, 128>}, {pipeline_mode = #tpu.pipeline_mode<synchronous>, transform_indices = @transform_2, window_bounds = array<i64: 40, 64>}, {pipeline_mode = #tpu.pipeline_mode<synchronous>, transform_indices = @transform_3, window_bounds = array<i64: 40, 64>}, {pipeline_mode = #tpu.pipeline_mode<synchronous>, transform_indices = @transform_4, window_bounds = array<i64: 40, 40>}, {pipeline_mode = #tpu.pipeline_mode<synchronous>, transform_indices = @transform_5, window_bounds = array<i64: 40, 40>}, {pipeline_mode = #tpu.pipeline_mode<synchronous>, transform_indices = @transform_6, window_bounds = array<i64: 40, 1>}, {pipeline_mode = #tpu.pipeline_mode<synchronous>, transform_indices = @transform_7, window_bounds = array<i64: 40, 1>}, {pipeline_mode = #tpu.pipeline_mode<synchronous>, transform_indices = @transform_8, window_bounds = array<i64: 40, 1>}, {transform_indices = @transform_9, window_bounds = array<i64: 40, 128>}]} {
    %c0 = arith.constant 0 : index
    %c0_0 = arith.constant 0 : index
    %0 = vector.load %arg3[%c0, %c0_0] : memref<40x64xbf16, #tpu.memory_space<vmem>>, vector<40x64xbf16>
    %c0_1 = arith.constant 0 : index
    %c0_2 = arith.constant 0 : index
    %1 = vector.load %arg1[%c0_1, %c0_2] : memref<64x128xbf16, #tpu.memory_space<vmem>>, vector<64x128xbf16>
    %cst = arith.constant dense<0.000000e+00> : vector<40x128xf32>
    %2 = tpu.matmul %0, %1, %cst {dimension_numbers = #tpu.dot_dimension_numbers<[1], [0], [0], [1], [0, 0, 1, 1], [], []>} : vector<40x64xbf16>, vector<64x128xbf16>, vector<40x128xf32> -> vector<40x128xf32>
    %c0_3 = arith.constant 0 : index
    %c0_4 = arith.constant 0 : index
    %3 = vector.load %arg7[%c0_3, %c0_4] : memref<40x1xf32, #tpu.memory_space<vmem>>, vector<40x1xf32>
    %4 = vector.broadcast %3 : vector<40x1xf32> to vector<40x128xf32>
    %5 = arith.addf %2, %4 : vector<40x128xf32>
    %cst_5 = arith.constant 0.000000e+00 : f32
    %6 = vector.broadcast %cst_5 : f32 to vector<40x128xf32>
    %7 = arith.maximumf %5, %6 : vector<40x128xf32>
    %8 = arith.truncf %7 : vector<40x128xf32> to vector<40x128xbf16>
    %c0_6 = arith.constant 0 : index
    %c0_7 = arith.constant 0 : index
    %9 = vector.load %arg4[%c0_6, %c0_7] : memref<40x64xbf16, #tpu.memory_space<vmem>>, vector<40x64xbf16>
    %c0_8 = arith.constant 0 : index
    %c0_9 = arith.constant 0 : index
    %10 = vector.load %arg2[%c0_8, %c0_9] : memref<64x128xbf16, #tpu.memory_space<vmem>>, vector<64x128xbf16>
    %cst_10 = arith.constant dense<0.000000e+00> : vector<40x128xf32>
    %11 = tpu.matmul %9, %10, %cst_10 {dimension_numbers = #tpu.dot_dimension_numbers<[1], [0], [0], [1], [0, 0, 1, 1], [], []>} : vector<40x64xbf16>, vector<64x128xbf16>, vector<40x128xf32> -> vector<40x128xf32>
    %c0_11 = arith.constant 0 : index
    %c0_12 = arith.constant 0 : index
    %12 = vector.load %arg8[%c0_11, %c0_12] : memref<40x1xf32, #tpu.memory_space<vmem>>, vector<40x1xf32>
    %13 = vector.broadcast %12 : vector<40x1xf32> to vector<40x128xf32>
    %14 = arith.addf %11, %13 : vector<40x128xf32>
    %cst_13 = arith.constant 0.000000e+00 : f32
    %15 = vector.broadcast %cst_13 : f32 to vector<40x128xf32>
    %16 = arith.maximumf %14, %15 : vector<40x128xf32>
    %17 = arith.truncf %16 : vector<40x128xf32> to vector<40x128xbf16>
    %c0_14 = arith.constant 0 : index
    %c0_15 = arith.constant 0 : index
    %18 = vector.load %arg5[%c0_14, %c0_15] : memref<40x40xbf16, #tpu.memory_space<vmem>>, vector<40x40xbf16>
    %cst_16 = arith.constant dense<0.000000e+00> : vector<40x128xf32>
    %19 = tpu.matmul %18, %8, %cst_16 {dimension_numbers = #tpu.dot_dimension_numbers<[1], [0], [0], [1], [0, 0, 1, 1], [], []>} : vector<40x40xbf16>, vector<40x128xbf16>, vector<40x128xf32> -> vector<40x128xf32>
    %c0_17 = arith.constant 0 : index
    %c0_18 = arith.constant 0 : index
    %20 = vector.load %arg6[%c0_17, %c0_18] : memref<40x40xbf16, #tpu.memory_space<vmem>>, vector<40x40xbf16>
    %cst_19 = arith.constant dense<0.000000e+00> : vector<40x128xf32>
    %21 = tpu.matmul %20, %17, %cst_19 {dimension_numbers = #tpu.dot_dimension_numbers<[1], [0], [0], [1], [0, 0, 1, 1], [], []>} : vector<40x40xbf16>, vector<40x128xbf16>, vector<40x128xf32> -> vector<40x128xf32>
    %22 = arith.addf %19, %21 : vector<40x128xf32>
    %c0_20 = arith.constant 0 : index
    %c0_21 = arith.constant 0 : index
    %23 = vector.load %arg9[%c0_20, %c0_21] : memref<40x1xf32, #tpu.memory_space<vmem>>, vector<40x1xf32>
    %24 = vector.broadcast %23 : vector<40x1xf32> to vector<40x128xf32>
    %25 = arith.addf %22, %24 : vector<40x128xf32>
    %26 = arith.truncf %25 : vector<40x128xf32> to vector<40x128xbf16>
    %c0_22 = arith.constant 0 : index
    %c0_23 = arith.constant 0 : index
    %27 = vector.load %arg10[%c0_22, %c0_23] : memref<40x128xbf16, #tpu.memory_space<vmem>>, vector<40x128xbf16>
    tpu.vector_store %arg10[%c0_22, %c0_23], %26 {strides = array<i32>} : memref<40x128xbf16, #tpu.memory_space<vmem>>, vector<40x128xbf16>,
    return
  }
  func.func @transform_0(%arg0: i32) -> (i32, i32) {
    %c0_i32 = arith.constant 0 : i32
    %c0_i32_0 = arith.constant 0 : i32
    return %c0_i32, %arg0 : i32, i32
  }
  func.func @transform_1(%arg0: i32) -> (i32, i32) {
    %c0_i32 = arith.constant 0 : i32
    %c0_i32_0 = arith.constant 0 : i32
    return %c0_i32, %arg0 : i32, i32
  }
  func.func @transform_2(%arg0: i32) -> (i32, i32) {
    %c0_i32 = arith.constant 0 : i32
    %c0_i32_0 = arith.constant 0 : i32
    %c0_i32_1 = arith.constant 0 : i32
    return %c0_i32, %c0_i32_0 : i32, i32
  }
  func.func @transform_3(%arg0: i32) -> (i32, i32) {
    %c0_i32 = arith.constant 0 : i32
    %c0_i32_0 = arith.constant 0 : i32
    %c0_i32_1 = arith.constant 0 : i32
    return %c0_i32, %c0_i32_0 : i32, i32
  }
  func.func @transform_4(%arg0: i32) -> (i32, i32) {
    %c0_i32 = arith.constant 0 : i32
    %c0_i32_0 = arith.constant 0 : i32
    %c0_i32_1 = arith.constant 0 : i32
    return %c0_i32, %c0_i32_0 : i32, i32
  }
  func.func @transform_5(%arg0: i32) -> (i32, i32) {
    %c0_i32 = arith.constant 0 : i32
    %c0_i32_0 = arith.constant 0 : i32
    %c0_i32_1 = arith.constant 0 : i32
    return %c0_i32, %c0_i32_0 : i32, i32
  }
  func.func @transform_6(%arg0: i32) -> (i32, i32) {
    %c0_i32 = arith.constant 0 : i32
    %c0_i32_0 = arith.constant 0 : i32
    %c0_i32_1 = arith.constant 0 : i32
    return %c0_i32, %c0_i32_0 : i32, i32
  }
  func.func @transform_7(%arg0: i32) -> (i32, i32) {
    %c0_i32 = arith.constant 0 : i32
    %c0_i32_0 = arith.constant 0 : i32
    %c0_i32_1 = arith.constant 0 : i32
    return %c0_i32, %c0_i32_0 : i32, i32
  }
  func.func @transform_8(%arg0: i32) -> (i32, i32) {
    %c0_i32 = arith.constant 0 : i32
    %c0_i32_0 = arith.constant 0 : i32
    %c0_i32_1 = arith.constant 0 : i32
    return %c0_i32, %c0_i32_0 : i32, i32
  }
  func.func @transform_9(%arg0: i32) -> (i32, i32) {
    %c0_i32 = arith.constant 0 : i32
    %c0_i32_0 = arith.constant 0 : i32
    return %c0_i32, %arg0 : i32, i32
  }
}

module attributes {stable_mosaic.version = 11 : i64} {
  func.func @_conv1x1_kernel(%arg0: i32, %arg1: memref<32x128xbf16, #tpu.memory_space<vmem>>, %arg2: memref<40x128xbf16, #tpu.memory_space<vmem>>, %arg3: memref<16x32xbf16, #tpu.memory_space<vmem>>, %arg4: memref<16x40xbf16, #tpu.memory_space<vmem>>, %arg5: memref<16x1xf32, #tpu.memory_space<vmem>>, %arg6: memref<16x128xbf16, #tpu.memory_space<vmem>>) attributes {dimension_semantics = [#tpu.dimension_semantics<parallel>], iteration_bounds = array<i64: 1>, scalar_prefetch = 0 : i64, scratch_operands = 0 : i64, tpu.core_type = #tpu.core_type<tc>, window_params = [{transform_indices = @transform_0, window_bounds = array<i64: 32, 128>}, {transform_indices = @transform_1, window_bounds = array<i64: 40, 128>}, {pipeline_mode = #tpu.pipeline_mode<synchronous>, transform_indices = @transform_2, window_bounds = array<i64: 16, 32>}, {pipeline_mode = #tpu.pipeline_mode<synchronous>, transform_indices = @transform_3, window_bounds = array<i64: 16, 40>}, {pipeline_mode = #tpu.pipeline_mode<synchronous>, transform_indices = @transform_4, window_bounds = array<i64: 16, 1>}, {transform_indices = @transform_5, window_bounds = array<i64: 16, 128>}]} {
    %c0 = arith.constant 0 : index
    %c0_0 = arith.constant 0 : index
    %0 = vector.load %arg3[%c0, %c0_0] : memref<16x32xbf16, #tpu.memory_space<vmem>>, vector<16x32xbf16>
    %c0_1 = arith.constant 0 : index
    %c0_2 = arith.constant 0 : index
    %1 = vector.load %arg1[%c0_1, %c0_2] : memref<32x128xbf16, #tpu.memory_space<vmem>>, vector<32x128xbf16>
    %cst = arith.constant dense<0.000000e+00> : vector<16x128xf32>
    %2 = tpu.matmul %0, %1, %cst {dimension_numbers = #tpu.dot_dimension_numbers<[1], [0], [0], [1], [0, 0, 1, 1], [], []>} : vector<16x32xbf16>, vector<32x128xbf16>, vector<16x128xf32> -> vector<16x128xf32>
    %c0_3 = arith.constant 0 : index
    %c0_4 = arith.constant 0 : index
    %3 = vector.load %arg4[%c0_3, %c0_4] : memref<16x40xbf16, #tpu.memory_space<vmem>>, vector<16x40xbf16>
    %c0_5 = arith.constant 0 : index
    %c0_6 = arith.constant 0 : index
    %4 = vector.load %arg2[%c0_5, %c0_6] : memref<40x128xbf16, #tpu.memory_space<vmem>>, vector<40x128xbf16>
    %cst_7 = arith.constant dense<0.000000e+00> : vector<16x128xf32>
    %5 = tpu.matmul %3, %4, %cst_7 {dimension_numbers = #tpu.dot_dimension_numbers<[1], [0], [0], [1], [0, 0, 1, 1], [], []>} : vector<16x40xbf16>, vector<40x128xbf16>, vector<16x128xf32> -> vector<16x128xf32>
    %6 = arith.addf %2, %5 : vector<16x128xf32>
    %c0_8 = arith.constant 0 : index
    %c0_9 = arith.constant 0 : index
    %7 = vector.load %arg5[%c0_8, %c0_9] : memref<16x1xf32, #tpu.memory_space<vmem>>, vector<16x1xf32>
    %8 = vector.broadcast %7 : vector<16x1xf32> to vector<16x128xf32>
    %9 = arith.addf %6, %8 : vector<16x128xf32>
    %cst_10 = arith.constant 0.000000e+00 : f32
    %10 = vector.broadcast %cst_10 : f32 to vector<16x128xf32>
    %11 = arith.maximumf %9, %10 : vector<16x128xf32>
    %12 = arith.truncf %11 : vector<16x128xf32> to vector<16x128xbf16>
    %c0_11 = arith.constant 0 : index
    %c0_12 = arith.constant 0 : index
    %13 = vector.load %arg6[%c0_11, %c0_12] : memref<16x128xbf16, #tpu.memory_space<vmem>>, vector<16x128xbf16>
    tpu.vector_store %arg6[%c0_11, %c0_12], %12 {strides = array<i32>} : memref<16x128xbf16, #tpu.memory_space<vmem>>, vector<16x128xbf16>,
    return
  }
  func.func @transform_0(%arg0: i32) -> (i32, i32) {
    %c0_i32 = arith.constant 0 : i32
    %c0_i32_0 = arith.constant 0 : i32
    return %c0_i32, %arg0 : i32, i32
  }
  func.func @transform_1(%arg0: i32) -> (i32, i32) {
    %c0_i32 = arith.constant 0 : i32
    %c0_i32_0 = arith.constant 0 : i32
    return %c0_i32, %arg0 : i32, i32
  }
  func.func @transform_2(%arg0: i32) -> (i32, i32) {
    %c0_i32 = arith.constant 0 : i32
    %c0_i32_0 = arith.constant 0 : i32
    %c0_i32_1 = arith.constant 0 : i32
    return %c0_i32, %c0_i32_0 : i32, i32
  }
  func.func @transform_3(%arg0: i32) -> (i32, i32) {
    %c0_i32 = arith.constant 0 : i32
    %c0_i32_0 = arith.constant 0 : i32
    %c0_i32_1 = arith.constant 0 : i32
    return %c0_i32, %c0_i32_0 : i32, i32
  }
  func.func @transform_4(%arg0: i32) -> (i32, i32) {
    %c0_i32 = arith.constant 0 : i32
    %c0_i32_0 = arith.constant 0 : i32
    %c0_i32_1 = arith.constant 0 : i32
    return %c0_i32, %c0_i32_0 : i32, i32
  }
  func.func @transform_5(%arg0: i32) -> (i32, i32) {
    %c0_i32 = arith.constant 0 : i32
    %c0_i32_0 = arith.constant 0 : i32
    return %c0_i32, %arg0 : i32, i32
  }
}

module attributes {stable_mosaic.version = 11 : i64} {
  func.func @_cond_cat_kernel(%arg0: i32, %arg1: memref<16x256xbf16, #tpu.memory_space<vmem>>, %arg2: memref<16x256xbf16, #tpu.memory_space<vmem>>, %arg3: memref<20x16xbf16, #tpu.memory_space<vmem>>, %arg4: memref<20x16xbf16, #tpu.memory_space<vmem>>, %arg5: memref<20x20xbf16, #tpu.memory_space<vmem>>, %arg6: memref<20x20xbf16, #tpu.memory_space<vmem>>, %arg7: memref<20x1xf32, #tpu.memory_space<vmem>>, %arg8: memref<20x1xf32, #tpu.memory_space<vmem>>, %arg9: memref<20x1xf32, #tpu.memory_space<vmem>>, %arg10: memref<20x256xbf16, #tpu.memory_space<vmem>>) attributes {dimension_semantics = [#tpu.dimension_semantics<parallel>], iteration_bounds = array<i64: 2>, scalar_prefetch = 0 : i64, scratch_operands = 0 : i64, tpu.core_type = #tpu.core_type<tc>, window_params = [{transform_indices = @transform_0, window_bounds = array<i64: 16, 256>}, {transform_indices = @transform_1, window_bounds = array<i64: 16, 256>}, {pipeline_mode = #tpu.pipeline_mode<synchronous>, transform_indices = @transform_2, window_bounds = array<i64: 20, 16>}, {pipeline_mode = #tpu.pipeline_mode<synchronous>, transform_indices = @transform_3, window_bounds = array<i64: 20, 16>}, {pipeline_mode = #tpu.pipeline_mode<synchronous>, transform_indices = @transform_4, window_bounds = array<i64: 20, 20>}, {pipeline_mode = #tpu.pipeline_mode<synchronous>, transform_indices = @transform_5, window_bounds = array<i64: 20, 20>}, {pipeline_mode = #tpu.pipeline_mode<synchronous>, transform_indices = @transform_6, window_bounds = array<i64: 20, 1>}, {pipeline_mode = #tpu.pipeline_mode<synchronous>, transform_indices = @transform_7, window_bounds = array<i64: 20, 1>}, {pipeline_mode = #tpu.pipeline_mode<synchronous>, transform_indices = @transform_8, window_bounds = array<i64: 20, 1>}, {transform_indices = @transform_9, window_bounds = array<i64: 20, 256>}]} {
    %c0 = arith.constant 0 : index
    %c0_0 = arith.constant 0 : index
    %0 = vector.load %arg3[%c0, %c0_0] : memref<20x16xbf16, #tpu.memory_space<vmem>>, vector<20x16xbf16>
    %c0_1 = arith.constant 0 : index
    %c0_2 = arith.constant 0 : index
    %1 = vector.load %arg1[%c0_1, %c0_2] : memref<16x256xbf16, #tpu.memory_space<vmem>>, vector<16x256xbf16>
    %cst = arith.constant dense<0.000000e+00> : vector<20x256xf32>
    %2 = tpu.matmul %0, %1, %cst {dimension_numbers = #tpu.dot_dimension_numbers<[1], [0], [0], [1], [0, 0, 1, 1], [], []>} : vector<20x16xbf16>, vector<16x256xbf16>, vector<20x256xf32> -> vector<20x256xf32>
    %c0_3 = arith.constant 0 : index
    %c0_4 = arith.constant 0 : index
    %3 = vector.load %arg7[%c0_3, %c0_4] : memref<20x1xf32, #tpu.memory_space<vmem>>, vector<20x1xf32>
    %4 = vector.broadcast %3 : vector<20x1xf32> to vector<20x256xf32>
    %5 = arith.addf %2, %4 : vector<20x256xf32>
    %cst_5 = arith.constant 0.000000e+00 : f32
    %6 = vector.broadcast %cst_5 : f32 to vector<20x256xf32>
    %7 = arith.maximumf %5, %6 : vector<20x256xf32>
    %8 = arith.truncf %7 : vector<20x256xf32> to vector<20x256xbf16>
    %c0_6 = arith.constant 0 : index
    %c0_7 = arith.constant 0 : index
    %9 = vector.load %arg4[%c0_6, %c0_7] : memref<20x16xbf16, #tpu.memory_space<vmem>>, vector<20x16xbf16>
    %c0_8 = arith.constant 0 : index
    %c0_9 = arith.constant 0 : index
    %10 = vector.load %arg2[%c0_8, %c0_9] : memref<16x256xbf16, #tpu.memory_space<vmem>>, vector<16x256xbf16>
    %cst_10 = arith.constant dense<0.000000e+00> : vector<20x256xf32>
    %11 = tpu.matmul %9, %10, %cst_10 {dimension_numbers = #tpu.dot_dimension_numbers<[1], [0], [0], [1], [0, 0, 1, 1], [], []>} : vector<20x16xbf16>, vector<16x256xbf16>, vector<20x256xf32> -> vector<20x256xf32>
    %c0_11 = arith.constant 0 : index
    %c0_12 = arith.constant 0 : index
    %12 = vector.load %arg8[%c0_11, %c0_12] : memref<20x1xf32, #tpu.memory_space<vmem>>, vector<20x1xf32>
    %13 = vector.broadcast %12 : vector<20x1xf32> to vector<20x256xf32>
    %14 = arith.addf %11, %13 : vector<20x256xf32>
    %cst_13 = arith.constant 0.000000e+00 : f32
    %15 = vector.broadcast %cst_13 : f32 to vector<20x256xf32>
    %16 = arith.maximumf %14, %15 : vector<20x256xf32>
    %17 = arith.truncf %16 : vector<20x256xf32> to vector<20x256xbf16>
    %c0_14 = arith.constant 0 : index
    %c0_15 = arith.constant 0 : index
    %18 = vector.load %arg5[%c0_14, %c0_15] : memref<20x20xbf16, #tpu.memory_space<vmem>>, vector<20x20xbf16>
    %cst_16 = arith.constant dense<0.000000e+00> : vector<20x256xf32>
    %19 = tpu.matmul %18, %8, %cst_16 {dimension_numbers = #tpu.dot_dimension_numbers<[1], [0], [0], [1], [0, 0, 1, 1], [], []>} : vector<20x20xbf16>, vector<20x256xbf16>, vector<20x256xf32> -> vector<20x256xf32>
    %c0_17 = arith.constant 0 : index
    %c0_18 = arith.constant 0 : index
    %20 = vector.load %arg6[%c0_17, %c0_18] : memref<20x20xbf16, #tpu.memory_space<vmem>>, vector<20x20xbf16>
    %cst_19 = arith.constant dense<0.000000e+00> : vector<20x256xf32>
    %21 = tpu.matmul %20, %17, %cst_19 {dimension_numbers = #tpu.dot_dimension_numbers<[1], [0], [0], [1], [0, 0, 1, 1], [], []>} : vector<20x20xbf16>, vector<20x256xbf16>, vector<20x256xf32> -> vector<20x256xf32>
    %22 = arith.addf %19, %21 : vector<20x256xf32>
    %c0_20 = arith.constant 0 : index
    %c0_21 = arith.constant 0 : index
    %23 = vector.load %arg9[%c0_20, %c0_21] : memref<20x1xf32, #tpu.memory_space<vmem>>, vector<20x1xf32>
    %24 = vector.broadcast %23 : vector<20x1xf32> to vector<20x256xf32>
    %25 = arith.addf %22, %24 : vector<20x256xf32>
    %26 = arith.truncf %25 : vector<20x256xf32> to vector<20x256xbf16>
    %c0_22 = arith.constant 0 : index
    %c0_23 = arith.constant 0 : index
    %27 = vector.load %arg10[%c0_22, %c0_23] : memref<20x256xbf16, #tpu.memory_space<vmem>>, vector<20x256xbf16>
    tpu.vector_store %arg10[%c0_22, %c0_23], %26 {strides = array<i32>} : memref<20x256xbf16, #tpu.memory_space<vmem>>, vector<20x256xbf16>,
    return
  }
  func.func @transform_0(%arg0: i32) -> (i32, i32) {
    %c0_i32 = arith.constant 0 : i32
    %c0_i32_0 = arith.constant 0 : i32
    return %c0_i32, %arg0 : i32, i32
  }
  func.func @transform_1(%arg0: i32) -> (i32, i32) {
    %c0_i32 = arith.constant 0 : i32
    %c0_i32_0 = arith.constant 0 : i32
    return %c0_i32, %arg0 : i32, i32
  }
  func.func @transform_2(%arg0: i32) -> (i32, i32) {
    %c0_i32 = arith.constant 0 : i32
    %c0_i32_0 = arith.constant 0 : i32
    %c0_i32_1 = arith.constant 0 : i32
    return %c0_i32, %c0_i32_0 : i32, i32
  }
  func.func @transform_3(%arg0: i32) -> (i32, i32) {
    %c0_i32 = arith.constant 0 : i32
    %c0_i32_0 = arith.constant 0 : i32
    %c0_i32_1 = arith.constant 0 : i32
    return %c0_i32, %c0_i32_0 : i32, i32
  }
  func.func @transform_4(%arg0: i32) -> (i32, i32) {
    %c0_i32 = arith.constant 0 : i32
    %c0_i32_0 = arith.constant 0 : i32
    %c0_i32_1 = arith.constant 0 : i32
    return %c0_i32, %c0_i32_0 : i32, i32
  }
  func.func @transform_5(%arg0: i32) -> (i32, i32) {
    %c0_i32 = arith.constant 0 : i32
    %c0_i32_0 = arith.constant 0 : i32
    %c0_i32_1 = arith.constant 0 : i32
    return %c0_i32, %c0_i32_0 : i32, i32
  }
  func.func @transform_6(%arg0: i32) -> (i32, i32) {
    %c0_i32 = arith.constant 0 : i32
    %c0_i32_0 = arith.constant 0 : i32
    %c0_i32_1 = arith.constant 0 : i32
    return %c0_i32, %c0_i32_0 : i32, i32
  }
  func.func @transform_7(%arg0: i32) -> (i32, i32) {
    %c0_i32 = arith.constant 0 : i32
    %c0_i32_0 = arith.constant 0 : i32
    %c0_i32_1 = arith.constant 0 : i32
    return %c0_i32, %c0_i32_0 : i32, i32
  }
  func.func @transform_8(%arg0: i32) -> (i32, i32) {
    %c0_i32 = arith.constant 0 : i32
    %c0_i32_0 = arith.constant 0 : i32
    %c0_i32_1 = arith.constant 0 : i32
    return %c0_i32, %c0_i32_0 : i32, i32
  }
  func.func @transform_9(%arg0: i32) -> (i32, i32) {
    %c0_i32 = arith.constant 0 : i32
    %c0_i32_0 = arith.constant 0 : i32
    return %c0_i32, %arg0 : i32, i32
  }
}

module attributes {stable_mosaic.version = 11 : i64} {
  func.func @_conv1x1_kernel(%arg0: i32, %arg1: memref<16x256xbf16, #tpu.memory_space<vmem>>, %arg2: memref<20x256xbf16, #tpu.memory_space<vmem>>, %arg3: memref<16x16xbf16, #tpu.memory_space<vmem>>, %arg4: memref<16x20xbf16, #tpu.memory_space<vmem>>, %arg5: memref<16x1xf32, #tpu.memory_space<vmem>>, %arg6: memref<16x256xbf16, #tpu.memory_space<vmem>>) attributes {dimension_semantics = [#tpu.dimension_semantics<parallel>], iteration_bounds = array<i64: 2>, scalar_prefetch = 0 : i64, scratch_operands = 0 : i64, tpu.core_type = #tpu.core_type<tc>, window_params = [{transform_indices = @transform_0, window_bounds = array<i64: 16, 256>}, {transform_indices = @transform_1, window_bounds = array<i64: 20, 256>}, {pipeline_mode = #tpu.pipeline_mode<synchronous>, transform_indices = @transform_2, window_bounds = array<i64: 16, 16>}, {pipeline_mode = #tpu.pipeline_mode<synchronous>, transform_indices = @transform_3, window_bounds = array<i64: 16, 20>}, {pipeline_mode = #tpu.pipeline_mode<synchronous>, transform_indices = @transform_4, window_bounds = array<i64: 16, 1>}, {transform_indices = @transform_5, window_bounds = array<i64: 16, 256>}]} {
    %c0 = arith.constant 0 : index
    %c0_0 = arith.constant 0 : index
    %0 = vector.load %arg3[%c0, %c0_0] : memref<16x16xbf16, #tpu.memory_space<vmem>>, vector<16x16xbf16>
    %c0_1 = arith.constant 0 : index
    %c0_2 = arith.constant 0 : index
    %1 = vector.load %arg1[%c0_1, %c0_2] : memref<16x256xbf16, #tpu.memory_space<vmem>>, vector<16x256xbf16>
    %cst = arith.constant dense<0.000000e+00> : vector<16x256xf32>
    %2 = tpu.matmul %0, %1, %cst {dimension_numbers = #tpu.dot_dimension_numbers<[1], [0], [0], [1], [0, 0, 1, 1], [], []>} : vector<16x16xbf16>, vector<16x256xbf16>, vector<16x256xf32> -> vector<16x256xf32>
    %c0_3 = arith.constant 0 : index
    %c0_4 = arith.constant 0 : index
    %3 = vector.load %arg4[%c0_3, %c0_4] : memref<16x20xbf16, #tpu.memory_space<vmem>>, vector<16x20xbf16>
    %c0_5 = arith.constant 0 : index
    %c0_6 = arith.constant 0 : index
    %4 = vector.load %arg2[%c0_5, %c0_6] : memref<20x256xbf16, #tpu.memory_space<vmem>>, vector<20x256xbf16>
    %cst_7 = arith.constant dense<0.000000e+00> : vector<16x256xf32>
    %5 = tpu.matmul %3, %4, %cst_7 {dimension_numbers = #tpu.dot_dimension_numbers<[1], [0], [0], [1], [0, 0, 1, 1], [], []>} : vector<16x20xbf16>, vector<20x256xbf16>, vector<16x256xf32> -> vector<16x256xf32>
    %6 = arith.addf %2, %5 : vector<16x256xf32>
    %c0_8 = arith.constant 0 : index
    %c0_9 = arith.constant 0 : index
    %7 = vector.load %arg5[%c0_8, %c0_9] : memref<16x1xf32, #tpu.memory_space<vmem>>, vector<16x1xf32>
    %8 = vector.broadcast %7 : vector<16x1xf32> to vector<16x256xf32>
    %9 = arith.addf %6, %8 : vector<16x256xf32>
    %cst_10 = arith.constant 0.000000e+00 : f32
    %10 = vector.broadcast %cst_10 : f32 to vector<16x256xf32>
    %11 = arith.maximumf %9, %10 : vector<16x256xf32>
    %12 = arith.truncf %11 : vector<16x256xf32> to vector<16x256xbf16>
    %c0_11 = arith.constant 0 : index
    %c0_12 = arith.constant 0 : index
    %13 = vector.load %arg6[%c0_11, %c0_12] : memref<16x256xbf16, #tpu.memory_space<vmem>>, vector<16x256xbf16>
    tpu.vector_store %arg6[%c0_11, %c0_12], %12 {strides = array<i32>} : memref<16x256xbf16, #tpu.memory_space<vmem>>, vector<16x256xbf16>,
    return
  }
  func.func @transform_0(%arg0: i32) -> (i32, i32) {
    %c0_i32 = arith.constant 0 : i32
    %c0_i32_0 = arith.constant 0 : i32
    return %c0_i32, %arg0 : i32, i32
  }
  func.func @transform_1(%arg0: i32) -> (i32, i32) {
    %c0_i32 = arith.constant 0 : i32
    %c0_i32_0 = arith.constant 0 : i32
    return %c0_i32, %arg0 : i32, i32
  }
  func.func @transform_2(%arg0: i32) -> (i32, i32) {
    %c0_i32 = arith.constant 0 : i32
    %c0_i32_0 = arith.constant 0 : i32
    %c0_i32_1 = arith.constant 0 : i32
    return %c0_i32, %c0_i32_0 : i32, i32
  }
  func.func @transform_3(%arg0: i32) -> (i32, i32) {
    %c0_i32 = arith.constant 0 : i32
    %c0_i32_0 = arith.constant 0 : i32
    %c0_i32_1 = arith.constant 0 : i32
    return %c0_i32, %c0_i32_0 : i32, i32
  }
  func.func @transform_4(%arg0: i32) -> (i32, i32) {
    %c0_i32 = arith.constant 0 : i32
    %c0_i32_0 = arith.constant 0 : i32
    %c0_i32_1 = arith.constant 0 : i32
    return %c0_i32, %c0_i32_0 : i32, i32
  }
  func.func @transform_5(%arg0: i32) -> (i32, i32) {
    %c0_i32 = arith.constant 0 : i32
    %c0_i32_0 = arith.constant 0 : i32
    return %c0_i32, %arg0 : i32, i32
  }
}

module attributes {stable_mosaic.version = 11 : i64} {
  func.func @_conv1x1_kernel(%arg0: i32, %arg1: memref<16x1024xbf16, #tpu.memory_space<vmem>>, %arg2: memref<2x16xbf16, #tpu.memory_space<vmem>>, %arg3: memref<2x1xf32, #tpu.memory_space<vmem>>, %arg4: memref<2x1024xf32, #tpu.memory_space<vmem>>) attributes {dimension_semantics = [#tpu.dimension_semantics<parallel>], iteration_bounds = array<i64: 2>, scalar_prefetch = 0 : i64, scratch_operands = 0 : i64, tpu.core_type = #tpu.core_type<tc>, window_params = [{transform_indices = @transform_0, window_bounds = array<i64: 16, 1024>}, {pipeline_mode = #tpu.pipeline_mode<synchronous>, transform_indices = @transform_1, window_bounds = array<i64: 2, 16>}, {pipeline_mode = #tpu.pipeline_mode<synchronous>, transform_indices = @transform_2, window_bounds = array<i64: 2, 1>}, {transform_indices = @transform_3, window_bounds = array<i64: 2, 1024>}]} {
    %c0 = arith.constant 0 : index
    %c0_0 = arith.constant 0 : index
    %0 = vector.load %arg2[%c0, %c0_0] : memref<2x16xbf16, #tpu.memory_space<vmem>>, vector<2x16xbf16>
    %c0_1 = arith.constant 0 : index
    %c0_2 = arith.constant 0 : index
    %1 = vector.load %arg1[%c0_1, %c0_2] : memref<16x1024xbf16, #tpu.memory_space<vmem>>, vector<16x1024xbf16>
    %cst = arith.constant dense<0.000000e+00> : vector<2x1024xf32>
    %2 = tpu.matmul %0, %1, %cst {dimension_numbers = #tpu.dot_dimension_numbers<[1], [0], [0], [1], [0, 0, 1, 1], [], []>} : vector<2x16xbf16>, vector<16x1024xbf16>, vector<2x1024xf32> -> vector<2x1024xf32>
    %c0_3 = arith.constant 0 : index
    %c0_4 = arith.constant 0 : index
    %3 = vector.load %arg3[%c0_3, %c0_4] : memref<2x1xf32, #tpu.memory_space<vmem>>, vector<2x1xf32>
    %4 = vector.broadcast %3 : vector<2x1xf32> to vector<2x1024xf32>
    %5 = arith.addf %2, %4 : vector<2x1024xf32>
    %cst_5 = arith.constant 0.000000e+00 : f32
    %cst_6 = arith.constant 6.000000e+00 : f32
    %6 = vector.broadcast %cst_5 : f32 to vector<2x1024xf32>
    %7 = arith.maximumf %6, %5 : vector<2x1024xf32>
    %8 = vector.broadcast %cst_6 : f32 to vector<2x1024xf32>
    %9 = arith.minimumf %8, %7 : vector<2x1024xf32>
    %cst_7 = arith.constant 0.166666672 : f32
    %10 = vector.broadcast %cst_7 : f32 to vector<2x1024xf32>
    %11 = arith.mulf %9, %10 : vector<2x1024xf32>
    %c0_8 = arith.constant 0 : index
    %c0_9 = arith.constant 0 : index
    %12 = vector.load %arg4[%c0_8, %c0_9] : memref<2x1024xf32, #tpu.memory_space<vmem>>, vector<2x1024xf32>
    tpu.vector_store %arg4[%c0_8, %c0_9], %11 {strides = array<i32>} : memref<2x1024xf32, #tpu.memory_space<vmem>>, vector<2x1024xf32>,
    return
  }
  func.func @transform_0(%arg0: i32) -> (i32, i32) {
    %c0_i32 = arith.constant 0 : i32
    %c0_i32_0 = arith.constant 0 : i32
    return %c0_i32, %arg0 : i32, i32
  }
  func.func @transform_1(%arg0: i32) -> (i32, i32) {
    %c0_i32 = arith.constant 0 : i32
    %c0_i32_0 = arith.constant 0 : i32
    %c0_i32_1 = arith.constant 0 : i32
    return %c0_i32, %c0_i32_0 : i32, i32
  }
  func.func @transform_2(%arg0: i32) -> (i32, i32) {
    %c0_i32 = arith.constant 0 : i32
    %c0_i32_0 = arith.constant 0 : i32
    %c0_i32_1 = arith.constant 0 : i32
    return %c0_i32, %c0_i32_0 : i32, i32
  }
  func.func @transform_3(%arg0: i32) -> (i32, i32) {
    %c0_i32 = arith.constant 0 : i32
    %c0_i32_0 = arith.constant 0 : i32
    return %c0_i32, %arg0 : i32, i32
  }
}

</mosaic_0001>

<llo_original>
// kernel: generator_forward.15
$region0: #{generator_forward.15}
  #allocation0 [shape = 'u32[]', space=smem, size = 0x4, offset = 0x4, fixed_abs, tag = 'smem constant byte address 0x4 - core index']
  #allocation1 [shape = 'u32[144,128]{1,0:T(1,128)}', space=vmem, size = 0x12000, scoped, tag = 'internal scratch']
  %s0 = inlined_call_operand.vmem [shape: bf16[8,128], index: 0, kind: input, shape index: {}]
  %s1 = inlined_call_operand.vmem [shape: bf16[160,128], index: 1, kind: input, shape index: {}]
  %s2 = inlined_call_operand.vmem [shape: bf16[32,8], index: 2, kind: input, shape index: {}]
  %s3 = inlined_call_operand.vmem [shape: bf16[32,160], index: 3, kind: input, shape index: {}]
  %s4 = inlined_call_operand.vmem [shape: f32[32,1], index: 4, kind: input, shape index: {}]
  %s5 = inlined_call_operand.vmem [shape: bf16[32,128], index: 5, kind: output, shape index: {}]
  %s6 = sld [smem:[#allocation0]]
  $region30: #{generator_forward.15} parent=0
    _
  %s8 = ssub.s32 1, %s6
  %s9 = scalar_select 0, %s8, %s6
  // Predicated region
  $region2: #{generator_forward.15} parent=0 // pred_check
    _
  $region3: #{generator_forward.15} parent=0 // pred_check_branch
    %11 = sbr.rel (0) target = $region5
  $region4: #{generator_forward.15} parent=0 // pred_region
    _
  $region5: #{generator_forward.15} parent=0 // pred_fallthru
    _
  // Predicated region
  $region6: #{generator_forward.15} parent=0 // pred_check
    _
  $region7: #{generator_forward.15} parent=0 // pred_check_branch
    %13 = sbr.rel (0) target = $region9
  $region8: #{generator_forward.15} parent=0 // pred_region
    _
  $region9: #{generator_forward.15} parent=0 // pred_fallthru
    _
  // Predicated region
  $region10: #{generator_forward.15} parent=0 // pred_check
    _
  $region11: #{generator_forward.15} parent=0 // pred_check_branch
    %15 = sbr.rel (0) target = $region13
  $region12: #{generator_forward.15} parent=0 // pred_region
    _
  $region13: #{generator_forward.15} parent=0 // pred_fallthru
    _
  // Predicated region
  $region14: #{generator_forward.15} parent=0 // pred_check
    _
  $region15: #{generator_forward.15} parent=0 // pred_check_branch
    %17 = sbr.rel (0) target = $region17
  $region16: #{generator_forward.15} parent=0 // pred_region
    _
  $region17: #{generator_forward.15} parent=0 // pred_fallthru
    _
  // Predicated region
  $region18: #{generator_forward.15} parent=0 // pred_check
    _
  $region19: #{generator_forward.15} parent=0 // pred_check_branch
    %19 = sbr.rel (0) target = $region21
  $region20: #{generator_forward.15} parent=0 // pred_region
    _
  $region21: #{generator_forward.15} parent=0 // pred_fallthru
    _
  %v21 = vld [vmem:[%s2] sm:$0xf]
  %v22 = vld [vmem:[%s2 + $0x4] sm:$0xf]
  %v23 = vld [vmem:[%s2 + $0x8] sm:$0xf]
  %v24 = vld [vmem:[%s2 + $0xc] sm:$0xf]
  %v25 = vld [vmem:[%s0] sm:$0xf]
  %v26 = vld [vmem:[%s3] sm:$0xff]
  %v27 = vld [vmem:[%s3 + $0x8] sm:$0xff]
  %v28 = vld [vmem:[%s3 + $0x10] sm:$0xff]
  %v29 = vld [vmem:[%s3 + $0x18] sm:$0xff]
  %v30 = vld [vmem:[%s1] sm:$0xf]
  %v31 = vld [vmem:[%s1 + $0x4] sm:$0xf]
  %v32 = vld [vmem:[%s1 + $0x8] sm:$0xf]
  %v33 = vld [vmem:[%s1 + $0xc] sm:$0xf]
  %v34 = vld [vmem:[%s1 + $0x10] sm:$0xf]
  %v35 = vld [vmem:[%s1 + $0x14] sm:$0xf]
  %v36 = vld [vmem:[%s1 + $0x18] sm:$0xf]
  %v37 = vld [vmem:[%s1 + $0x1c] sm:$0xf]
  %v38 = vld [vmem:[%s1 + $0x20] sm:$0xf]
  %v39 = vld [vmem:[%s1 + $0x24] sm:$0xf]
  %v40 = vld [vmem:[%s1 + $0x28] sm:$0xf]
  %v41 = vld [vmem:[%s1 + $0x2c] sm:$0xf]
  %v42 = vld [vmem:[%s1 + $0x30] sm:$0xf]
  %v43 = vld [vmem:[%s1 + $0x34] sm:$0xf]
  %v44 = vld [vmem:[%s1 + $0x38] sm:$0xf]
  %v45 = vld [vmem:[%s1 + $0x3c] sm:$0xf]
  %v46 = vld [vmem:[%s1 + $0x40] sm:$0xf]
  %v47 = vld [vmem:[%s1 + $0x44] sm:$0xf]
  %v48 = vld [vmem:[%s1 + $0x48] sm:$0xf]
  %v49 = vld [vmem:[%s1 + $0x4c] sm:$0xf]
  %v54 = vunpack.c.l.b16 %v26
  %v55 = vunpack.c.h.b16 %v26
  %v56 = vunpack.c.l.b16 %v27
  %v57 = vunpack.c.h.b16 %v27
  %v58 = vunpack.c.l.b16 %v28
  %v59 = vunpack.c.h.b16 %v28
  %v60 = vunpack.c.l.b16 %v29
  %v61 = vunpack.c.h.b16 %v29
  %v62 = vpack.c.b16 %v56, %v54
  %v63 = vpack.c.b16 %v57, %v55
  %v64 = vpack.c.b16 %v60, %v58
  %v65 = vpack.c.b16 %v61, %v59
  %v88 = vunpack.c.l.b16 %v30
  %v89 = vunpack.c.l.b16 %v31
  %v90 = vunpack.c.l.b16 %v32
  %v91 = vunpack.c.l.b16 %v33
  %v92 = vunpack.c.l.b16 %v34
  %v93 = vunpack.c.l.b16 %v35
  %v94 = vunpack.c.l.b16 %v36
  %v95 = vunpack.c.l.b16 %v37
  %v96 = vunpack.c.l.b16 %v38
  %v97 = vunpack.c.l.b16 %v39
  %v98 = vunpack.c.l.b16 %v40
  %v99 = vunpack.c.l.b16 %v41
  %v100 = vunpack.c.l.b16 %v42
  %v101 = vunpack.c.l.b16 %v43
  %v102 = vunpack.c.l.b16 %v44
  %v103 = vunpack.c.l.b16 %v45
  %v104 = vunpack.c.l.b16 %v46
  %v105 = vunpack.c.l.b16 %v47
  %v106 = vunpack.c.l.b16 %v48
  %v107 = vunpack.c.l.b16 %v49
  %v108 = vpack.c.b16 %v89, %v88
  %v109 = vpack.c.b16 %v91, %v90
  %v110 = vpack.c.b16 %v93, %v92
  %v111 = vpack.c.b16 %v95, %v94
  %v112 = vpack.c.b16 %v97, %v96
  %v113 = vpack.c.b16 %v99, %v98
  %v114 = vpack.c.b16 %v101, %v100
  %v115 = vpack.c.b16 %v103, %v102
  %v116 = vpack.c.b16 %v105, %v104
  %v117 = vpack.c.b16 %v107, %v106
  %vm128 = vcmask 261120
  %v130 = vsel %vm128, %v63, 0
  %v133 = vsel %vm128, %v65, 0
  %135 = vmatprep.subr.bf16.mxu0 0
  %136 = vmatpush1.bf16.msra.mxu0 %v108
  %137 = vmatprep.subr.bf16.mxu0 0
  %138 = vmatpush1.bf16.msra.mxu0 %v109
  %139 = vmatprep.subr.bf16.mxu0 0
  %140 = vmatpush1.bf16.msra.mxu0 %v110
  %141 = vmatprep.subr.bf16.mxu0 0
  %142 = vmatpush1.bf16.msra.mxu0 %v111
  %143 = vmatprep.subr.bf16.mxu0 0
  %144 = vmatpush1.bf16.msra.mxu0 %v112
  %145 = vmatprep.subr.bf16.mxu0 0
  %146 = vmatpush1.bf16.msra.mxu0 %v113
  %147 = vmatprep.subr.bf16.mxu0 0
  %148 = vmatpush1.bf16.msra.mxu0 %v114
  %149 = vmatprep.subr.bf16.mxu0 0
  %150 = vmatpush1.bf16.msra.mxu0 %v115
  %151 = vmatprep.subr.bf16.mxu0 0
  %152 = vmatpush1.bf16.msra.mxu0 %v116
  %153 = vmatprep.subr.bf16.mxu0 0
  %154 = vmatpush1.bf16.msra.mxu0 %v117
  %155 = vmatprep.subr.bf16.mxu0 0
  %156 = vmatpush1.bf16.msra.mxu0 0
  %157 = vmatprep.subr.bf16.mxu0 0
  %158 = vmatpush1.bf16.msra.mxu0 0
  %159 = vmatprep.subr.bf16.mxu0 0
  %160 = vmatpush1.bf16.msra.mxu0 0
  %161 = vmatprep.subr.bf16.mxu0 0
  %162 = vmatpush1.bf16.msra.mxu0 0
  %163 = vmatprep.subr.bf16.mxu0 0
  %164 = vmatpush1.bf16.msra.mxu0 0
  %165 = vmatprep.subr.bf16.mxu0 0
  %166 = vmatpush1.bf16.msra.mxu0 0
  %167 = vmatprep.mubr.bf16.mxu0 %v130
  %168 = vmatmul.mubr.bf16.gmra.mrb[0].mxu0 %v62
  %v169 = vpop.f32.mrb[0].mxu0
  %v170 = vadd.f32 0.0, %v169
  %v171 = vpop.f32.mrb[0].mxu0
  %v172 = vpop.f32.mrb[0].mxu0
  %v173 = vadd.f32 0.0, %v172
  %v174 = vpop.f32.mrb[0].mxu0
  %175 = vmatprep.mubr.bf16.mxu0 %v133
  %176 = vmatmul.mubr.bf16.gmra.mrb[0].mxu0 %v64
  %v177 = vpop.f32.mrb[0].mxu0
  %v178 = vadd.f32 0.0, %v177
  %v179 = vpop.f32.mrb[0].mxu0
  %v180 = vpop.f32.mrb[0].mxu0
  %v181 = vadd.f32 0.0, %v180
  %v182 = vpop.f32.mrb[0].mxu0
  %183 = vdwg.mxu0
  %v188 = vunpack.c.l.b16 %v21
  %v189 = vunpack.c.l.b16 %v22
  %v190 = vunpack.c.l.b16 %v23
  %v191 = vunpack.c.l.b16 %v24
  %v192 = vpack.c.b16 %v189, %v188
  %v193 = vpack.c.b16 %v191, %v190
  %vm194 = vcmask 64512
  %v196 = vsel %vm194, %v192, 0
  %v199 = vsel %vm194, %v193, 0
  %vm201 = vcmask 1043456
  %v203 = vsel %vm201, %v25, 0
  %205 = vmatprep.subr.bf16.mxu0 0
  %206 = vmatpush1.bf16.msra.mxu0 %v203
  %207 = vmatprep.subr.bf16.mxu0 0
  %208 = vmatpush1.bf16.msra.mxu0 0
  %209 = vmatprep.subr.bf16.mxu0 0
  %210 = vmatpush1.bf16.msra.mxu0 0
  %211 = vmatprep.subr.bf16.mxu0 0
  %212 = vmatpush1.bf16.msra.mxu0 0
  %213 = vmatprep.subr.bf16.mxu0 0
  %214 = vmatpush1.bf16.msra.mxu0 0
  %215 = vmatprep.subr.bf16.mxu0 0
  %216 = vmatpush1.bf16.msra.mxu0 0
  %217 = vmatprep.subr.bf16.mxu0 0
  %218 = vmatpush1.bf16.msra.mxu0 0
  %219 = vmatprep.subr.bf16.mxu0 0
  %220 = vmatpush1.bf16.msra.mxu0 0
  %221 = vmatprep.subr.bf16.mxu0 0
  %222 = vmatpush1.bf16.msra.mxu0 0
  %223 = vmatprep.subr.bf16.mxu0 0
  %224 = vmatpush1.bf16.msra.mxu0 0
  %225 = vmatprep.subr.bf16.mxu0 0
  %226 = vmatpush1.bf16.msra.mxu0 0
  %227 = vmatprep.subr.bf16.mxu0 0
  %228 = vmatpush1.bf16.msra.mxu0 0
  %229 = vmatprep.subr.bf16.mxu0 0
  %230 = vmatpush1.bf16.msra.mxu0 0
  %231 = vmatprep.subr.bf16.mxu0 0
  %232 = vmatpush1.bf16.msra.mxu0 0
  %233 = vmatprep.subr.bf16.mxu0 0
  %234 = vmatpush1.bf16.msra.mxu0 0
  %235 = vmatprep.subr.bf16.mxu0 0
  %236 = vmatpush1.bf16.msra.mxu0 0
  %237 = vmatprep.mubr.bf16.mxu0 0
  %238 = vmatmul.mubr.bf16.gmra.mrb[0].mxu0 %v196
  %v239 = vpop.f32.mrb[0].mxu0
  %v240 = vadd.f32 %v170, %v239
  %v241 = vpop.f32.mrb[0].mxu0
  %v242 = vpop.f32.mrb[0].mxu0
  %v243 = vadd.f32 %v173, %v242
  %v244 = vpop.f32.mrb[0].mxu0
  %245 = vmatprep.mubr.bf16.mxu0 0
  %246 = vmatmul.mubr.bf16.gmra.mrb[0].mxu0 %v199
  %v247 = vpop.f32.mrb[0].mxu0
  %v248 = vadd.f32 %v178, %v247
  %v249 = vpop.f32.mrb[0].mxu0
  %v250 = vpop.f32.mrb[0].mxu0
  %v251 = vadd.f32 %v181, %v250
  %v252 = vpop.f32.mrb[0].mxu0
  %253 = vdwg.mxu0
  %v254 = vld [vmem:[%s4] sm:$0xff]
  %v255 = vld [vmem:[%s4 + $0x8] sm:$0xff]
  %v256 = vld [vmem:[%s4 + $0x10] sm:$0xff]
  %v257 = vld [vmem:[%s4 + $0x18] sm:$0xff]
  %259 = vset.pattern.permute.xlu0 0
  %260 = vperm.xlu0 %259, %v254
  %v261 = vpop.permute.xlu0 %260
  %264 = vset.pattern.permute.xlu0 0
  %265 = vperm.xlu0 %264, %v255
  %v266 = vpop.permute.xlu0 %265
  %269 = vset.pattern.permute.xlu0 0
  %270 = vperm.xlu0 %269, %v256
  %v271 = vpop.permute.xlu0 %270
  %274 = vset.pattern.permute.xlu0 0
  %275 = vperm.xlu0 %274, %v257
  %v276 = vpop.permute.xlu0 %275
  %v278 = vadd.f32 %v240, %v261
  %v279 = vadd.f32 %v243, %v266
  %v280 = vadd.f32 %v248, %v271
  %v281 = vadd.f32 %v251, %v276
  %v282 = vmax.f32 %v278, 0.0
  %v283 = vmax.f32 %v279, 0.0
  %v284 = vmax.f32 %v280, 0.0
  %v285 = vmax.f32 %v281, 0.0
  %v286 = vpack.c.bf16 %v283, %v282
  %v287 = vpack.c.bf16 %v285, %v284
  %v290 = vunpack.c.l.b16 %v286
  %v291 = vunpack.c.h.b16 %v286
  %v292 = vunpack.c.l.b16 %v287
  %v293 = vunpack.c.h.b16 %v287
  %v294 = vpack.c.b16 %v290, %v290
  %v295 = vpack.c.b16 %v291, %v291
  %v296 = vpack.c.b16 %v292, %v292
  %v297 = vpack.c.b16 %v293, %v293
  %302 = vst [vmem:[%s5] sm:$0xf] %v294
  %303 = vst [vmem:[%s5 + $0x4] sm:$0xf] %v295
  %304 = vst [vmem:[%s5 + $0x8] sm:$0xf] %v296
  %305 = vst [vmem:[%s5 + $0xc] sm:$0xf] %v297
  // Predicated region
  $region22: #{generator_forward.15} parent=0 // pred_check
    _
  $region23: #{generator_forward.15} parent=0 // pred_check_branch
    %307 = sbr.rel (0) target = $region25
  $region24: #{generator_forward.15} parent=0 // pred_region
    _
  $region25: #{generator_forward.15} parent=0 // pred_fallthru
    _
  // Predicated region
  $region26: #{generator_forward.15} parent=0 // pred_check
    _
  $region27: #{generator_forward.15} parent=0 // pred_check_branch
    %309 = sbr.rel (0) target = $region29
  $region28: #{generator_forward.15} parent=0 // pred_region
    _
  $region29: #{generator_forward.15} parent=0 // pred_fallthru
    _

// kernel: generator_forward.14
$region0: #{generator_forward.14}
  #allocation0 [shape = 'u32[]', space=smem, size = 0x4, offset = 0x4, fixed_abs, tag = 'smem constant byte address 0x4 - core index']
  #allocation1 [shape = 'u32[144,128]{1,0:T(1,128)}', space=vmem, size = 0x12000, scoped, tag = 'internal scratch']
  %s0 = inlined_call_operand.vmem [shape: bf16[1024,128], index: 0, kind: input, shape index: {}]
  %s1 = inlined_call_operand.vmem [shape: bf16[1024,128], index: 1, kind: input, shape index: {}]
  %s2 = inlined_call_operand.vmem [shape: bf16[8,1024], index: 2, kind: input, shape index: {}]
  %s3 = inlined_call_operand.vmem [shape: bf16[8,1024], index: 3, kind: input, shape index: {}]
  %s4 = inlined_call_operand.vmem [shape: f32[8,1], index: 4, kind: input, shape index: {}]
  %s5 = inlined_call_operand.vmem [shape: bf16[8,128], index: 5, kind: output, shape index: {}]
  %s6 = sld [smem:[#allocation0]]
  $region30: #{generator_forward.14} parent=0
    _
  %s8 = ssub.s32 1, %s6
  %s9 = scalar_select 0, %s8, %s6
  // Predicated region
  $region2: #{generator_forward.14} parent=0 // pred_check
    _
  $region3: #{generator_forward.14} parent=0 // pred_check_branch
    %11 = sbr.rel (0) target = $region5
  $region4: #{generator_forward.14} parent=0 // pred_region
    _
  $region5: #{generator_forward.14} parent=0 // pred_fallthru
    _
  // Predicated region
  $region6: #{generator_forward.14} parent=0 // pred_check
    _
  $region7: #{generator_forward.14} parent=0 // pred_check_branch
    %13 = sbr.rel (0) target = $region9
  $region8: #{generator_forward.14} parent=0 // pred_region
    _
  $region9: #{generator_forward.14} parent=0 // pred_fallthru
    _
  // Predicated region
  $region10: #{generator_forward.14} parent=0 // pred_check
    _
  $region11: #{generator_forward.14} parent=0 // pred_check_branch
    %15 = sbr.rel (0) target = $region13
  $region12: #{generator_forward.14} parent=0 // pred_region
    _
  $region13: #{generator_forward.14} parent=0 // pred_fallthru
    _
  // Predicated region
  $region14: #{generator_forward.14} parent=0 // pred_check
    _
  $region15: #{generator_forward.14} parent=0 // pred_check_branch
    %17 = sbr.rel (0) target = $region17
  $region16: #{generator_forward.14} parent=0 // pred_region
    _
  $region17: #{generator_forward.14} parent=0 // pred_fallthru
    _
  // Predicated region
  $region18: #{generator_forward.14} parent=0 // pred_check
    _
  $region19: #{generator_forward.14} parent=0 // pred_check_branch
    %19 = sbr.rel (0) target = $region21
  $region20: #{generator_forward.14} parent=0 // pred_region
    _
  $region21: #{generator_forward.14} parent=0 // pred_fallthru
    _
  %v21 = vld [vmem:[%s2] sm:$0xff]
  %v22 = vld [vmem:[%s2 + $0x8] sm:$0xff]
  %v23 = vld [vmem:[%s2 + $0x10] sm:$0xff]
  %v24 = vld [vmem:[%s2 + $0x18] sm:$0xff]
  %v25 = vld [vmem:[%s0] sm:$0xf]
  %v26 = vld [vmem:[%s0 + $0x4] sm:$0xf]
  %v27 = vld [vmem:[%s0 + $0x8] sm:$0xf]
  %v28 = vld [vmem:[%s0 + $0xc] sm:$0xf]
  %v29 = vld [vmem:[%s0 + $0x10] sm:$0xf]
  %v30 = vld [vmem:[%s0 + $0x14] sm:$0xf]
  %v31 = vld [vmem:[%s0 + $0x18] sm:$0xf]
  %v32 = vld [vmem:[%s0 + $0x1c] sm:$0xf]
  %v33 = vld [vmem:[%s0 + $0x20] sm:$0xf]
  %v34 = vld [vmem:[%s0 + $0x24] sm:$0xf]
  %v35 = vld [vmem:[%s0 + $0x28] sm:$0xf]
  %v36 = vld [vmem:[%s0 + $0x2c] sm:$0xf]
  %v37 = vld [vmem:[%s0 + $0x30] sm:$0xf]
  %v38 = vld [vmem:[%s0 + $0x34] sm:$0xf]
  %v39 = vld [vmem:[%s0 + $0x38] sm:$0xf]
  %v40 = vld [vmem:[%s0 + $0x3c] sm:$0xf]
  %v41 = vld [vmem:[%s0 + $0x40] sm:$0xf]
  %v42 = vld [vmem:[%s0 + $0x44] sm:$0xf]
  %v43 = vld [vmem:[%s0 + $0x48] sm:$0xf]
  %v44 = vld [vmem:[%s0 + $0x4c] sm:$0xf]
  %v45 = vld [vmem:[%s0 + $0x50] sm:$0xf]
  %v46 = vld [vmem:[%s0 + $0x54] sm:$0xf]
  %v47 = vld [vmem:[%s0 + $0x58] sm:$0xf]
  %v48 = vld [vmem:[%s0 + $0x5c] sm:$0xf]
  %v49 = vld [vmem:[%s0 + $0x60] sm:$0xf]
  %v50 = vld [vmem:[%s0 + $0x64] sm:$0xf]
  %v51 = vld [vmem:[%s0 + $0x68] sm:$0xf]
  %v52 = vld [vmem:[%s0 + $0x6c] sm:$0xf]
  %v53 = vld [vmem:[%s0 + $0x70] sm:$0xf]
  %v54 = vld [vmem:[%s0 + $0x74] sm:$0xf]
  %v55 = vld [vmem:[%s0 + $0x78] sm:$0xf]
  %v56 = vld [vmem:[%s0 + $0x7c] sm:$0xf]
  %v57 = vld [vmem:[%s0 + $0x80] sm:$0xf]
  %v58 = vld [vmem:[%s0 + $0x84] sm:$0xf]
  %v59 = vld [vmem:[%s0 + $0x88] sm:$0xf]
  %v60 = vld [vmem:[%s0 + $0x8c] sm:$0xf]
  %v61 = vld [vmem:[%s0 + $0x90] sm:$0xf]
  %v62 = vld [vmem:[%s0 + $0x94] sm:$0xf]
  %v63 = vld [vmem:[%s0 + $0x98] sm:$0xf]
  %v64 = vld [vmem:[%s0 + $0x9c] sm:$0xf]
  %v65 = vld [vmem:[%s0 + $0xa0] sm:$0xf]
  %v66 = vld [vmem:[%s0 + $0xa4] sm:$0xf]
  %v67 = vld [vmem:[%s0 + $0xa8] sm:$0xf]
  %v68 = vld [vmem:[%s0 + $0xac] sm:$0xf]
  %v69 = vld [vmem:[%s0 + $0xb0] sm:$0xf]
  %v70 = vld [vmem:[%s0 + $0xb4] sm:$0xf]
  %v71 = vld [vmem:[%s0 + $0xb8] sm:$0xf]
  %v72 = vld [vmem:[%s0 + $0xbc] sm:$0xf]
  %v73 = vld [vmem:[%s0 + $0xc0] sm:$0xf]
  %v74 = vld [vmem:[%s0 + $0xc4] sm:$0xf]
  %v75 = vld [vmem:[%s0 + $0xc8] sm:$0xf]
  %v76 = vld [vmem:[%s0 + $0xcc] sm:$0xf]
  %v77 = vld [vmem:[%s0 + $0xd0] sm:$0xf]
  %v78 = vld [vmem:[%s0 + $0xd4] sm:$0xf]
  %v79 = vld [vmem:[%s0 + $0xd8] sm:$0xf]
  %v80 = vld [vmem:[%s0 + $0xdc] sm:$0xf]
  %v81 = vld [vmem:[%s0 + $0xe0] sm:$0xf]
  %v82 = vld [vmem:[%s0 + $0xe4] sm:$0xf]
  %v83 = vld [vmem:[%s0 + $0xe8] sm:$0xf]
  %v84 = vld [vmem:[%s0 + $0xec] sm:$0xf]
  %v85 = vld [vmem:[%s0 + $0xf0] sm:$0xf]
  %v86 = vld [vmem:[%s0 + $0xf4] sm:$0xf]
  %v87 = vld [vmem:[%s0 + $0xf8] sm:$0xf]
  %v88 = vld [vmem:[%s0 + $0xfc] sm:$0xf]
  %v89 = vld [vmem:[%s0 + $0x100] sm:$0xf]
  %v90 = vld [vmem:[%s0 + $0x104] sm:$0xf]
  %v91 = vld [vmem:[%s0 + $0x108] sm:$0xf]
  %v92 = vld [vmem:[%s0 + $0x10c] sm:$0xf]
  %v93 = vld [vmem:[%s0 + $0x110] sm:$0xf]
  %v94 = vld [vmem:[%s0 + $0x114] sm:$0xf]
  %v95 = vld [vmem:[%s0 + $0x118] sm:$0xf]
  %v96 = vld [vmem:[%s0 + $0x11c] sm:$0xf]
  %v97 = vld [vmem:[%s0 + $0x120] sm:$0xf]
  %v98 = vld [vmem:[%s0 + $0x124] sm:$0xf]
  %v99 = vld [vmem:[%s0 + $0x128] sm:$0xf]
  %v100 = vld [vmem:[%s0 + $0x12c] sm:$0xf]
  %v101 = vld [vmem:[%s0 + $0x130] sm:$0xf]
  %v102 = vld [vmem:[%s0 + $0x134] sm:$0xf]
  %v103 = vld [vmem:[%s0 + $0x138] sm:$0xf]
  %v104 = vld [vmem:[%s0 + $0x13c] sm:$0xf]
  %v105 = vld [vmem:[%s0 + $0x140] sm:$0xf]
  %v106 = vld [vmem:[%s0 + $0x144] sm:$0xf]
  %v107 = vld [vmem:[%s0 + $0x148] sm:$0xf]
  %v108 = vld [vmem:[%s0 + $0x14c] sm:$0xf]
  %v109 = vld [vmem:[%s0 + $0x150] sm:$0xf]
  %v110 = vld [vmem:[%s0 + $0x154] sm:$0xf]
  %v111 = vld [vmem:[%s0 + $0x158] sm:$0xf]
  %v112 = vld [vmem:[%s0 + $0x15c] sm:$0xf]
  %v113 = vld [vmem:[%s0 + $0x160] sm:$0xf]
  %v114 = vld [vmem:[%s0 + $0x164] sm:$0xf]
  %v115 = vld [vmem:[%s0 + $0x168] sm:$0xf]
  %v116 = vld [vmem:[%s0 + $0x16c] sm:$0xf]
  %v117 = vld [vmem:[%s0 + $0x170] sm:$0xf]
  %v118 = vld [vmem:[%s0 + $0x174] sm:$0xf]
  %v119 = vld [vmem:[%s0 + $0x178] sm:$0xf]
  %v120 = vld [vmem:[%s0 + $0x17c] sm:$0xf]
  %v121 = vld [vmem:[%s0 + $0x180] sm:$0xf]
  %v122 = vld [vmem:[%s0 + $0x184] sm:$0xf]
  %v123 = vld [vmem:[%s0 + $0x188] sm:$0xf]
  %v124 = vld [vmem:[%s0 + $0x18c] sm:$0xf]
  %v125 = vld [vmem:[%s0 + $0x190] sm:$0xf]
  %v126 = vld [vmem:[%s0 + $0x194] sm:$0xf]
  %v127 = vld [vmem:[%s0 + $0x198] sm:$0xf]
  %v128 = vld [vmem:[%s0 + $0x19c] sm:$0xf]
  %v129 = vld [vmem:[%s0 + $0x1a0] sm:$0xf]
  %v130 = vld [vmem:[%s0 + $0x1a4] sm:$0xf]
  %v131 = vld [vmem:[%s0 + $0x1a8] sm:$0xf]
  %v132 = vld [vmem:[%s0 + $0x1ac] sm:$0xf]
  %v133 = vld [vmem:[%s0 + $0x1b0] sm:$0xf]
  %v134 = vld [vmem:[%s0 + $0x1b4] sm:$0xf]
  %v135 = vld [vmem:[%s0 + $0x1b8] sm:$0xf]
  %v136 = vld [vmem:[%s0 + $0x1bc] sm:$0xf]
  %v137 = vld [vmem:[%s0 + $0x1c0] sm:$0xf]
  %v138 = vld [vmem:[%s0 + $0x1c4] sm:$0xf]
  %v139 = vld [vmem:[%s0 + $0x1c8] sm:$0xf]
  %v140 = vld [vmem:[%s0 + $0x1cc] sm:$0xf]
  %v141 = vld [vmem:[%s0 + $0x1d0] sm:$0xf]
  %v142 = vld [vmem:[%s0 + $0x1d4] sm:$0xf]
  %v143 = vld [vmem:[%s0 + $0x1d8] sm:$0xf]
  %v144 = vld [vmem:[%s0 + $0x1dc] sm:$0xf]
  %v145 = vld [vmem:[%s0 + $0x1e0] sm:$0xf]
  %v146 = vld [vmem:[%s0 + $0x1e4] sm:$0xf]
  %v147 = vld [vmem:[%s0 + $0x1e8] sm:$0xf]
  %v148 = vld [vmem:[%s0 + $0x1ec] sm:$0xf]
  %v149 = vld [vmem:[%s0 + $0x1f0] sm:$0xf]
  %v150 = vld [vmem:[%s0 + $0x1f4] sm:$0xf]
  %v151 = vld [vmem:[%s0 + $0x1f8] sm:$0xf]
  %v152 = vld [vmem:[%s0 + $0x1fc] sm:$0xf]
  %v153 = vld [vmem:[%s3] sm:$0xff]
  %v154 = vld [vmem:[%s3 + $0x8] sm:$0xff]
  %v155 = vld [vmem:[%s3 + $0x10] sm:$0xff]
  %v156 = vld [vmem:[%s3 + $0x18] sm:$0xff]
  %v157 = vld [vmem:[%s1] sm:$0xf]
  %v158 = vld [vmem:[%s1 + $0x4] sm:$0xf]
  %v159 = vld [vmem:[%s1 + $0x8] sm:$0xf]
  %v160 = vld [vmem:[%s1 + $0xc] sm:$0xf]
  %v161 = vld [vmem:[%s1 + $0x10] sm:$0xf]
  %v162 = vld [vmem:[%s1 + $0x14] sm:$0xf]
  %v163 = vld [vmem:[%s1 + $0x18] sm:$0xf]
  %v164 = vld [vmem:[%s1 + $0x1c] sm:$0xf]
  %v165 = vld [vmem:[%s1 + $0x20] sm:$0xf]
  %v166 = vld [vmem:[%s1 + $0x24] sm:$0xf]
  %v167 = vld [vmem:[%s1 + $0x28] sm:$0xf]
  %v168 = vld [vmem:[%s1 + $0x2c] sm:$0xf]
  %v169 = vld [vmem:[%s1 + $0x30] sm:$0xf]
  %v170 = vld [vmem:[%s1 + $0x34] sm:$0xf]
  %v171 = vld [vmem:[%s1 + $0x38] sm:$0xf]
  %v172 = vld [vmem:[%s1 + $0x3c] sm:$0xf]
  %v173 = vld [vmem:[%s1 + $0x40] sm:$0xf]
  %v174 = vld [vmem:[%s1 + $0x44] sm:$0xf]
  %v175 = vld [vmem:[%s1 + $0x48] sm:$0xf]
  %v176 = vld [vmem:[%s1 + $0x4c] sm:$0xf]
  %v177 = vld [vmem:[%s1 + $0x50] sm:$0xf]
  %v178 = vld [vmem:[%s1 + $0x54] sm:$0xf]
  %v179 = vld [vmem:[%s1 + $0x58] sm:$0xf]
  %v180 = vld [vmem:[%s1 + $0x5c] sm:$0xf]
  %v181 = vld [vmem:[%s1 + $0x60] sm:$0xf]
  %v182 = vld [vmem:[%s1 + $0x64] sm:$0xf]
  %v183 = vld [vmem:[%s1 + $0x68] sm:$0xf]
  %v184 = vld [vmem:[%s1 + $0x6c] sm:$0xf]
  %v185 = vld [vmem:[%s1 + $0x70] sm:$0xf]
  %v186 = vld [vmem:[%s1 + $0x74] sm:$0xf]
  %v187 = vld [vmem:[%s1 + $0x78] sm:$0xf]
  %v188 = vld [vmem:[%s1 + $0x7c] sm:$0xf]
  %v189 = vld [vmem:[%s1 + $0x80] sm:$0xf]
  %v190 = vld [vmem:[%s1 + $0x84] sm:$0xf]
  %v191 = vld [vmem:[%s1 + $0x88] sm:$0xf]
  %v192 = vld [vmem:[%s1 + $0x8c] sm:$0xf]
  %v193 = vld [vmem:[%s1 + $0x90] sm:$0xf]
  %v194 = vld [vmem:[%s1 + $0x94] sm:$0xf]
  %v195 = vld [vmem:[%s1 + $0x98] sm:$0xf]
  %v196 = vld [vmem:[%s1 + $0x9c] sm:$0xf]
  %v197 = vld [vmem:[%s1 + $0xa0] sm:$0xf]
  %v198 = vld [vmem:[%s1 + $0xa4] sm:$0xf]
  %v199 = vld [vmem:[%s1 + $0xa8] sm:$0xf]
  %v200 = vld [vmem:[%s1 + $0xac] sm:$0xf]
  %v201 = vld [vmem:[%s1 + $0xb0] sm:$0xf]
  %v202 = vld [vmem:[%s1 + $0xb4] sm:$0xf]
  %v203 = vld [vmem:[%s1 + $0xb8] sm:$0xf]
  %v204 = vld [vmem:[%s1 + $0xbc] sm:$0xf]
  %v205 = vld [vmem:[%s1 + $0xc0] sm:$0xf]
  %v206 = vld [vmem:[%s1 + $0xc4] sm:$0xf]
  %v207 = vld [vmem:[%s1 + $0xc8] sm:$0xf]
  %v208 = vld [vmem:[%s1 + $0xcc] sm:$0xf]
  %v209 = vld [vmem:[%s1 + $0xd0] sm:$0xf]
  %v210 = vld [vmem:[%s1 + $0xd4] sm:$0xf]
  %v211 = vld [vmem:[%s1 + $0xd8] sm:$0xf]
  %v212 = vld [vmem:[%s1 + $0xdc] sm:$0xf]
  %v213 = vld [vmem:[%s1 + $0xe0] sm:$0xf]
  %v214 = vld [vmem:[%s1 + $0xe4] sm:$0xf]
  %v215 = vld [vmem:[%s1 + $0xe8] sm:$0xf]
  %v216 = vld [vmem:[%s1 + $0xec] sm:$0xf]
  %v217 = vld [vmem:[%s1 + $0xf0] sm:$0xf]
  %v218 = vld [vmem:[%s1 + $0xf4] sm:$0xf]
  %v219 = vld [vmem:[%s1 + $0xf8] sm:$0xf]
  %v220 = vld [vmem:[%s1 + $0xfc] sm:$0xf]
  %v221 = vld [vmem:[%s1 + $0x100] sm:$0xf]
  %v222 = vld [vmem:[%s1 + $0x104] sm:$0xf]
  %v223 = vld [vmem:[%s1 + $0x108] sm:$0xf]
  %v224 = vld [vmem:[%s1 + $0x10c] sm:$0xf]
  %v225 = vld [vmem:[%s1 + $0x110] sm:$0xf]
  %v226 = vld [vmem:[%s1 + $0x114] sm:$0xf]
  %v227 = vld [vmem:[%s1 + $0x118] sm:$0xf]
  %v228 = vld [vmem:[%s1 + $0x11c] sm:$0xf]
  %v229 = vld [vmem:[%s1 + $0x120] sm:$0xf]
  %v230 = vld [vmem:[%s1 + $0x124] sm:$0xf]
  %v231 = vld [vmem:[%s1 + $0x128] sm:$0xf]
  %v232 = vld [vmem:[%s1 + $0x12c] sm:$0xf]
  %v233 = vld [vmem:[%s1 + $0x130] sm:$0xf]
  %v234 = vld [vmem:[%s1 + $0x134] sm:$0xf]
  %v235 = vld [vmem:[%s1 + $0x138] sm:$0xf]
  %v236 = vld [vmem:[%s1 + $0x13c] sm:$0xf]
  %v237 = vld [vmem:[%s1 + $0x140] sm:$0xf]
  %v238 = vld [vmem:[%s1 + $0x144] sm:$0xf]
  %v239 = vld [vmem:[%s1 + $0x148] sm:$0xf]
  %v240 = vld [vmem:[%s1 + $0x14c] sm:$0xf]
  %v241 = vld [vmem:[%s1 + $0x150] sm:$0xf]
  %v242 = vld [vmem:[%s1 + $0x154] sm:$0xf]
  %v243 = vld [vmem:[%s1 + $0x158] sm:$0xf]
  %v244 = vld [vmem:[%s1 + $0x15c] sm:$0xf]
  %v245 = vld [vmem:[%s1 + $0x160] sm:$0xf]
  %v246 = vld [vmem:[%s1 + $0x164] sm:$0xf]
  %v247 = vld [vmem:[%s1 + $0x168] sm:$0xf]
  %v248 = vld [vmem:[%s1 + $0x16c] sm:$0xf]
  %v249 = vld [vmem:[%s1 + $0x170] sm:$0xf]
  %v250 = vld [vmem:[%s1 + $0x174] sm:$0xf]
  %v251 = vld [vmem:[%s1 + $0x178] sm:$0xf]
  %v252 = vld [vmem:[%s1 + $0x17c] sm:$0xf]
  %v253 = vld [vmem:[%s1 + $0x180] sm:$0xf]
  %v254 = vld [vmem:[%s1 + $0x184] sm:$0xf]
  %v255 = vld [vmem:[%s1 + $0x188] sm:$0xf]
  %v256 = vld [vmem:[%s1 + $0x18c] sm:$0xf]
  %v257 = vld [vmem:[%s1 + $0x190] sm:$0xf]
  %v258 = vld [vmem:[%s1 + $0x194] sm:$0xf]
  %v259 = vld [vmem:[%s1 + $0x198] sm:$0xf]
  %v260 = vld [vmem:[%s1 + $0x19c] sm:$0xf]
  %v261 = vld [vmem:[%s1 + $0x1a0] sm:$0xf]
  %v262 = vld [vmem:[%s1 + $0x1a4] sm:$0xf]
  %v263 = vld [vmem:[%s1 + $0x1a8] sm:$0xf]
  %v264 = vld [vmem:[%s1 + $0x1ac] sm:$0xf]
  %v265 = vld [vmem:[%s1 + $0x1b0] sm:$0xf]
  %v266 = vld [vmem:[%s1 + $0x1b4] sm:$0xf]
  %v267 = vld [vmem:[%s1 + $0x1b8] sm:$0xf]
  %v268 = vld [vmem:[%s1 + $0x1bc] sm:$0xf]
  %v269 = vld [vmem:[%s1 + $0x1c0] sm:$0xf]
  %v270 = vld [vmem:[%s1 + $0x1c4] sm:$0xf]
  %v271 = vld [vmem:[%s1 + $0x1c8] sm:$0xf]
  %v272 = vld [vmem:[%s1 + $0x1cc] sm:$0xf]
  %v273 = vld [vmem:[%s1 + $0x1d0] sm:$0xf]
  %v274 = vld [vmem:[%s1 + $0x1d4] sm:$0xf]
  %v275 = vld [vmem:[%s1 + $0x1d8] sm:$0xf]
  %v276 = vld [vmem:[%s1 + $0x1dc] sm:$0xf]
  %v277 = vld [vmem:[%s1 + $0x1e0] sm:$0xf]
  %v278 = vld [vmem:[%s1 + $0x1e4] sm:$0xf]
  %v279 = vld [vmem:[%s1 + $0x1e8] sm:$0xf]
  %v280 = vld [vmem:[%s1 + $0x1ec] sm:$0xf]
  %v281 = vld [vmem:[%s1 + $0x1f0] sm:$0xf]
  %v282 = vld [vmem:[%s1 + $0x1f4] sm:$0xf]
  %v283 = vld [vmem:[%s1 + $0x1f8] sm:$0xf]
  %v284 = vld [vmem:[%s1 + $0x1fc] sm:$0xf]
  %v289 = vunpack.c.l.b16 %v153
  %v290 = vunpack.c.h.b16 %v153
  %v291 = vunpack.c.l.b16 %v154
  %v292 = vunpack.c.h.b16 %v154
  %v293 = vunpack.c.l.b16 %v155
  %v294 = vunpack.c.h.b16 %v155
  %v295 = vunpack.c.l.b16 %v156
  %v296 = vunpack.c.h.b16 %v156
  %v297 = vpack.c.b16 %v289, %v289
  %v298 = vpack.c.b16 %v290, %v290
  %v299 = vpack.c.b16 %v291, %v291
  %v300 = vpack.c.b16 %v292, %v292
  %v301 = vpack.c.b16 %v293, %v293
  %v302 = vpack.c.b16 %v294, %v294
  %v303 = vpack.c.b16 %v295, %v295
  %v304 = vpack.c.b16 %v296, %v296
  %v441 = vunpack.c.l.b16 %v157
  %v442 = vunpack.c.l.b16 %v158
  %v443 = vunpack.c.l.b16 %v159
  %v444 = vunpack.c.l.b16 %v160
  %v445 = vunpack.c.l.b16 %v161
  %v446 = vunpack.c.l.b16 %v162
  %v447 = vunpack.c.l.b16 %v163
  %v448 = vunpack.c.l.b16 %v164
  %v449 = vunpack.c.l.b16 %v165
  %v450 = vunpack.c.l.b16 %v166
  %v451 = vunpack.c.l.b16 %v167
  %v452 = vunpack.c.l.b16 %v168
  %v453 = vunpack.c.l.b16 %v169
  %v454 = vunpack.c.l.b16 %v170
  %v455 = vunpack.c.l.b16 %v171
  %v456 = vunpack.c.l.b16 %v172
  %v457 = vunpack.c.l.b16 %v173
  %v458 = vunpack.c.l.b16 %v174
  %v459 = vunpack.c.l.b16 %v175
  %v460 = vunpack.c.l.b16 %v176
  %v461 = vunpack.c.l.b16 %v177
  %v462 = vunpack.c.l.b16 %v178
  %v463 = vunpack.c.l.b16 %v179
  %v464 = vunpack.c.l.b16 %v180
  %v465 = vunpack.c.l.b16 %v181
  %v466 = vunpack.c.l.b16 %v182
  %v467 = vunpack.c.l.b16 %v183
  %v468 = vunpack.c.l.b16 %v184
  %v469 = vunpack.c.l.b16 %v185
  %v470 = vunpack.c.l.b16 %v186
  %v471 = vunpack.c.l.b16 %v187
  %v472 = vunpack.c.l.b16 %v188
  %v473 = vunpack.c.l.b16 %v189
  %v474 = vunpack.c.l.b16 %v190
  %v475 = vunpack.c.l.b16 %v191
  %v476 = vunpack.c.l.b16 %v192
  %v477 = vunpack.c.l.b16 %v193
  %v478 = vunpack.c.l.b16 %v194
  %v479 = vunpack.c.l.b16 %v195
  %v480 = vunpack.c.l.b16 %v196
  %v481 = vunpack.c.l.b16 %v197
  %v482 = vunpack.c.l.b16 %v198
  %v483 = vunpack.c.l.b16 %v199
  %v484 = vunpack.c.l.b16 %v200
  %v485 = vunpack.c.l.b16 %v201
  %v486 = vunpack.c.l.b16 %v202
  %v487 = vunpack.c.l.b16 %v203
  %v488 = vunpack.c.l.b16 %v204
  %v489 = vunpack.c.l.b16 %v205
  %v490 = vunpack.c.l.b16 %v206
  %v491 = vunpack.c.l.b16 %v207
  %v492 = vunpack.c.l.b16 %v208
  %v493 = vunpack.c.l.b16 %v209
  %v494 = vunpack.c.l.b16 %v210
  %v495 = vunpack.c.l.b16 %v211
  %v496 = vunpack.c.l.b16 %v212
  %v497 = vunpack.c.l.b16 %v213
  %v498 = vunpack.c.l.b16 %v214
  %v499 = vunpack.c.l.b16 %v215
  %v500 = vunpack.c.l.b16 %v216
  %v501 = vunpack.c.l.b16 %v217
  %v502 = vunpack.c.l.b16 %v218
  %v503 = vunpack.c.l.b16 %v219
  %v504 = vunpack.c.l.b16 %v220
  %v505 = vunpack.c.l.b16 %v221
  %v506 = vunpack.c.l.b16 %v222
  %v507 = vunpack.c.l.b16 %v223
  %v508 = vunpack.c.l.b16 %v224
  %v509 = vunpack.c.l.b16 %v225
  %v510 = vunpack.c.l.b16 %v226
  %v511 = vunpack.c.l.b16 %v227
  %v512 = vunpack.c.l.b16 %v228
  %v513 = vunpack.c.l.b16 %v229
  %v514 = vunpack.c.l.b16 %v230
  %v515 = vunpack.c.l.b16 %v231
  %v516 = vunpack.c.l.b16 %v232
  %v517 = vunpack.c.l.b16 %v233
  %v518 = vunpack.c.l.b16 %v234
  %v519 = vunpack.c.l.b16 %v235
  %v520 = vunpack.c.l.b16 %v236
  %v521 = vunpack.c.l.b16 %v237
  %v522 = vunpack.c.l.b16 %v238
  %v523 = vunpack.c.l.b16 %v239
  %v524 = vunpack.c.l.b16 %v240
  %v525 = vunpack.c.l.b16 %v241
  %v526 = vunpack.c.l.b16 %v242
  %v527 = vunpack.c.l.b16 %v243
  %v528 = vunpack.c.l.b16 %v244
  %v529 = vunpack.c.l.b16 %v245
  %v530 = vunpack.c.l.b16 %v246
  %v531 = vunpack.c.l.b16 %v247
  %v532 = vunpack.c.l.b16 %v248
  %v533 = vunpack.c.l.b16 %v249
  %v534 = vunpack.c.l.b16 %v250
  %v535 = vunpack.c.l.b16 %v251
  %v536 = vunpack.c.l.b16 %v252
  %v537 = vunpack.c.l.b16 %v253
  %v538 = vunpack.c.l.b16 %v254
  %v539 = vunpack.c.l.b16 %v255
  %v540 = vunpack.c.l.b16 %v256
  %v541 = vunpack.c.l.b16 %v257
  %v542 = vunpack.c.l.b16 %v258
  %v543 = vunpack.c.l.b16 %v259
  %v544 = vunpack.c.l.b16 %v260
  %v545 = vunpack.c.l.b16 %v261
  %v546 = vunpack.c.l.b16 %v262
  %v547 = vunpack.c.l.b16 %v263
  %v548 = vunpack.c.l.b16 %v264
  %v549 = vunpack.c.l.b16 %v265
  %v550 = vunpack.c.l.b16 %v266
  %v551 = vunpack.c.l.b16 %v267
  %v552 = vunpack.c.l.b16 %v268
  %v553 = vunpack.c.l.b16 %v269
  %v554 = vunpack.c.l.b16 %v270
  %v555 = vunpack.c.l.b16 %v271
  %v556 = vunpack.c.l.b16 %v272
  %v557 = vunpack.c.l.b16 %v273
  %v558 = vunpack.c.l.b16 %v274
  %v559 = vunpack.c.l.b16 %v275
  %v560 = vunpack.c.l.b16 %v276
  %v561 = vunpack.c.l.b16 %v277
  %v562 = vunpack.c.l.b16 %v278
  %v563 = vunpack.c.l.b16 %v279
  %v564 = vunpack.c.l.b16 %v280
  %v565 = vunpack.c.l.b16 %v281
  %v566 = vunpack.c.l.b16 %v282
  %v567 = vunpack.c.l.b16 %v283
  %v568 = vunpack.c.l.b16 %v284
  %v569 = vpack.c.b16 %v442, %v441
  %v570 = vpack.c.b16 %v444, %v443
  %v571 = vpack.c.b16 %v446, %v445
  %v572 = vpack.c.b16 %v448, %v447
  %v573 = vpack.c.b16 %v450, %v449
  %v574 = vpack.c.b16 %v452, %v451
  %v575 = vpack.c.b16 %v454, %v453
  %v576 = vpack.c.b16 %v456, %v455
  %v577 = vpack.c.b16 %v458, %v457
  %v578 = vpack.c.b16 %v460, %v459
  %v579 = vpack.c.b16 %v462, %v461
  %v580 = vpack.c.b16 %v464, %v463
  %v581 = vpack.c.b16 %v466, %v465
  %v582 = vpack.c.b16 %v468, %v467
  %v583 = vpack.c.b16 %v470, %v469
  %v584 = vpack.c.b16 %v472, %v471
  %v585 = vpack.c.b16 %v474, %v473
  %v586 = vpack.c.b16 %v476, %v475
  %v587 = vpack.c.b16 %v478, %v477
  %v588 = vpack.c.b16 %v480, %v479
  %v589 = vpack.c.b16 %v482, %v481
  %v590 = vpack.c.b16 %v484, %v483
  %v591 = vpack.c.b16 %v486, %v485
  %v592 = vpack.c.b16 %v488, %v487
  %v593 = vpack.c.b16 %v490, %v489
  %v594 = vpack.c.b16 %v492, %v491
  %v595 = vpack.c.b16 %v494, %v493
  %v596 = vpack.c.b16 %v496, %v495
  %v597 = vpack.c.b16 %v498, %v497
  %v598 = vpack.c.b16 %v500, %v499
  %v599 = vpack.c.b16 %v502, %v501
  %v600 = vpack.c.b16 %v504, %v503
  %v601 = vpack.c.b16 %v506, %v505
  %v602 = vpack.c.b16 %v508, %v507
  %v603 = vpack.c.b16 %v510, %v509
  %v604 = vpack.c.b16 %v512, %v511
  %v605 = vpack.c.b16 %v514, %v513
  %v606 = vpack.c.b16 %v516, %v515
  %v607 = vpack.c.b16 %v518, %v517
  %v608 = vpack.c.b16 %v520, %v519
  %v609 = vpack.c.b16 %v522, %v521
  %v610 = vpack.c.b16 %v524, %v523
  %v611 = vpack.c.b16 %v526, %v525
  %v612 = vpack.c.b16 %v528, %v527
  %v613 = vpack.c.b16 %v530, %v529
  %v614 = vpack.c.b16 %v532, %v531
  %v615 = vpack.c.b16 %v534, %v533
  %v616 = vpack.c.b16 %v536, %v535
  %v617 = vpack.c.b16 %v538, %v537
  %v618 = vpack.c.b16 %v540, %v539
  %v619 = vpack.c.b16 %v542, %v541
  %v620 = vpack.c.b16 %v544, %v543
  %v621 = vpack.c.b16 %v546, %v545
  %v622 = vpack.c.b16 %v548, %v547
  %v623 = vpack.c.b16 %v550, %v549
  %v624 = vpack.c.b16 %v552, %v551
  %v625 = vpack.c.b16 %v554, %v553
  %v626 = vpack.c.b16 %v556, %v555
  %v627 = vpack.c.b16 %v558, %v557
  %v628 = vpack.c.b16 %v560, %v559
  %v629 = vpack.c.b16 %v562, %v561
  %v630 = vpack.c.b16 %v564, %v563
  %v631 = vpack.c.b16 %v566, %v565
  %v632 = vpack.c.b16 %v568, %v567
  %697 = vmatprep.subr.bf16.mxu0 0
  %698 = vmatpush1.bf16.msra.mxu0 %v569
  %699 = vmatprep.subr.bf16.mxu0 0
  %700 = vmatpush1.bf16.msra.mxu0 %v570
  %701 = vmatprep.subr.bf16.mxu0 0
  %702 = vmatpush1.bf16.msra.mxu0 %v571
  %703 = vmatprep.subr.bf16.mxu0 0
  %704 = vmatpush1.bf16.msra.mxu0 %v572
  %705 = vmatprep.subr.bf16.mxu0 0
  %706 = vmatpush1.bf16.msra.mxu0 %v573
  %707 = vmatprep.subr.bf16.mxu0 0
  %708 = vmatpush1.bf16.msra.mxu0 %v574
  %709 = vmatprep.subr.bf16.mxu0 0
  %710 = vmatpush1.bf16.msra.mxu0 %v575
  %711 = vmatprep.subr.bf16.mxu0 0
  %712 = vmatpush1.bf16.msra.mxu0 %v576
  %713 = vmatprep.subr.bf16.mxu0 0
  %714 = vmatpush1.bf16.msra.mxu0 %v577
  %715 = vmatprep.subr.bf16.mxu0 0
  %716 = vmatpush1.bf16.msra.mxu0 %v578
  %717 = vmatprep.subr.bf16.mxu0 0
  %718 = vmatpush1.bf16.msra.mxu0 %v579
  %719 = vmatprep.subr.bf16.mxu0 0
  %720 = vmatpush1.bf16.msra.mxu0 %v580
  %721 = vmatprep.subr.bf16.mxu0 0
  %722 = vmatpush1.bf16.msra.mxu0 %v581
  %723 = vmatprep.subr.bf16.mxu0 0
  %724 = vmatpush1.bf16.msra.mxu0 %v582
  %725 = vmatprep.subr.bf16.mxu0 0
  %726 = vmatpush1.bf16.msra.mxu0 %v583
  %727 = vmatprep.subr.bf16.mxu0 0
  %728 = vmatpush1.bf16.msra.mxu0 %v584
  %729 = vmatprep.mubr.bf16.mxu0 %v298
  %730 = vmatmul.mubr.bf16.gmra.mrb[0].mxu0 %v297
  %v731 = vpop.f32.mrb[0].mxu0
  %v732 = vadd.f32 0.0, %v731
  %v733 = vpop.f32.mrb[0].mxu0
  %v734 = vpop.f32.mrb[0].mxu0
  %v735 = vpop.f32.mrb[0].mxu0
  %736 = vdwg.mxu0
  %737 = vmatprep.subr.bf16.mxu0 0
  %738 = vmatpush1.bf16.msra.mxu0 %v585
  %739 = vmatprep.subr.bf16.mxu0 0
  %740 = vmatpush1.bf16.msra.mxu0 %v586
  %741 = vmatprep.subr.bf16.mxu0 0
  %742 = vmatpush1.bf16.msra.mxu0 %v587
  %743 = vmatprep.subr.bf16.mxu0 0
  %744 = vmatpush1.bf16.msra.mxu0 %v588
  %745 = vmatprep.subr.bf16.mxu0 0
  %746 = vmatpush1.bf16.msra.mxu0 %v589
  %747 = vmatprep.subr.bf16.mxu0 0
  %748 = vmatpush1.bf16.msra.mxu0 %v590
  %749 = vmatprep.subr.bf16.mxu0 0
  %750 = vmatpush1.bf16.msra.mxu0 %v591
  %751 = vmatprep.subr.bf16.mxu0 0
  %752 = vmatpush1.bf16.msra.mxu0 %v592
  %753 = vmatprep.subr.bf16.mxu0 0
  %754 = vmatpush1.bf16.msra.mxu0 %v593
  %755 = vmatprep.subr.bf16.mxu0 0
  %756 = vmatpush1.bf16.msra.mxu0 %v594
  %757 = vmatprep.subr.bf16.mxu0 0
  %758 = vmatpush1.bf16.msra.mxu0 %v595
  %759 = vmatprep.subr.bf16.mxu0 0
  %760 = vmatpush1.bf16.msra.mxu0 %v596
  %761 = vmatprep.subr.bf16.mxu0 0
  %762 = vmatpush1.bf16.msra.mxu0 %v597
  %763 = vmatprep.subr.bf16.mxu0 0
  %764 = vmatpush1.bf16.msra.mxu0 %v598
  %765 = vmatprep.subr.bf16.mxu0 0
  %766 = vmatpush1.bf16.msra.mxu0 %v599
  %767 = vmatprep.subr.bf16.mxu0 0
  %768 = vmatpush1.bf16.msra.mxu0 %v600
  %769 = vmatprep.mubr.bf16.mxu0 %v300
  %770 = vmatmul.mubr.bf16.gmra.mrb[0].mxu0 %v299
  %v771 = vpop.f32.mrb[0].mxu0
  %v772 = vadd.f32 %v732, %v771
  %v773 = vpop.f32.mrb[0].mxu0
  %v774 = vpop.f32.mrb[0].mxu0
  %v775 = vpop.f32.mrb[0].mxu0
  %776 = vdwg.mxu0
  %777 = vmatprep.subr.bf16.mxu0 0
  %778 = vmatpush1.bf16.msra.mxu0 %v601
  %779 = vmatprep.subr.bf16.mxu0 0
  %780 = vmatpush1.bf16.msra.mxu0 %v602
  %781 = vmatprep.subr.bf16.mxu0 0
  %782 = vmatpush1.bf16.msra.mxu0 %v603
  %783 = vmatprep.subr.bf16.mxu0 0
  %784 = vmatpush1.bf16.msra.mxu0 %v604
  %785 = vmatprep.subr.bf16.mxu0 0
  %786 = vmatpush1.bf16.msra.mxu0 %v605
  %787 = vmatprep.subr.bf16.mxu0 0
  %788 = vmatpush1.bf16.msra.mxu0 %v606
  %789 = vmatprep.subr.bf16.mxu0 0
  %790 = vmatpush1.bf16.msra.mxu0 %v607
  %791 = vmatprep.subr.bf16.mxu0 0
  %792 = vmatpush1.bf16.msra.mxu0 %v608
  %793 = vmatprep.subr.bf16.mxu0 0
  %794 = vmatpush1.bf16.msra.mxu0 %v609
  %795 = vmatprep.subr.bf16.mxu0 0
  %796 = vmatpush1.bf16.msra.mxu0 %v610
  %797 = vmatprep.subr.bf16.mxu0 0
  %798 = vmatpush1.bf16.msra.mxu0 %v611
  %799 = vmatprep.subr.bf16.mxu0 0
  %800 = vmatpush1.bf16.msra.mxu0 %v612
  %801 = vmatprep.subr.bf16.mxu0 0
  %802 = vmatpush1.bf16.msra.mxu0 %v613
  %803 = vmatprep.subr.bf16.mxu0 0
  %804 = vmatpush1.bf16.msra.mxu0 %v614
  %805 = vmatprep.subr.bf16.mxu0 0
  %806 = vmatpush1.bf16.msra.mxu0 %v615
  %807 = vmatprep.subr.bf16.mxu0 0
  %808 = vmatpush1.bf16.msra.mxu0 %v616
  %809 = vmatprep.mubr.bf16.mxu0 %v302
  %810 = vmatmul.mubr.bf16.gmra.mrb[0].mxu0 %v301
  %v811 = vpop.f32.mrb[0].mxu0
  %v812 = vadd.f32 %v772, %v811
  %v813 = vpop.f32.mrb[0].mxu0
  %v814 = vpop.f32.mrb[0].mxu0
  %v815 = vpop.f32.mrb[0].mxu0
  %816 = vdwg.mxu0
  %817 = vmatprep.subr.bf16.mxu0 0
  %818 = vmatpush1.bf16.msra.mxu0 %v617
  %819 = vmatprep.subr.bf16.mxu0 0
  %820 = vmatpush1.bf16.msra.mxu0 %v618
  %821 = vmatprep.subr.bf16.mxu0 0
  %822 = vmatpush1.bf16.msra.mxu0 %v619
  %823 = vmatprep.subr.bf16.mxu0 0
  %824 = vmatpush1.bf16.msra.mxu0 %v620
  %825 = vmatprep.subr.bf16.mxu0 0
  %826 = vmatpush1.bf16.msra.mxu0 %v621
  %827 = vmatprep.subr.bf16.mxu0 0
  %828 = vmatpush1.bf16.msra.mxu0 %v622
  %829 = vmatprep.subr.bf16.mxu0 0
  %830 = vmatpush1.bf16.msra.mxu0 %v623
  %831 = vmatprep.subr.bf16.mxu0 0
  %832 = vmatpush1.bf16.msra.mxu0 %v624
  %833 = vmatprep.subr.bf16.mxu0 0
  %834 = vmatpush1.bf16.msra.mxu0 %v625
  %835 = vmatprep.subr.bf16.mxu0 0
  %836 = vmatpush1.bf16.msra.mxu0 %v626
  %837 = vmatprep.subr.bf16.mxu0 0
  %838 = vmatpush1.bf16.msra.mxu0 %v627
  %839 = vmatprep.subr.bf16.mxu0 0
  %840 = vmatpush1.bf16.msra.mxu0 %v628
  %841 = vmatprep.subr.bf16.mxu0 0
  %842 = vmatpush1.bf16.msra.mxu0 %v629
  %843 = vmatprep.subr.bf16.mxu0 0
  %844 = vmatpush1.bf16.msra.mxu0 %v630
  %845 = vmatprep.subr.bf16.mxu0 0
  %846 = vmatpush1.bf16.msra.mxu0 %v631
  %847 = vmatprep.subr.bf16.mxu0 0
  %848 = vmatpush1.bf16.msra.mxu0 %v632
  %849 = vmatprep.mubr.bf16.mxu0 %v304
  %850 = vmatmul.mubr.bf16.gmra.mrb[0].mxu0 %v303
  %v851 = vpop.f32.mrb[0].mxu0
  %v852 = vadd.f32 %v812, %v851
  %v853 = vpop.f32.mrb[0].mxu0
  %v854 = vpop.f32.mrb[0].mxu0
  %v855 = vpop.f32.mrb[0].mxu0
  %856 = vdwg.mxu0
  %v861 = vunpack.c.l.b16 %v21
  %v862 = vunpack.c.h.b16 %v21
  %v863 = vunpack.c.l.b16 %v22
  %v864 = vunpack.c.h.b16 %v22
  %v865 = vunpack.c.l.b16 %v23
  %v866 = vunpack.c.h.b16 %v23
  %v867 = vunpack.c.l.b16 %v24
  %v868 = vunpack.c.h.b16 %v24
  %v869 = vpack.c.b16 %v861, %v861
  %v870 = vpack.c.b16 %v862, %v862
  %v871 = vpack.c.b16 %v863, %v863
  %v872 = vpack.c.b16 %v864, %v864
  %v873 = vpack.c.b16 %v865, %v865
  %v874 = vpack.c.b16 %v866, %v866
  %v875 = vpack.c.b16 %v867, %v867
  %v876 = vpack.c.b16 %v868, %v868
  %v1013 = vunpack.c.l.b16 %v25
  %v1014 = vunpack.c.l.b16 %v26
  %v1015 = vunpack.c.l.b16 %v27
  %v1016 = vunpack.c.l.b16 %v28
  %v1017 = vunpack.c.l.b16 %v29
  %v1018 = vunpack.c.l.b16 %v30
  %v1019 = vunpack.c.l.b16 %v31
  %v1020 = vunpack.c.l.b16 %v32
  %v1021 = vunpack.c.l.b16 %v33
  %v1022 = vunpack.c.l.b16 %v34
  %v1023 = vunpack.c.l.b16 %v35
  %v1024 = vunpack.c.l.b16 %v36
  %v1025 = vunpack.c.l.b16 %v37
  %v1026 = vunpack.c.l.b16 %v38
  %v1027 = vunpack.c.l.b16 %v39
  %v1028 = vunpack.c.l.b16 %v40
  %v1029 = vunpack.c.l.b16 %v41
  %v1030 = vunpack.c.l.b16 %v42
  %v1031 = vunpack.c.l.b16 %v43
  %v1032 = vunpack.c.l.b16 %v44
  %v1033 = vunpack.c.l.b16 %v45
  %v1034 = vunpack.c.l.b16 %v46
  %v1035 = vunpack.c.l.b16 %v47
  %v1036 = vunpack.c.l.b16 %v48
  %v1037 = vunpack.c.l.b16 %v49
  %v1038 = vunpack.c.l.b16 %v50
  %v1039 = vunpack.c.l.b16 %v51
  %v1040 = vunpack.c.l.b16 %v52
  %v1041 = vunpack.c.l.b16 %v53
  %v1042 = vunpack.c.l.b16 %v54
  %v1043 = vunpack.c.l.b16 %v55
  %v1044 = vunpack.c.l.b16 %v56
  %v1045 = vunpack.c.l.b16 %v57
  %v1046 = vunpack.c.l.b16 %v58
  %v1047 = vunpack.c.l.b16 %v59
  %v1048 = vunpack.c.l.b16 %v60
  %v1049 = vunpack.c.l.b16 %v61
  %v1050 = vunpack.c.l.b16 %v62
  %v1051 = vunpack.c.l.b16 %v63
  %v1052 = vunpack.c.l.b16 %v64
  %v1053 = vunpack.c.l.b16 %v65
  %v1054 = vunpack.c.l.b16 %v66
  %v1055 = vunpack.c.l.b16 %v67
  %v1056 = vunpack.c.l.b16 %v68
  %v1057 = vunpack.c.l.b16 %v69
  %v1058 = vunpack.c.l.b16 %v70
  %v1059 = vunpack.c.l.b16 %v71
  %v1060 = vunpack.c.l.b16 %v72
  %v1061 = vunpack.c.l.b16 %v73
  %v1062 = vunpack.c.l.b16 %v74
  %v1063 = vunpack.c.l.b16 %v75
  %v1064 = vunpack.c.l.b16 %v76
  %v1065 = vunpack.c.l.b16 %v77
  %v1066 = vunpack.c.l.b16 %v78
  %v1067 = vunpack.c.l.b16 %v79
  %v1068 = vunpack.c.l.b16 %v80
  %v1069 = vunpack.c.l.b16 %v81
  %v1070 = vunpack.c.l.b16 %v82
  %v1071 = vunpack.c.l.b16 %v83
  %v1072 = vunpack.c.l.b16 %v84
  %v1073 = vunpack.c.l.b16 %v85
  %v1074 = vunpack.c.l.b16 %v86
  %v1075 = vunpack.c.l.b16 %v87
  %v1076 = vunpack.c.l.b16 %v88
  %v1077 = vunpack.c.l.b16 %v89
  %v1078 = vunpack.c.l.b16 %v90
  %v1079 = vunpack.c.l.b16 %v91
  %v1080 = vunpack.c.l.b16 %v92
  %v1081 = vunpack.c.l.b16 %v93
  %v1082 = vunpack.c.l.b16 %v94
  %v1083 = vunpack.c.l.b16 %v95
  %v1084 = vunpack.c.l.b16 %v96
  %v1085 = vunpack.c.l.b16 %v97
  %v1086 = vunpack.c.l.b16 %v98
  %v1087 = vunpack.c.l.b16 %v99
  %v1088 = vunpack.c.l.b16 %v100
  %v1089 = vunpack.c.l.b16 %v101
  %v1090 = vunpack.c.l.b16 %v102
  %v1091 = vunpack.c.l.b16 %v103
  %v1092 = vunpack.c.l.b16 %v104
  %v1093 = vunpack.c.l.b16 %v105
  %v1094 = vunpack.c.l.b16 %v106
  %v1095 = vunpack.c.l.b16 %v107
  %v1096 = vunpack.c.l.b16 %v108
  %v1097 = vunpack.c.l.b16 %v109
  %v1098 = vunpack.c.l.b16 %v110
  %v1099 = vunpack.c.l.b16 %v111
  %v1100 = vunpack.c.l.b16 %v112
  %v1101 = vunpack.c.l.b16 %v113
  %v1102 = vunpack.c.l.b16 %v114
  %v1103 = vunpack.c.l.b16 %v115
  %v1104 = vunpack.c.l.b16 %v116
  %v1105 = vunpack.c.l.b16 %v117
  %v1106 = vunpack.c.l.b16 %v118
  %v1107 = vunpack.c.l.b16 %v119
  %v1108 = vunpack.c.l.b16 %v120
  %v1109 = vunpack.c.l.b16 %v121
  %v1110 = vunpack.c.l.b16 %v122
  %v1111 = vunpack.c.l.b16 %v123
  %v1112 = vunpack.c.l.b16 %v124
  %v1113 = vunpack.c.l.b16 %v125
  %v1114 = vunpack.c.l.b16 %v126
  %v1115 = vunpack.c.l.b16 %v127
  %v1116 = vunpack.c.l.b16 %v128
  %v1117 = vunpack.c.l.b16 %v129
  %v1118 = vunpack.c.l.b16 %v130
  %v1119 = vunpack.c.l.b16 %v131
  %v1120 = vunpack.c.l.b16 %v132
  %v1121 = vunpack.c.l.b16 %v133
  %v1122 = vunpack.c.l.b16 %v134
  %v1123 = vunpack.c.l.b16 %v135
  %v1124 = vunpack.c.l.b16 %v136
  %v1125 = vunpack.c.l.b16 %v137
  %v1126 = vunpack.c.l.b16 %v138
  %v1127 = vunpack.c.l.b16 %v139
  %v1128 = vunpack.c.l.b16 %v140
  %v1129 = vunpack.c.l.b16 %v141
  %v1130 = vunpack.c.l.b16 %v142
  %v1131 = vunpack.c.l.b16 %v143
  %v1132 = vunpack.c.l.b16 %v144
  %v1133 = vunpack.c.l.b16 %v145
  %v1134 = vunpack.c.l.b16 %v146
  %v1135 = vunpack.c.l.b16 %v147
  %v1136 = vunpack.c.l.b16 %v148
  %v1137 = vunpack.c.l.b16 %v149
  %v1138 = vunpack.c.l.b16 %v150
  %v1139 = vunpack.c.l.b16 %v151
  %v1140 = vunpack.c.l.b16 %v152
  %v1141 = vpack.c.b16 %v1014, %v1013
  %v1142 = vpack.c.b16 %v1016, %v1015
  %v1143 = vpack.c.b16 %v1018, %v1017
  %v1144 = vpack.c.b16 %v1020, %v1019
  %v1145 = vpack.c.b16 %v1022, %v1021
  %v1146 = vpack.c.b16 %v1024, %v1023
  %v1147 = vpack.c.b16 %v1026, %v1025
  %v1148 = vpack.c.b16 %v1028, %v1027
  %v1149 = vpack.c.b16 %v1030, %v1029
  %v1150 = vpack.c.b16 %v1032, %v1031
  %v1151 = vpack.c.b16 %v1034, %v1033
  %v1152 = vpack.c.b16 %v1036, %v1035
  %v1153 = vpack.c.b16 %v1038, %v1037
  %v1154 = vpack.c.b16 %v1040, %v1039
  %v1155 = vpack.c.b16 %v1042, %v1041
  %v1156 = vpack.c.b16 %v1044, %v1043
  %v1157 = vpack.c.b16 %v1046, %v1045
  %v1158 = vpack.c.b16 %v1048, %v1047
  %v1159 = vpack.c.b16 %v1050, %v1049
  %v1160 = vpack.c.b16 %v1052, %v1051
  %v1161 = vpack.c.b16 %v1054, %v1053
  %v1162 = vpack.c.b16 %v1056, %v1055
  %v1163 = vpack.c.b16 %v1058, %v1057
  %v1164 = vpack.c.b16 %v1060, %v1059
  %v1165 = vpack.c.b16 %v1062, %v1061
  %v1166 = vpack.c.b16 %v1064, %v1063
  %v1167 = vpack.c.b16 %v1066, %v1065
  %v1168 = vpack.c.b16 %v1068, %v1067
  %v1169 = vpack.c.b16 %v1070, %v1069
  %v1170 = vpack.c.b16 %v1072, %v1071
  %v1171 = vpack.c.b16 %v1074, %v1073
  %v1172 = vpack.c.b16 %v1076, %v1075
  %v1173 = vpack.c.b16 %v1078, %v1077
  %v1174 = vpack.c.b16 %v1080, %v1079
  %v1175 = vpack.c.b16 %v1082, %v1081
  %v1176 = vpack.c.b16 %v1084, %v1083
  %v1177 = vpack.c.b16 %v1086, %v1085
  %v1178 = vpack.c.b16 %v1088, %v1087
  %v1179 = vpack.c.b16 %v1090, %v1089
  %v1180 = vpack.c.b16 %v1092, %v1091
  %v1181 = vpack.c.b16 %v1094, %v1093
  %v1182 = vpack.c.b16 %v1096, %v1095
  %v1183 = vpack.c.b16 %v1098, %v1097
  %v1184 = vpack.c.b16 %v1100, %v1099
  %v1185 = vpack.c.b16 %v1102, %v1101
  %v1186 = vpack.c.b16 %v1104, %v1103
  %v1187 = vpack.c.b16 %v1106, %v1105
  %v1188 = vpack.c.b16 %v1108, %v1107
  %v1189 = vpack.c.b16 %v1110, %v1109
  %v1190 = vpack.c.b16 %v1112, %v1111
  %v1191 = vpack.c.b16 %v1114, %v1113
  %v1192 = vpack.c.b16 %v1116, %v1115
  %v1193 = vpack.c.b16 %v1118, %v1117
  %v1194 = vpack.c.b16 %v1120, %v1119
  %v1195 = vpack.c.b16 %v1122, %v1121
  %v1196 = vpack.c.b16 %v1124, %v1123
  %v1197 = vpack.c.b16 %v1126, %v1125
  %v1198 = vpack.c.b16 %v1128, %v1127
  %v1199 = vpack.c.b16 %v1130, %v1129
  %v1200 = vpack.c.b16 %v1132, %v1131
  %v1201 = vpack.c.b16 %v1134, %v1133
  %v1202 = vpack.c.b16 %v1136, %v1135
  %v1203 = vpack.c.b16 %v1138, %v1137
  %v1204 = vpack.c.b16 %v1140, %v1139
  %1269 = vmatprep.subr.bf16.mxu0 0
  %1270 = vmatpush1.bf16.msra.mxu0 %v1141
  %1271 = vmatprep.subr.bf16.mxu0 0
  %1272 = vmatpush1.bf16.msra.mxu0 %v1142
  %1273 = vmatprep.subr.bf16.mxu0 0
  %1274 = vmatpush1.bf16.msra.mxu0 %v1143
  %1275 = vmatprep.subr.bf16.mxu0 0
  %1276 = vmatpush1.bf16.msra.mxu0 %v1144
  %1277 = vmatprep.subr.bf16.mxu0 0
  %1278 = vmatpush1.bf16.msra.mxu0 %v1145
  %1279 = vmatprep.subr.bf16.mxu0 0
  %1280 = vmatpush1.bf16.msra.mxu0 %v1146
  %1281 = vmatprep.subr.bf16.mxu0 0
  %1282 = vmatpush1.bf16.msra.mxu0 %v1147
  %1283 = vmatprep.subr.bf16.mxu0 0
  %1284 = vmatpush1.bf16.msra.mxu0 %v1148
  %1285 = vmatprep.subr.bf16.mxu0 0
  %1286 = vmatpush1.bf16.msra.mxu0 %v1149
  %1287 = vmatprep.subr.bf16.mxu0 0
  %1288 = vmatpush1.bf16.msra.mxu0 %v1150
  %1289 = vmatprep.subr.bf16.mxu0 0
  %1290 = vmatpush1.bf16.msra.mxu0 %v1151
  %1291 = vmatprep.subr.bf16.mxu0 0
  %1292 = vmatpush1.bf16.msra.mxu0 %v1152
  %1293 = vmatprep.subr.bf16.mxu0 0
  %1294 = vmatpush1.bf16.msra.mxu0 %v1153
  %1295 = vmatprep.subr.bf16.mxu0 0
  %1296 = vmatpush1.bf16.msra.mxu0 %v1154
  %1297 = vmatprep.subr.bf16.mxu0 0
  %1298 = vmatpush1.bf16.msra.mxu0 %v1155
  %1299 = vmatprep.subr.bf16.mxu0 0
  %1300 = vmatpush1.bf16.msra.mxu0 %v1156
  %1301 = vmatprep.mubr.bf16.mxu0 %v870
  %1302 = vmatmul.mubr.bf16.gmra.mrb[0].mxu0 %v869
  %v1303 = vpop.f32.mrb[0].mxu0
  %v1304 = vadd.f32 %v852, %v1303
  %v1305 = vpop.f32.mrb[0].mxu0
  %v1306 = vpop.f32.mrb[0].mxu0
  %v1307 = vpop.f32.mrb[0].mxu0
  %1308 = vdwg.mxu0
  %1309 = vmatprep.subr.bf16.mxu0 0
  %1310 = vmatpush1.bf16.msra.mxu0 %v1157
  %1311 = vmatprep.subr.bf16.mxu0 0
  %1312 = vmatpush1.bf16.msra.mxu0 %v1158
  %1313 = vmatprep.subr.bf16.mxu0 0
  %1314 = vmatpush1.bf16.msra.mxu0 %v1159
  %1315 = vmatprep.subr.bf16.mxu0 0
  %1316 = vmatpush1.bf16.msra.mxu0 %v1160
  %1317 = vmatprep.subr.bf16.mxu0 0
  %1318 = vmatpush1.bf16.msra.mxu0 %v1161
  %1319 = vmatprep.subr.bf16.mxu0 0
  %1320 = vmatpush1.bf16.msra.mxu0 %v1162
  %1321 = vmatprep.subr.bf16.mxu0 0
  %1322 = vmatpush1.bf16.msra.mxu0 %v1163
  %1323 = vmatprep.subr.bf16.mxu0 0
  %1324 = vmatpush1.bf16.msra.mxu0 %v1164
  %1325 = vmatprep.subr.bf16.mxu0 0
  %1326 = vmatpush1.bf16.msra.mxu0 %v1165
  %1327 = vmatprep.subr.bf16.mxu0 0
  %1328 = vmatpush1.bf16.msra.mxu0 %v1166
  %1329 = vmatprep.subr.bf16.mxu0 0
  %1330 = vmatpush1.bf16.msra.mxu0 %v1167
  %1331 = vmatprep.subr.bf16.mxu0 0
  %1332 = vmatpush1.bf16.msra.mxu0 %v1168
  %1333 = vmatprep.subr.bf16.mxu0 0
  %1334 = vmatpush1.bf16.msra.mxu0 %v1169
  %1335 = vmatprep.subr.bf16.mxu0 0
  %1336 = vmatpush1.bf16.msra.mxu0 %v1170
  %1337 = vmatprep.subr.bf16.mxu0 0
  %1338 = vmatpush1.bf16.msra.mxu0 %v1171
  %1339 = vmatprep.subr.bf16.mxu0 0
  %1340 = vmatpush1.bf16.msra.mxu0 %v1172
  %1341 = vmatprep.mubr.bf16.mxu0 %v872
  %1342 = vmatmul.mubr.bf16.gmra.mrb[0].mxu0 %v871
  %v1343 = vpop.f32.mrb[0].mxu0
  %v1344 = vadd.f32 %v1304, %v1343
  %v1345 = vpop.f32.mrb[0].mxu0
  %v1346 = vpop.f32.mrb[0].mxu0
  %v1347 = vpop.f32.mrb[0].mxu0
  %1348 = vdwg.mxu0
  %1349 = vmatprep.subr.bf16.mxu0 0
  %1350 = vmatpush1.bf16.msra.mxu0 %v1173
  %1351 = vmatprep.subr.bf16.mxu0 0
  %1352 = vmatpush1.bf16.msra.mxu0 %v1174
  %1353 = vmatprep.subr.bf16.mxu0 0
  %1354 = vmatpush1.bf16.msra.mxu0 %v1175
  %1355 = vmatprep.subr.bf16.mxu0 0
  %1356 = vmatpush1.bf16.msra.mxu0 %v1176
  %1357 = vmatprep.subr.bf16.mxu0 0
  %1358 = vmatpush1.bf16.msra.mxu0 %v1177
  %1359 = vmatprep.subr.bf16.mxu0 0
  %1360 = vmatpush1.bf16.msra.mxu0 %v1178
  %1361 = vmatprep.subr.bf16.mxu0 0
  %1362 = vmatpush1.bf16.msra.mxu0 %v1179
  %1363 = vmatprep.subr.bf16.mxu0 0
  %1364 = vmatpush1.bf16.msra.mxu0 %v1180
  %1365 = vmatprep.subr.bf16.mxu0 0
  %1366 = vmatpush1.bf16.msra.mxu0 %v1181
  %1367 = vmatprep.subr.bf16.mxu0 0
  %1368 = vmatpush1.bf16.msra.mxu0 %v1182
  %1369 = vmatprep.subr.bf16.mxu0 0
  %1370 = vmatpush1.bf16.msra.mxu0 %v1183
  %1371 = vmatprep.subr.bf16.mxu0 0
  %1372 = vmatpush1.bf16.msra.mxu0 %v1184
  %1373 = vmatprep.subr.bf16.mxu0 0
  %1374 = vmatpush1.bf16.msra.mxu0 %v1185
  %1375 = vmatprep.subr.bf16.mxu0 0
  %1376 = vmatpush1.bf16.msra.mxu0 %v1186
  %1377 = vmatprep.subr.bf16.mxu0 0
  %1378 = vmatpush1.bf16.msra.mxu0 %v1187
  %1379 = vmatprep.subr.bf16.mxu0 0
  %1380 = vmatpush1.bf16.msra.mxu0 %v1188
  %1381 = vmatprep.mubr.bf16.mxu0 %v874
  %1382 = vmatmul.mubr.bf16.gmra.mrb[0].mxu0 %v873
  %v1383 = vpop.f32.mrb[0].mxu0
  %v1384 = vadd.f32 %v1344, %v1383
  %v1385 = vpop.f32.mrb[0].mxu0
  %v1386 = vpop.f32.mrb[0].mxu0
  %v1387 = vpop.f32.mrb[0].mxu0
  %1388 = vdwg.mxu0
  %1389 = vmatprep.subr.bf16.mxu0 0
  %1390 = vmatpush1.bf16.msra.mxu0 %v1189
  %1391 = vmatprep.subr.bf16.mxu0 0
  %1392 = vmatpush1.bf16.msra.mxu0 %v1190
  %1393 = vmatprep.subr.bf16.mxu0 0
  %1394 = vmatpush1.bf16.msra.mxu0 %v1191
  %1395 = vmatprep.subr.bf16.mxu0 0
  %1396 = vmatpush1.bf16.msra.mxu0 %v1192
  %1397 = vmatprep.subr.bf16.mxu0 0
  %1398 = vmatpush1.bf16.msra.mxu0 %v1193
  %1399 = vmatprep.subr.bf16.mxu0 0
  %1400 = vmatpush1.bf16.msra.mxu0 %v1194
  %1401 = vmatprep.subr.bf16.mxu0 0
  %1402 = vmatpush1.bf16.msra.mxu0 %v1195
  %1403 = vmatprep.subr.bf16.mxu0 0
  %1404 = vmatpush1.bf16.msra.mxu0 %v1196
  %1405 = vmatprep.subr.bf16.mxu0 0
  %1406 = vmatpush1.bf16.msra.mxu0 %v1197
  %1407 = vmatprep.subr.bf16.mxu0 0
  %1408 = vmatpush1.bf16.msra.mxu0 %v1198
  %1409 = vmatprep.subr.bf16.mxu0 0
  %1410 = vmatpush1.bf16.msra.mxu0 %v1199
  %1411 = vmatprep.subr.bf16.mxu0 0
  %1412 = vmatpush1.bf16.msra.mxu0 %v1200
  %1413 = vmatprep.subr.bf16.mxu0 0
  %1414 = vmatpush1.bf16.msra.mxu0 %v1201
  %1415 = vmatprep.subr.bf16.mxu0 0
  %1416 = vmatpush1.bf16.msra.mxu0 %v1202
  %1417 = vmatprep.subr.bf16.mxu0 0
  %1418 = vmatpush1.bf16.msra.mxu0 %v1203
  %1419 = vmatprep.subr.bf16.mxu0 0
  %1420 = vmatpush1.bf16.msra.mxu0 %v1204
  %1421 = vmatprep.mubr.bf16.mxu0 %v876
  %1422 = vmatmul.mubr.bf16.gmra.mrb[0].mxu0 %v875
  %v1423 = vpop.f32.mrb[0].mxu0
  %v1424 = vadd.f32 %v1384, %v1423
  %v1425 = vpop.f32.mrb[0].mxu0
  %v1426 = vpop.f32.mrb[0].mxu0
  %v1427 = vpop.f32.mrb[0].mxu0
  %1428 = vdwg.mxu0
  %v1429 = vld [vmem:[%s4] sm:$0xff]
  %1431 = vset.pattern.permute.xlu0 0
  %1432 = vperm.xlu0 %1431, %v1429
  %v1433 = vpop.permute.xlu0 %1432
  %v1435 = vadd.f32 %v1424, %v1433
  %v1436 = vmax.f32 %v1435, 0.0
  %v1437 = vpack.c.bf16 %v1436, %v1436
  %1438 = vst [vmem:[%s5] sm:$0xf] %v1437
  // Predicated region
  $region22: #{generator_forward.14} parent=0 // pred_check
    _
  $region23: #{generator_forward.14} parent=0 // pred_check_branch
    %1440 = sbr.rel (0) target = $region25
  $region24: #{generator_forward.14} parent=0 // pred_region
    _
  $region25: #{generator_forward.14} parent=0 // pred_fallthru
    _
  // Predicated region
  $region26: #{generator_forward.14} parent=0 // pred_check
    _
  $region27: #{generator_forward.14} parent=0 // pred_check_branch
    %1442 = sbr.rel (0) target = $region29
  $region28: #{generator_forward.14} parent=0 // pred_region
    _
  $region29: #{generator_forward.14} parent=0 // pred_fallthru
    _

// kernel: generator_forward.13
$region0: #{generator_forward.13}
  #allocation0 [shape = 'u32[]', space=smem, size = 0x4, offset = 0x4, fixed_abs, tag = 'smem constant byte address 0x4 - core index']
  #allocation1 [shape = 'u32[144,128]{1,0:T(1,128)}', space=vmem, size = 0x12000, scoped, tag = 'internal scratch']
  %s0 = inlined_call_operand.vmem [shape: bf16[1024,128], index: 0, kind: input, shape index: {}]
  %s1 = inlined_call_operand.vmem [shape: bf16[1024,128], index: 1, kind: input, shape index: {}]
  %s2 = inlined_call_operand.vmem [shape: bf16[160,1024], index: 2, kind: input, shape index: {}]
  %s3 = inlined_call_operand.vmem [shape: bf16[160,1024], index: 3, kind: input, shape index: {}]
  %s4 = inlined_call_operand.vmem [shape: bf16[160,160], index: 4, kind: input, shape index: {}]
  %s5 = inlined_call_operand.vmem [shape: bf16[160,160], index: 5, kind: input, shape index: {}]
  %s6 = inlined_call_operand.vmem [shape: f32[160,1], index: 6, kind: input, shape index: {}]
  %s7 = inlined_call_operand.vmem [shape: f32[160,1], index: 7, kind: input, shape index: {}]
  %s8 = inlined_call_operand.vmem [shape: f32[160,1], index: 8, kind: input, shape index: {}]
  %s9 = inlined_call_operand.vmem [shape: bf16[160,128], index: 9, kind: output, shape index: {}]
  %s10 = sld [smem:[#allocation0]]
  $region46: #{generator_forward.13} parent=0
    _
  %s12 = ssub.s32 1, %s10
  %s13 = scalar_select 0, %s12, %s10
  // Predicated region
  $region2: #{generator_forward.13} parent=0 // pred_check
    _
  $region3: #{generator_forward.13} parent=0 // pred_check_branch
    %15 = sbr.rel (0) target = $region5
  $region4: #{generator_forward.13} parent=0 // pred_region
    _
  $region5: #{generator_forward.13} parent=0 // pred_fallthru
    _
  // Predicated region
  $region6: #{generator_forward.13} parent=0 // pred_check
    _
  $region7: #{generator_forward.13} parent=0 // pred_check_branch
    %17 = sbr.rel (0) target = $region9
  $region8: #{generator_forward.13} parent=0 // pred_region
    _
  $region9: #{generator_forward.13} parent=0 // pred_fallthru
    _
  // Predicated region
  $region10: #{generator_forward.13} parent=0 // pred_check
    _
  $region11: #{generator_forward.13} parent=0 // pred_check_branch
    %19 = sbr.rel (0) target = $region13
  $region12: #{generator_forward.13} parent=0 // pred_region
    _
  $region13: #{generator_forward.13} parent=0 // pred_fallthru
    _
  // Predicated region
  $region14: #{generator_forward.13} parent=0 // pred_check
    _
  $region15: #{generator_forward.13} parent=0 // pred_check_branch
    %21 = sbr.rel (0) target = $region17
  $region16: #{generator_forward.13} parent=0 // pred_region
    _
  $region17: #{generator_forward.13} parent=0 // pred_fallthru
    _
  // Predicated region
  $region18: #{generator_forward.13} parent=0 // pred_check
    _
  $region19: #{generator_forward.13} parent=0 // pred_check_branch
    %23 = sbr.rel (0) target = $region21
  $region20: #{generator_forward.13} parent=0 // pred_region
    _
  $region21: #{generator_forward.13} parent=0 // pred_fallthru
    _
  // Predicated region
  $region22: #{generator_forward.13} parent=0 // pred_check
    _
  $region23: #{generator_forward.13} parent=0 // pred_check_branch
    %25 = sbr.rel (0) target = $region25
  $region24: #{generator_forward.13} parent=0 // pred_region
    _
  $region25: #{generator_forward.13} parent=0 // pred_fallthru
    _
  // Predicated region
  $region26: #{generator_forward.13} parent=0 // pred_check
    _
  $region27: #{generator_forward.13} parent=0 // pred_check_branch
    %27 = sbr.rel (0) target = $region29
  $region28: #{generator_forward.13} parent=0 // pred_region
    _
  $region29: #{generator_forward.13} parent=0 // pred_fallthru
    _
  // Predicated region
  $region30: #{generator_forward.13} parent=0 // pred_check
    _
  $region31: #{generator_forward.13} parent=0 // pred_check_branch
    %29 = sbr.rel (0) target = $region33
  $region32: #{generator_forward.13} parent=0 // pred_region
    _
  $region33: #{generator_forward.13} parent=0 // pred_fallthru
    _
  // Predicated region
  $region34: #{generator_forward.13} parent=0 // pred_check
    _
  $region35: #{generator_forward.13} parent=0 // pred_check_branch
    %31 = sbr.rel (0) target = $region37
  $region36: #{generator_forward.13} parent=0 // pred_region
    _
  $region37: #{generator_forward.13} parent=0 // pred_fallthru
    _
  %v33 = vld [vmem:[%s2] sm:$0xff]
  %v34 = vld [vmem:[%s2 + $0x8] sm:$0xff]
  %v35 = vld [vmem:[%s2 + $0x10] sm:$0xff]
  %v36 = vld [vmem:[%s2 + $0x18] sm:$0xff]
  %v37 = vld [vmem:[%s2 + $0x20] sm:$0xff]
  %v38 = vld [vmem:[%s2 + $0x28] sm:$0xff]
  %v39 = vld [vmem:[%s2 + $0x30] sm:$0xff]
  %v40 = vld [vmem:[%s2 + $0x38] sm:$0xff]
  %v41 = vld [vmem:[%s2 + $0x40] sm:$0xff]
  %v42 = vld [vmem:[%s2 + $0x48] sm:$0xff]
  %v43 = vld [vmem:[%s2 + $0x50] sm:$0xff]
  %v44 = vld [vmem:[%s2 + $0x58] sm:$0xff]
  %v45 = vld [vmem:[%s2 + $0x60] sm:$0xff]
  %v46 = vld [vmem:[%s2 + $0x68] sm:$0xff]
  %v47 = vld [vmem:[%s2 + $0x70] sm:$0xff]
  %v48 = vld [vmem:[%s2 + $0x78] sm:$0xff]
  %v49 = vld [vmem:[%s2 + $0x80] sm:$0xff]
  %v50 = vld [vmem:[%s2 + $0x88] sm:$0xff]
  %v51 = vld [vmem:[%s2 + $0x90] sm:$0xff]
  %v52 = vld [vmem:[%s2 + $0x98] sm:$0xff]
  %v53 = vld [vmem:[%s2 + $0xa0] sm:$0xff]
  %v54 = vld [vmem:[%s2 + $0xa8] sm:$0xff]
  %v55 = vld [vmem:[%s2 + $0xb0] sm:$0xff]
  %v56 = vld [vmem:[%s2 + $0xb8] sm:$0xff]
  %v57 = vld [vmem:[%s2 + $0xc0] sm:$0xff]
  %v58 = vld [vmem:[%s2 + $0xc8] sm:$0xff]
  %v59 = vld [vmem:[%s2 + $0xd0] sm:$0xff]
  %v60 = vld [vmem:[%s2 + $0xd8] sm:$0xff]
  %v61 = vld [vmem:[%s2 + $0xe0] sm:$0xff]
  %v62 = vld [vmem:[%s2 + $0xe8] sm:$0xff]
  %v63 = vld [vmem:[%s2 + $0xf0] sm:$0xff]
  %v64 = vld [vmem:[%s2 + $0xf8] sm:$0xff]
  %v65 = vld [vmem:[%s2 + $0x100] sm:$0xff]
  %v66 = vld [vmem:[%s2 + $0x108] sm:$0xff]
  %v67 = vld [vmem:[%s2 + $0x110] sm:$0xff]
  %v68 = vld [vmem:[%s2 + $0x118] sm:$0xff]
  %v69 = vld [vmem:[%s2 + $0x120] sm:$0xff]
  %v70 = vld [vmem:[%s2 + $0x128] sm:$0xff]
  %v71 = vld [vmem:[%s2 + $0x130] sm:$0xff]
  %v72 = vld [vmem:[%s2 + $0x138] sm:$0xff]
  %v73 = vld [vmem:[%s2 + $0x140] sm:$0xff]
  %v74 = vld [vmem:[%s2 + $0x148] sm:$0xff]
  %v75 = vld [vmem:[%s2 + $0x150] sm:$0xff]
  %v76 = vld [vmem:[%s2 + $0x158] sm:$0xff]
  %v77 = vld [vmem:[%s2 + $0x160] sm:$0xff]
  %v78 = vld [vmem:[%s2 + $0x168] sm:$0xff]
  %v79 = vld [vmem:[%s2 + $0x170] sm:$0xff]
  %v80 = vld [vmem:[%s2 + $0x178] sm:$0xff]
  %v81 = vld [vmem:[%s2 + $0x180] sm:$0xff]
  %v82 = vld [vmem:[%s2 + $0x188] sm:$0xff]
  %v83 = vld [vmem:[%s2 + $0x190] sm:$0xff]
  %v84 = vld [vmem:[%s2 + $0x198] sm:$0xff]
  %v85 = vld [vmem:[%s2 + $0x1a0] sm:$0xff]
  %v86 = vld [vmem:[%s2 + $0x1a8] sm:$0xff]
  %v87 = vld [vmem:[%s2 + $0x1b0] sm:$0xff]
  %v88 = vld [vmem:[%s2 + $0x1b8] sm:$0xff]
  %v89 = vld [vmem:[%s2 + $0x1c0] sm:$0xff]
  %v90 = vld [vmem:[%s2 + $0x1c8] sm:$0xff]
  %v91 = vld [vmem:[%s2 + $0x1d0] sm:$0xff]
  %v92 = vld [vmem:[%s2 + $0x1d8] sm:$0xff]
  %v93 = vld [vmem:[%s2 + $0x1e0] sm:$0xff]
  %v94 = vld [vmem:[%s2 + $0x1e8] sm:$0xff]
  %v95 = vld [vmem:[%s2 + $0x1f0] sm:$0xff]
  %v96 = vld [vmem:[%s2 + $0x1f8] sm:$0xff]
  %v97 = vld [vmem:[%s2 + $0x200] sm:$0xff]
  %v98 = vld [vmem:[%s2 + $0x208] sm:$0xff]
  %v99 = vld [vmem:[%s2 + $0x210] sm:$0xff]
  %v100 = vld [vmem:[%s2 + $0x218] sm:$0xff]
  %v101 = vld [vmem:[%s2 + $0x220] sm:$0xff]
  %v102 = vld [vmem:[%s2 + $0x228] sm:$0xff]
  %v103 = vld [vmem:[%s2 + $0x230] sm:$0xff]
  %v104 = vld [vmem:[%s2 + $0x238] sm:$0xff]
  %v105 = vld [vmem:[%s2 + $0x240] sm:$0xff]
  %v106 = vld [vmem:[%s2 + $0x248] sm:$0xff]
  %v107 = vld [vmem:[%s2 + $0x250] sm:$0xff]
  %v108 = vld [vmem:[%s2 + $0x258] sm:$0xff]
  %v109 = vld [vmem:[%s2 + $0x260] sm:$0xff]
  %v110 = vld [vmem:[%s2 + $0x268] sm:$0xff]
  %v111 = vld [vmem:[%s2 + $0x270] sm:$0xff]
  %v112 = vld [vmem:[%s2 + $0x278] sm:$0xff]
  %v113 = vld [vmem:[%s0] sm:$0xf]
  %v114 = vld [vmem:[%s0 + $0x4] sm:$0xf]
  %v115 = vld [vmem:[%s0 + $0x8] sm:$0xf]
  %v116 = vld [vmem:[%s0 + $0xc] sm:$0xf]
  %v117 = vld [vmem:[%s0 + $0x10] sm:$0xf]
  %v118 = vld [vmem:[%s0 + $0x14] sm:$0xf]
  %v119 = vld [vmem:[%s0 + $0x18] sm:$0xf]
  %v120 = vld [vmem:[%s0 + $0x1c] sm:$0xf]
  %v121 = vld [vmem:[%s0 + $0x20] sm:$0xf]
  %v122 = vld [vmem:[%s0 + $0x24] sm:$0xf]
  %v123 = vld [vmem:[%s0 + $0x28] sm:$0xf]
  %v124 = vld [vmem:[%s0 + $0x2c] sm:$0xf]
  %v125 = vld [vmem:[%s0 + $0x30] sm:$0xf]
  %v126 = vld [vmem:[%s0 + $0x34] sm:$0xf]
  %v127 = vld [vmem:[%s0 + $0x38] sm:$0xf]
  %v128 = vld [vmem:[%s0 + $0x3c] sm:$0xf]
  %v129 = vld [vmem:[%s0 + $0x40] sm:$0xf]
  %v130 = vld [vmem:[%s0 + $0x44] sm:$0xf]
  %v131 = vld [vmem:[%s0 + $0x48] sm:$0xf]
  %v132 = vld [vmem:[%s0 + $0x4c] sm:$0xf]
  %v133 = vld [vmem:[%s0 + $0x50] sm:$0xf]
  %v134 = vld [vmem:[%s0 + $0x54] sm:$0xf]
  %v135 = vld [vmem:[%s0 + $0x58] sm:$0xf]
  %v136 = vld [vmem:[%s0 + $0x5c] sm:$0xf]
  %v137 = vld [vmem:[%s0 + $0x60] sm:$0xf]
  %v138 = vld [vmem:[%s0 + $0x64] sm:$0xf]
  %v139 = vld [vmem:[%s0 + $0x68] sm:$0xf]
  %v140 = vld [vmem:[%s0 + $0x6c] sm:$0xf]
  %v141 = vld [vmem:[%s0 + $0x70] sm:$0xf]
  %v142 = vld [vmem:[%s0 + $0x74] sm:$0xf]
  %v143 = vld [vmem:[%s0 + $0x78] sm:$0xf]
  %v144 = vld [vmem:[%s0 + $0x7c] sm:$0xf]
  %v145 = vld [vmem:[%s0 + $0x80] sm:$0xf]
  %v146 = vld [vmem:[%s0 + $0x84] sm:$0xf]
  %v147 = vld [vmem:[%s0 + $0x88] sm:$0xf]
  %v148 = vld [vmem:[%s0 + $0x8c] sm:$0xf]
  %v149 = vld [vmem:[%s0 + $0x90] sm:$0xf]
  %v150 = vld [vmem:[%s0 + $0x94] sm:$0xf]
  %v151 = vld [vmem:[%s0 + $0x98] sm:$0xf]
  %v152 = vld [vmem:[%s0 + $0x9c] sm:$0xf]
  %v153 = vld [vmem:[%s0 + $0xa0] sm:$0xf]
  %v154 = vld [vmem:[%s0 + $0xa4] sm:$0xf]
  %v155 = vld [vmem:[%s0 + $0xa8] sm:$0xf]
  %v156 = vld [vmem:[%s0 + $0xac] sm:$0xf]
  %v157 = vld [vmem:[%s0 + $0xb0] sm:$0xf]
  %v158 = vld [vmem:[%s0 + $0xb4] sm:$0xf]
  %v159 = vld [vmem:[%s0 + $0xb8] sm:$0xf]
  %v160 = vld [vmem:[%s0 + $0xbc] sm:$0xf]
  %v161 = vld [vmem:[%s0 + $0xc0] sm:$0xf]
  %v162 = vld [vmem:[%s0 + $0xc4] sm:$0xf]
  %v163 = vld [vmem:[%s0 + $0xc8] sm:$0xf]
  %v164 = vld [vmem:[%s0 + $0xcc] sm:$0xf]
  %v165 = vld [vmem:[%s0 + $0xd0] sm:$0xf]
  %v166 = vld [vmem:[%s0 + $0xd4] sm:$0xf]
  %v167 = vld [vmem:[%s0 + $0xd8] sm:$0xf]
  %v168 = vld [vmem:[%s0 + $0xdc] sm:$0xf]
  %v169 = vld [vmem:[%s0 + $0xe0] sm:$0xf]
  %v170 = vld [vmem:[%s0 + $0xe4] sm:$0xf]
  %v171 = vld [vmem:[%s0 + $0xe8] sm:$0xf]
  %v172 = vld [vmem:[%s0 + $0xec] sm:$0xf]
  %v173 = vld [vmem:[%s0 + $0xf0] sm:$0xf]
  %v174 = vld [vmem:[%s0 + $0xf4] sm:$0xf]
  %v175 = vld [vmem:[%s0 + $0xf8] sm:$0xf]
  %v176 = vld [vmem:[%s0 + $0xfc] sm:$0xf]
  %v177 = vld [vmem:[%s0 + $0x100] sm:$0xf]
  %v178 = vld [vmem:[%s0 + $0x104] sm:$0xf]
  %v179 = vld [vmem:[%s0 + $0x108] sm:$0xf]
  %v180 = vld [vmem:[%s0 + $0x10c] sm:$0xf]
  %v181 = vld [vmem:[%s0 + $0x110] sm:$0xf]
  %v182 = vld [vmem:[%s0 + $0x114] sm:$0xf]
  %v183 = vld [vmem:[%s0 + $0x118] sm:$0xf]
  %v184 = vld [vmem:[%s0 + $0x11c] sm:$0xf]
  %v185 = vld [vmem:[%s0 + $0x120] sm:$0xf]
  %v186 = vld [vmem:[%s0 + $0x124] sm:$0xf]
  %v187 = vld [vmem:[%s0 + $0x128] sm:$0xf]
  %v188 = vld [vmem:[%s0 + $0x12c] sm:$0xf]
  %v189 = vld [vmem:[%s0 + $0x130] sm:$0xf]
  %v190 = vld [vmem:[%s0 + $0x134] sm:$0xf]
  %v191 = vld [vmem:[%s0 + $0x138] sm:$0xf]
  %v192 = vld [vmem:[%s0 + $0x13c] sm:$0xf]
  %v193 = vld [vmem:[%s0 + $0x140] sm:$0xf]
  %v194 = vld [vmem:[%s0 + $0x144] sm:$0xf]
  %v195 = vld [vmem:[%s0 + $0x148] sm:$0xf]
  %v196 = vld [vmem:[%s0 + $0x14c] sm:$0xf]
  %v197 = vld [vmem:[%s0 + $0x150] sm:$0xf]
  %v198 = vld [vmem:[%s0 + $0x154] sm:$0xf]
  %v199 = vld [vmem:[%s0 + $0x158] sm:$0xf]
  %v200 = vld [vmem:[%s0 + $0x15c] sm:$0xf]
  %v201 = vld [vmem:[%s0 + $0x160] sm:$0xf]
  %v202 = vld [vmem:[%s0 + $0x164] sm:$0xf]
  %v203 = vld [vmem:[%s0 + $0x168] sm:$0xf]
  %v204 = vld [vmem:[%s0 + $0x16c] sm:$0xf]
  %v205 = vld [vmem:[%s0 + $0x170] sm:$0xf]
  %v206 = vld [vmem:[%s0 + $0x174] sm:$0xf]
  %v207 = vld [vmem:[%s0 + $0x178] sm:$0xf]
  %v208 = vld [vmem:[%s0 + $0x17c] sm:$0xf]
  %v209 = vld [vmem:[%s0 + $0x180] sm:$0xf]
  %v210 = vld [vmem:[%s0 + $0x184] sm:$0xf]
  %v211 = vld [vmem:[%s0 + $0x188] sm:$0xf]
  %v212 = vld [vmem:[%s0 + $0x18c] sm:$0xf]
  %v213 = vld [vmem:[%s0 + $0x190] sm:$0xf]
  %v214 = vld [vmem:[%s0 + $0x194] sm:$0xf]
  %v215 = vld [vmem:[%s0 + $0x198] sm:$0xf]
  %v216 = vld [vmem:[%s0 + $0x19c] sm:$0xf]
  %v217 = vld [vmem:[%s0 + $0x1a0] sm:$0xf]
  %v218 = vld [vmem:[%s0 + $0x1a4] sm:$0xf]
  %v219 = vld [vmem:[%s0 + $0x1a8] sm:$0xf]
  %v220 = vld [vmem:[%s0 + $0x1ac] sm:$0xf]
  %v221 = vld [vmem:[%s0 + $0x1b0] sm:$0xf]
  %v222 = vld [vmem:[%s0 + $0x1b4] sm:$0xf]
  %v223 = vld [vmem:[%s0 + $0x1b8] sm:$0xf]
  %v224 = vld [vmem:[%s0 + $0x1bc] sm:$0xf]
  %v225 = vld [vmem:[%s0 + $0x1c0] sm:$0xf]
  %v226 = vld [vmem:[%s0 + $0x1c4] sm:$0xf]
  %v227 = vld [vmem:[%s0 + $0x1c8] sm:$0xf]
  %v228 = vld [vmem:[%s0 + $0x1cc] sm:$0xf]
  %v229 = vld [vmem:[%s0 + $0x1d0] sm:$0xf]
  %v230 = vld [vmem:[%s0 + $0x1d4] sm:$0xf]
  %v231 = vld [vmem:[%s0 + $0x1d8] sm:$0xf]
  %v232 = vld [vmem:[%s0 + $0x1dc] sm:$0xf]
  %v233 = vld [vmem:[%s0 + $0x1e0] sm:$0xf]
  %v234 = vld [vmem:[%s0 + $0x1e4] sm:$0xf]
  %v235 = vld [vmem:[%s0 + $0x1e8] sm:$0xf]
  %v236 = vld [vmem:[%s0 + $0x1ec] sm:$0xf]
  %v237 = vld [vmem:[%s0 + $0x1f0] sm:$0xf]
  %v238 = vld [vmem:[%s0 + $0x1f4] sm:$0xf]
  %v239 = vld [vmem:[%s0 + $0x1f8] sm:$0xf]
  %v240 = vld [vmem:[%s0 + $0x1fc] sm:$0xf]
  %v241 = vld [vmem:[%s6] sm:$0xff]
  %v242 = vld [vmem:[%s6 + $0x8] sm:$0xff]
  %v243 = vld [vmem:[%s6 + $0x10] sm:$0xff]
  %v244 = vld [vmem:[%s6 + $0x18] sm:$0xff]
  %v245 = vld [vmem:[%s6 + $0x20] sm:$0xff]
  %v246 = vld [vmem:[%s6 + $0x28] sm:$0xff]
  %v247 = vld [vmem:[%s6 + $0x30] sm:$0xff]
  %v248 = vld [vmem:[%s6 + $0x38] sm:$0xff]
  %v249 = vld [vmem:[%s6 + $0x40] sm:$0xff]
  %v250 = vld [vmem:[%s6 + $0x48] sm:$0xff]
  %v251 = vld [vmem:[%s6 + $0x50] sm:$0xff]
  %v252 = vld [vmem:[%s6 + $0x58] sm:$0xff]
  %v253 = vld [vmem:[%s6 + $0x60] sm:$0xff]
  %v254 = vld [vmem:[%s6 + $0x68] sm:$0xff]
  %v255 = vld [vmem:[%s6 + $0x70] sm:$0xff]
  %v256 = vld [vmem:[%s6 + $0x78] sm:$0xff]
  %v257 = vld [vmem:[%s6 + $0x80] sm:$0xff]
  %v258 = vld [vmem:[%s6 + $0x88] sm:$0xff]
  %v259 = vld [vmem:[%s6 + $0x90] sm:$0xff]
  %v260 = vld [vmem:[%s6 + $0x98] sm:$0xff]
  %262 = vset.pattern.permute.xlu0 0
  %263 = vperm.xlu0 %262, %v241
  %v264 = vpop.permute.xlu0 %263
  %267 = vset.pattern.permute.xlu0 0
  %268 = vperm.xlu0 %267, %v242
  %v269 = vpop.permute.xlu0 %268
  %272 = vset.pattern.permute.xlu0 0
  %273 = vperm.xlu0 %272, %v243
  %v274 = vpop.permute.xlu0 %273
  %277 = vset.pattern.permute.xlu0 0
  %278 = vperm.xlu0 %277, %v244
  %v279 = vpop.permute.xlu0 %278
  %282 = vset.pattern.permute.xlu0 0
  %283 = vperm.xlu0 %282, %v245
  %v284 = vpop.permute.xlu0 %283
  %287 = vset.pattern.permute.xlu0 0
  %288 = vperm.xlu0 %287, %v246
  %v289 = vpop.permute.xlu0 %288
  %292 = vset.pattern.permute.xlu0 0
  %293 = vperm.xlu0 %292, %v247
  %v294 = vpop.permute.xlu0 %293
  %297 = vset.pattern.permute.xlu0 0
  %298 = vperm.xlu0 %297, %v248
  %v299 = vpop.permute.xlu0 %298
  %302 = vset.pattern.permute.xlu0 0
  %303 = vperm.xlu0 %302, %v249
  %v304 = vpop.permute.xlu0 %303
  %307 = vset.pattern.permute.xlu0 0
  %308 = vperm.xlu0 %307, %v250
  %v309 = vpop.permute.xlu0 %308
  %312 = vset.pattern.permute.xlu0 0
  %313 = vperm.xlu0 %312, %v251
  %v314 = vpop.permute.xlu0 %313
  %317 = vset.pattern.permute.xlu0 0
  %318 = vperm.xlu0 %317, %v252
  %v319 = vpop.permute.xlu0 %318
  %322 = vset.pattern.permute.xlu0 0
  %323 = vperm.xlu0 %322, %v253
  %v324 = vpop.permute.xlu0 %323
  %327 = vset.pattern.permute.xlu0 0
  %328 = vperm.xlu0 %327, %v254
  %v329 = vpop.permute.xlu0 %328
  %332 = vset.pattern.permute.xlu0 0
  %333 = vperm.xlu0 %332, %v255
  %v334 = vpop.permute.xlu0 %333
  %337 = vset.pattern.permute.xlu0 0
  %338 = vperm.xlu0 %337, %v256
  %v339 = vpop.permute.xlu0 %338
  %342 = vset.pattern.permute.xlu0 0
  %343 = vperm.xlu0 %342, %v257
  %v344 = vpop.permute.xlu0 %343
  %347 = vset.pattern.permute.xlu0 0
  %348 = vperm.xlu0 %347, %v258
  %v349 = vpop.permute.xlu0 %348
  %352 = vset.pattern.permute.xlu0 0
  %353 = vperm.xlu0 %352, %v259
  %v354 = vpop.permute.xlu0 %353
  %357 = vset.pattern.permute.xlu0 0
  %358 = vperm.xlu0 %357, %v260
  %v359 = vpop.permute.xlu0 %358
  %v441 = vunpack.c.l.b16 %v33
  %v442 = vunpack.c.h.b16 %v33
  %v443 = vunpack.c.l.b16 %v34
  %v444 = vunpack.c.h.b16 %v34
  %v445 = vunpack.c.l.b16 %v35
  %v446 = vunpack.c.h.b16 %v35
  %v447 = vunpack.c.l.b16 %v36
  %v448 = vunpack.c.h.b16 %v36
  %v449 = vunpack.c.l.b16 %v37
  %v450 = vunpack.c.h.b16 %v37
  %v451 = vunpack.c.l.b16 %v38
  %v452 = vunpack.c.h.b16 %v38
  %v453 = vunpack.c.l.b16 %v39
  %v454 = vunpack.c.h.b16 %v39
  %v455 = vunpack.c.l.b16 %v40
  %v456 = vunpack.c.h.b16 %v40
  %v457 = vunpack.c.l.b16 %v41
  %v458 = vunpack.c.h.b16 %v41
  %v459 = vunpack.c.l.b16 %v42
  %v460 = vunpack.c.h.b16 %v42
  %v461 = vunpack.c.l.b16 %v43
  %v462 = vunpack.c.h.b16 %v43
  %v463 = vunpack.c.l.b16 %v44
  %v464 = vunpack.c.h.b16 %v44
  %v465 = vunpack.c.l.b16 %v45
  %v466 = vunpack.c.h.b16 %v45
  %v467 = vunpack.c.l.b16 %v46
  %v468 = vunpack.c.h.b16 %v46
  %v469 = vunpack.c.l.b16 %v47
  %v470 = vunpack.c.h.b16 %v47
  %v471 = vunpack.c.l.b16 %v48
  %v472 = vunpack.c.h.b16 %v48
  %v473 = vunpack.c.l.b16 %v49
  %v474 = vunpack.c.h.b16 %v49
  %v475 = vunpack.c.l.b16 %v50
  %v476 = vunpack.c.h.b16 %v50
  %v477 = vunpack.c.l.b16 %v51
  %v478 = vunpack.c.h.b16 %v51
  %v479 = vunpack.c.l.b16 %v52
  %v480 = vunpack.c.h.b16 %v52
  %v481 = vunpack.c.l.b16 %v53
  %v482 = vunpack.c.h.b16 %v53
  %v483 = vunpack.c.l.b16 %v54
  %v484 = vunpack.c.h.b16 %v54
  %v485 = vunpack.c.l.b16 %v55
  %v486 = vunpack.c.h.b16 %v55
  %v487 = vunpack.c.l.b16 %v56
  %v488 = vunpack.c.h.b16 %v56
  %v489 = vunpack.c.l.b16 %v57
  %v490 = vunpack.c.h.b16 %v57
  %v491 = vunpack.c.l.b16 %v58
  %v492 = vunpack.c.h.b16 %v58
  %v493 = vunpack.c.l.b16 %v59
  %v494 = vunpack.c.h.b16 %v59
  %v495 = vunpack.c.l.b16 %v60
  %v496 = vunpack.c.h.b16 %v60
  %v497 = vunpack.c.l.b16 %v61
  %v498 = vunpack.c.h.b16 %v61
  %v499 = vunpack.c.l.b16 %v62
  %v500 = vunpack.c.h.b16 %v62
  %v501 = vunpack.c.l.b16 %v63
  %v502 = vunpack.c.h.b16 %v63
  %v503 = vunpack.c.l.b16 %v64
  %v504 = vunpack.c.h.b16 %v64
  %v505 = vunpack.c.l.b16 %v65
  %v506 = vunpack.c.h.b16 %v65
  %v507 = vunpack.c.l.b16 %v66
  %v508 = vunpack.c.h.b16 %v66
  %v509 = vunpack.c.l.b16 %v67
  %v510 = vunpack.c.h.b16 %v67
  %v511 = vunpack.c.l.b16 %v68
  %v512 = vunpack.c.h.b16 %v68
  %v513 = vunpack.c.l.b16 %v69
  %v514 = vunpack.c.h.b16 %v69
  %v515 = vunpack.c.l.b16 %v70
  %v516 = vunpack.c.h.b16 %v70
  %v517 = vunpack.c.l.b16 %v71
  %v518 = vunpack.c.h.b16 %v71
  %v519 = vunpack.c.l.b16 %v72
  %v520 = vunpack.c.h.b16 %v72
  %v521 = vunpack.c.l.b16 %v73
  %v522 = vunpack.c.h.b16 %v73
  %v523 = vunpack.c.l.b16 %v74
  %v524 = vunpack.c.h.b16 %v74
  %v525 = vunpack.c.l.b16 %v75
  %v526 = vunpack.c.h.b16 %v75
  %v527 = vunpack.c.l.b16 %v76
  %v528 = vunpack.c.h.b16 %v76
  %v529 = vunpack.c.l.b16 %v77
  %v530 = vunpack.c.h.b16 %v77
  %v531 = vunpack.c.l.b16 %v78
  %v532 = vunpack.c.h.b16 %v78
  %v533 = vunpack.c.l.b16 %v79
  %v534 = vunpack.c.h.b16 %v79
  %v535 = vunpack.c.l.b16 %v80
  %v536 = vunpack.c.h.b16 %v80
  %v537 = vunpack.c.l.b16 %v81
  %v538 = vunpack.c.h.b16 %v81
  %v539 = vunpack.c.l.b16 %v82
  %v540 = vunpack.c.h.b16 %v82
  %v541 = vunpack.c.l.b16 %v83
  %v542 = vunpack.c.h.b16 %v83
  %v543 = vunpack.c.l.b16 %v84
  %v544 = vunpack.c.h.b16 %v84
  %v545 = vunpack.c.l.b16 %v85
  %v546 = vunpack.c.h.b16 %v85
  %v547 = vunpack.c.l.b16 %v86
  %v548 = vunpack.c.h.b16 %v86
  %v549 = vunpack.c.l.b16 %v87
  %v550 = vunpack.c.h.b16 %v87
  %v551 = vunpack.c.l.b16 %v88
  %v552 = vunpack.c.h.b16 %v88
  %v553 = vunpack.c.l.b16 %v89
  %v554 = vunpack.c.h.b16 %v89
  %v555 = vunpack.c.l.b16 %v90
  %v556 = vunpack.c.h.b16 %v90
  %v557 = vunpack.c.l.b16 %v91
  %v558 = vunpack.c.h.b16 %v91
  %v559 = vunpack.c.l.b16 %v92
  %v560 = vunpack.c.h.b16 %v92
  %v561 = vunpack.c.l.b16 %v93
  %v562 = vunpack.c.h.b16 %v93
  %v563 = vunpack.c.l.b16 %v94
  %v564 = vunpack.c.h.b16 %v94
  %v565 = vunpack.c.l.b16 %v95
  %v566 = vunpack.c.h.b16 %v95
  %v567 = vunpack.c.l.b16 %v96
  %v568 = vunpack.c.h.b16 %v96
  %v569 = vunpack.c.l.b16 %v97
  %v570 = vunpack.c.h.b16 %v97
  %v571 = vunpack.c.l.b16 %v98
  %v572 = vunpack.c.h.b16 %v98
  %v573 = vunpack.c.l.b16 %v99
  %v574 = vunpack.c.h.b16 %v99
  %v575 = vunpack.c.l.b16 %v100
  %v576 = vunpack.c.h.b16 %v100
  %v577 = vunpack.c.l.b16 %v101
  %v578 = vunpack.c.h.b16 %v101
  %v579 = vunpack.c.l.b16 %v102
  %v580 = vunpack.c.h.b16 %v102
  %v581 = vunpack.c.l.b16 %v103
  %v582 = vunpack.c.h.b16 %v103
  %v583 = vunpack.c.l.b16 %v104
  %v584 = vunpack.c.h.b16 %v104
  %v585 = vunpack.c.l.b16 %v105
  %v586 = vunpack.c.h.b16 %v105
  %v587 = vunpack.c.l.b16 %v106
  %v588 = vunpack.c.h.b16 %v106
  %v589 = vunpack.c.l.b16 %v107
  %v590 = vunpack.c.h.b16 %v107
  %v591 = vunpack.c.l.b16 %v108
  %v592 = vunpack.c.h.b16 %v108
  %v593 = vunpack.c.l.b16 %v109
  %v594 = vunpack.c.h.b16 %v109
  %v595 = vunpack.c.l.b16 %v110
  %v596 = vunpack.c.h.b16 %v110
  %v597 = vunpack.c.l.b16 %v111
  %v598 = vunpack.c.h.b16 %v111
  %v599 = vunpack.c.l.b16 %v112
  %v600 = vunpack.c.h.b16 %v112
  %v601 = vpack.c.b16 %v449, %v441
  %v602 = vpack.c.b16 %v450, %v442
  %v603 = vpack.c.b16 %v451, %v443
  %v604 = vpack.c.b16 %v452, %v444
  %v605 = vpack.c.b16 %v453, %v445
  %v606 = vpack.c.b16 %v454, %v446
  %v607 = vpack.c.b16 %v455, %v447
  %v608 = vpack.c.b16 %v456, %v448
  %v609 = vpack.c.b16 %v465, %v457
  %v610 = vpack.c.b16 %v466, %v458
  %v611 = vpack.c.b16 %v467, %v459
  %v612 = vpack.c.b16 %v468, %v460
  %v613 = vpack.c.b16 %v469, %v461
  %v614 = vpack.c.b16 %v470, %v462
  %v615 = vpack.c.b16 %v471, %v463
  %v616 = vpack.c.b16 %v472, %v464
  %v617 = vpack.c.b16 %v481, %v473
  %v618 = vpack.c.b16 %v482, %v474
  %v619 = vpack.c.b16 %v483, %v475
  %v620 = vpack.c.b16 %v484, %v476
  %v621 = vpack.c.b16 %v485, %v477
  %v622 = vpack.c.b16 %v486, %v478
  %v623 = vpack.c.b16 %v487, %v479
  %v624 = vpack.c.b16 %v488, %v480
  %v625 = vpack.c.b16 %v497, %v489
  %v626 = vpack.c.b16 %v498, %v490
  %v627 = vpack.c.b16 %v499, %v491
  %v628 = vpack.c.b16 %v500, %v492
  %v629 = vpack.c.b16 %v501, %v493
  %v630 = vpack.c.b16 %v502, %v494
  %v631 = vpack.c.b16 %v503, %v495
  %v632 = vpack.c.b16 %v504, %v496
  %v633 = vpack.c.b16 %v513, %v505
  %v634 = vpack.c.b16 %v514, %v506
  %v635 = vpack.c.b16 %v515, %v507
  %v636 = vpack.c.b16 %v516, %v508
  %v637 = vpack.c.b16 %v517, %v509
  %v638 = vpack.c.b16 %v518, %v510
  %v639 = vpack.c.b16 %v519, %v511
  %v640 = vpack.c.b16 %v520, %v512
  %v641 = vpack.c.b16 %v529, %v521
  %v642 = vpack.c.b16 %v530, %v522
  %v643 = vpack.c.b16 %v531, %v523
  %v644 = vpack.c.b16 %v532, %v524
  %v645 = vpack.c.b16 %v533, %v525
  %v646 = vpack.c.b16 %v534, %v526
  %v647 = vpack.c.b16 %v535, %v527
  %v648 = vpack.c.b16 %v536, %v528
  %v649 = vpack.c.b16 %v545, %v537
  %v650 = vpack.c.b16 %v546, %v538
  %v651 = vpack.c.b16 %v547, %v539
  %v652 = vpack.c.b16 %v548, %v540
  %v653 = vpack.c.b16 %v549, %v541
  %v654 = vpack.c.b16 %v550, %v542
  %v655 = vpack.c.b16 %v551, %v543
  %v656 = vpack.c.b16 %v552, %v544
  %v657 = vpack.c.b16 %v561, %v553
  %v658 = vpack.c.b16 %v562, %v554
  %v659 = vpack.c.b16 %v563, %v555
  %v660 = vpack.c.b16 %v564, %v556
  %v661 = vpack.c.b16 %v565, %v557
  %v662 = vpack.c.b16 %v566, %v558
  %v663 = vpack.c.b16 %v567, %v559
  %v664 = vpack.c.b16 %v568, %v560
  %v665 = vpack.c.b16 %v577, %v569
  %v666 = vpack.c.b16 %v578, %v570
  %v667 = vpack.c.b16 %v579, %v571
  %v668 = vpack.c.b16 %v580, %v572
  %v669 = vpack.c.b16 %v581, %v573
  %v670 = vpack.c.b16 %v582, %v574
  %v671 = vpack.c.b16 %v583, %v575
  %v672 = vpack.c.b16 %v584, %v576
  %v673 = vpack.c.b16 %v593, %v585
  %v674 = vpack.c.b16 %v594, %v586
  %v675 = vpack.c.b16 %v595, %v587
  %v676 = vpack.c.b16 %v596, %v588
  %v677 = vpack.c.b16 %v597, %v589
  %v678 = vpack.c.b16 %v598, %v590
  %v679 = vpack.c.b16 %v599, %v591
  %v680 = vpack.c.b16 %v600, %v592
  %v889 = vunpack.c.l.b16 %v113
  %v890 = vunpack.c.l.b16 %v114
  %v891 = vunpack.c.l.b16 %v115
  %v892 = vunpack.c.l.b16 %v116
  %v893 = vunpack.c.l.b16 %v117
  %v894 = vunpack.c.l.b16 %v118
  %v895 = vunpack.c.l.b16 %v119
  %v896 = vunpack.c.l.b16 %v120
  %v897 = vunpack.c.l.b16 %v121
  %v898 = vunpack.c.l.b16 %v122
  %v899 = vunpack.c.l.b16 %v123
  %v900 = vunpack.c.l.b16 %v124
  %v901 = vunpack.c.l.b16 %v125
  %v902 = vunpack.c.l.b16 %v126
  %v903 = vunpack.c.l.b16 %v127
  %v904 = vunpack.c.l.b16 %v128
  %v905 = vunpack.c.l.b16 %v129
  %v906 = vunpack.c.l.b16 %v130
  %v907 = vunpack.c.l.b16 %v131
  %v908 = vunpack.c.l.b16 %v132
  %v909 = vunpack.c.l.b16 %v133
  %v910 = vunpack.c.l.b16 %v134
  %v911 = vunpack.c.l.b16 %v135
  %v912 = vunpack.c.l.b16 %v136
  %v913 = vunpack.c.l.b16 %v137
  %v914 = vunpack.c.l.b16 %v138
  %v915 = vunpack.c.l.b16 %v139
  %v916 = vunpack.c.l.b16 %v140
  %v917 = vunpack.c.l.b16 %v141
  %v918 = vunpack.c.l.b16 %v142
  %v919 = vunpack.c.l.b16 %v143
  %v920 = vunpack.c.l.b16 %v144
  %v921 = vunpack.c.l.b16 %v145
  %v922 = vunpack.c.l.b16 %v146
  %v923 = vunpack.c.l.b16 %v147
  %v924 = vunpack.c.l.b16 %v148
  %v925 = vunpack.c.l.b16 %v149
  %v926 = vunpack.c.l.b16 %v150
  %v927 = vunpack.c.l.b16 %v151
  %v928 = vunpack.c.l.b16 %v152
  %v929 = vunpack.c.l.b16 %v153
  %v930 = vunpack.c.l.b16 %v154
  %v931 = vunpack.c.l.b16 %v155
  %v932 = vunpack.c.l.b16 %v156
  %v933 = vunpack.c.l.b16 %v157
  %v934 = vunpack.c.l.b16 %v158
  %v935 = vunpack.c.l.b16 %v159
  %v936 = vunpack.c.l.b16 %v160
  %v937 = vunpack.c.l.b16 %v161
  %v938 = vunpack.c.l.b16 %v162
  %v939 = vunpack.c.l.b16 %v163
  %v940 = vunpack.c.l.b16 %v164
  %v941 = vunpack.c.l.b16 %v165
  %v942 = vunpack.c.l.b16 %v166
  %v943 = vunpack.c.l.b16 %v167
  %v944 = vunpack.c.l.b16 %v168
  %v945 = vunpack.c.l.b16 %v169
  %v946 = vunpack.c.l.b16 %v170
  %v947 = vunpack.c.l.b16 %v171
  %v948 = vunpack.c.l.b16 %v172
  %v949 = vunpack.c.l.b16 %v173
  %v950 = vunpack.c.l.b16 %v174
  %v951 = vunpack.c.l.b16 %v175
  %v952 = vunpack.c.l.b16 %v176
  %v953 = vunpack.c.l.b16 %v177
  %v954 = vunpack.c.l.b16 %v178
  %v955 = vunpack.c.l.b16 %v179
  %v956 = vunpack.c.l.b16 %v180
  %v957 = vunpack.c.l.b16 %v181
  %v958 = vunpack.c.l.b16 %v182
  %v959 = vunpack.c.l.b16 %v183
  %v960 = vunpack.c.l.b16 %v184
  %v961 = vunpack.c.l.b16 %v185
  %v962 = vunpack.c.l.b16 %v186
  %v963 = vunpack.c.l.b16 %v187
  %v964 = vunpack.c.l.b16 %v188
  %v965 = vunpack.c.l.b16 %v189
  %v966 = vunpack.c.l.b16 %v190
  %v967 = vunpack.c.l.b16 %v191
  %v968 = vunpack.c.l.b16 %v192
  %v969 = vunpack.c.l.b16 %v193
  %v970 = vunpack.c.l.b16 %v194
  %v971 = vunpack.c.l.b16 %v195
  %v972 = vunpack.c.l.b16 %v196
  %v973 = vunpack.c.l.b16 %v197
  %v974 = vunpack.c.l.b16 %v198
  %v975 = vunpack.c.l.b16 %v199
  %v976 = vunpack.c.l.b16 %v200
  %v977 = vunpack.c.l.b16 %v201
  %v978 = vunpack.c.l.b16 %v202
  %v979 = vunpack.c.l.b16 %v203
  %v980 = vunpack.c.l.b16 %v204
  %v981 = vunpack.c.l.b16 %v205
  %v982 = vunpack.c.l.b16 %v206
  %v983 = vunpack.c.l.b16 %v207
  %v984 = vunpack.c.l.b16 %v208
  %v985 = vunpack.c.l.b16 %v209
  %v986 = vunpack.c.l.b16 %v210
  %v987 = vunpack.c.l.b16 %v211
  %v988 = vunpack.c.l.b16 %v212
  %v989 = vunpack.c.l.b16 %v213
  %v990 = vunpack.c.l.b16 %v214
  %v991 = vunpack.c.l.b16 %v215
  %v992 = vunpack.c.l.b16 %v216
  %v993 = vunpack.c.l.b16 %v217
  %v994 = vunpack.c.l.b16 %v218
  %v995 = vunpack.c.l.b16 %v219
  %v996 = vunpack.c.l.b16 %v220
  %v997 = vunpack.c.l.b16 %v221
  %v998 = vunpack.c.l.b16 %v222
  %v999 = vunpack.c.l.b16 %v223
  %v1000 = vunpack.c.l.b16 %v224
  %v1001 = vunpack.c.l.b16 %v225
  %v1002 = vunpack.c.l.b16 %v226
  %v1003 = vunpack.c.l.b16 %v227
  %v1004 = vunpack.c.l.b16 %v228
  %v1005 = vunpack.c.l.b16 %v229
  %v1006 = vunpack.c.l.b16 %v230
  %v1007 = vunpack.c.l.b16 %v231
  %v1008 = vunpack.c.l.b16 %v232
  %v1009 = vunpack.c.l.b16 %v233
  %v1010 = vunpack.c.l.b16 %v234
  %v1011 = vunpack.c.l.b16 %v235
  %v1012 = vunpack.c.l.b16 %v236
  %v1013 = vunpack.c.l.b16 %v237
  %v1014 = vunpack.c.l.b16 %v238
  %v1015 = vunpack.c.l.b16 %v239
  %v1016 = vunpack.c.l.b16 %v240
  %v1017 = vpack.c.b16 %v890, %v889
  %v1018 = vpack.c.b16 %v892, %v891
  %v1019 = vpack.c.b16 %v894, %v893
  %v1020 = vpack.c.b16 %v896, %v895
  %v1021 = vpack.c.b16 %v898, %v897
  %v1022 = vpack.c.b16 %v900, %v899
  %v1023 = vpack.c.b16 %v902, %v901
  %v1024 = vpack.c.b16 %v904, %v903
  %v1025 = vpack.c.b16 %v906, %v905
  %v1026 = vpack.c.b16 %v908, %v907
  %v1027 = vpack.c.b16 %v910, %v909
  %v1028 = vpack.c.b16 %v912, %v911
  %v1029 = vpack.c.b16 %v914, %v913
  %v1030 = vpack.c.b16 %v916, %v915
  %v1031 = vpack.c.b16 %v918, %v917
  %v1032 = vpack.c.b16 %v920, %v919
  %v1033 = vpack.c.b16 %v922, %v921
  %v1034 = vpack.c.b16 %v924, %v923
  %v1035 = vpack.c.b16 %v926, %v925
  %v1036 = vpack.c.b16 %v928, %v927
  %v1037 = vpack.c.b16 %v930, %v929
  %v1038 = vpack.c.b16 %v932, %v931
  %v1039 = vpack.c.b16 %v934, %v933
  %v1040 = vpack.c.b16 %v936, %v935
  %v1041 = vpack.c.b16 %v938, %v937
  %v1042 = vpack.c.b16 %v940, %v939
  %v1043 = vpack.c.b16 %v942, %v941
  %v1044 = vpack.c.b16 %v944, %v943
  %v1045 = vpack.c.b16 %v946, %v945
  %v1046 = vpack.c.b16 %v948, %v947
  %v1047 = vpack.c.b16 %v950, %v949
  %v1048 = vpack.c.b16 %v952, %v951
  %v1049 = vpack.c.b16 %v954, %v953
  %v1050 = vpack.c.b16 %v956, %v955
  %v1051 = vpack.c.b16 %v958, %v957
  %v1052 = vpack.c.b16 %v960, %v959
  %v1053 = vpack.c.b16 %v962, %v961
  %v1054 = vpack.c.b16 %v964, %v963
  %v1055 = vpack.c.b16 %v966, %v965
  %v1056 = vpack.c.b16 %v968, %v967
  %v1057 = vpack.c.b16 %v970, %v969
  %v1058 = vpack.c.b16 %v972, %v971
  %v1059 = vpack.c.b16 %v974, %v973
  %v1060 = vpack.c.b16 %v976, %v975
  %v1061 = vpack.c.b16 %v978, %v977
  %v1062 = vpack.c.b16 %v980, %v979
  %v1063 = vpack.c.b16 %v982, %v981
  %v1064 = vpack.c.b16 %v984, %v983
  %v1065 = vpack.c.b16 %v986, %v985
  %v1066 = vpack.c.b16 %v988, %v987
  %v1067 = vpack.c.b16 %v990, %v989
  %v1068 = vpack.c.b16 %v992, %v991
  %v1069 = vpack.c.b16 %v994, %v993
  %v1070 = vpack.c.b16 %v996, %v995
  %v1071 = vpack.c.b16 %v998, %v997
  %v1072 = vpack.c.b16 %v1000, %v999
  %v1073 = vpack.c.b16 %v1002, %v1001
  %v1074 = vpack.c.b16 %v1004, %v1003
  %v1075 = vpack.c.b16 %v1006, %v1005
  %v1076 = vpack.c.b16 %v1008, %v1007
  %v1077 = vpack.c.b16 %v1010, %v1009
  %v1078 = vpack.c.b16 %v1012, %v1011
  %v1079 = vpack.c.b16 %v1014, %v1013
  %v1080 = vpack.c.b16 %v1016, %v1015
  %1145 = vmatprep.subr.bf16.mxu0 0
  %1146 = vmatpush1.bf16.msra.mxu0 %v1017
  %1147 = vmatprep.subr.bf16.mxu0 0
  %1148 = vmatpush1.bf16.msra.mxu0 %v1018
  %1149 = vmatprep.subr.bf16.mxu0 0
  %1150 = vmatpush1.bf16.msra.mxu0 %v1019
  %1151 = vmatprep.subr.bf16.mxu0 0
  %1152 = vmatpush1.bf16.msra.mxu0 %v1020
  %1153 = vmatprep.subr.bf16.mxu0 0
  %1154 = vmatpush1.bf16.msra.mxu0 %v1021
  %1155 = vmatprep.subr.bf16.mxu0 0
  %1156 = vmatpush1.bf16.msra.mxu0 %v1022
  %1157 = vmatprep.subr.bf16.mxu0 0
  %1158 = vmatpush1.bf16.msra.mxu0 %v1023
  %1159 = vmatprep.subr.bf16.mxu0 0
  %1160 = vmatpush1.bf16.msra.mxu0 %v1024
  %1161 = vmatprep.subr.bf16.mxu0 0
  %1162 = vmatpush1.bf16.msra.mxu0 %v1025
  %1163 = vmatprep.subr.bf16.mxu0 0
  %1164 = vmatpush1.bf16.msra.mxu0 %v1026
  %1165 = vmatprep.subr.bf16.mxu0 0
  %1166 = vmatpush1.bf16.msra.mxu0 %v1027
  %1167 = vmatprep.subr.bf16.mxu0 0
  %1168 = vmatpush1.bf16.msra.mxu0 %v1028
  %1169 = vmatprep.subr.bf16.mxu0 0
  %1170 = vmatpush1.bf16.msra.mxu0 %v1029
  %1171 = vmatprep.subr.bf16.mxu0 0
  %1172 = vmatpush1.bf16.msra.mxu0 %v1030
  %1173 = vmatprep.subr.bf16.mxu0 0
  %1174 = vmatpush1.bf16.msra.mxu0 %v1031
  %1175 = vmatprep.subr.bf16.mxu0 0
  %1176 = vmatpush1.bf16.msra.mxu0 %v1032
  %1177 = vmatprep.mubr.bf16.mxu0 %v602
  %1178 = vmatmul.mubr.bf16.gmra.mrb[0].mxu0 %v601
  %v1179 = vpop.f32.mrb[0].mxu0
  %v1180 = vadd.f32 %v264, %v1179
  %v1181 = vpop.f32.mrb[0].mxu0
  %v1182 = vpop.f32.mrb[0].mxu0
  %v1183 = vadd.f32 %v269, %v1182
  %v1184 = vpop.f32.mrb[0].mxu0
  %1185 = vmatprep.mubr.bf16.mxu0 %v610
  %1186 = vmatmul.mubr.bf16.gmra.mrb[0].mxu0 %v609
  %v1187 = vpop.f32.mrb[0].mxu0
  %v1188 = vadd.f32 %v274, %v1187
  %v1189 = vpop.f32.mrb[0].mxu0
  %v1190 = vpop.f32.mrb[0].mxu0
  %v1191 = vadd.f32 %v279, %v1190
  %v1192 = vpop.f32.mrb[0].mxu0
  %1193 = vmatprep.mubr.bf16.mxu0 %v618
  %1194 = vmatmul.mubr.bf16.gmra.mrb[0].mxu0 %v617
  %v1195 = vpop.f32.mrb[0].mxu0
  %v1196 = vadd.f32 %v284, %v1195
  %v1197 = vpop.f32.mrb[0].mxu0
  %v1198 = vpop.f32.mrb[0].mxu0
  %v1199 = vadd.f32 %v289, %v1198
  %v1200 = vpop.f32.mrb[0].mxu0
  %1201 = vmatprep.mubr.bf16.mxu0 %v626
  %1202 = vmatmul.mubr.bf16.gmra.mrb[0].mxu0 %v625
  %v1203 = vpop.f32.mrb[0].mxu0
  %v1204 = vadd.f32 %v294, %v1203
  %v1205 = vpop.f32.mrb[0].mxu0
  %v1206 = vpop.f32.mrb[0].mxu0
  %v1207 = vadd.f32 %v299, %v1206
  %v1208 = vpop.f32.mrb[0].mxu0
  %1209 = vmatprep.mubr.bf16.mxu0 %v634
  %1210 = vmatmul.mubr.bf16.gmra.mrb[0].mxu0 %v633
  %v1211 = vpop.f32.mrb[0].mxu0
  %v1212 = vadd.f32 %v304, %v1211
  %v1213 = vpop.f32.mrb[0].mxu0
  %v1214 = vpop.f32.mrb[0].mxu0
  %v1215 = vadd.f32 %v309, %v1214
  %v1216 = vpop.f32.mrb[0].mxu0
  %1217 = vmatprep.mubr.bf16.mxu0 %v642
  %1218 = vmatmul.mubr.bf16.gmra.mrb[0].mxu0 %v641
  %v1219 = vpop.f32.mrb[0].mxu0
  %v1220 = vadd.f32 %v314, %v1219
  %v1221 = vpop.f32.mrb[0].mxu0
  %v1222 = vpop.f32.mrb[0].mxu0
  %v1223 = vadd.f32 %v319, %v1222
  %v1224 = vpop.f32.mrb[0].mxu0
  %1225 = vmatprep.mubr.bf16.mxu0 %v650
  %1226 = vmatmul.mubr.bf16.gmra.mrb[0].mxu0 %v649
  %v1227 = vpop.f32.mrb[0].mxu0
  %v1228 = vadd.f32 %v324, %v1227
  %v1229 = vpop.f32.mrb[0].mxu0
  %v1230 = vpop.f32.mrb[0].mxu0
  %v1231 = vadd.f32 %v329, %v1230
  %v1232 = vpop.f32.mrb[0].mxu0
  %1233 = vmatprep.mubr.bf16.mxu0 %v658
  %1234 = vmatmul.mubr.bf16.gmra.mrb[0].mxu0 %v657
  %v1235 = vpop.f32.mrb[0].mxu0
  %v1236 = vadd.f32 %v334, %v1235
  %v1237 = vpop.f32.mrb[0].mxu0
  %v1238 = vpop.f32.mrb[0].mxu0
  %v1239 = vadd.f32 %v339, %v1238
  %v1240 = vpop.f32.mrb[0].mxu0
  %1241 = vmatprep.mubr.bf16.mxu0 %v666
  %1242 = vmatmul.mubr.bf16.gmra.mrb[0].mxu0 %v665
  %v1243 = vpop.f32.mrb[0].mxu0
  %v1244 = vadd.f32 %v344, %v1243
  %v1245 = vpop.f32.mrb[0].mxu0
  %v1246 = vpop.f32.mrb[0].mxu0
  %v1247 = vadd.f32 %v349, %v1246
  %v1248 = vpop.f32.mrb[0].mxu0
  %1249 = vmatprep.mubr.bf16.mxu0 %v674
  %1250 = vmatmul.mubr.bf16.gmra.mrb[0].mxu0 %v673
  %v1251 = vpop.f32.mrb[0].mxu0
  %v1252 = vadd.f32 %v354, %v1251
  %v1253 = vpop.f32.mrb[0].mxu0
  %v1254 = vpop.f32.mrb[0].mxu0
  %v1255 = vadd.f32 %v359, %v1254
  %v1256 = vpop.f32.mrb[0].mxu0
  %1257 = vdwg.mxu0
  %1258 = vmatprep.subr.bf16.mxu0 0
  %1259 = vmatpush1.bf16.msra.mxu0 %v1033
  %1260 = vmatprep.subr.bf16.mxu0 0
  %1261 = vmatpush1.bf16.msra.mxu0 %v1034
  %1262 = vmatprep.subr.bf16.mxu0 0
  %1263 = vmatpush1.bf16.msra.mxu0 %v1035
  %1264 = vmatprep.subr.bf16.mxu0 0
  %1265 = vmatpush1.bf16.msra.mxu0 %v1036
  %1266 = vmatprep.subr.bf16.mxu0 0
  %1267 = vmatpush1.bf16.msra.mxu0 %v1037
  %1268 = vmatprep.subr.bf16.mxu0 0
  %1269 = vmatpush1.bf16.msra.mxu0 %v1038
  %1270 = vmatprep.subr.bf16.mxu0 0
  %1271 = vmatpush1.bf16.msra.mxu0 %v1039
  %1272 = vmatprep.subr.bf16.mxu0 0
  %1273 = vmatpush1.bf16.msra.mxu0 %v1040
  %1274 = vmatprep.subr.bf16.mxu0 0
  %1275 = vmatpush1.bf16.msra.mxu0 %v1041
  %1276 = vmatprep.subr.bf16.mxu0 0
  %1277 = vmatpush1.bf16.msra.mxu0 %v1042
  %1278 = vmatprep.subr.bf16.mxu0 0
  %1279 = vmatpush1.bf16.msra.mxu0 %v1043
  %1280 = vmatprep.subr.bf16.mxu0 0
  %1281 = vmatpush1.bf16.msra.mxu0 %v1044
  %1282 = vmatprep.subr.bf16.mxu0 0
  %1283 = vmatpush1.bf16.msra.mxu0 %v1045
  %1284 = vmatprep.subr.bf16.mxu0 0
  %1285 = vmatpush1.bf16.msra.mxu0 %v1046
  %1286 = vmatprep.subr.bf16.mxu0 0
  %1287 = vmatpush1.bf16.msra.mxu0 %v1047
  %1288 = vmatprep.subr.bf16.mxu0 0
  %1289 = vmatpush1.bf16.msra.mxu0 %v1048
  %1290 = vmatprep.mubr.bf16.mxu0 %v604
  %1291 = vmatmul.mubr.bf16.gmra.mrb[0].mxu0 %v603
  %v1292 = vpop.f32.mrb[0].mxu0
  %v1293 = vadd.f32 %v1180, %v1292
  %v1294 = vpop.f32.mrb[0].mxu0
  %v1295 = vpop.f32.mrb[0].mxu0
  %v1296 = vadd.f32 %v1183, %v1295
  %v1297 = vpop.f32.mrb[0].mxu0
  %1298 = vmatprep.mubr.bf16.mxu0 %v612
  %1299 = vmatmul.mubr.bf16.gmra.mrb[0].mxu0 %v611
  %v1300 = vpop.f32.mrb[0].mxu0
  %v1301 = vadd.f32 %v1188, %v1300
  %v1302 = vpop.f32.mrb[0].mxu0
  %v1303 = vpop.f32.mrb[0].mxu0
  %v1304 = vadd.f32 %v1191, %v1303
  %v1305 = vpop.f32.mrb[0].mxu0
  %1306 = vmatprep.mubr.bf16.mxu0 %v620
  %1307 = vmatmul.mubr.bf16.gmra.mrb[0].mxu0 %v619
  %v1308 = vpop.f32.mrb[0].mxu0
  %v1309 = vadd.f32 %v1196, %v1308
  %v1310 = vpop.f32.mrb[0].mxu0
  %v1311 = vpop.f32.mrb[0].mxu0
  %v1312 = vadd.f32 %v1199, %v1311
  %v1313 = vpop.f32.mrb[0].mxu0
  %1314 = vmatprep.mubr.bf16.mxu0 %v628
  %1315 = vmatmul.mubr.bf16.gmra.mrb[0].mxu0 %v627
  %v1316 = vpop.f32.mrb[0].mxu0
  %v1317 = vadd.f32 %v1204, %v1316
  %v1318 = vpop.f32.mrb[0].mxu0
  %v1319 = vpop.f32.mrb[0].mxu0
  %v1320 = vadd.f32 %v1207, %v1319
  %v1321 = vpop.f32.mrb[0].mxu0
  %1322 = vmatprep.mubr.bf16.mxu0 %v636
  %1323 = vmatmul.mubr.bf16.gmra.mrb[0].mxu0 %v635
  %v1324 = vpop.f32.mrb[0].mxu0
  %v1325 = vadd.f32 %v1212, %v1324
  %v1326 = vpop.f32.mrb[0].mxu0
  %v1327 = vpop.f32.mrb[0].mxu0
  %v1328 = vadd.f32 %v1215, %v1327
  %v1329 = vpop.f32.mrb[0].mxu0
  %1330 = vmatprep.mubr.bf16.mxu0 %v644
  %1331 = vmatmul.mubr.bf16.gmra.mrb[0].mxu0 %v643
  %v1332 = vpop.f32.mrb[0].mxu0
  %v1333 = vadd.f32 %v1220, %v1332
  %v1334 = vpop.f32.mrb[0].mxu0
  %v1335 = vpop.f32.mrb[0].mxu0
  %v1336 = vadd.f32 %v1223, %v1335
  %v1337 = vpop.f32.mrb[0].mxu0
  %1338 = vmatprep.mubr.bf16.mxu0 %v652
  %1339 = vmatmul.mubr.bf16.gmra.mrb[0].mxu0 %v651
  %v1340 = vpop.f32.mrb[0].mxu0
  %v1341 = vadd.f32 %v1228, %v1340
  %v1342 = vpop.f32.mrb[0].mxu0
  %v1343 = vpop.f32.mrb[0].mxu0
  %v1344 = vadd.f32 %v1231, %v1343
  %v1345 = vpop.f32.mrb[0].mxu0
  %1346 = vmatprep.mubr.bf16.mxu0 %v660
  %1347 = vmatmul.mubr.bf16.gmra.mrb[0].mxu0 %v659
  %v1348 = vpop.f32.mrb[0].mxu0
  %v1349 = vadd.f32 %v1236, %v1348
  %v1350 = vpop.f32.mrb[0].mxu0
  %v1351 = vpop.f32.mrb[0].mxu0
  %v1352 = vadd.f32 %v1239, %v1351
  %v1353 = vpop.f32.mrb[0].mxu0
  %1354 = vmatprep.mubr.bf16.mxu0 %v668
  %1355 = vmatmul.mubr.bf16.gmra.mrb[0].mxu0 %v667
  %v1356 = vpop.f32.mrb[0].mxu0
  %v1357 = vadd.f32 %v1244, %v1356
  %v1358 = vpop.f32.mrb[0].mxu0
  %v1359 = vpop.f32.mrb[0].mxu0
  %v1360 = vadd.f32 %v1247, %v1359
  %v1361 = vpop.f32.mrb[0].mxu0
  %1362 = vmatprep.mubr.bf16.mxu0 %v676
  %1363 = vmatmul.mubr.bf16.gmra.mrb[0].mxu0 %v675
  %v1364 = vpop.f32.mrb[0].mxu0
  %v1365 = vadd.f32 %v1252, %v1364
  %v1366 = vpop.f32.mrb[0].mxu0
  %v1367 = vpop.f32.mrb[0].mxu0
  %v1368 = vadd.f32 %v1255, %v1367
  %v1369 = vpop.f32.mrb[0].mxu0
  %1370 = vdwg.mxu0
  %1371 = vmatprep.subr.bf16.mxu0 0
  %1372 = vmatpush1.bf16.msra.mxu0 %v1049
  %1373 = vmatprep.subr.bf16.mxu0 0
  %1374 = vmatpush1.bf16.msra.mxu0 %v1050
  %1375 = vmatprep.subr.bf16.mxu0 0
  %1376 = vmatpush1.bf16.msra.mxu0 %v1051
  %1377 = vmatprep.subr.bf16.mxu0 0
  %1378 = vmatpush1.bf16.msra.mxu0 %v1052
  %1379 = vmatprep.subr.bf16.mxu0 0
  %1380 = vmatpush1.bf16.msra.mxu0 %v1053
  %1381 = vmatprep.subr.bf16.mxu0 0
  %1382 = vmatpush1.bf16.msra.mxu0 %v1054
  %1383 = vmatprep.subr.bf16.mxu0 0
  %1384 = vmatpush1.bf16.msra.mxu0 %v1055
  %1385 = vmatprep.subr.bf16.mxu0 0
  %1386 = vmatpush1.bf16.msra.mxu0 %v1056
  %1387 = vmatprep.subr.bf16.mxu0 0
  %1388 = vmatpush1.bf16.msra.mxu0 %v1057
  %1389 = vmatprep.subr.bf16.mxu0 0
  %1390 = vmatpush1.bf16.msra.mxu0 %v1058
  %1391 = vmatprep.subr.bf16.mxu0 0
  %1392 = vmatpush1.bf16.msra.mxu0 %v1059
  %1393 = vmatprep.subr.bf16.mxu0 0
  %1394 = vmatpush1.bf16.msra.mxu0 %v1060
  %1395 = vmatprep.subr.bf16.mxu0 0
  %1396 = vmatpush1.bf16.msra.mxu0 %v1061
  %1397 = vmatprep.subr.bf16.mxu0 0
  %1398 = vmatpush1.bf16.msra.mxu0 %v1062
  %1399 = vmatprep.subr.bf16.mxu0 0
  %1400 = vmatpush1.bf16.msra.mxu0 %v1063
  %1401 = vmatprep.subr.bf16.mxu0 0
  %1402 = vmatpush1.bf16.msra.mxu0 %v1064
  %1403 = vmatprep.mubr.bf16.mxu0 %v606
  %1404 = vmatmul.mubr.bf16.gmra.mrb[0].mxu0 %v605
  %v1405 = vpop.f32.mrb[0].mxu0
  %v1406 = vadd.f32 %v1293, %v1405
  %v1407 = vpop.f32.mrb[0].mxu0
  %v1408 = vpop.f32.mrb[0].mxu0
  %v1409 = vadd.f32 %v1296, %v1408
  %v1410 = vpop.f32.mrb[0].mxu0
  %1411 = vmatprep.mubr.bf16.mxu0 %v614
  %1412 = vmatmul.mubr.bf16.gmra.mrb[0].mxu0 %v613
  %v1413 = vpop.f32.mrb[0].mxu0
  %v1414 = vadd.f32 %v1301, %v1413
  %v1415 = vpop.f32.mrb[0].mxu0
  %v1416 = vpop.f32.mrb[0].mxu0
  %v1417 = vadd.f32 %v1304, %v1416
  %v1418 = vpop.f32.mrb[0].mxu0
  %1419 = vmatprep.mubr.bf16.mxu0 %v622
  %1420 = vmatmul.mubr.bf16.gmra.mrb[0].mxu0 %v621
  %v1421 = vpop.f32.mrb[0].mxu0
  %v1422 = vadd.f32 %v1309, %v1421
  %v1423 = vpop.f32.mrb[0].mxu0
  %v1424 = vpop.f32.mrb[0].mxu0
  %v1425 = vadd.f32 %v1312, %v1424
  %v1426 = vpop.f32.mrb[0].mxu0
  %1427 = vmatprep.mubr.bf16.mxu0 %v630
  %1428 = vmatmul.mubr.bf16.gmra.mrb[0].mxu0 %v629
  %v1429 = vpop.f32.mrb[0].mxu0
  %v1430 = vadd.f32 %v1317, %v1429
  %v1431 = vpop.f32.mrb[0].mxu0
  %v1432 = vpop.f32.mrb[0].mxu0
  %v1433 = vadd.f32 %v1320, %v1432
  %v1434 = vpop.f32.mrb[0].mxu0
  %1435 = vmatprep.mubr.bf16.mxu0 %v638
  %1436 = vmatmul.mubr.bf16.gmra.mrb[0].mxu0 %v637
  %v1437 = vpop.f32.mrb[0].mxu0
  %v1438 = vadd.f32 %v1325, %v1437
  %v1439 = vpop.f32.mrb[0].mxu0
  %v1440 = vpop.f32.mrb[0].mxu0
  %v1441 = vadd.f32 %v1328, %v1440
  %v1442 = vpop.f32.mrb[0].mxu0
  %1443 = vmatprep.mubr.bf16.mxu0 %v646
  %1444 = vmatmul.mubr.bf16.gmra.mrb[0].mxu0 %v645
  %v1445 = vpop.f32.mrb[0].mxu0
  %v1446 = vadd.f32 %v1333, %v1445
  %v1447 = vpop.f32.mrb[0].mxu0
  %v1448 = vpop.f32.mrb[0].mxu0
  %v1449 = vadd.f32 %v1336, %v1448
  %v1450 = vpop.f32.mrb[0].mxu0
  %1451 = vmatprep.mubr.bf16.mxu0 %v654
  %1452 = vmatmul.mubr.bf16.gmra.mrb[0].mxu0 %v653
  %v1453 = vpop.f32.mrb[0].mxu0
  %v1454 = vadd.f32 %v1341, %v1453
  %v1455 = vpop.f32.mrb[0].mxu0
  %v1456 = vpop.f32.mrb[0].mxu0
  %v1457 = vadd.f32 %v1344, %v1456
  %v1458 = vpop.f32.mrb[0].mxu0
  %1459 = vmatprep.mubr.bf16.mxu0 %v662
  %1460 = vmatmul.mubr.bf16.gmra.mrb[0].mxu0 %v661
  %v1461 = vpop.f32.mrb[0].mxu0
  %v1462 = vadd.f32 %v1349, %v1461
  %v1463 = vpop.f32.mrb[0].mxu0
  %v1464 = vpop.f32.mrb[0].mxu0
  %v1465 = vadd.f32 %v1352, %v1464
  %v1466 = vpop.f32.mrb[0].mxu0
  %1467 = vmatprep.mubr.bf16.mxu0 %v670
  %1468 = vmatmul.mubr.bf16.gmra.mrb[0].mxu0 %v669
  %v1469 = vpop.f32.mrb[0].mxu0
  %v1470 = vadd.f32 %v1357, %v1469
  %v1471 = vpop.f32.mrb[0].mxu0
  %v1472 = vpop.f32.mrb[0].mxu0
  %v1473 = vadd.f32 %v1360, %v1472
  %v1474 = vpop.f32.mrb[0].mxu0
  %1475 = vmatprep.mubr.bf16.mxu0 %v678
  %1476 = vmatmul.mubr.bf16.gmra.mrb[0].mxu0 %v677
  %v1477 = vpop.f32.mrb[0].mxu0
  %v1478 = vadd.f32 %v1365, %v1477
  %v1479 = vpop.f32.mrb[0].mxu0
  %v1480 = vpop.f32.mrb[0].mxu0
  %v1481 = vadd.f32 %v1368, %v1480
  %v1482 = vpop.f32.mrb[0].mxu0
  %1483 = vdwg.mxu0
  %1484 = vmatprep.subr.bf16.mxu0 0
  %1485 = vmatpush1.bf16.msra.mxu0 %v1065
  %1486 = vmatprep.subr.bf16.mxu0 0
  %1487 = vmatpush1.bf16.msra.mxu0 %v1066
  %1488 = vmatprep.subr.bf16.mxu0 0
  %1489 = vmatpush1.bf16.msra.mxu0 %v1067
  %1490 = vmatprep.subr.bf16.mxu0 0
  %1491 = vmatpush1.bf16.msra.mxu0 %v1068
  %1492 = vmatprep.subr.bf16.mxu0 0
  %1493 = vmatpush1.bf16.msra.mxu0 %v1069
  %1494 = vmatprep.subr.bf16.mxu0 0
  %1495 = vmatpush1.bf16.msra.mxu0 %v1070
  %1496 = vmatprep.subr.bf16.mxu0 0
  %1497 = vmatpush1.bf16.msra.mxu0 %v1071
  %1498 = vmatprep.subr.bf16.mxu0 0
  %1499 = vmatpush1.bf16.msra.mxu0 %v1072
  %1500 = vmatprep.subr.bf16.mxu0 0
  %1501 = vmatpush1.bf16.msra.mxu0 %v1073
  %1502 = vmatprep.subr.bf16.mxu0 0
  %1503 = vmatpush1.bf16.msra.mxu0 %v1074
  %1504 = vmatprep.subr.bf16.mxu0 0
  %1505 = vmatpush1.bf16.msra.mxu0 %v1075
  %1506 = vmatprep.subr.bf16.mxu0 0
  %1507 = vmatpush1.bf16.msra.mxu0 %v1076
  %1508 = vmatprep.subr.bf16.mxu0 0
  %1509 = vmatpush1.bf16.msra.mxu0 %v1077
  %1510 = vmatprep.subr.bf16.mxu0 0
  %1511 = vmatpush1.bf16.msra.mxu0 %v1078
  %1512 = vmatprep.subr.bf16.mxu0 0
  %1513 = vmatpush1.bf16.msra.mxu0 %v1079
  %1514 = vmatprep.subr.bf16.mxu0 0
  %1515 = vmatpush1.bf16.msra.mxu0 %v1080
  %1516 = vmatprep.mubr.bf16.mxu0 %v608
  %1517 = vmatmul.mubr.bf16.gmra.mrb[0].mxu0 %v607
  %v1518 = vpop.f32.mrb[0].mxu0
  %v1519 = vadd.f32 %v1406, %v1518
  %v1520 = vpop.f32.mrb[0].mxu0
  %v1521 = vpop.f32.mrb[0].mxu0
  %v1522 = vadd.f32 %v1409, %v1521
  %v1523 = vpop.f32.mrb[0].mxu0
  %1524 = vmatprep.mubr.bf16.mxu0 %v616
  %1525 = vmatmul.mubr.bf16.gmra.mrb[0].mxu0 %v615
  %v1526 = vpop.f32.mrb[0].mxu0
  %v1527 = vadd.f32 %v1414, %v1526
  %v1528 = vpop.f32.mrb[0].mxu0
  %v1529 = vpop.f32.mrb[0].mxu0
  %v1530 = vadd.f32 %v1417, %v1529
  %v1531 = vpop.f32.mrb[0].mxu0
  %1532 = vmatprep.mubr.bf16.mxu0 %v624
  %1533 = vmatmul.mubr.bf16.gmra.mrb[0].mxu0 %v623
  %v1534 = vpop.f32.mrb[0].mxu0
  %v1535 = vadd.f32 %v1422, %v1534
  %v1536 = vpop.f32.mrb[0].mxu0
  %v1537 = vpop.f32.mrb[0].mxu0
  %v1538 = vadd.f32 %v1425, %v1537
  %v1539 = vpop.f32.mrb[0].mxu0
  %1540 = vmatprep.mubr.bf16.mxu0 %v632
  %1541 = vmatmul.mubr.bf16.gmra.mrb[0].mxu0 %v631
  %v1542 = vpop.f32.mrb[0].mxu0
  %v1543 = vadd.f32 %v1430, %v1542
  %v1544 = vpop.f32.mrb[0].mxu0
  %v1545 = vpop.f32.mrb[0].mxu0
  %v1546 = vadd.f32 %v1433, %v1545
  %v1547 = vpop.f32.mrb[0].mxu0
  %1548 = vmatprep.mubr.bf16.mxu0 %v640
  %1549 = vmatmul.mubr.bf16.gmra.mrb[0].mxu0 %v639
  %v1550 = vpop.f32.mrb[0].mxu0
  %v1551 = vadd.f32 %v1438, %v1550
  %v1552 = vpop.f32.mrb[0].mxu0
  %v1553 = vpop.f32.mrb[0].mxu0
  %v1554 = vadd.f32 %v1441, %v1553
  %v1555 = vpop.f32.mrb[0].mxu0
  %1556 = vmatprep.mubr.bf16.mxu0 %v648
  %1557 = vmatmul.mubr.bf16.gmra.mrb[0].mxu0 %v647
  %v1558 = vpop.f32.mrb[0].mxu0
  %v1559 = vadd.f32 %v1446, %v1558
  %v1560 = vpop.f32.mrb[0].mxu0
  %v1561 = vpop.f32.mrb[0].mxu0
  %v1562 = vadd.f32 %v1449, %v1561
  %v1563 = vpop.f32.mrb[0].mxu0
  %1564 = vmatprep.mubr.bf16.mxu0 %v656
  %1565 = vmatmul.mubr.bf16.gmra.mrb[0].mxu0 %v655
  %v1566 = vpop.f32.mrb[0].mxu0
  %v1567 = vadd.f32 %v1454, %v1566
  %v1568 = vpop.f32.mrb[0].mxu0
  %v1569 = vpop.f32.mrb[0].mxu0
  %v1570 = vadd.f32 %v1457, %v1569
  %v1571 = vpop.f32.mrb[0].mxu0
  %1572 = vmatprep.mubr.bf16.mxu0 %v664
  %1573 = vmatmul.mubr.bf16.gmra.mrb[0].mxu0 %v663
  %v1574 = vpop.f32.mrb[0].mxu0
  %v1575 = vadd.f32 %v1462, %v1574
  %v1576 = vpop.f32.mrb[0].mxu0
  %v1577 = vpop.f32.mrb[0].mxu0
  %v1578 = vadd.f32 %v1465, %v1577
  %v1579 = vpop.f32.mrb[0].mxu0
  %1580 = vmatprep.mubr.bf16.mxu0 %v672
  %1581 = vmatmul.mubr.bf16.gmra.mrb[0].mxu0 %v671
  %v1582 = vpop.f32.mrb[0].mxu0
  %v1583 = vadd.f32 %v1470, %v1582
  %v1584 = vpop.f32.mrb[0].mxu0
  %v1585 = vpop.f32.mrb[0].mxu0
  %v1586 = vadd.f32 %v1473, %v1585
  %v1587 = vpop.f32.mrb[0].mxu0
  %1588 = vmatprep.mubr.bf16.mxu0 %v680
  %1589 = vmatmul.mubr.bf16.gmra.mrb[0].mxu0 %v679
  %v1590 = vpop.f32.mrb[0].mxu0
  %v1591 = vadd.f32 %v1478, %v1590
  %v1592 = vpop.f32.mrb[0].mxu0
  %v1593 = vpop.f32.mrb[0].mxu0
  %v1594 = vadd.f32 %v1481, %v1593
  %v1595 = vpop.f32.mrb[0].mxu0
  %1596 = vdwg.mxu0
  %v1597 = vmax.f32 %v1519, 0.0
  %v1598 = vmax.f32 %v1522, 0.0
  %v1599 = vmax.f32 %v1527, 0.0
  %v1600 = vmax.f32 %v1530, 0.0
  %v1601 = vmax.f32 %v1535, 0.0
  %v1602 = vmax.f32 %v1538, 0.0
  %v1603 = vmax.f32 %v1543, 0.0
  %v1604 = vmax.f32 %v1546, 0.0
  %v1605 = vmax.f32 %v1551, 0.0
  %v1606 = vmax.f32 %v1554, 0.0
  %v1607 = vmax.f32 %v1559, 0.0
  %v1608 = vmax.f32 %v1562, 0.0
  %v1609 = vmax.f32 %v1567, 0.0
  %v1610 = vmax.f32 %v1570, 0.0
  %v1611 = vmax.f32 %v1575, 0.0
  %v1612 = vmax.f32 %v1578, 0.0
  %v1613 = vmax.f32 %v1583, 0.0
  %v1614 = vmax.f32 %v1586, 0.0
  %v1615 = vmax.f32 %v1591, 0.0
  %v1616 = vmax.f32 %v1594, 0.0
  %v1617 = vpack.c.bf16 %v1598, %v1597
  %v1618 = vpack.c.bf16 %v1600, %v1599
  %v1619 = vpack.c.bf16 %v1602, %v1601
  %v1620 = vpack.c.bf16 %v1604, %v1603
  %v1621 = vpack.c.bf16 %v1606, %v1605
  %v1622 = vpack.c.bf16 %v1608, %v1607
  %v1623 = vpack.c.bf16 %v1610, %v1609
  %v1624 = vpack.c.bf16 %v1612, %v1611
  %v1625 = vpack.c.bf16 %v1614, %v1613
  %v1626 = vpack.c.bf16 %v1616, %v1615
  %v1627 = vld [vmem:[%s3] sm:$0xff]
  %v1628 = vld [vmem:[%s3 + $0x8] sm:$0xff]
  %v1629 = vld [vmem:[%s3 + $0x10] sm:$0xff]
  %v1630 = vld [vmem:[%s3 + $0x18] sm:$0xff]
  %v1631 = vld [vmem:[%s3 + $0x20] sm:$0xff]
  %v1632 = vld [vmem:[%s3 + $0x28] sm:$0xff]
  %v1633 = vld [vmem:[%s3 + $0x30] sm:$0xff]
  %v1634 = vld [vmem:[%s3 + $0x38] sm:$0xff]
  %v1635 = vld [vmem:[%s3 + $0x40] sm:$0xff]
  %v1636 = vld [vmem:[%s3 + $0x48] sm:$0xff]
  %v1637 = vld [vmem:[%s3 + $0x50] sm:$0xff]
  %v1638 = vld [vmem:[%s3 + $0x58] sm:$0xff]
  %v1639 = vld [vmem:[%s3 + $0x60] sm:$0xff]
  %v1640 = vld [vmem:[%s3 + $0x68] sm:$0xff]
  %v1641 = vld [vmem:[%s3 + $0x70] sm:$0xff]
  %v1642 = vld [vmem:[%s3 + $0x78] sm:$0xff]
  %v1643 = vld [vmem:[%s3 + $0x80] sm:$0xff]
  %v1644 = vld [vmem:[%s3 + $0x88] sm:$0xff]
  %v1645 = vld [vmem:[%s3 + $0x90] sm:$0xff]
  %v1646 = vld [vmem:[%s3 + $0x98] sm:$0xff]
  %v1647 = vld [vmem:[%s3 + $0xa0] sm:$0xff]
  %v1648 = vld [vmem:[%s3 + $0xa8] sm:$0xff]
  %v1649 = vld [vmem:[%s3 + $0xb0] sm:$0xff]
  %v1650 = vld [vmem:[%s3 + $0xb8] sm:$0xff]
  %v1651 = vld [vmem:[%s3 + $0xc0] sm:$0xff]
  %v1652 = vld [vmem:[%s3 + $0xc8] sm:$0xff]
  %v1653 = vld [vmem:[%s3 + $0xd0] sm:$0xff]
  %v1654 = vld [vmem:[%s3 + $0xd8] sm:$0xff]
  %v1655 = vld [vmem:[%s3 + $0xe0] sm:$0xff]
  %v1656 = vld [vmem:[%s3 + $0xe8] sm:$0xff]
  %v1657 = vld [vmem:[%s3 + $0xf0] sm:$0xff]
  %v1658 = vld [vmem:[%s3 + $0xf8] sm:$0xff]
  %v1659 = vld [vmem:[%s3 + $0x100] sm:$0xff]
  %v1660 = vld [vmem:[%s3 + $0x108] sm:$0xff]
  %v1661 = vld [vmem:[%s3 + $0x110] sm:$0xff]
  %v1662 = vld [vmem:[%s3 + $0x118] sm:$0xff]
  %v1663 = vld [vmem:[%s3 + $0x120] sm:$0xff]
  %v1664 = vld [vmem:[%s3 + $0x128] sm:$0xff]
  %v1665 = vld [vmem:[%s3 + $0x130] sm:$0xff]
  %v1666 = vld [vmem:[%s3 + $0x138] sm:$0xff]
  %v1667 = vld [vmem:[%s3 + $0x140] sm:$0xff]
  %v1668 = vld [vmem:[%s3 + $0x148] sm:$0xff]
  %v1669 = vld [vmem:[%s3 + $0x150] sm:$0xff]
  %v1670 = vld [vmem:[%s3 + $0x158] sm:$0xff]
  %v1671 = vld [vmem:[%s3 + $0x160] sm:$0xff]
  %v1672 = vld [vmem:[%s3 + $0x168] sm:$0xff]
  %v1673 = vld [vmem:[%s3 + $0x170] sm:$0xff]
  %v1674 = vld [vmem:[%s3 + $0x178] sm:$0xff]
  %v1675 = vld [vmem:[%s3 + $0x180] sm:$0xff]
  %v1676 = vld [vmem:[%s3 + $0x188] sm:$0xff]
  %v1677 = vld [vmem:[%s3 + $0x190] sm:$0xff]
  %v1678 = vld [vmem:[%s3 + $0x198] sm:$0xff]
  %v1679 = vld [vmem:[%s3 + $0x1a0] sm:$0xff]
  %v1680 = vld [vmem:[%s3 + $0x1a8] sm:$0xff]
  %v1681 = vld [vmem:[%s3 + $0x1b0] sm:$0xff]
  %v1682 = vld [vmem:[%s3 + $0x1b8] sm:$0xff]
  %v1683 = vld [vmem:[%s3 + $0x1c0] sm:$0xff]
  %v1684 = vld [vmem:[%s3 + $0x1c8] sm:$0xff]
  %v1685 = vld [vmem:[%s3 + $0x1d0] sm:$0xff]
  %v1686 = vld [vmem:[%s3 + $0x1d8] sm:$0xff]
  %v1687 = vld [vmem:[%s3 + $0x1e0] sm:$0xff]
  %v1688 = vld [vmem:[%s3 + $0x1e8] sm:$0xff]
  %v1689 = vld [vmem:[%s3 + $0x1f0] sm:$0xff]
  %v1690 = vld [vmem:[%s3 + $0x1f8] sm:$0xff]
  %v1691 = vld [vmem:[%s3 + $0x200] sm:$0xff]
  %v1692 = vld [vmem:[%s3 + $0x208] sm:$0xff]
  %v1693 = vld [vmem:[%s3 + $0x210] sm:$0xff]
  %v1694 = vld [vmem:[%s3 + $0x218] sm:$0xff]
  %v1695 = vld [vmem:[%s3 + $0x220] sm:$0xff]
  %v1696 = vld [vmem:[%s3 + $0x228] sm:$0xff]
  %v1697 = vld [vmem:[%s3 + $0x230] sm:$0xff]
  %v1698 = vld [vmem:[%s3 + $0x238] sm:$0xff]
  %v1699 = vld [vmem:[%s3 + $0x240] sm:$0xff]
  %v1700 = vld [vmem:[%s3 + $0x248] sm:$0xff]
  %v1701 = vld [vmem:[%s3 + $0x250] sm:$0xff]
  %v1702 = vld [vmem:[%s3 + $0x258] sm:$0xff]
  %v1703 = vld [vmem:[%s3 + $0x260] sm:$0xff]
  %v1704 = vld [vmem:[%s3 + $0x268] sm:$0xff]
  %v1705 = vld [vmem:[%s3 + $0x270] sm:$0xff]
  %v1706 = vld [vmem:[%s3 + $0x278] sm:$0xff]
  %v1707 = vld [vmem:[%s1] sm:$0xf]
  %v1708 = vld [vmem:[%s1 + $0x4] sm:$0xf]
  %v1709 = vld [vmem:[%s1 + $0x8] sm:$0xf]
  %v1710 = vld [vmem:[%s1 + $0xc] sm:$0xf]
  %v1711 = vld [vmem:[%s1 + $0x10] sm:$0xf]
  %v1712 = vld [vmem:[%s1 + $0x14] sm:$0xf]
  %v1713 = vld [vmem:[%s1 + $0x18] sm:$0xf]
  %v1714 = vld [vmem:[%s1 + $0x1c] sm:$0xf]
  %v1715 = vld [vmem:[%s1 + $0x20] sm:$0xf]
  %v1716 = vld [vmem:[%s1 + $0x24] sm:$0xf]
  %v1717 = vld [vmem:[%s1 + $0x28] sm:$0xf]
  %v1718 = vld [vmem:[%s1 + $0x2c] sm:$0xf]
  %v1719 = vld [vmem:[%s1 + $0x30] sm:$0xf]
  %v1720 = vld [vmem:[%s1 + $0x34] sm:$0xf]
  %v1721 = vld [vmem:[%s1 + $0x38] sm:$0xf]
  %v1722 = vld [vmem:[%s1 + $0x3c] sm:$0xf]
  %v1723 = vld [vmem:[%s1 + $0x40] sm:$0xf]
  %v1724 = vld [vmem:[%s1 + $0x44] sm:$0xf]
  %v1725 = vld [vmem:[%s1 + $0x48] sm:$0xf]
  %v1726 = vld [vmem:[%s1 + $0x4c] sm:$0xf]
  %v1727 = vld [vmem:[%s1 + $0x50] sm:$0xf]
  %v1728 = vld [vmem:[%s1 + $0x54] sm:$0xf]
  %v1729 = vld [vmem:[%s1 + $0x58] sm:$0xf]
  %v1730 = vld [vmem:[%s1 + $0x5c] sm:$0xf]
  %v1731 = vld [vmem:[%s1 + $0x60] sm:$0xf]
  %v1732 = vld [vmem:[%s1 + $0x64] sm:$0xf]
  %v1733 = vld [vmem:[%s1 + $0x68] sm:$0xf]
  %v1734 = vld [vmem:[%s1 + $0x6c] sm:$0xf]
  %v1735 = vld [vmem:[%s1 + $0x70] sm:$0xf]
  %v1736 = vld [vmem:[%s1 + $0x74] sm:$0xf]
  %v1737 = vld [vmem:[%s1 + $0x78] sm:$0xf]
  %v1738 = vld [vmem:[%s1 + $0x7c] sm:$0xf]
  %v1739 = vld [vmem:[%s1 + $0x80] sm:$0xf]
  %v1740 = vld [vmem:[%s1 + $0x84] sm:$0xf]
  %v1741 = vld [vmem:[%s1 + $0x88] sm:$0xf]
  %v1742 = vld [vmem:[%s1 + $0x8c] sm:$0xf]
  %v1743 = vld [vmem:[%s1 + $0x90] sm:$0xf]
  %v1744 = vld [vmem:[%s1 + $0x94] sm:$0xf]
  %v1745 = vld [vmem:[%s1 + $0x98] sm:$0xf]
  %v1746 = vld [vmem:[%s1 + $0x9c] sm:$0xf]
  %v1747 = vld [vmem:[%s1 + $0xa0] sm:$0xf]
  %v1748 = vld [vmem:[%s1 + $0xa4] sm:$0xf]
  %v1749 = vld [vmem:[%s1 + $0xa8] sm:$0xf]
  %v1750 = vld [vmem:[%s1 + $0xac] sm:$0xf]
  %v1751 = vld [vmem:[%s1 + $0xb0] sm:$0xf]
  %v1752 = vld [vmem:[%s1 + $0xb4] sm:$0xf]
  %v1753 = vld [vmem:[%s1 + $0xb8] sm:$0xf]
  %v1754 = vld [vmem:[%s1 + $0xbc] sm:$0xf]
  %v1755 = vld [vmem:[%s1 + $0xc0] sm:$0xf]
  %v1756 = vld [vmem:[%s1 + $0xc4] sm:$0xf]
  %v1757 = vld [vmem:[%s1 + $0xc8] sm:$0xf]
  %v1758 = vld [vmem:[%s1 + $0xcc] sm:$0xf]
  %v1759 = vld [vmem:[%s1 + $0xd0] sm:$0xf]
  %v1760 = vld [vmem:[%s1 + $0xd4] sm:$0xf]
  %v1761 = vld [vmem:[%s1 + $0xd8] sm:$0xf]
  %v1762 = vld [vmem:[%s1 + $0xdc] sm:$0xf]
  %v1763 = vld [vmem:[%s1 + $0xe0] sm:$0xf]
  %v1764 = vld [vmem:[%s1 + $0xe4] sm:$0xf]
  %v1765 = vld [vmem:[%s1 + $0xe8] sm:$0xf]
  %v1766 = vld [vmem:[%s1 + $0xec] sm:$0xf]
  %v1767 = vld [vmem:[%s1 + $0xf0] sm:$0xf]
  %v1768 = vld [vmem:[%s1 + $0xf4] sm:$0xf]
  %v1769 = vld [vmem:[%s1 + $0xf8] sm:$0xf]
  %v1770 = vld [vmem:[%s1 + $0xfc] sm:$0xf]
  %v1771 = vld [vmem:[%s1 + $0x100] sm:$0xf]
  %v1772 = vld [vmem:[%s1 + $0x104] sm:$0xf]
  %v1773 = vld [vmem:[%s1 + $0x108] sm:$0xf]
  %v1774 = vld [vmem:[%s1 + $0x10c] sm:$0xf]
  %v1775 = vld [vmem:[%s1 + $0x110] sm:$0xf]
  %v1776 = vld [vmem:[%s1 + $0x114] sm:$0xf]
  %v1777 = vld [vmem:[%s1 + $0x118] sm:$0xf]
  %v1778 = vld [vmem:[%s1 + $0x11c] sm:$0xf]
  %v1779 = vld [vmem:[%s1 + $0x120] sm:$0xf]
  %v1780 = vld [vmem:[%s1 + $0x124] sm:$0xf]
  %v1781 = vld [vmem:[%s1 + $0x128] sm:$0xf]
  %v1782 = vld [vmem:[%s1 + $0x12c] sm:$0xf]
  %v1783 = vld [vmem:[%s1 + $0x130] sm:$0xf]
  %v1784 = vld [vmem:[%s1 + $0x134] sm:$0xf]
  %v1785 = vld [vmem:[%s1 + $0x138] sm:$0xf]
  %v1786 = vld [vmem:[%s1 + $0x13c] sm:$0xf]
  %v1787 = vld [vmem:[%s1 + $0x140] sm:$0xf]
  %v1788 = vld [vmem:[%s1 + $0x144] sm:$0xf]
  %v1789 = vld [vmem:[%s1 + $0x148] sm:$0xf]
  %v1790 = vld [vmem:[%s1 + $0x14c] sm:$0xf]
  %v1791 = vld [vmem:[%s1 + $0x150] sm:$0xf]
  %v1792 = vld [vmem:[%s1 + $0x154] sm:$0xf]
  %v1793 = vld [vmem:[%s1 + $0x158] sm:$0xf]
  %v1794 = vld [vmem:[%s1 + $0x15c] sm:$0xf]
  %v1795 = vld [vmem:[%s1 + $0x160] sm:$0xf]
  %v1796 = vld [vmem:[%s1 + $0x164] sm:$0xf]
  %v1797 = vld [vmem:[%s1 + $0x168] sm:$0xf]
  %v1798 = vld [vmem:[%s1 + $0x16c] sm:$0xf]
  %v1799 = vld [vmem:[%s1 + $0x170] sm:$0xf]
  %v1800 = vld [vmem:[%s1 + $0x174] sm:$0xf]
  %v1801 = vld [vmem:[%s1 + $0x178] sm:$0xf]
  %v1802 = vld [vmem:[%s1 + $0x17c] sm:$0xf]
  %v1803 = vld [vmem:[%s1 + $0x180] sm:$0xf]
  %v1804 = vld [vmem:[%s1 + $0x184] sm:$0xf]
  %v1805 = vld [vmem:[%s1 + $0x188] sm:$0xf]
  %v1806 = vld [vmem:[%s1 + $0x18c] sm:$0xf]
  %v1807 = vld [vmem:[%s1 + $0x190] sm:$0xf]
  %v1808 = vld [vmem:[%s1 + $0x194] sm:$0xf]
  %v1809 = vld [vmem:[%s1 + $0x198] sm:$0xf]
  %v1810 = vld [vmem:[%s1 + $0x19c] sm:$0xf]
  %v1811 = vld [vmem:[%s1 + $0x1a0] sm:$0xf]
  %v1812 = vld [vmem:[%s1 + $0x1a4] sm:$0xf]
  %v1813 = vld [vmem:[%s1 + $0x1a8] sm:$0xf]
  %v1814 = vld [vmem:[%s1 + $0x1ac] sm:$0xf]
  %v1815 = vld [vmem:[%s1 + $0x1b0] sm:$0xf]
  %v1816 = vld [vmem:[%s1 + $0x1b4] sm:$0xf]
  %v1817 = vld [vmem:[%s1 + $0x1b8] sm:$0xf]
  %v1818 = vld [vmem:[%s1 + $0x1bc] sm:$0xf]
  %v1819 = vld [vmem:[%s1 + $0x1c0] sm:$0xf]
  %v1820 = vld [vmem:[%s1 + $0x1c4] sm:$0xf]
  %v1821 = vld [vmem:[%s1 + $0x1c8] sm:$0xf]
  %v1822 = vld [vmem:[%s1 + $0x1cc] sm:$0xf]
  %v1823 = vld [vmem:[%s1 + $0x1d0] sm:$0xf]
  %v1824 = vld [vmem:[%s1 + $0x1d4] sm:$0xf]
  %v1825 = vld [vmem:[%s1 + $0x1d8] sm:$0xf]
  %v1826 = vld [vmem:[%s1 + $0x1dc] sm:$0xf]
  %v1827 = vld [vmem:[%s1 + $0x1e0] sm:$0xf]
  %v1828 = vld [vmem:[%s1 + $0x1e4] sm:$0xf]
  %v1829 = vld [vmem:[%s1 + $0x1e8] sm:$0xf]
  %v1830 = vld [vmem:[%s1 + $0x1ec] sm:$0xf]
  %v1831 = vld [vmem:[%s1 + $0x1f0] sm:$0xf]
  %v1832 = vld [vmem:[%s1 + $0x1f4] sm:$0xf]
  %v1833 = vld [vmem:[%s1 + $0x1f8] sm:$0xf]
  %v1834 = vld [vmem:[%s1 + $0x1fc] sm:$0xf]
  %v1835 = vld [vmem:[%s7] sm:$0xff]
  %v1836 = vld [vmem:[%s7 + $0x8] sm:$0xff]
  %v1837 = vld [vmem:[%s7 + $0x10] sm:$0xff]
  %v1838 = vld [vmem:[%s7 + $0x18] sm:$0xff]
  %v1839 = vld [vmem:[%s7 + $0x20] sm:$0xff]
  %v1840 = vld [vmem:[%s7 + $0x28] sm:$0xff]
  %v1841 = vld [vmem:[%s7 + $0x30] sm:$0xff]
  %v1842 = vld [vmem:[%s7 + $0x38] sm:$0xff]
  %v1843 = vld [vmem:[%s7 + $0x40] sm:$0xff]
  %v1844 = vld [vmem:[%s7 + $0x48] sm:$0xff]
  %v1845 = vld [vmem:[%s7 + $0x50] sm:$0xff]
  %v1846 = vld [vmem:[%s7 + $0x58] sm:$0xff]
  %v1847 = vld [vmem:[%s7 + $0x60] sm:$0xff]
  %v1848 = vld [vmem:[%s7 + $0x68] sm:$0xff]
  %v1849 = vld [vmem:[%s7 + $0x70] sm:$0xff]
  %v1850 = vld [vmem:[%s7 + $0x78] sm:$0xff]
  %v1851 = vld [vmem:[%s7 + $0x80] sm:$0xff]
  %v1852 = vld [vmem:[%s7 + $0x88] sm:$0xff]
  %v1853 = vld [vmem:[%s7 + $0x90] sm:$0xff]
  %v1854 = vld [vmem:[%s7 + $0x98] sm:$0xff]
  %1856 = vset.pattern.permute.xlu0 0
  %1857 = vperm.xlu0 %1856, %v1835
  %v1858 = vpop.permute.xlu0 %1857
  %1861 = vset.pattern.permute.xlu0 0
  %1862 = vperm.xlu0 %1861, %v1836
  %v1863 = vpop.permute.xlu0 %1862
  %1866 = vset.pattern.permute.xlu0 0
  %1867 = vperm.xlu0 %1866, %v1837
  %v1868 = vpop.permute.xlu0 %1867
  %1871 = vset.pattern.permute.xlu0 0
  %1872 = vperm.xlu0 %1871, %v1838
  %v1873 = vpop.permute.xlu0 %1872
  %1876 = vset.pattern.permute.xlu0 0
  %1877 = vperm.xlu0 %1876, %v1839
  %v1878 = vpop.permute.xlu0 %1877
  %1881 = vset.pattern.permute.xlu0 0
  %1882 = vperm.xlu0 %1881, %v1840
  %v1883 = vpop.permute.xlu0 %1882
  %1886 = vset.pattern.permute.xlu0 0
  %1887 = vperm.xlu0 %1886, %v1841
  %v1888 = vpop.permute.xlu0 %1887
  %1891 = vset.pattern.permute.xlu0 0
  %1892 = vperm.xlu0 %1891, %v1842
  %v1893 = vpop.permute.xlu0 %1892
  %1896 = vset.pattern.permute.xlu0 0
  %1897 = vperm.xlu0 %1896, %v1843
  %v1898 = vpop.permute.xlu0 %1897
  %1901 = vset.pattern.permute.xlu0 0
  %1902 = vperm.xlu0 %1901, %v1844
  %v1903 = vpop.permute.xlu0 %1902
  %1906 = vset.pattern.permute.xlu0 0
  %1907 = vperm.xlu0 %1906, %v1845
  %v1908 = vpop.permute.xlu0 %1907
  %1911 = vset.pattern.permute.xlu0 0
  %1912 = vperm.xlu0 %1911, %v1846
  %v1913 = vpop.permute.xlu0 %1912
  %1916 = vset.pattern.permute.xlu0 0
  %1917 = vperm.xlu0 %1916, %v1847
  %v1918 = vpop.permute.xlu0 %1917
  %1921 = vset.pattern.permute.xlu0 0
  %1922 = vperm.xlu0 %1921, %v1848
  %v1923 = vpop.permute.xlu0 %1922
  %1926 = vset.pattern.permute.xlu0 0
  %1927 = vperm.xlu0 %1926, %v1849
  %v1928 = vpop.permute.xlu0 %1927
  %1931 = vset.pattern.permute.xlu0 0
  %1932 = vperm.xlu0 %1931, %v1850
  %v1933 = vpop.permute.xlu0 %1932
  %1936 = vset.pattern.permute.xlu0 0
  %1937 = vperm.xlu0 %1936, %v1851
  %v1938 = vpop.permute.xlu0 %1937
  %1941 = vset.pattern.permute.xlu0 0
  %1942 = vperm.xlu0 %1941, %v1852
  %v1943 = vpop.permute.xlu0 %1942
  %1946 = vset.pattern.permute.xlu0 0
  %1947 = vperm.xlu0 %1946, %v1853
  %v1948 = vpop.permute.xlu0 %1947
  %1951 = vset.pattern.permute.xlu0 0
  %1952 = vperm.xlu0 %1951, %v1854
  %v1953 = vpop.permute.xlu0 %1952
  %v2035 = vunpack.c.l.b16 %v1627
  %v2036 = vunpack.c.h.b16 %v1627
  %v2037 = vunpack.c.l.b16 %v1628
  %v2038 = vunpack.c.h.b16 %v1628
  %v2039 = vunpack.c.l.b16 %v1629
  %v2040 = vunpack.c.h.b16 %v1629
  %v2041 = vunpack.c.l.b16 %v1630
  %v2042 = vunpack.c.h.b16 %v1630
  %v2043 = vunpack.c.l.b16 %v1631
  %v2044 = vunpack.c.h.b16 %v1631
  %v2045 = vunpack.c.l.b16 %v1632
  %v2046 = vunpack.c.h.b16 %v1632
  %v2047 = vunpack.c.l.b16 %v1633
  %v2048 = vunpack.c.h.b16 %v1633
  %v2049 = vunpack.c.l.b16 %v1634
  %v2050 = vunpack.c.h.b16 %v1634
  %v2051 = vunpack.c.l.b16 %v1635
  %v2052 = vunpack.c.h.b16 %v1635
  %v2053 = vunpack.c.l.b16 %v1636
  %v2054 = vunpack.c.h.b16 %v1636
  %v2055 = vunpack.c.l.b16 %v1637
  %v2056 = vunpack.c.h.b16 %v1637
  %v2057 = vunpack.c.l.b16 %v1638
  %v2058 = vunpack.c.h.b16 %v1638
  %v2059 = vunpack.c.l.b16 %v1639
  %v2060 = vunpack.c.h.b16 %v1639
  %v2061 = vunpack.c.l.b16 %v1640
  %v2062 = vunpack.c.h.b16 %v1640
  %v2063 = vunpack.c.l.b16 %v1641
  %v2064 = vunpack.c.h.b16 %v1641
  %v2065 = vunpack.c.l.b16 %v1642
  %v2066 = vunpack.c.h.b16 %v1642
  %v2067 = vunpack.c.l.b16 %v1643
  %v2068 = vunpack.c.h.b16 %v1643
  %v2069 = vunpack.c.l.b16 %v1644
  %v2070 = vunpack.c.h.b16 %v1644
  %v2071 = vunpack.c.l.b16 %v1645
  %v2072 = vunpack.c.h.b16 %v1645
  %v2073 = vunpack.c.l.b16 %v1646
  %v2074 = vunpack.c.h.b16 %v1646
  %v2075 = vunpack.c.l.b16 %v1647
  %v2076 = vunpack.c.h.b16 %v1647
  %v2077 = vunpack.c.l.b16 %v1648
  %v2078 = vunpack.c.h.b16 %v1648
  %v2079 = vunpack.c.l.b16 %v1649
  %v2080 = vunpack.c.h.b16 %v1649
  %v2081 = vunpack.c.l.b16 %v1650
  %v2082 = vunpack.c.h.b16 %v1650
  %v2083 = vunpack.c.l.b16 %v1651
  %v2084 = vunpack.c.h.b16 %v1651
  %v2085 = vunpack.c.l.b16 %v1652
  %v2086 = vunpack.c.h.b16 %v1652
  %v2087 = vunpack.c.l.b16 %v1653
  %v2088 = vunpack.c.h.b16 %v1653
  %v2089 = vunpack.c.l.b16 %v1654
  %v2090 = vunpack.c.h.b16 %v1654
  %v2091 = vunpack.c.l.b16 %v1655
  %v2092 = vunpack.c.h.b16 %v1655
  %v2093 = vunpack.c.l.b16 %v1656
  %v2094 = vunpack.c.h.b16 %v1656
  %v2095 = vunpack.c.l.b16 %v1657
  %v2096 = vunpack.c.h.b16 %v1657
  %v2097 = vunpack.c.l.b16 %v1658
  %v2098 = vunpack.c.h.b16 %v1658
  %v2099 = vunpack.c.l.b16 %v1659
  %v2100 = vunpack.c.h.b16 %v1659
  %v2101 = vunpack.c.l.b16 %v1660
  %v2102 = vunpack.c.h.b16 %v1660
  %v2103 = vunpack.c.l.b16 %v1661
  %v2104 = vunpack.c.h.b16 %v1661
  %v2105 = vunpack.c.l.b16 %v1662
  %v2106 = vunpack.c.h.b16 %v1662
  %v2107 = vunpack.c.l.b16 %v1663
  %v2108 = vunpack.c.h.b16 %v1663
  %v2109 = vunpack.c.l.b16 %v1664
  %v2110 = vunpack.c.h.b16 %v1664
  %v2111 = vunpack.c.l.b16 %v1665
  %v2112 = vunpack.c.h.b16 %v1665
  %v2113 = vunpack.c.l.b16 %v1666
  %v2114 = vunpack.c.h.b16 %v1666
  %v2115 = vunpack.c.l.b16 %v1667
  %v2116 = vunpack.c.h.b16 %v1667
  %v2117 = vunpack.c.l.b16 %v1668
  %v2118 = vunpack.c.h.b16 %v1668
  %v2119 = vunpack.c.l.b16 %v1669
  %v2120 = vunpack.c.h.b16 %v1669
  %v2121 = vunpack.c.l.b16 %v1670
  %v2122 = vunpack.c.h.b16 %v1670
  %v2123 = vunpack.c.l.b16 %v1671
  %v2124 = vunpack.c.h.b16 %v1671
  %v2125 = vunpack.c.l.b16 %v1672
  %v2126 = vunpack.c.h.b16 %v1672
  %v2127 = vunpack.c.l.b16 %v1673
  %v2128 = vunpack.c.h.b16 %v1673
  %v2129 = vunpack.c.l.b16 %v1674
  %v2130 = vunpack.c.h.b16 %v1674
  %v2131 = vunpack.c.l.b16 %v1675
  %v2132 = vunpack.c.h.b16 %v1675
  %v2133 = vunpack.c.l.b16 %v1676
  %v2134 = vunpack.c.h.b16 %v1676
  %v2135 = vunpack.c.l.b16 %v1677
  %v2136 = vunpack.c.h.b16 %v1677
  %v2137 = vunpack.c.l.b16 %v1678
  %v2138 = vunpack.c.h.b16 %v1678
  %v2139 = vunpack.c.l.b16 %v1679
  %v2140 = vunpack.c.h.b16 %v1679
  %v2141 = vunpack.c.l.b16 %v1680
  %v2142 = vunpack.c.h.b16 %v1680
  %v2143 = vunpack.c.l.b16 %v1681
  %v2144 = vunpack.c.h.b16 %v1681
  %v2145 = vunpack.c.l.b16 %v1682
  %v2146 = vunpack.c.h.b16 %v1682
  %v2147 = vunpack.c.l.b16 %v1683
  %v2148 = vunpack.c.h.b16 %v1683
  %v2149 = vunpack.c.l.b16 %v1684
  %v2150 = vunpack.c.h.b16 %v1684
  %v2151 = vunpack.c.l.b16 %v1685
  %v2152 = vunpack.c.h.b16 %v1685
  %v2153 = vunpack.c.l.b16 %v1686
  %v2154 = vunpack.c.h.b16 %v1686
  %v2155 = vunpack.c.l.b16 %v1687
  %v2156 = vunpack.c.h.b16 %v1687
  %v2157 = vunpack.c.l.b16 %v1688
  %v2158 = vunpack.c.h.b16 %v1688
  %v2159 = vunpack.c.l.b16 %v1689
  %v2160 = vunpack.c.h.b16 %v1689
  %v2161 = vunpack.c.l.b16 %v1690
  %v2162 = vunpack.c.h.b16 %v1690
  %v2163 = vunpack.c.l.b16 %v1691
  %v2164 = vunpack.c.h.b16 %v1691
  %v2165 = vunpack.c.l.b16 %v1692
  %v2166 = vunpack.c.h.b16 %v1692
  %v2167 = vunpack.c.l.b16 %v1693
  %v2168 = vunpack.c.h.b16 %v1693
  %v2169 = vunpack.c.l.b16 %v1694
  %v2170 = vunpack.c.h.b16 %v1694
  %v2171 = vunpack.c.l.b16 %v1695
  %v2172 = vunpack.c.h.b16 %v1695
  %v2173 = vunpack.c.l.b16 %v1696
  %v2174 = vunpack.c.h.b16 %v1696
  %v2175 = vunpack.c.l.b16 %v1697
  %v2176 = vunpack.c.h.b16 %v1697
  %v2177 = vunpack.c.l.b16 %v1698
  %v2178 = vunpack.c.h.b16 %v1698
  %v2179 = vunpack.c.l.b16 %v1699
  %v2180 = vunpack.c.h.b16 %v1699
  %v2181 = vunpack.c.l.b16 %v1700
  %v2182 = vunpack.c.h.b16 %v1700
  %v2183 = vunpack.c.l.b16 %v1701
  %v2184 = vunpack.c.h.b16 %v1701
  %v2185 = vunpack.c.l.b16 %v1702
  %v2186 = vunpack.c.h.b16 %v1702
  %v2187 = vunpack.c.l.b16 %v1703
  %v2188 = vunpack.c.h.b16 %v1703
  %v2189 = vunpack.c.l.b16 %v1704
  %v2190 = vunpack.c.h.b16 %v1704
  %v2191 = vunpack.c.l.b16 %v1705
  %v2192 = vunpack.c.h.b16 %v1705
  %v2193 = vunpack.c.l.b16 %v1706
  %v2194 = vunpack.c.h.b16 %v1706
  %v2195 = vpack.c.b16 %v2043, %v2035
  %v2196 = vpack.c.b16 %v2044, %v2036
  %v2197 = vpack.c.b16 %v2045, %v2037
  %v2198 = vpack.c.b16 %v2046, %v2038
  %v2199 = vpack.c.b16 %v2047, %v2039
  %v2200 = vpack.c.b16 %v2048, %v2040
  %v2201 = vpack.c.b16 %v2049, %v2041
  %v2202 = vpack.c.b16 %v2050, %v2042
  %v2203 = vpack.c.b16 %v2059, %v2051
  %v2204 = vpack.c.b16 %v2060, %v2052
  %v2205 = vpack.c.b16 %v2061, %v2053
  %v2206 = vpack.c.b16 %v2062, %v2054
  %v2207 = vpack.c.b16 %v2063, %v2055
  %v2208 = vpack.c.b16 %v2064, %v2056
  %v2209 = vpack.c.b16 %v2065, %v2057
  %v2210 = vpack.c.b16 %v2066, %v2058
  %v2211 = vpack.c.b16 %v2075, %v2067
  %v2212 = vpack.c.b16 %v2076, %v2068
  %v2213 = vpack.c.b16 %v2077, %v2069
  %v2214 = vpack.c.b16 %v2078, %v2070
  %v2215 = vpack.c.b16 %v2079, %v2071
  %v2216 = vpack.c.b16 %v2080, %v2072
  %v2217 = vpack.c.b16 %v2081, %v2073
  %v2218 = vpack.c.b16 %v2082, %v2074
  %v2219 = vpack.c.b16 %v2091, %v2083
  %v2220 = vpack.c.b16 %v2092, %v2084
  %v2221 = vpack.c.b16 %v2093, %v2085
  %v2222 = vpack.c.b16 %v2094, %v2086
  %v2223 = vpack.c.b16 %v2095, %v2087
  %v2224 = vpack.c.b16 %v2096, %v2088
  %v2225 = vpack.c.b16 %v2097, %v2089
  %v2226 = vpack.c.b16 %v2098, %v2090
  %v2227 = vpack.c.b16 %v2107, %v2099
  %v2228 = vpack.c.b16 %v2108, %v2100
  %v2229 = vpack.c.b16 %v2109, %v2101
  %v2230 = vpack.c.b16 %v2110, %v2102
  %v2231 = vpack.c.b16 %v2111, %v2103
  %v2232 = vpack.c.b16 %v2112, %v2104
  %v2233 = vpack.c.b16 %v2113, %v2105
  %v2234 = vpack.c.b16 %v2114, %v2106
  %v2235 = vpack.c.b16 %v2123, %v2115
  %v2236 = vpack.c.b16 %v2124, %v2116
  %v2237 = vpack.c.b16 %v2125, %v2117
  %v2238 = vpack.c.b16 %v2126, %v2118
  %v2239 = vpack.c.b16 %v2127, %v2119
  %v2240 = vpack.c.b16 %v2128, %v2120
  %v2241 = vpack.c.b16 %v2129, %v2121
  %v2242 = vpack.c.b16 %v2130, %v2122
  %v2243 = vpack.c.b16 %v2139, %v2131
  %v2244 = vpack.c.b16 %v2140, %v2132
  %v2245 = vpack.c.b16 %v2141, %v2133
  %v2246 = vpack.c.b16 %v2142, %v2134
  %v2247 = vpack.c.b16 %v2143, %v2135
  %v2248 = vpack.c.b16 %v2144, %v2136
  %v2249 = vpack.c.b16 %v2145, %v2137
  %v2250 = vpack.c.b16 %v2146, %v2138
  %v2251 = vpack.c.b16 %v2155, %v2147
  %v2252 = vpack.c.b16 %v2156, %v2148
  %v2253 = vpack.c.b16 %v2157, %v2149
  %v2254 = vpack.c.b16 %v2158, %v2150
  %v2255 = vpack.c.b16 %v2159, %v2151
  %v2256 = vpack.c.b16 %v2160, %v2152
  %v2257 = vpack.c.b16 %v2161, %v2153
  %v2258 = vpack.c.b16 %v2162, %v2154
  %v2259 = vpack.c.b16 %v2171, %v2163
  %v2260 = vpack.c.b16 %v2172, %v2164
  %v2261 = vpack.c.b16 %v2173, %v2165
  %v2262 = vpack.c.b16 %v2174, %v2166
  %v2263 = vpack.c.b16 %v2175, %v2167
  %v2264 = vpack.c.b16 %v2176, %v2168
  %v2265 = vpack.c.b16 %v2177, %v2169
  %v2266 = vpack.c.b16 %v2178, %v2170
  %v2267 = vpack.c.b16 %v2187, %v2179
  %v2268 = vpack.c.b16 %v2188, %v2180
  %v2269 = vpack.c.b16 %v2189, %v2181
  %v2270 = vpack.c.b16 %v2190, %v2182
  %v2271 = vpack.c.b16 %v2191, %v2183
  %v2272 = vpack.c.b16 %v2192, %v2184
  %v2273 = vpack.c.b16 %v2193, %v2185
  %v2274 = vpack.c.b16 %v2194, %v2186
  %v2483 = vunpack.c.l.b16 %v1707
  %v2484 = vunpack.c.l.b16 %v1708
  %v2485 = vunpack.c.l.b16 %v1709
  %v2486 = vunpack.c.l.b16 %v1710
  %v2487 = vunpack.c.l.b16 %v1711
  %v2488 = vunpack.c.l.b16 %v1712
  %v2489 = vunpack.c.l.b16 %v1713
  %v2490 = vunpack.c.l.b16 %v1714
  %v2491 = vunpack.c.l.b16 %v1715
  %v2492 = vunpack.c.l.b16 %v1716
  %v2493 = vunpack.c.l.b16 %v1717
  %v2494 = vunpack.c.l.b16 %v1718
  %v2495 = vunpack.c.l.b16 %v1719
  %v2496 = vunpack.c.l.b16 %v1720
  %v2497 = vunpack.c.l.b16 %v1721
  %v2498 = vunpack.c.l.b16 %v1722
  %v2499 = vunpack.c.l.b16 %v1723
  %v2500 = vunpack.c.l.b16 %v1724
  %v2501 = vunpack.c.l.b16 %v1725
  %v2502 = vunpack.c.l.b16 %v1726
  %v2503 = vunpack.c.l.b16 %v1727
  %v2504 = vunpack.c.l.b16 %v1728
  %v2505 = vunpack.c.l.b16 %v1729
  %v2506 = vunpack.c.l.b16 %v1730
  %v2507 = vunpack.c.l.b16 %v1731
  %v2508 = vunpack.c.l.b16 %v1732
  %v2509 = vunpack.c.l.b16 %v1733
  %v2510 = vunpack.c.l.b16 %v1734
  %v2511 = vunpack.c.l.b16 %v1735
  %v2512 = vunpack.c.l.b16 %v1736
  %v2513 = vunpack.c.l.b16 %v1737
  %v2514 = vunpack.c.l.b16 %v1738
  %v2515 = vunpack.c.l.b16 %v1739
  %v2516 = vunpack.c.l.b16 %v1740
  %v2517 = vunpack.c.l.b16 %v1741
  %v2518 = vunpack.c.l.b16 %v1742
  %v2519 = vunpack.c.l.b16 %v1743
  %v2520 = vunpack.c.l.b16 %v1744
  %v2521 = vunpack.c.l.b16 %v1745
  %v2522 = vunpack.c.l.b16 %v1746
  %v2523 = vunpack.c.l.b16 %v1747
  %v2524 = vunpack.c.l.b16 %v1748
  %v2525 = vunpack.c.l.b16 %v1749
  %v2526 = vunpack.c.l.b16 %v1750
  %v2527 = vunpack.c.l.b16 %v1751
  %v2528 = vunpack.c.l.b16 %v1752
  %v2529 = vunpack.c.l.b16 %v1753
  %v2530 = vunpack.c.l.b16 %v1754
  %v2531 = vunpack.c.l.b16 %v1755
  %v2532 = vunpack.c.l.b16 %v1756
  %v2533 = vunpack.c.l.b16 %v1757
  %v2534 = vunpack.c.l.b16 %v1758
  %v2535 = vunpack.c.l.b16 %v1759
  %v2536 = vunpack.c.l.b16 %v1760
  %v2537 = vunpack.c.l.b16 %v1761
  %v2538 = vunpack.c.l.b16 %v1762
  %v2539 = vunpack.c.l.b16 %v1763
  %v2540 = vunpack.c.l.b16 %v1764
  %v2541 = vunpack.c.l.b16 %v1765
  %v2542 = vunpack.c.l.b16 %v1766
  %v2543 = vunpack.c.l.b16 %v1767
  %v2544 = vunpack.c.l.b16 %v1768
  %v2545 = vunpack.c.l.b16 %v1769
  %v2546 = vunpack.c.l.b16 %v1770
  %v2547 = vunpack.c.l.b16 %v1771
  %v2548 = vunpack.c.l.b16 %v1772
  %v2549 = vunpack.c.l.b16 %v1773
  %v2550 = vunpack.c.l.b16 %v1774
  %v2551 = vunpack.c.l.b16 %v1775
  %v2552 = vunpack.c.l.b16 %v1776
  %v2553 = vunpack.c.l.b16 %v1777
  %v2554 = vunpack.c.l.b16 %v1778
  %v2555 = vunpack.c.l.b16 %v1779
  %v2556 = vunpack.c.l.b16 %v1780
  %v2557 = vunpack.c.l.b16 %v1781
  %v2558 = vunpack.c.l.b16 %v1782
  %v2559 = vunpack.c.l.b16 %v1783
  %v2560 = vunpack.c.l.b16 %v1784
  %v2561 = vunpack.c.l.b16 %v1785
  %v2562 = vunpack.c.l.b16 %v1786
  %v2563 = vunpack.c.l.b16 %v1787
  %v2564 = vunpack.c.l.b16 %v1788
  %v2565 = vunpack.c.l.b16 %v1789
  %v2566 = vunpack.c.l.b16 %v1790
  %v2567 = vunpack.c.l.b16 %v1791
  %v2568 = vunpack.c.l.b16 %v1792
  %v2569 = vunpack.c.l.b16 %v1793
  %v2570 = vunpack.c.l.b16 %v1794
  %v2571 = vunpack.c.l.b16 %v1795
  %v2572 = vunpack.c.l.b16 %v1796
  %v2573 = vunpack.c.l.b16 %v1797
  %v2574 = vunpack.c.l.b16 %v1798
  %v2575 = vunpack.c.l.b16 %v1799
  %v2576 = vunpack.c.l.b16 %v1800
  %v2577 = vunpack.c.l.b16 %v1801
  %v2578 = vunpack.c.l.b16 %v1802
  %v2579 = vunpack.c.l.b16 %v1803
  %v2580 = vunpack.c.l.b16 %v1804
  %v2581 = vunpack.c.l.b16 %v1805
  %v2582 = vunpack.c.l.b16 %v1806
  %v2583 = vunpack.c.l.b16 %v1807
  %v2584 = vunpack.c.l.b16 %v1808
  %v2585 = vunpack.c.l.b16 %v1809
  %v2586 = vunpack.c.l.b16 %v1810
  %v2587 = vunpack.c.l.b16 %v1811
  %v2588 = vunpack.c.l.b16 %v1812
  %v2589 = vunpack.c.l.b16 %v1813
  %v2590 = vunpack.c.l.b16 %v1814
  %v2591 = vunpack.c.l.b16 %v1815
  %v2592 = vunpack.c.l.b16 %v1816
  %v2593 = vunpack.c.l.b16 %v1817
  %v2594 = vunpack.c.l.b16 %v1818
  %v2595 = vunpack.c.l.b16 %v1819
  %v2596 = vunpack.c.l.b16 %v1820
  %v2597 = vunpack.c.l.b16 %v1821
  %v2598 = vunpack.c.l.b16 %v1822
  %v2599 = vunpack.c.l.b16 %v1823
  %v2600 = vunpack.c.l.b16 %v1824
  %v2601 = vunpack.c.l.b16 %v1825
  %v2602 = vunpack.c.l.b16 %v1826
  %v2603 = vunpack.c.l.b16 %v1827
  %v2604 = vunpack.c.l.b16 %v1828
  %v2605 = vunpack.c.l.b16 %v1829
  %v2606 = vunpack.c.l.b16 %v1830
  %v2607 = vunpack.c.l.b16 %v1831
  %v2608 = vunpack.c.l.b16 %v1832
  %v2609 = vunpack.c.l.b16 %v1833
  %v2610 = vunpack.c.l.b16 %v1834
  %v2611 = vpack.c.b16 %v2484, %v2483
  %v2612 = vpack.c.b16 %v2486, %v2485
  %v2613 = vpack.c.b16 %v2488, %v2487
  %v2614 = vpack.c.b16 %v2490, %v2489
  %v2615 = vpack.c.b16 %v2492, %v2491
  %v2616 = vpack.c.b16 %v2494, %v2493
  %v2617 = vpack.c.b16 %v2496, %v2495
  %v2618 = vpack.c.b16 %v2498, %v2497
  %v2619 = vpack.c.b16 %v2500, %v2499
  %v2620 = vpack.c.b16 %v2502, %v2501
  %v2621 = vpack.c.b16 %v2504, %v2503
  %v2622 = vpack.c.b16 %v2506, %v2505
  %v2623 = vpack.c.b16 %v2508, %v2507
  %v2624 = vpack.c.b16 %v2510, %v2509
  %v2625 = vpack.c.b16 %v2512, %v2511
  %v2626 = vpack.c.b16 %v2514, %v2513
  %v2627 = vpack.c.b16 %v2516, %v2515
  %v2628 = vpack.c.b16 %v2518, %v2517
  %v2629 = vpack.c.b16 %v2520, %v2519
  %v2630 = vpack.c.b16 %v2522, %v2521
  %v2631 = vpack.c.b16 %v2524, %v2523
  %v2632 = vpack.c.b16 %v2526, %v2525
  %v2633 = vpack.c.b16 %v2528, %v2527
  %v2634 = vpack.c.b16 %v2530, %v2529
  %v2635 = vpack.c.b16 %v2532, %v2531
  %v2636 = vpack.c.b16 %v2534, %v2533
  %v2637 = vpack.c.b16 %v2536, %v2535
  %v2638 = vpack.c.b16 %v2538, %v2537
  %v2639 = vpack.c.b16 %v2540, %v2539
  %v2640 = vpack.c.b16 %v2542, %v2541
  %v2641 = vpack.c.b16 %v2544, %v2543
  %v2642 = vpack.c.b16 %v2546, %v2545
  %v2643 = vpack.c.b16 %v2548, %v2547
  %v2644 = vpack.c.b16 %v2550, %v2549
  %v2645 = vpack.c.b16 %v2552, %v2551
  %v2646 = vpack.c.b16 %v2554, %v2553
  %v2647 = vpack.c.b16 %v2556, %v2555
  %v2648 = vpack.c.b16 %v2558, %v2557
  %v2649 = vpack.c.b16 %v2560, %v2559
  %v2650 = vpack.c.b16 %v2562, %v2561
  %v2651 = vpack.c.b16 %v2564, %v2563
  %v2652 = vpack.c.b16 %v2566, %v2565
  %v2653 = vpack.c.b16 %v2568, %v2567
  %v2654 = vpack.c.b16 %v2570, %v2569
  %v2655 = vpack.c.b16 %v2572, %v2571
  %v2656 = vpack.c.b16 %v2574, %v2573
  %v2657 = vpack.c.b16 %v2576, %v2575
  %v2658 = vpack.c.b16 %v2578, %v2577
  %v2659 = vpack.c.b16 %v2580, %v2579
  %v2660 = vpack.c.b16 %v2582, %v2581
  %v2661 = vpack.c.b16 %v2584, %v2583
  %v2662 = vpack.c.b16 %v2586, %v2585
  %v2663 = vpack.c.b16 %v2588, %v2587
  %v2664 = vpack.c.b16 %v2590, %v2589
  %v2665 = vpack.c.b16 %v2592, %v2591
  %v2666 = vpack.c.b16 %v2594, %v2593
  %v2667 = vpack.c.b16 %v2596, %v2595
  %v2668 = vpack.c.b16 %v2598, %v2597
  %v2669 = vpack.c.b16 %v2600, %v2599
  %v2670 = vpack.c.b16 %v2602, %v2601
  %v2671 = vpack.c.b16 %v2604, %v2603
  %v2672 = vpack.c.b16 %v2606, %v2605
  %v2673 = vpack.c.b16 %v2608, %v2607
  %v2674 = vpack.c.b16 %v2610, %v2609
  %2739 = vmatprep.subr.bf16.mxu0 0
  %2740 = vmatpush1.bf16.msra.mxu0 %v2611
  %2741 = vmatprep.subr.bf16.mxu0 0
  %2742 = vmatpush1.bf16.msra.mxu0 %v2612
  %2743 = vmatprep.subr.bf16.mxu0 0
  %2744 = vmatpush1.bf16.msra.mxu0 %v2613
  %2745 = vmatprep.subr.bf16.mxu0 0
  %2746 = vmatpush1.bf16.msra.mxu0 %v2614
  %2747 = vmatprep.subr.bf16.mxu0 0
  %2748 = vmatpush1.bf16.msra.mxu0 %v2615
  %2749 = vmatprep.subr.bf16.mxu0 0
  %2750 = vmatpush1.bf16.msra.mxu0 %v2616
  %2751 = vmatprep.subr.bf16.mxu0 0
  %2752 = vmatpush1.bf16.msra.mxu0 %v2617
  %2753 = vmatprep.subr.bf16.mxu0 0
  %2754 = vmatpush1.bf16.msra.mxu0 %v2618
  %2755 = vmatprep.subr.bf16.mxu0 0
  %2756 = vmatpush1.bf16.msra.mxu0 %v2619
  %2757 = vmatprep.subr.bf16.mxu0 0
  %2758 = vmatpush1.bf16.msra.mxu0 %v2620
  %2759 = vmatprep.subr.bf16.mxu0 0
  %2760 = vmatpush1.bf16.msra.mxu0 %v2621
  %2761 = vmatprep.subr.bf16.mxu0 0
  %2762 = vmatpush1.bf16.msra.mxu0 %v2622
  %2763 = vmatprep.subr.bf16.mxu0 0
  %2764 = vmatpush1.bf16.msra.mxu0 %v2623
  %2765 = vmatprep.subr.bf16.mxu0 0
  %2766 = vmatpush1.bf16.msra.mxu0 %v2624
  %2767 = vmatprep.subr.bf16.mxu0 0
  %2768 = vmatpush1.bf16.msra.mxu0 %v2625
  %2769 = vmatprep.subr.bf16.mxu0 0
  %2770 = vmatpush1.bf16.msra.mxu0 %v2626
  %2771 = vmatprep.mubr.bf16.mxu0 %v2196
  %2772 = vmatmul.mubr.bf16.gmra.mrb[0].mxu0 %v2195
  %v2773 = vpop.f32.mrb[0].mxu0
  %v2774 = vadd.f32 %v1858, %v2773
  %v2775 = vpop.f32.mrb[0].mxu0
  %v2776 = vpop.f32.mrb[0].mxu0
  %v2777 = vadd.f32 %v1863, %v2776
  %v2778 = vpop.f32.mrb[0].mxu0
  %2779 = vmatprep.mubr.bf16.mxu0 %v2204
  %2780 = vmatmul.mubr.bf16.gmra.mrb[0].mxu0 %v2203
  %v2781 = vpop.f32.mrb[0].mxu0
  %v2782 = vadd.f32 %v1868, %v2781
  %v2783 = vpop.f32.mrb[0].mxu0
  %v2784 = vpop.f32.mrb[0].mxu0
  %v2785 = vadd.f32 %v1873, %v2784
  %v2786 = vpop.f32.mrb[0].mxu0
  %2787 = vmatprep.mubr.bf16.mxu0 %v2212
  %2788 = vmatmul.mubr.bf16.gmra.mrb[0].mxu0 %v2211
  %v2789 = vpop.f32.mrb[0].mxu0
  %v2790 = vadd.f32 %v1878, %v2789
  %v2791 = vpop.f32.mrb[0].mxu0
  %v2792 = vpop.f32.mrb[0].mxu0
  %v2793 = vadd.f32 %v1883, %v2792
  %v2794 = vpop.f32.mrb[0].mxu0
  %2795 = vmatprep.mubr.bf16.mxu0 %v2220
  %2796 = vmatmul.mubr.bf16.gmra.mrb[0].mxu0 %v2219
  %v2797 = vpop.f32.mrb[0].mxu0
  %v2798 = vadd.f32 %v1888, %v2797
  %v2799 = vpop.f32.mrb[0].mxu0
  %v2800 = vpop.f32.mrb[0].mxu0
  %v2801 = vadd.f32 %v1893, %v2800
  %v2802 = vpop.f32.mrb[0].mxu0
  %2803 = vmatprep.mubr.bf16.mxu0 %v2228
  %2804 = vmatmul.mubr.bf16.gmra.mrb[0].mxu0 %v2227
  %v2805 = vpop.f32.mrb[0].mxu0
  %v2806 = vadd.f32 %v1898, %v2805
  %v2807 = vpop.f32.mrb[0].mxu0
  %v2808 = vpop.f32.mrb[0].mxu0
  %v2809 = vadd.f32 %v1903, %v2808
  %v2810 = vpop.f32.mrb[0].mxu0
  %2811 = vmatprep.mubr.bf16.mxu0 %v2236
  %2812 = vmatmul.mubr.bf16.gmra.mrb[0].mxu0 %v2235
  %v2813 = vpop.f32.mrb[0].mxu0
  %v2814 = vadd.f32 %v1908, %v2813
  %v2815 = vpop.f32.mrb[0].mxu0
  %v2816 = vpop.f32.mrb[0].mxu0
  %v2817 = vadd.f32 %v1913, %v2816
  %v2818 = vpop.f32.mrb[0].mxu0
  %2819 = vmatprep.mubr.bf16.mxu0 %v2244
  %2820 = vmatmul.mubr.bf16.gmra.mrb[0].mxu0 %v2243
  %v2821 = vpop.f32.mrb[0].mxu0
  %v2822 = vadd.f32 %v1918, %v2821
  %v2823 = vpop.f32.mrb[0].mxu0
  %v2824 = vpop.f32.mrb[0].mxu0
  %v2825 = vadd.f32 %v1923, %v2824
  %v2826 = vpop.f32.mrb[0].mxu0
  %2827 = vmatprep.mubr.bf16.mxu0 %v2252
  %2828 = vmatmul.mubr.bf16.gmra.mrb[0].mxu0 %v2251
  %v2829 = vpop.f32.mrb[0].mxu0
  %v2830 = vadd.f32 %v1928, %v2829
  %v2831 = vpop.f32.mrb[0].mxu0
  %v2832 = vpop.f32.mrb[0].mxu0
  %v2833 = vadd.f32 %v1933, %v2832
  %v2834 = vpop.f32.mrb[0].mxu0
  %2835 = vmatprep.mubr.bf16.mxu0 %v2260
  %2836 = vmatmul.mubr.bf16.gmra.mrb[0].mxu0 %v2259
  %v2837 = vpop.f32.mrb[0].mxu0
  %v2838 = vadd.f32 %v1938, %v2837
  %v2839 = vpop.f32.mrb[0].mxu0
  %v2840 = vpop.f32.mrb[0].mxu0
  %v2841 = vadd.f32 %v1943, %v2840
  %v2842 = vpop.f32.mrb[0].mxu0
  %2843 = vmatprep.mubr.bf16.mxu0 %v2268
  %2844 = vmatmul.mubr.bf16.gmra.mrb[0].mxu0 %v2267
  %v2845 = vpop.f32.mrb[0].mxu0
  %v2846 = vadd.f32 %v1948, %v2845
  %v2847 = vpop.f32.mrb[0].mxu0
  %v2848 = vpop.f32.mrb[0].mxu0
  %v2849 = vadd.f32 %v1953, %v2848
  %v2850 = vpop.f32.mrb[0].mxu0
  %2851 = vdwg.mxu0
  %2852 = vmatprep.subr.bf16.mxu0 0
  %2853 = vmatpush1.bf16.msra.mxu0 %v2627
  %2854 = vmatprep.subr.bf16.mxu0 0
  %2855 = vmatpush1.bf16.msra.mxu0 %v2628
  %2856 = vmatprep.subr.bf16.mxu0 0
  %2857 = vmatpush1.bf16.msra.mxu0 %v2629
  %2858 = vmatprep.subr.bf16.mxu0 0
  %2859 = vmatpush1.bf16.msra.mxu0 %v2630
  %2860 = vmatprep.subr.bf16.mxu0 0
  %2861 = vmatpush1.bf16.msra.mxu0 %v2631
  %2862 = vmatprep.subr.bf16.mxu0 0
  %2863 = vmatpush1.bf16.msra.mxu0 %v2632
  %2864 = vmatprep.subr.bf16.mxu0 0
  %2865 = vmatpush1.bf16.msra.mxu0 %v2633
  %2866 = vmatprep.subr.bf16.mxu0 0
  %2867 = vmatpush1.bf16.msra.mxu0 %v2634
  %2868 = vmatprep.subr.bf16.mxu0 0
  %2869 = vmatpush1.bf16.msra.mxu0 %v2635
  %2870 = vmatprep.subr.bf16.mxu0 0
  %2871 = vmatpush1.bf16.msra.mxu0 %v2636
  %2872 = vmatprep.subr.bf16.mxu0 0
  %2873 = vmatpush1.bf16.msra.mxu0 %v2637
  %2874 = vmatprep.subr.bf16.mxu0 0
  %2875 = vmatpush1.bf16.msra.mxu0 %v2638
  %2876 = vmatprep.subr.bf16.mxu0 0
  %2877 = vmatpush1.bf16.msra.mxu0 %v2639
  %2878 = vmatprep.subr.bf16.mxu0 0
  %2879 = vmatpush1.bf16.msra.mxu0 %v2640
  %2880 = vmatprep.subr.bf16.mxu0 0
  %2881 = vmatpush1.bf16.msra.mxu0 %v2641
  %2882 = vmatprep.subr.bf16.mxu0 0
  %2883 = vmatpush1.bf16.msra.mxu0 %v2642
  %2884 = vmatprep.mubr.bf16.mxu0 %v2198
  %2885 = vmatmul.mubr.bf16.gmra.mrb[0].mxu0 %v2197
  %v2886 = vpop.f32.mrb[0].mxu0
  %v2887 = vadd.f32 %v2774, %v2886
  %v2888 = vpop.f32.mrb[0].mxu0
  %v2889 = vpop.f32.mrb[0].mxu0
  %v2890 = vadd.f32 %v2777, %v2889
  %v2891 = vpop.f32.mrb[0].mxu0
  %2892 = vmatprep.mubr.bf16.mxu0 %v2206
  %2893 = vmatmul.mubr.bf16.gmra.mrb[0].mxu0 %v2205
  %v2894 = vpop.f32.mrb[0].mxu0
  %v2895 = vadd.f32 %v2782, %v2894
  %v2896 = vpop.f32.mrb[0].mxu0
  %v2897 = vpop.f32.mrb[0].mxu0
  %v2898 = vadd.f32 %v2785, %v2897
  %v2899 = vpop.f32.mrb[0].mxu0
  %2900 = vmatprep.mubr.bf16.mxu0 %v2214
  %2901 = vmatmul.mubr.bf16.gmra.mrb[0].mxu0 %v2213
  %v2902 = vpop.f32.mrb[0].mxu0
  %v2903 = vadd.f32 %v2790, %v2902
  %v2904 = vpop.f32.mrb[0].mxu0
  %v2905 = vpop.f32.mrb[0].mxu0
  %v2906 = vadd.f32 %v2793, %v2905
  %v2907 = vpop.f32.mrb[0].mxu0
  %2908 = vmatprep.mubr.bf16.mxu0 %v2222
  %2909 = vmatmul.mubr.bf16.gmra.mrb[0].mxu0 %v2221
  %v2910 = vpop.f32.mrb[0].mxu0
  %v2911 = vadd.f32 %v2798, %v2910
  %v2912 = vpop.f32.mrb[0].mxu0
  %v2913 = vpop.f32.mrb[0].mxu0
  %v2914 = vadd.f32 %v2801, %v2913
  %v2915 = vpop.f32.mrb[0].mxu0
  %2916 = vmatprep.mubr.bf16.mxu0 %v2230
  %2917 = vmatmul.mubr.bf16.gmra.mrb[0].mxu0 %v2229
  %v2918 = vpop.f32.mrb[0].mxu0
  %v2919 = vadd.f32 %v2806, %v2918
  %v2920 = vpop.f32.mrb[0].mxu0
  %v2921 = vpop.f32.mrb[0].mxu0
  %v2922 = vadd.f32 %v2809, %v2921
  %v2923 = vpop.f32.mrb[0].mxu0
  %2924 = vmatprep.mubr.bf16.mxu0 %v2238
  %2925 = vmatmul.mubr.bf16.gmra.mrb[0].mxu0 %v2237
  %v2926 = vpop.f32.mrb[0].mxu0
  %v2927 = vadd.f32 %v2814, %v2926
  %v2928 = vpop.f32.mrb[0].mxu0
  %v2929 = vpop.f32.mrb[0].mxu0
  %v2930 = vadd.f32 %v2817, %v2929
  %v2931 = vpop.f32.mrb[0].mxu0
  %2932 = vmatprep.mubr.bf16.mxu0 %v2246
  %2933 = vmatmul.mubr.bf16.gmra.mrb[0].mxu0 %v2245
  %v2934 = vpop.f32.mrb[0].mxu0
  %v2935 = vadd.f32 %v2822, %v2934
  %v2936 = vpop.f32.mrb[0].mxu0
  %v2937 = vpop.f32.mrb[0].mxu0
  %v2938 = vadd.f32 %v2825, %v2937
  %v2939 = vpop.f32.mrb[0].mxu0
  %2940 = vmatprep.mubr.bf16.mxu0 %v2254
  %2941 = vmatmul.mubr.bf16.gmra.mrb[0].mxu0 %v2253
  %v2942 = vpop.f32.mrb[0].mxu0
  %v2943 = vadd.f32 %v2830, %v2942
  %v2944 = vpop.f32.mrb[0].mxu0
  %v2945 = vpop.f32.mrb[0].mxu0
  %v2946 = vadd.f32 %v2833, %v2945
  %v2947 = vpop.f32.mrb[0].mxu0
  %2948 = vmatprep.mubr.bf16.mxu0 %v2262
  %2949 = vmatmul.mubr.bf16.gmra.mrb[0].mxu0 %v2261
  %v2950 = vpop.f32.mrb[0].mxu0
  %v2951 = vadd.f32 %v2838, %v2950
  %v2952 = vpop.f32.mrb[0].mxu0
  %v2953 = vpop.f32.mrb[0].mxu0
  %v2954 = vadd.f32 %v2841, %v2953
  %v2955 = vpop.f32.mrb[0].mxu0
  %2956 = vmatprep.mubr.bf16.mxu0 %v2270
  %2957 = vmatmul.mubr.bf16.gmra.mrb[0].mxu0 %v2269
  %v2958 = vpop.f32.mrb[0].mxu0
  %v2959 = vadd.f32 %v2846, %v2958
  %v2960 = vpop.f32.mrb[0].mxu0
  %v2961 = vpop.f32.mrb[0].mxu0
  %v2962 = vadd.f32 %v2849, %v2961
  %v2963 = vpop.f32.mrb[0].mxu0
  %2964 = vdwg.mxu0
  %2965 = vmatprep.subr.bf16.mxu0 0
  %2966 = vmatpush1.bf16.msra.mxu0 %v2643
  %2967 = vmatprep.subr.bf16.mxu0 0
  %2968 = vmatpush1.bf16.msra.mxu0 %v2644
  %2969 = vmatprep.subr.bf16.mxu0 0
  %2970 = vmatpush1.bf16.msra.mxu0 %v2645
  %2971 = vmatprep.subr.bf16.mxu0 0
  %2972 = vmatpush1.bf16.msra.mxu0 %v2646
  %2973 = vmatprep.subr.bf16.mxu0 0
  %2974 = vmatpush1.bf16.msra.mxu0 %v2647
  %2975 = vmatprep.subr.bf16.mxu0 0
  %2976 = vmatpush1.bf16.msra.mxu0 %v2648
  %2977 = vmatprep.subr.bf16.mxu0 0
  %2978 = vmatpush1.bf16.msra.mxu0 %v2649
  %2979 = vmatprep.subr.bf16.mxu0 0
  %2980 = vmatpush1.bf16.msra.mxu0 %v2650
  %2981 = vmatprep.subr.bf16.mxu0 0
  %2982 = vmatpush1.bf16.msra.mxu0 %v2651
  %2983 = vmatprep.subr.bf16.mxu0 0
  %2984 = vmatpush1.bf16.msra.mxu0 %v2652
  %2985 = vmatprep.subr.bf16.mxu0 0
  %2986 = vmatpush1.bf16.msra.mxu0 %v2653
  %2987 = vmatprep.subr.bf16.mxu0 0
  %2988 = vmatpush1.bf16.msra.mxu0 %v2654
  %2989 = vmatprep.subr.bf16.mxu0 0
  %2990 = vmatpush1.bf16.msra.mxu0 %v2655
  %2991 = vmatprep.subr.bf16.mxu0 0
  %2992 = vmatpush1.bf16.msra.mxu0 %v2656
  %2993 = vmatprep.subr.bf16.mxu0 0
  %2994 = vmatpush1.bf16.msra.mxu0 %v2657
  %2995 = vmatprep.subr.bf16.mxu0 0
  %2996 = vmatpush1.bf16.msra.mxu0 %v2658
  %2997 = vmatprep.mubr.bf16.mxu0 %v2200
  %2998 = vmatmul.mubr.bf16.gmra.mrb[0].mxu0 %v2199
  %v2999 = vpop.f32.mrb[0].mxu0
  %v3000 = vadd.f32 %v2887, %v2999
  %v3001 = vpop.f32.mrb[0].mxu0
  %v3002 = vpop.f32.mrb[0].mxu0
  %v3003 = vadd.f32 %v2890, %v3002
  %v3004 = vpop.f32.mrb[0].mxu0
  %3005 = vmatprep.mubr.bf16.mxu0 %v2208
  %3006 = vmatmul.mubr.bf16.gmra.mrb[0].mxu0 %v2207
  %v3007 = vpop.f32.mrb[0].mxu0
  %v3008 = vadd.f32 %v2895, %v3007
  %v3009 = vpop.f32.mrb[0].mxu0
  %v3010 = vpop.f32.mrb[0].mxu0
  %v3011 = vadd.f32 %v2898, %v3010
  %v3012 = vpop.f32.mrb[0].mxu0
  %3013 = vmatprep.mubr.bf16.mxu0 %v2216
  %3014 = vmatmul.mubr.bf16.gmra.mrb[0].mxu0 %v2215
  %v3015 = vpop.f32.mrb[0].mxu0
  %v3016 = vadd.f32 %v2903, %v3015
  %v3017 = vpop.f32.mrb[0].mxu0
  %v3018 = vpop.f32.mrb[0].mxu0
  %v3019 = vadd.f32 %v2906, %v3018
  %v3020 = vpop.f32.mrb[0].mxu0
  %3021 = vmatprep.mubr.bf16.mxu0 %v2224
  %3022 = vmatmul.mubr.bf16.gmra.mrb[0].mxu0 %v2223
  %v3023 = vpop.f32.mrb[0].mxu0
  %v3024 = vadd.f32 %v2911, %v3023
  %v3025 = vpop.f32.mrb[0].mxu0
  %v3026 = vpop.f32.mrb[0].mxu0
  %v3027 = vadd.f32 %v2914, %v3026
  %v3028 = vpop.f32.mrb[0].mxu0
  %3029 = vmatprep.mubr.bf16.mxu0 %v2232
  %3030 = vmatmul.mubr.bf16.gmra.mrb[0].mxu0 %v2231
  %v3031 = vpop.f32.mrb[0].mxu0
  %v3032 = vadd.f32 %v2919, %v3031
  %v3033 = vpop.f32.mrb[0].mxu0
  %v3034 = vpop.f32.mrb[0].mxu0
  %v3035 = vadd.f32 %v2922, %v3034
  %v3036 = vpop.f32.mrb[0].mxu0
  %3037 = vmatprep.mubr.bf16.mxu0 %v2240
  %3038 = vmatmul.mubr.bf16.gmra.mrb[0].mxu0 %v2239
  %v3039 = vpop.f32.mrb[0].mxu0
  %v3040 = vadd.f32 %v2927, %v3039
  %v3041 = vpop.f32.mrb[0].mxu0
  %v3042 = vpop.f32.mrb[0].mxu0
  %v3043 = vadd.f32 %v2930, %v3042
  %v3044 = vpop.f32.mrb[0].mxu0
  %3045 = vmatprep.mubr.bf16.mxu0 %v2248
  %3046 = vmatmul.mubr.bf16.gmra.mrb[0].mxu0 %v2247
  %v3047 = vpop.f32.mrb[0].mxu0
  %v3048 = vadd.f32 %v2935, %v3047
  %v3049 = vpop.f32.mrb[0].mxu0
  %v3050 = vpop.f32.mrb[0].mxu0
  %v3051 = vadd.f32 %v2938, %v3050
  %v3052 = vpop.f32.mrb[0].mxu0
  %3053 = vmatprep.mubr.bf16.mxu0 %v2256
  %3054 = vmatmul.mubr.bf16.gmra.mrb[0].mxu0 %v2255
  %v3055 = vpop.f32.mrb[0].mxu0
  %v3056 = vadd.f32 %v2943, %v3055
  %v3057 = vpop.f32.mrb[0].mxu0
  %v3058 = vpop.f32.mrb[0].mxu0
  %v3059 = vadd.f32 %v2946, %v3058
  %v3060 = vpop.f32.mrb[0].mxu0
  %3061 = vmatprep.mubr.bf16.mxu0 %v2264
  %3062 = vmatmul.mubr.bf16.gmra.mrb[0].mxu0 %v2263
  %v3063 = vpop.f32.mrb[0].mxu0
  %v3064 = vadd.f32 %v2951, %v3063
  %v3065 = vpop.f32.mrb[0].mxu0
  %v3066 = vpop.f32.mrb[0].mxu0
  %v3067 = vadd.f32 %v2954, %v3066
  %v3068 = vpop.f32.mrb[0].mxu0
  %3069 = vmatprep.mubr.bf16.mxu0 %v2272
  %3070 = vmatmul.mubr.bf16.gmra.mrb[0].mxu0 %v2271
  %v3071 = vpop.f32.mrb[0].mxu0
  %v3072 = vadd.f32 %v2959, %v3071
  %v3073 = vpop.f32.mrb[0].mxu0
  %v3074 = vpop.f32.mrb[0].mxu0
  %v3075 = vadd.f32 %v2962, %v3074
  %v3076 = vpop.f32.mrb[0].mxu0
  %3077 = vdwg.mxu0
  %3078 = vmatprep.subr.bf16.mxu0 0
  %3079 = vmatpush1.bf16.msra.mxu0 %v2659
  %3080 = vmatprep.subr.bf16.mxu0 0
  %3081 = vmatpush1.bf16.msra.mxu0 %v2660
  %3082 = vmatprep.subr.bf16.mxu0 0
  %3083 = vmatpush1.bf16.msra.mxu0 %v2661
  %3084 = vmatprep.subr.bf16.mxu0 0
  %3085 = vmatpush1.bf16.msra.mxu0 %v2662
  %3086 = vmatprep.subr.bf16.mxu0 0
  %3087 = vmatpush1.bf16.msra.mxu0 %v2663
  %3088 = vmatprep.subr.bf16.mxu0 0
  %3089 = vmatpush1.bf16.msra.mxu0 %v2664
  %3090 = vmatprep.subr.bf16.mxu0 0
  %3091 = vmatpush1.bf16.msra.mxu0 %v2665
  %3092 = vmatprep.subr.bf16.mxu0 0
  %3093 = vmatpush1.bf16.msra.mxu0 %v2666
  %3094 = vmatprep.subr.bf16.mxu0 0
  %3095 = vmatpush1.bf16.msra.mxu0 %v2667
  %3096 = vmatprep.subr.bf16.mxu0 0
  %3097 = vmatpush1.bf16.msra.mxu0 %v2668
  %3098 = vmatprep.subr.bf16.mxu0 0
  %3099 = vmatpush1.bf16.msra.mxu0 %v2669
  %3100 = vmatprep.subr.bf16.mxu0 0
  %3101 = vmatpush1.bf16.msra.mxu0 %v2670
  %3102 = vmatprep.subr.bf16.mxu0 0
  %3103 = vmatpush1.bf16.msra.mxu0 %v2671
  %3104 = vmatprep.subr.bf16.mxu0 0
  %3105 = vmatpush1.bf16.msra.mxu0 %v2672
  %3106 = vmatprep.subr.bf16.mxu0 0
  %3107 = vmatpush1.bf16.msra.mxu0 %v2673
  %3108 = vmatprep.subr.bf16.mxu0 0
  %3109 = vmatpush1.bf16.msra.mxu0 %v2674
  %3110 = vmatprep.mubr.bf16.mxu0 %v2202
  %3111 = vmatmul.mubr.bf16.gmra.mrb[0].mxu0 %v2201
  %v3112 = vpop.f32.mrb[0].mxu0
  %v3113 = vadd.f32 %v3000, %v3112
  %v3114 = vpop.f32.mrb[0].mxu0
  %v3115 = vpop.f32.mrb[0].mxu0
  %v3116 = vadd.f32 %v3003, %v3115
  %v3117 = vpop.f32.mrb[0].mxu0
  %3118 = vmatprep.mubr.bf16.mxu0 %v2210
  %3119 = vmatmul.mubr.bf16.gmra.mrb[0].mxu0 %v2209
  %v3120 = vpop.f32.mrb[0].mxu0
  %v3121 = vadd.f32 %v3008, %v3120
  %v3122 = vpop.f32.mrb[0].mxu0
  %v3123 = vpop.f32.mrb[0].mxu0
  %v3124 = vadd.f32 %v3011, %v3123
  %v3125 = vpop.f32.mrb[0].mxu0
  %3126 = vmatprep.mubr.bf16.mxu0 %v2218
  %3127 = vmatmul.mubr.bf16.gmra.mrb[0].mxu0 %v2217
  %v3128 = vpop.f32.mrb[0].mxu0
  %v3129 = vadd.f32 %v3016, %v3128
  %v3130 = vpop.f32.mrb[0].mxu0
  %v3131 = vpop.f32.mrb[0].mxu0
  %v3132 = vadd.f32 %v3019, %v3131
  %v3133 = vpop.f32.mrb[0].mxu0
  %3134 = vmatprep.mubr.bf16.mxu0 %v2226
  %3135 = vmatmul.mubr.bf16.gmra.mrb[0].mxu0 %v2225
  %v3136 = vpop.f32.mrb[0].mxu0
  %v3137 = vadd.f32 %v3024, %v3136
  %v3138 = vpop.f32.mrb[0].mxu0
  %v3139 = vpop.f32.mrb[0].mxu0
  %v3140 = vadd.f32 %v3027, %v3139
  %v3141 = vpop.f32.mrb[0].mxu0
  %3142 = vmatprep.mubr.bf16.mxu0 %v2234
  %3143 = vmatmul.mubr.bf16.gmra.mrb[0].mxu0 %v2233
  %v3144 = vpop.f32.mrb[0].mxu0
  %v3145 = vadd.f32 %v3032, %v3144
  %v3146 = vpop.f32.mrb[0].mxu0
  %v3147 = vpop.f32.mrb[0].mxu0
  %v3148 = vadd.f32 %v3035, %v3147
  %v3149 = vpop.f32.mrb[0].mxu0
  %3150 = vmatprep.mubr.bf16.mxu0 %v2242
  %3151 = vmatmul.mubr.bf16.gmra.mrb[0].mxu0 %v2241
  %v3152 = vpop.f32.mrb[0].mxu0
  %v3153 = vadd.f32 %v3040, %v3152
  %v3154 = vpop.f32.mrb[0].mxu0
  %v3155 = vpop.f32.mrb[0].mxu0
  %v3156 = vadd.f32 %v3043, %v3155
  %v3157 = vpop.f32.mrb[0].mxu0
  %3158 = vmatprep.mubr.bf16.mxu0 %v2250
  %3159 = vmatmul.mubr.bf16.gmra.mrb[0].mxu0 %v2249
  %v3160 = vpop.f32.mrb[0].mxu0
  %v3161 = vadd.f32 %v3048, %v3160
  %v3162 = vpop.f32.mrb[0].mxu0
  %v3163 = vpop.f32.mrb[0].mxu0
  %v3164 = vadd.f32 %v3051, %v3163
  %v3165 = vpop.f32.mrb[0].mxu0
  %3166 = vmatprep.mubr.bf16.mxu0 %v2258
  %3167 = vmatmul.mubr.bf16.gmra.mrb[0].mxu0 %v2257
  %v3168 = vpop.f32.mrb[0].mxu0
  %v3169 = vadd.f32 %v3056, %v3168
  %v3170 = vpop.f32.mrb[0].mxu0
  %v3171 = vpop.f32.mrb[0].mxu0
  %v3172 = vadd.f32 %v3059, %v3171
  %v3173 = vpop.f32.mrb[0].mxu0
  %3174 = vmatprep.mubr.bf16.mxu0 %v2266
  %3175 = vmatmul.mubr.bf16.gmra.mrb[0].mxu0 %v2265
  %v3176 = vpop.f32.mrb[0].mxu0
  %v3177 = vadd.f32 %v3064, %v3176
  %v3178 = vpop.f32.mrb[0].mxu0
  %v3179 = vpop.f32.mrb[0].mxu0
  %v3180 = vadd.f32 %v3067, %v3179
  %v3181 = vpop.f32.mrb[0].mxu0
  %3182 = vmatprep.mubr.bf16.mxu0 %v2274
  %3183 = vmatmul.mubr.bf16.gmra.mrb[0].mxu0 %v2273
  %v3184 = vpop.f32.mrb[0].mxu0
  %v3185 = vadd.f32 %v3072, %v3184
  %v3186 = vpop.f32.mrb[0].mxu0
  %v3187 = vpop.f32.mrb[0].mxu0
  %v3188 = vadd.f32 %v3075, %v3187
  %v3189 = vpop.f32.mrb[0].mxu0
  %3190 = vdwg.mxu0
  %v3191 = vmax.f32 %v3113, 0.0
  %v3192 = vmax.f32 %v3116, 0.0
  %v3193 = vmax.f32 %v3121, 0.0
  %v3194 = vmax.f32 %v3124, 0.0
  %v3195 = vmax.f32 %v3129, 0.0
  %v3196 = vmax.f32 %v3132, 0.0
  %v3197 = vmax.f32 %v3137, 0.0
  %v3198 = vmax.f32 %v3140, 0.0
  %v3199 = vmax.f32 %v3145, 0.0
  %v3200 = vmax.f32 %v3148, 0.0
  %v3201 = vmax.f32 %v3153, 0.0
  %v3202 = vmax.f32 %v3156, 0.0
  %v3203 = vmax.f32 %v3161, 0.0
  %v3204 = vmax.f32 %v3164, 0.0
  %v3205 = vmax.f32 %v3169, 0.0
  %v3206 = vmax.f32 %v3172, 0.0
  %v3207 = vmax.f32 %v3177, 0.0
  %v3208 = vmax.f32 %v3180, 0.0
  %v3209 = vmax.f32 %v3185, 0.0
  %v3210 = vmax.f32 %v3188, 0.0
  %v3211 = vpack.c.bf16 %v3192, %v3191
  %v3212 = vpack.c.bf16 %v3194, %v3193
  %v3213 = vpack.c.bf16 %v3196, %v3195
  %v3214 = vpack.c.bf16 %v3198, %v3197
  %v3215 = vpack.c.bf16 %v3200, %v3199
  %v3216 = vpack.c.bf16 %v3202, %v3201
  %v3217 = vpack.c.bf16 %v3204, %v3203
  %v3218 = vpack.c.bf16 %v3206, %v3205
  %v3219 = vpack.c.bf16 %v3208, %v3207
  %v3220 = vpack.c.bf16 %v3210, %v3209
  %v3221 = vld [vmem:[%s4] sm:$0xff]
  %v3222 = vld [vmem:[%s4 + $0x8] sm:$0xff]
  %v3223 = vld [vmem:[%s4 + $0x10] sm:$0xff]
  %v3224 = vld [vmem:[%s4 + $0x18] sm:$0xff]
  %v3225 = vld [vmem:[%s4 + $0x20] sm:$0xff]
  %v3226 = vld [vmem:[%s4 + $0x28] sm:$0xff]
  %v3227 = vld [vmem:[%s4 + $0x30] sm:$0xff]
  %v3228 = vld [vmem:[%s4 + $0x38] sm:$0xff]
  %v3229 = vld [vmem:[%s4 + $0x40] sm:$0xff]
  %v3230 = vld [vmem:[%s4 + $0x48] sm:$0xff]
  %v3231 = vld [vmem:[%s4 + $0x50] sm:$0xff]
  %v3232 = vld [vmem:[%s4 + $0x58] sm:$0xff]
  %v3233 = vld [vmem:[%s4 + $0x60] sm:$0xff]
  %v3234 = vld [vmem:[%s4 + $0x68] sm:$0xff]
  %v3235 = vld [vmem:[%s4 + $0x70] sm:$0xff]
  %v3236 = vld [vmem:[%s4 + $0x78] sm:$0xff]
  %v3237 = vld [vmem:[%s4 + $0x80] sm:$0xff]
  %v3238 = vld [vmem:[%s4 + $0x88] sm:$0xff]
  %v3239 = vld [vmem:[%s4 + $0x90] sm:$0xff]
  %v3240 = vld [vmem:[%s4 + $0x98] sm:$0xff]
  %v3241 = vld [vmem:[%s5] sm:$0xff]
  %v3242 = vld [vmem:[%s5 + $0x8] sm:$0xff]
  %v3243 = vld [vmem:[%s5 + $0x10] sm:$0xff]
  %v3244 = vld [vmem:[%s5 + $0x18] sm:$0xff]
  %v3245 = vld [vmem:[%s5 + $0x20] sm:$0xff]
  %v3246 = vld [vmem:[%s5 + $0x28] sm:$0xff]
  %v3247 = vld [vmem:[%s5 + $0x30] sm:$0xff]
  %v3248 = vld [vmem:[%s5 + $0x38] sm:$0xff]
  %v3249 = vld [vmem:[%s5 + $0x40] sm:$0xff]
  %v3250 = vld [vmem:[%s5 + $0x48] sm:$0xff]
  %v3251 = vld [vmem:[%s5 + $0x50] sm:$0xff]
  %v3252 = vld [vmem:[%s5 + $0x58] sm:$0xff]
  %v3253 = vld [vmem:[%s5 + $0x60] sm:$0xff]
  %v3254 = vld [vmem:[%s5 + $0x68] sm:$0xff]
  %v3255 = vld [vmem:[%s5 + $0x70] sm:$0xff]
  %v3256 = vld [vmem:[%s5 + $0x78] sm:$0xff]
  %v3257 = vld [vmem:[%s5 + $0x80] sm:$0xff]
  %v3258 = vld [vmem:[%s5 + $0x88] sm:$0xff]
  %v3259 = vld [vmem:[%s5 + $0x90] sm:$0xff]
  %v3260 = vld [vmem:[%s5 + $0x98] sm:$0xff]
  %v3281 = vunpack.c.l.b16 %v3241
  %v3282 = vunpack.c.h.b16 %v3241
  %v3283 = vunpack.c.l.b16 %v3242
  %v3284 = vunpack.c.h.b16 %v3242
  %v3285 = vunpack.c.l.b16 %v3243
  %v3286 = vunpack.c.h.b16 %v3243
  %v3287 = vunpack.c.l.b16 %v3244
  %v3288 = vunpack.c.h.b16 %v3244
  %v3289 = vunpack.c.l.b16 %v3245
  %v3290 = vunpack.c.h.b16 %v3245
  %v3291 = vunpack.c.l.b16 %v3246
  %v3292 = vunpack.c.h.b16 %v3246
  %v3293 = vunpack.c.l.b16 %v3247
  %v3294 = vunpack.c.h.b16 %v3247
  %v3295 = vunpack.c.l.b16 %v3248
  %v3296 = vunpack.c.h.b16 %v3248
  %v3297 = vunpack.c.l.b16 %v3249
  %v3298 = vunpack.c.h.b16 %v3249
  %v3299 = vunpack.c.l.b16 %v3250
  %v3300 = vunpack.c.h.b16 %v3250
  %v3301 = vunpack.c.l.b16 %v3251
  %v3302 = vunpack.c.h.b16 %v3251
  %v3303 = vunpack.c.l.b16 %v3252
  %v3304 = vunpack.c.h.b16 %v3252
  %v3305 = vunpack.c.l.b16 %v3253
  %v3306 = vunpack.c.h.b16 %v3253
  %v3307 = vunpack.c.l.b16 %v3254
  %v3308 = vunpack.c.h.b16 %v3254
  %v3309 = vunpack.c.l.b16 %v3255
  %v3310 = vunpack.c.h.b16 %v3255
  %v3311 = vunpack.c.l.b16 %v3256
  %v3312 = vunpack.c.h.b16 %v3256
  %v3313 = vunpack.c.l.b16 %v3257
  %v3314 = vunpack.c.h.b16 %v3257
  %v3315 = vunpack.c.l.b16 %v3258
  %v3316 = vunpack.c.h.b16 %v3258
  %v3317 = vunpack.c.l.b16 %v3259
  %v3318 = vunpack.c.h.b16 %v3259
  %v3319 = vunpack.c.l.b16 %v3260
  %v3320 = vunpack.c.h.b16 %v3260
  %v3321 = vpack.c.b16 %v3283, %v3281
  %v3322 = vpack.c.b16 %v3284, %v3282
  %v3323 = vpack.c.b16 %v3287, %v3285
  %v3324 = vpack.c.b16 %v3288, %v3286
  %v3325 = vpack.c.b16 %v3291, %v3289
  %v3326 = vpack.c.b16 %v3292, %v3290
  %v3327 = vpack.c.b16 %v3295, %v3293
  %v3328 = vpack.c.b16 %v3296, %v3294
  %v3329 = vpack.c.b16 %v3299, %v3297
  %v3330 = vpack.c.b16 %v3300, %v3298
  %v3331 = vpack.c.b16 %v3303, %v3301
  %v3332 = vpack.c.b16 %v3304, %v3302
  %v3333 = vpack.c.b16 %v3307, %v3305
  %v3334 = vpack.c.b16 %v3308, %v3306
  %v3335 = vpack.c.b16 %v3311, %v3309
  %v3336 = vpack.c.b16 %v3312, %v3310
  %v3337 = vpack.c.b16 %v3315, %v3313
  %v3338 = vpack.c.b16 %v3316, %v3314
  %v3339 = vpack.c.b16 %v3319, %v3317
  %v3340 = vpack.c.b16 %v3320, %v3318
  %vm3351 = vcmask 261120
  %v3353 = vsel %vm3351, %v3322, 0
  %v3356 = vsel %vm3351, %v3324, 0
  %v3359 = vsel %vm3351, %v3326, 0
  %v3362 = vsel %vm3351, %v3328, 0
  %v3365 = vsel %vm3351, %v3330, 0
  %v3368 = vsel %vm3351, %v3332, 0
  %v3371 = vsel %vm3351, %v3334, 0
  %v3374 = vsel %vm3351, %v3336, 0
  %v3377 = vsel %vm3351, %v3338, 0
  %v3380 = vsel %vm3351, %v3340, 0
  %3382 = vmatprep.subr.bf16.mxu0 0
  %3383 = vmatpush1.bf16.msra.mxu0 %v3211
  %3384 = vmatprep.subr.bf16.mxu0 0
  %3385 = vmatpush1.bf16.msra.mxu0 %v3212
  %3386 = vmatprep.subr.bf16.mxu0 0
  %3387 = vmatpush1.bf16.msra.mxu0 %v3213
  %3388 = vmatprep.subr.bf16.mxu0 0
  %3389 = vmatpush1.bf16.msra.mxu0 %v3214
  %3390 = vmatprep.subr.bf16.mxu0 0
  %3391 = vmatpush1.bf16.msra.mxu0 %v3215
  %3392 = vmatprep.subr.bf16.mxu0 0
  %3393 = vmatpush1.bf16.msra.mxu0 %v3216
  %3394 = vmatprep.subr.bf16.mxu0 0
  %3395 = vmatpush1.bf16.msra.mxu0 %v3217
  %3396 = vmatprep.subr.bf16.mxu0 0
  %3397 = vmatpush1.bf16.msra.mxu0 %v3218
  %3398 = vmatprep.subr.bf16.mxu0 0
  %3399 = vmatpush1.bf16.msra.mxu0 %v3219
  %3400 = vmatprep.subr.bf16.mxu0 0
  %3401 = vmatpush1.bf16.msra.mxu0 %v3220
  %3402 = vmatprep.subr.bf16.mxu0 0
  %3403 = vmatpush1.bf16.msra.mxu0 0
  %3404 = vmatprep.subr.bf16.mxu0 0
  %3405 = vmatpush1.bf16.msra.mxu0 0
  %3406 = vmatprep.subr.bf16.mxu0 0
  %3407 = vmatpush1.bf16.msra.mxu0 0
  %3408 = vmatprep.subr.bf16.mxu0 0
  %3409 = vmatpush1.bf16.msra.mxu0 0
  %3410 = vmatprep.subr.bf16.mxu0 0
  %3411 = vmatpush1.bf16.msra.mxu0 0
  %3412 = vmatprep.subr.bf16.mxu0 0
  %3413 = vmatpush1.bf16.msra.mxu0 0
  %3414 = vmatprep.mubr.bf16.mxu0 %v3353
  %3415 = vmatmul.mubr.bf16.gmra.mrb[0].mxu0 %v3321
  %v3416 = vpop.f32.mrb[0].mxu0
  %v3417 = vadd.f32 0.0, %v3416
  %v3418 = vpop.f32.mrb[0].mxu0
  %v3419 = vpop.f32.mrb[0].mxu0
  %v3420 = vadd.f32 0.0, %v3419
  %v3421 = vpop.f32.mrb[0].mxu0
  %3422 = vmatprep.mubr.bf16.mxu0 %v3356
  %3423 = vmatmul.mubr.bf16.gmra.mrb[0].mxu0 %v3323
  %v3424 = vpop.f32.mrb[0].mxu0
  %v3425 = vadd.f32 0.0, %v3424
  %v3426 = vpop.f32.mrb[0].mxu0
  %v3427 = vpop.f32.mrb[0].mxu0
  %v3428 = vadd.f32 0.0, %v3427
  %v3429 = vpop.f32.mrb[0].mxu0
  %3430 = vmatprep.mubr.bf16.mxu0 %v3359
  %3431 = vmatmul.mubr.bf16.gmra.mrb[0].mxu0 %v3325
  %v3432 = vpop.f32.mrb[0].mxu0
  %v3433 = vadd.f32 0.0, %v3432
  %v3434 = vpop.f32.mrb[0].mxu0
  %v3435 = vpop.f32.mrb[0].mxu0
  %v3436 = vadd.f32 0.0, %v3435
  %v3437 = vpop.f32.mrb[0].mxu0
  %3438 = vmatprep.mubr.bf16.mxu0 %v3362
  %3439 = vmatmul.mubr.bf16.gmra.mrb[0].mxu0 %v3327
  %v3440 = vpop.f32.mrb[0].mxu0
  %v3441 = vadd.f32 0.0, %v3440
  %v3442 = vpop.f32.mrb[0].mxu0
  %v3443 = vpop.f32.mrb[0].mxu0
  %v3444 = vadd.f32 0.0, %v3443
  %v3445 = vpop.f32.mrb[0].mxu0
  %3446 = vmatprep.mubr.bf16.mxu0 %v3365
  %3447 = vmatmul.mubr.bf16.gmra.mrb[0].mxu0 %v3329
  %v3448 = vpop.f32.mrb[0].mxu0
  %v3449 = vadd.f32 0.0, %v3448
  %v3450 = vpop.f32.mrb[0].mxu0
  %v3451 = vpop.f32.mrb[0].mxu0
  %v3452 = vadd.f32 0.0, %v3451
  %v3453 = vpop.f32.mrb[0].mxu0
  %3454 = vmatprep.mubr.bf16.mxu0 %v3368
  %3455 = vmatmul.mubr.bf16.gmra.mrb[0].mxu0 %v3331
  %v3456 = vpop.f32.mrb[0].mxu0
  %v3457 = vadd.f32 0.0, %v3456
  %v3458 = vpop.f32.mrb[0].mxu0
  %v3459 = vpop.f32.mrb[0].mxu0
  %v3460 = vadd.f32 0.0, %v3459
  %v3461 = vpop.f32.mrb[0].mxu0
  %3462 = vmatprep.mubr.bf16.mxu0 %v3371
  %3463 = vmatmul.mubr.bf16.gmra.mrb[0].mxu0 %v3333
  %v3464 = vpop.f32.mrb[0].mxu0
  %v3465 = vadd.f32 0.0, %v3464
  %v3466 = vpop.f32.mrb[0].mxu0
  %v3467 = vpop.f32.mrb[0].mxu0
  %v3468 = vadd.f32 0.0, %v3467
  %v3469 = vpop.f32.mrb[0].mxu0
  %3470 = vmatprep.mubr.bf16.mxu0 %v3374
  %3471 = vmatmul.mubr.bf16.gmra.mrb[0].mxu0 %v3335
  %v3472 = vpop.f32.mrb[0].mxu0
  %v3473 = vadd.f32 0.0, %v3472
  %v3474 = vpop.f32.mrb[0].mxu0
  %v3475 = vpop.f32.mrb[0].mxu0
  %v3476 = vadd.f32 0.0, %v3475
  %v3477 = vpop.f32.mrb[0].mxu0
  %3478 = vmatprep.mubr.bf16.mxu0 %v3377
  %3479 = vmatmul.mubr.bf16.gmra.mrb[0].mxu0 %v3337
  %v3480 = vpop.f32.mrb[0].mxu0
  %v3481 = vadd.f32 0.0, %v3480
  %v3482 = vpop.f32.mrb[0].mxu0
  %v3483 = vpop.f32.mrb[0].mxu0
  %v3484 = vadd.f32 0.0, %v3483
  %v3485 = vpop.f32.mrb[0].mxu0
  %3486 = vmatprep.mubr.bf16.mxu0 %v3380
  %3487 = vmatmul.mubr.bf16.gmra.mrb[0].mxu0 %v3339
  %v3488 = vpop.f32.mrb[0].mxu0
  %v3489 = vadd.f32 0.0, %v3488
  %v3490 = vpop.f32.mrb[0].mxu0
  %v3491 = vpop.f32.mrb[0].mxu0
  %v3492 = vadd.f32 0.0, %v3491
  %v3493 = vpop.f32.mrb[0].mxu0
  %3494 = vdwg.mxu0
  %v3515 = vunpack.c.l.b16 %v3221
  %v3516 = vunpack.c.h.b16 %v3221
  %v3517 = vunpack.c.l.b16 %v3222
  %v3518 = vunpack.c.h.b16 %v3222
  %v3519 = vunpack.c.l.b16 %v3223
  %v3520 = vunpack.c.h.b16 %v3223
  %v3521 = vunpack.c.l.b16 %v3224
  %v3522 = vunpack.c.h.b16 %v3224
  %v3523 = vunpack.c.l.b16 %v3225
  %v3524 = vunpack.c.h.b16 %v3225
  %v3525 = vunpack.c.l.b16 %v3226
  %v3526 = vunpack.c.h.b16 %v3226
  %v3527 = vunpack.c.l.b16 %v3227
  %v3528 = vunpack.c.h.b16 %v3227
  %v3529 = vunpack.c.l.b16 %v3228
  %v3530 = vunpack.c.h.b16 %v3228
  %v3531 = vunpack.c.l.b16 %v3229
  %v3532 = vunpack.c.h.b16 %v3229
  %v3533 = vunpack.c.l.b16 %v3230
  %v3534 = vunpack.c.h.b16 %v3230
  %v3535 = vunpack.c.l.b16 %v3231
  %v3536 = vunpack.c.h.b16 %v3231
  %v3537 = vunpack.c.l.b16 %v3232
  %v3538 = vunpack.c.h.b16 %v3232
  %v3539 = vunpack.c.l.b16 %v3233
  %v3540 = vunpack.c.h.b16 %v3233
  %v3541 = vunpack.c.l.b16 %v3234
  %v3542 = vunpack.c.h.b16 %v3234
  %v3543 = vunpack.c.l.b16 %v3235
  %v3544 = vunpack.c.h.b16 %v3235
  %v3545 = vunpack.c.l.b16 %v3236
  %v3546 = vunpack.c.h.b16 %v3236
  %v3547 = vunpack.c.l.b16 %v3237
  %v3548 = vunpack.c.h.b16 %v3237
  %v3549 = vunpack.c.l.b16 %v3238
  %v3550 = vunpack.c.h.b16 %v3238
  %v3551 = vunpack.c.l.b16 %v3239
  %v3552 = vunpack.c.h.b16 %v3239
  %v3553 = vunpack.c.l.b16 %v3240
  %v3554 = vunpack.c.h.b16 %v3240
  %v3555 = vpack.c.b16 %v3517, %v3515
  %v3556 = vpack.c.b16 %v3518, %v3516
  %v3557 = vpack.c.b16 %v3521, %v3519
  %v3558 = vpack.c.b16 %v3522, %v3520
  %v3559 = vpack.c.b16 %v3525, %v3523
  %v3560 = vpack.c.b16 %v3526, %v3524
  %v3561 = vpack.c.b16 %v3529, %v3527
  %v3562 = vpack.c.b16 %v3530, %v3528
  %v3563 = vpack.c.b16 %v3533, %v3531
  %v3564 = vpack.c.b16 %v3534, %v3532
  %v3565 = vpack.c.b16 %v3537, %v3535
  %v3566 = vpack.c.b16 %v3538, %v3536
  %v3567 = vpack.c.b16 %v3541, %v3539
  %v3568 = vpack.c.b16 %v3542, %v3540
  %v3569 = vpack.c.b16 %v3545, %v3543
  %v3570 = vpack.c.b16 %v3546, %v3544
  %v3571 = vpack.c.b16 %v3549, %v3547
  %v3572 = vpack.c.b16 %v3550, %v3548
  %v3573 = vpack.c.b16 %v3553, %v3551
  %v3574 = vpack.c.b16 %v3554, %v3552
  %v3586 = vsel %vm3351, %v3556, 0
  %v3589 = vsel %vm3351, %v3558, 0
  %v3592 = vsel %vm3351, %v3560, 0
  %v3595 = vsel %vm3351, %v3562, 0
  %v3598 = vsel %vm3351, %v3564, 0
  %v3601 = vsel %vm3351, %v3566, 0
  %v3604 = vsel %vm3351, %v3568, 0
  %v3607 = vsel %vm3351, %v3570, 0
  %v3610 = vsel %vm3351, %v3572, 0
  %v3613 = vsel %vm3351, %v3574, 0
  %3615 = vmatprep.subr.bf16.mxu0 0
  %3616 = vmatpush1.bf16.msra.mxu0 %v1617
  %3617 = vmatprep.subr.bf16.mxu0 0
  %3618 = vmatpush1.bf16.msra.mxu0 %v1618
  %3619 = vmatprep.subr.bf16.mxu0 0
  %3620 = vmatpush1.bf16.msra.mxu0 %v1619
  %3621 = vmatprep.subr.bf16.mxu0 0
  %3622 = vmatpush1.bf16.msra.mxu0 %v1620
  %3623 = vmatprep.subr.bf16.mxu0 0
  %3624 = vmatpush1.bf16.msra.mxu0 %v1621
  %3625 = vmatprep.subr.bf16.mxu0 0
  %3626 = vmatpush1.bf16.msra.mxu0 %v1622
  %3627 = vmatprep.subr.bf16.mxu0 0
  %3628 = vmatpush1.bf16.msra.mxu0 %v1623
  %3629 = vmatprep.subr.bf16.mxu0 0
  %3630 = vmatpush1.bf16.msra.mxu0 %v1624
  %3631 = vmatprep.subr.bf16.mxu0 0
  %3632 = vmatpush1.bf16.msra.mxu0 %v1625
  %3633 = vmatprep.subr.bf16.mxu0 0
  %3634 = vmatpush1.bf16.msra.mxu0 %v1626
  %3635 = vmatprep.subr.bf16.mxu0 0
  %3636 = vmatpush1.bf16.msra.mxu0 0
  %3637 = vmatprep.subr.bf16.mxu0 0
  %3638 = vmatpush1.bf16.msra.mxu0 0
  %3639 = vmatprep.subr.bf16.mxu0 0
  %3640 = vmatpush1.bf16.msra.mxu0 0
  %3641 = vmatprep.subr.bf16.mxu0 0
  %3642 = vmatpush1.bf16.msra.mxu0 0
  %3643 = vmatprep.subr.bf16.mxu0 0
  %3644 = vmatpush1.bf16.msra.mxu0 0
  %3645 = vmatprep.subr.bf16.mxu0 0
  %3646 = vmatpush1.bf16.msra.mxu0 0
  %3647 = vmatprep.mubr.bf16.mxu0 %v3586
  %3648 = vmatmul.mubr.bf16.gmra.mrb[0].mxu0 %v3555
  %v3649 = vpop.f32.mrb[0].mxu0
  %v3650 = vadd.f32 %v3417, %v3649
  %v3651 = vpop.f32.mrb[0].mxu0
  %v3652 = vpop.f32.mrb[0].mxu0
  %v3653 = vadd.f32 %v3420, %v3652
  %v3654 = vpop.f32.mrb[0].mxu0
  %3655 = vmatprep.mubr.bf16.mxu0 %v3589
  %3656 = vmatmul.mubr.bf16.gmra.mrb[0].mxu0 %v3557
  %v3657 = vpop.f32.mrb[0].mxu0
  %v3658 = vadd.f32 %v3425, %v3657
  %v3659 = vpop.f32.mrb[0].mxu0
  %v3660 = vpop.f32.mrb[0].mxu0
  %v3661 = vadd.f32 %v3428, %v3660
  %v3662 = vpop.f32.mrb[0].mxu0
  %3663 = vmatprep.mubr.bf16.mxu0 %v3592
  %3664 = vmatmul.mubr.bf16.gmra.mrb[0].mxu0 %v3559
  %v3665 = vpop.f32.mrb[0].mxu0
  %v3666 = vadd.f32 %v3433, %v3665
  %v3667 = vpop.f32.mrb[0].mxu0
  %v3668 = vpop.f32.mrb[0].mxu0
  %v3669 = vadd.f32 %v3436, %v3668
  %v3670 = vpop.f32.mrb[0].mxu0
  %3671 = vmatprep.mubr.bf16.mxu0 %v3595
  %3672 = vmatmul.mubr.bf16.gmra.mrb[0].mxu0 %v3561
  %v3673 = vpop.f32.mrb[0].mxu0
  %v3674 = vadd.f32 %v3441, %v3673
  %v3675 = vpop.f32.mrb[0].mxu0
  %v3676 = vpop.f32.mrb[0].mxu0
  %v3677 = vadd.f32 %v3444, %v3676
  %v3678 = vpop.f32.mrb[0].mxu0
  %3679 = vmatprep.mubr.bf16.mxu0 %v3598
  %3680 = vmatmul.mubr.bf16.gmra.mrb[0].mxu0 %v3563
  %v3681 = vpop.f32.mrb[0].mxu0
  %v3682 = vadd.f32 %v3449, %v3681
  %v3683 = vpop.f32.mrb[0].mxu0
  %v3684 = vpop.f32.mrb[0].mxu0
  %v3685 = vadd.f32 %v3452, %v3684
  %v3686 = vpop.f32.mrb[0].mxu0
  %3687 = vmatprep.mubr.bf16.mxu0 %v3601
  %3688 = vmatmul.mubr.bf16.gmra.mrb[0].mxu0 %v3565
  %v3689 = vpop.f32.mrb[0].mxu0
  %v3690 = vadd.f32 %v3457, %v3689
  %v3691 = vpop.f32.mrb[0].mxu0
  %v3692 = vpop.f32.mrb[0].mxu0
  %v3693 = vadd.f32 %v3460, %v3692
  %v3694 = vpop.f32.mrb[0].mxu0
  %3695 = vmatprep.mubr.bf16.mxu0 %v3604
  %3696 = vmatmul.mubr.bf16.gmra.mrb[0].mxu0 %v3567
  %v3697 = vpop.f32.mrb[0].mxu0
  %v3698 = vadd.f32 %v3465, %v3697
  %v3699 = vpop.f32.mrb[0].mxu0
  %v3700 = vpop.f32.mrb[0].mxu0
  %v3701 = vadd.f32 %v3468, %v3700
  %v3702 = vpop.f32.mrb[0].mxu0
  %3703 = vmatprep.mubr.bf16.mxu0 %v3607
  %3704 = vmatmul.mubr.bf16.gmra.mrb[0].mxu0 %v3569
  %v3705 = vpop.f32.mrb[0].mxu0
  %v3706 = vadd.f32 %v3473, %v3705
  %v3707 = vpop.f32.mrb[0].mxu0
  %v3708 = vpop.f32.mrb[0].mxu0
  %v3709 = vadd.f32 %v3476, %v3708
  %v3710 = vpop.f32.mrb[0].mxu0
  %3711 = vmatprep.mubr.bf16.mxu0 %v3610
  %3712 = vmatmul.mubr.bf16.gmra.mrb[0].mxu0 %v3571
  %v3713 = vpop.f32.mrb[0].mxu0
  %v3714 = vadd.f32 %v3481, %v3713
  %v3715 = vpop.f32.mrb[0].mxu0
  %v3716 = vpop.f32.mrb[0].mxu0
  %v3717 = vadd.f32 %v3484, %v3716
  %v3718 = vpop.f32.mrb[0].mxu0
  %3719 = vmatprep.mubr.bf16.mxu0 %v3613
  %3720 = vmatmul.mubr.bf16.gmra.mrb[0].mxu0 %v3573
  %v3721 = vpop.f32.mrb[0].mxu0
  %v3722 = vadd.f32 %v3489, %v3721
  %v3723 = vpop.f32.mrb[0].mxu0
  %v3724 = vpop.f32.mrb[0].mxu0
  %v3725 = vadd.f32 %v3492, %v3724
  %v3726 = vpop.f32.mrb[0].mxu0
  %3727 = vdwg.mxu0
  %v3728 = vld [vmem:[%s8] sm:$0xff]
  %v3729 = vld [vmem:[%s8 + $0x8] sm:$0xff]
  %v3730 = vld [vmem:[%s8 + $0x10] sm:$0xff]
  %v3731 = vld [vmem:[%s8 + $0x18] sm:$0xff]
  %v3732 = vld [vmem:[%s8 + $0x20] sm:$0xff]
  %v3733 = vld [vmem:[%s8 + $0x28] sm:$0xff]
  %v3734 = vld [vmem:[%s8 + $0x30] sm:$0xff]
  %v3735 = vld [vmem:[%s8 + $0x38] sm:$0xff]
  %v3736 = vld [vmem:[%s8 + $0x40] sm:$0xff]
  %v3737 = vld [vmem:[%s8 + $0x48] sm:$0xff]
  %v3738 = vld [vmem:[%s8 + $0x50] sm:$0xff]
  %v3739 = vld [vmem:[%s8 + $0x58] sm:$0xff]
  %v3740 = vld [vmem:[%s8 + $0x60] sm:$0xff]
  %v3741 = vld [vmem:[%s8 + $0x68] sm:$0xff]
  %v3742 = vld [vmem:[%s8 + $0x70] sm:$0xff]
  %v3743 = vld [vmem:[%s8 + $0x78] sm:$0xff]
  %v3744 = vld [vmem:[%s8 + $0x80] sm:$0xff]
  %v3745 = vld [vmem:[%s8 + $0x88] sm:$0xff]
  %v3746 = vld [vmem:[%s8 + $0x90] sm:$0xff]
  %v3747 = vld [vmem:[%s8 + $0x98] sm:$0xff]
  %3749 = vset.pattern.permute.xlu0 0
  %3750 = vperm.xlu0 %3749, %v3728
  %v3751 = vpop.permute.xlu0 %3750
  %3754 = vset.pattern.permute.xlu0 0
  %3755 = vperm.xlu0 %3754, %v3729
  %v3756 = vpop.permute.xlu0 %3755
  %3759 = vset.pattern.permute.xlu0 0
  %3760 = vperm.xlu0 %3759, %v3730
  %v3761 = vpop.permute.xlu0 %3760
  %3764 = vset.pattern.permute.xlu0 0
  %3765 = vperm.xlu0 %3764, %v3731
  %v3766 = vpop.permute.xlu0 %3765
  %3769 = vset.pattern.permute.xlu0 0
  %3770 = vperm.xlu0 %3769, %v3732
  %v3771 = vpop.permute.xlu0 %3770
  %3774 = vset.pattern.permute.xlu0 0
  %3775 = vperm.xlu0 %3774, %v3733
  %v3776 = vpop.permute.xlu0 %3775
  %3779 = vset.pattern.permute.xlu0 0
  %3780 = vperm.xlu0 %3779, %v3734
  %v3781 = vpop.permute.xlu0 %3780
  %3784 = vset.pattern.permute.xlu0 0
  %3785 = vperm.xlu0 %3784, %v3735
  %v3786 = vpop.permute.xlu0 %3785
  %3789 = vset.pattern.permute.xlu0 0
  %3790 = vperm.xlu0 %3789, %v3736
  %v3791 = vpop.permute.xlu0 %3790
  %3794 = vset.pattern.permute.xlu0 0
  %3795 = vperm.xlu0 %3794, %v3737
  %v3796 = vpop.permute.xlu0 %3795
  %3799 = vset.pattern.permute.xlu0 0
  %3800 = vperm.xlu0 %3799, %v3738
  %v3801 = vpop.permute.xlu0 %3800
  %3804 = vset.pattern.permute.xlu0 0
  %3805 = vperm.xlu0 %3804, %v3739
  %v3806 = vpop.permute.xlu0 %3805
  %3809 = vset.pattern.permute.xlu0 0
  %3810 = vperm.xlu0 %3809, %v3740
  %v3811 = vpop.permute.xlu0 %3810
  %3814 = vset.pattern.permute.xlu0 0
  %3815 = vperm.xlu0 %3814, %v3741
  %v3816 = vpop.permute.xlu0 %3815
  %3819 = vset.pattern.permute.xlu0 0
  %3820 = vperm.xlu0 %3819, %v3742
  %v3821 = vpop.permute.xlu0 %3820
  %3824 = vset.pattern.permute.xlu0 0
  %3825 = vperm.xlu0 %3824, %v3743
  %v3826 = vpop.permute.xlu0 %3825
  %3829 = vset.pattern.permute.xlu0 0
  %3830 = vperm.xlu0 %3829, %v3744
  %v3831 = vpop.permute.xlu0 %3830
  %3834 = vset.pattern.permute.xlu0 0
  %3835 = vperm.xlu0 %3834, %v3745
  %v3836 = vpop.permute.xlu0 %3835
  %3839 = vset.pattern.permute.xlu0 0
  %3840 = vperm.xlu0 %3839, %v3746
  %v3841 = vpop.permute.xlu0 %3840
  %3844 = vset.pattern.permute.xlu0 0
  %3845 = vperm.xlu0 %3844, %v3747
  %v3846 = vpop.permute.xlu0 %3845
  %v3848 = vadd.f32 %v3650, %v3751
  %v3849 = vadd.f32 %v3653, %v3756
  %v3850 = vadd.f32 %v3658, %v3761
  %v3851 = vadd.f32 %v3661, %v3766
  %v3852 = vadd.f32 %v3666, %v3771
  %v3853 = vadd.f32 %v3669, %v3776
  %v3854 = vadd.f32 %v3674, %v3781
  %v3855 = vadd.f32 %v3677, %v3786
  %v3856 = vadd.f32 %v3682, %v3791
  %v3857 = vadd.f32 %v3685, %v3796
  %v3858 = vadd.f32 %v3690, %v3801
  %v3859 = vadd.f32 %v3693, %v3806
  %v3860 = vadd.f32 %v3698, %v3811
  %v3861 = vadd.f32 %v3701, %v3816
  %v3862 = vadd.f32 %v3706, %v3821
  %v3863 = vadd.f32 %v3709, %v3826
  %v3864 = vadd.f32 %v3714, %v3831
  %v3865 = vadd.f32 %v3717, %v3836
  %v3866 = vadd.f32 %v3722, %v3841
  %v3867 = vadd.f32 %v3725, %v3846
  %v3868 = vpack.c.bf16 %v3849, %v3848
  %v3869 = vpack.c.bf16 %v3851, %v3850
  %v3870 = vpack.c.bf16 %v3853, %v3852
  %v3871 = vpack.c.bf16 %v3855, %v3854
  %v3872 = vpack.c.bf16 %v3857, %v3856
  %v3873 = vpack.c.bf16 %v3859, %v3858
  %v3874 = vpack.c.bf16 %v3861, %v3860
  %v3875 = vpack.c.bf16 %v3863, %v3862
  %v3876 = vpack.c.bf16 %v3865, %v3864
  %v3877 = vpack.c.bf16 %v3867, %v3866
  %v3888 = vunpack.c.l.b16 %v3868
  %v3889 = vunpack.c.h.b16 %v3868
  %v3890 = vunpack.c.l.b16 %v3869
  %v3891 = vunpack.c.h.b16 %v3869
  %v3892 = vunpack.c.l.b16 %v3870
  %v3893 = vunpack.c.h.b16 %v3870
  %v3894 = vunpack.c.l.b16 %v3871
  %v3895 = vunpack.c.h.b16 %v3871
  %v3896 = vunpack.c.l.b16 %v3872
  %v3897 = vunpack.c.h.b16 %v3872
  %v3898 = vunpack.c.l.b16 %v3873
  %v3899 = vunpack.c.h.b16 %v3873
  %v3900 = vunpack.c.l.b16 %v3874
  %v3901 = vunpack.c.h.b16 %v3874
  %v3902 = vunpack.c.l.b16 %v3875
  %v3903 = vunpack.c.h.b16 %v3875
  %v3904 = vunpack.c.l.b16 %v3876
  %v3905 = vunpack.c.h.b16 %v3876
  %v3906 = vunpack.c.l.b16 %v3877
  %v3907 = vunpack.c.h.b16 %v3877
  %v3908 = vpack.c.b16 %v3888, %v3888
  %v3909 = vpack.c.b16 %v3889, %v3889
  %v3910 = vpack.c.b16 %v3890, %v3890
  %v3911 = vpack.c.b16 %v3891, %v3891
  %v3912 = vpack.c.b16 %v3892, %v3892
  %v3913 = vpack.c.b16 %v3893, %v3893
  %v3914 = vpack.c.b16 %v3894, %v3894
  %v3915 = vpack.c.b16 %v3895, %v3895
  %v3916 = vpack.c.b16 %v3896, %v3896
  %v3917 = vpack.c.b16 %v3897, %v3897
  %v3918 = vpack.c.b16 %v3898, %v3898
  %v3919 = vpack.c.b16 %v3899, %v3899
  %v3920 = vpack.c.b16 %v3900, %v3900
  %v3921 = vpack.c.b16 %v3901, %v3901
  %v3922 = vpack.c.b16 %v3902, %v3902
  %v3923 = vpack.c.b16 %v3903, %v3903
  %v3924 = vpack.c.b16 %v3904, %v3904
  %v3925 = vpack.c.b16 %v3905, %v3905
  %v3926 = vpack.c.b16 %v3906, %v3906
  %v3927 = vpack.c.b16 %v3907, %v3907
  %3948 = vst [vmem:[%s9] sm:$0xf] %v3908
  %3949 = vst [vmem:[%s9 + $0x4] sm:$0xf] %v3909
  %3950 = vst [vmem:[%s9 + $0x8] sm:$0xf] %v3910
  %3951 = vst [vmem:[%s9 + $0xc] sm:$0xf] %v3911
  %3952 = vst [vmem:[%s9 + $0x10] sm:$0xf] %v3912
  %3953 = vst [vmem:[%s9 + $0x14] sm:$0xf] %v3913
  %3954 = vst [vmem:[%s9 + $0x18] sm:$0xf] %v3914
  %3955 = vst [vmem:[%s9 + $0x1c] sm:$0xf] %v3915
  %3956 = vst [vmem:[%s9 + $0x20] sm:$0xf] %v3916
  %3957 = vst [vmem:[%s9 + $0x24] sm:$0xf] %v3917
  %3958 = vst [vmem:[%s9 + $0x28] sm:$0xf] %v3918
  %3959 = vst [vmem:[%s9 + $0x2c] sm:$0xf] %v3919
  %3960 = vst [vmem:[%s9 + $0x30] sm:$0xf] %v3920
  %3961 = vst [vmem:[%s9 + $0x34] sm:$0xf] %v3921
  %3962 = vst [vmem:[%s9 + $0x38] sm:$0xf] %v3922
  %3963 = vst [vmem:[%s9 + $0x3c] sm:$0xf] %v3923
  %3964 = vst [vmem:[%s9 + $0x40] sm:$0xf] %v3924
  %3965 = vst [vmem:[%s9 + $0x44] sm:$0xf] %v3925
  %3966 = vst [vmem:[%s9 + $0x48] sm:$0xf] %v3926
  %3967 = vst [vmem:[%s9 + $0x4c] sm:$0xf] %v3927
  // Predicated region
  $region38: #{generator_forward.13} parent=0 // pred_check
    _
  $region39: #{generator_forward.13} parent=0 // pred_check_branch
    %3969 = sbr.rel (0) target = $region41
  $region40: #{generator_forward.13} parent=0 // pred_region
    _
  $region41: #{generator_forward.13} parent=0 // pred_fallthru
    _
  // Predicated region
  $region42: #{generator_forward.13} parent=0 // pred_check
    _
  $region43: #{generator_forward.13} parent=0 // pred_check_branch
    %3971 = sbr.rel (0) target = $region45
  $region44: #{generator_forward.13} parent=0 // pred_region
    _
  $region45: #{generator_forward.13} parent=0 // pred_fallthru
    _

// kernel: generator_forward.16
$region0: #{generator_forward.16}
  #allocation0 [shape = 'u32[]', space=smem, size = 0x4, offset = 0x4, fixed_abs, tag = 'smem constant byte address 0x4 - core index']
  #allocation1 [shape = 'u32[144,128]{1,0:T(1,128)}', space=vmem, size = 0x12000, scoped, tag = 'internal scratch']
  %s0 = inlined_call_operand.vmem [shape: bf16[32,128], index: 0, kind: input, shape index: {}]
  %s1 = inlined_call_operand.vmem [shape: bf16[80,128], index: 1, kind: input, shape index: {}]
  %s2 = inlined_call_operand.vmem [shape: bf16[32,32], index: 2, kind: input, shape index: {}]
  %s3 = inlined_call_operand.vmem [shape: bf16[32,80], index: 3, kind: input, shape index: {}]
  %s4 = inlined_call_operand.vmem [shape: f32[32,1], index: 4, kind: input, shape index: {}]
  %s5 = inlined_call_operand.vmem [shape: bf16[32,128], index: 5, kind: output, shape index: {}]
  %s6 = sld [smem:[#allocation0]]
  $region30: #{generator_forward.16} parent=0
    _
  %s8 = ssub.s32 1, %s6
  %s9 = scalar_select 0, %s8, %s6
  // Predicated region
  $region2: #{generator_forward.16} parent=0 // pred_check
    _
  $region3: #{generator_forward.16} parent=0 // pred_check_branch
    %11 = sbr.rel (0) target = $region5
  $region4: #{generator_forward.16} parent=0 // pred_region
    _
  $region5: #{generator_forward.16} parent=0 // pred_fallthru
    _
  // Predicated region
  $region6: #{generator_forward.16} parent=0 // pred_check
    _
  $region7: #{generator_forward.16} parent=0 // pred_check_branch
    %13 = sbr.rel (0) target = $region9
  $region8: #{generator_forward.16} parent=0 // pred_region
    _
  $region9: #{generator_forward.16} parent=0 // pred_fallthru
    _
  // Predicated region
  $region10: #{generator_forward.16} parent=0 // pred_check
    _
  $region11: #{generator_forward.16} parent=0 // pred_check_branch
    %15 = sbr.rel (0) target = $region13
  $region12: #{generator_forward.16} parent=0 // pred_region
    _
  $region13: #{generator_forward.16} parent=0 // pred_fallthru
    _
  // Predicated region
  $region14: #{generator_forward.16} parent=0 // pred_check
    _
  $region15: #{generator_forward.16} parent=0 // pred_check_branch
    %17 = sbr.rel (0) target = $region17
  $region16: #{generator_forward.16} parent=0 // pred_region
    _
  $region17: #{generator_forward.16} parent=0 // pred_fallthru
    _
  // Predicated region
  $region18: #{generator_forward.16} parent=0 // pred_check
    _
  $region19: #{generator_forward.16} parent=0 // pred_check_branch
    %19 = sbr.rel (0) target = $region21
  $region20: #{generator_forward.16} parent=0 // pred_region
    _
  $region21: #{generator_forward.16} parent=0 // pred_fallthru
    _
  %v21 = vld [vmem:[%s2] sm:$0xf]
  %v22 = vld [vmem:[%s2 + $0x4] sm:$0xf]
  %v23 = vld [vmem:[%s2 + $0x8] sm:$0xf]
  %v24 = vld [vmem:[%s2 + $0xc] sm:$0xf]
  %v25 = vld [vmem:[%s0] sm:$0xf]
  %v26 = vld [vmem:[%s0 + $0x4] sm:$0xf]
  %v27 = vld [vmem:[%s0 + $0x8] sm:$0xf]
  %v28 = vld [vmem:[%s0 + $0xc] sm:$0xf]
  %v29 = vld [vmem:[%s3] sm:$0xf]
  %v30 = vld [vmem:[%s3 + $0x4] sm:$0xf]
  %v31 = vld [vmem:[%s3 + $0x8] sm:$0xf]
  %v32 = vld [vmem:[%s3 + $0xc] sm:$0xf]
  %v33 = vld [vmem:[%s1] sm:$0xf]
  %v34 = vld [vmem:[%s1 + $0x4] sm:$0xf]
  %v35 = vld [vmem:[%s1 + $0x8] sm:$0xf]
  %v36 = vld [vmem:[%s1 + $0xc] sm:$0xf]
  %v37 = vld [vmem:[%s1 + $0x10] sm:$0xf]
  %v38 = vld [vmem:[%s1 + $0x14] sm:$0xf]
  %v39 = vld [vmem:[%s1 + $0x18] sm:$0xf]
  %v40 = vld [vmem:[%s1 + $0x1c] sm:$0xf]
  %v41 = vld [vmem:[%s1 + $0x20] sm:$0xf]
  %v42 = vld [vmem:[%s1 + $0x24] sm:$0xf]
  %v47 = vunpack.c.l.b16 %v29
  %v48 = vunpack.c.l.b16 %v30
  %v49 = vunpack.c.l.b16 %v31
  %v50 = vunpack.c.l.b16 %v32
  %v51 = vpack.c.b16 %v48, %v47
  %v52 = vpack.c.b16 %v50, %v49
  %v63 = vunpack.c.l.b16 %v33
  %v64 = vunpack.c.l.b16 %v34
  %v65 = vunpack.c.l.b16 %v35
  %v66 = vunpack.c.l.b16 %v36
  %v67 = vunpack.c.l.b16 %v37
  %v68 = vunpack.c.l.b16 %v38
  %v69 = vunpack.c.l.b16 %v39
  %v70 = vunpack.c.l.b16 %v40
  %v71 = vunpack.c.l.b16 %v41
  %v72 = vunpack.c.l.b16 %v42
  %v73 = vpack.c.b16 %v64, %v63
  %v74 = vpack.c.b16 %v66, %v65
  %v75 = vpack.c.b16 %v68, %v67
  %v76 = vpack.c.b16 %v70, %v69
  %v77 = vpack.c.b16 %v72, %v71
  %vm83 = vcmask 654336
  %v85 = vsel %vm83, %v51, 0
  %v88 = vsel %vm83, %v52, 0
  %90 = vmatprep.subr.bf16.mxu0 0
  %91 = vmatpush1.bf16.msra.mxu0 %v73
  %92 = vmatprep.subr.bf16.mxu0 0
  %93 = vmatpush1.bf16.msra.mxu0 %v74
  %94 = vmatprep.subr.bf16.mxu0 0
  %95 = vmatpush1.bf16.msra.mxu0 %v75
  %96 = vmatprep.subr.bf16.mxu0 0
  %97 = vmatpush1.bf16.msra.mxu0 %v76
  %98 = vmatprep.subr.bf16.mxu0 0
  %99 = vmatpush1.bf16.msra.mxu0 %v77
  %100 = vmatprep.subr.bf16.mxu0 0
  %101 = vmatpush1.bf16.msra.mxu0 0
  %102 = vmatprep.subr.bf16.mxu0 0
  %103 = vmatpush1.bf16.msra.mxu0 0
  %104 = vmatprep.subr.bf16.mxu0 0
  %105 = vmatpush1.bf16.msra.mxu0 0
  %106 = vmatprep.subr.bf16.mxu0 0
  %107 = vmatpush1.bf16.msra.mxu0 0
  %108 = vmatprep.subr.bf16.mxu0 0
  %109 = vmatpush1.bf16.msra.mxu0 0
  %110 = vmatprep.subr.bf16.mxu0 0
  %111 = vmatpush1.bf16.msra.mxu0 0
  %112 = vmatprep.subr.bf16.mxu0 0
  %113 = vmatpush1.bf16.msra.mxu0 0
  %114 = vmatprep.subr.bf16.mxu0 0
  %115 = vmatpush1.bf16.msra.mxu0 0
  %116 = vmatprep.subr.bf16.mxu0 0
  %117 = vmatpush1.bf16.msra.mxu0 0
  %118 = vmatprep.subr.bf16.mxu0 0
  %119 = vmatpush1.bf16.msra.mxu0 0
  %120 = vmatprep.subr.bf16.mxu0 0
  %121 = vmatpush1.bf16.msra.mxu0 0
  %122 = vmatprep.mubr.bf16.mxu0 0
  %123 = vmatmul.mubr.bf16.gmra.mrb[0].mxu0 %v85
  %v124 = vpop.f32.mrb[0].mxu0
  %v125 = vadd.f32 0.0, %v124
  %v126 = vpop.f32.mrb[0].mxu0
  %v127 = vpop.f32.mrb[0].mxu0
  %v128 = vadd.f32 0.0, %v127
  %v129 = vpop.f32.mrb[0].mxu0
  %130 = vmatprep.mubr.bf16.mxu0 0
  %131 = vmatmul.mubr.bf16.gmra.mrb[0].mxu0 %v88
  %v132 = vpop.f32.mrb[0].mxu0
  %v133 = vadd.f32 0.0, %v132
  %v134 = vpop.f32.mrb[0].mxu0
  %v135 = vpop.f32.mrb[0].mxu0
  %v136 = vadd.f32 0.0, %v135
  %v137 = vpop.f32.mrb[0].mxu0
  %138 = vdwg.mxu0
  %v143 = vunpack.c.l.b16 %v21
  %v144 = vunpack.c.l.b16 %v22
  %v145 = vunpack.c.l.b16 %v23
  %v146 = vunpack.c.l.b16 %v24
  %v147 = vpack.c.b16 %v144, %v143
  %v148 = vpack.c.b16 %v146, %v145
  %v153 = vunpack.c.l.b16 %v25
  %v154 = vunpack.c.l.b16 %v26
  %v155 = vunpack.c.l.b16 %v27
  %v156 = vunpack.c.l.b16 %v28
  %v157 = vpack.c.b16 %v154, %v153
  %v158 = vpack.c.b16 %v156, %v155
  %vm161 = vcmask 261120
  %v163 = vsel %vm161, %v147, 0
  %v166 = vsel %vm161, %v148, 0
  %168 = vmatprep.subr.bf16.mxu0 0
  %169 = vmatpush1.bf16.msra.mxu0 %v157
  %170 = vmatprep.subr.bf16.mxu0 0
  %171 = vmatpush1.bf16.msra.mxu0 %v158
  %172 = vmatprep.subr.bf16.mxu0 0
  %173 = vmatpush1.bf16.msra.mxu0 0
  %174 = vmatprep.subr.bf16.mxu0 0
  %175 = vmatpush1.bf16.msra.mxu0 0
  %176 = vmatprep.subr.bf16.mxu0 0
  %177 = vmatpush1.bf16.msra.mxu0 0
  %178 = vmatprep.subr.bf16.mxu0 0
  %179 = vmatpush1.bf16.msra.mxu0 0
  %180 = vmatprep.subr.bf16.mxu0 0
  %181 = vmatpush1.bf16.msra.mxu0 0
  %182 = vmatprep.subr.bf16.mxu0 0
  %183 = vmatpush1.bf16.msra.mxu0 0
  %184 = vmatprep.subr.bf16.mxu0 0
  %185 = vmatpush1.bf16.msra.mxu0 0
  %186 = vmatprep.subr.bf16.mxu0 0
  %187 = vmatpush1.bf16.msra.mxu0 0
  %188 = vmatprep.subr.bf16.mxu0 0
  %189 = vmatpush1.bf16.msra.mxu0 0
  %190 = vmatprep.subr.bf16.mxu0 0
  %191 = vmatpush1.bf16.msra.mxu0 0
  %192 = vmatprep.subr.bf16.mxu0 0
  %193 = vmatpush1.bf16.msra.mxu0 0
  %194 = vmatprep.subr.bf16.mxu0 0
  %195 = vmatpush1.bf16.msra.mxu0 0
  %196 = vmatprep.subr.bf16.mxu0 0
  %197 = vmatpush1.bf16.msra.mxu0 0
  %198 = vmatprep.subr.bf16.mxu0 0
  %199 = vmatpush1.bf16.msra.mxu0 0
  %200 = vmatprep.mubr.bf16.mxu0 0
  %201 = vmatmul.mubr.bf16.gmra.mrb[0].mxu0 %v163
  %v202 = vpop.f32.mrb[0].mxu0
  %v203 = vadd.f32 %v125, %v202
  %v204 = vpop.f32.mrb[0].mxu0
  %v205 = vpop.f32.mrb[0].mxu0
  %v206 = vadd.f32 %v128, %v205
  %v207 = vpop.f32.mrb[0].mxu0
  %208 = vmatprep.mubr.bf16.mxu0 0
  %209 = vmatmul.mubr.bf16.gmra.mrb[0].mxu0 %v166
  %v210 = vpop.f32.mrb[0].mxu0
  %v211 = vadd.f32 %v133, %v210
  %v212 = vpop.f32.mrb[0].mxu0
  %v213 = vpop.f32.mrb[0].mxu0
  %v214 = vadd.f32 %v136, %v213
  %v215 = vpop.f32.mrb[0].mxu0
  %216 = vdwg.mxu0
  %v217 = vld [vmem:[%s4] sm:$0xff]
  %v218 = vld [vmem:[%s4 + $0x8] sm:$0xff]
  %v219 = vld [vmem:[%s4 + $0x10] sm:$0xff]
  %v220 = vld [vmem:[%s4 + $0x18] sm:$0xff]
  %222 = vset.pattern.permute.xlu0 0
  %223 = vperm.xlu0 %222, %v217
  %v224 = vpop.permute.xlu0 %223
  %227 = vset.pattern.permute.xlu0 0
  %228 = vperm.xlu0 %227, %v218
  %v229 = vpop.permute.xlu0 %228
  %232 = vset.pattern.permute.xlu0 0
  %233 = vperm.xlu0 %232, %v219
  %v234 = vpop.permute.xlu0 %233
  %237 = vset.pattern.permute.xlu0 0
  %238 = vperm.xlu0 %237, %v220
  %v239 = vpop.permute.xlu0 %238
  %v241 = vadd.f32 %v203, %v224
  %v242 = vadd.f32 %v206, %v229
  %v243 = vadd.f32 %v211, %v234
  %v244 = vadd.f32 %v214, %v239
  %v245 = vmax.f32 %v241, 0.0
  %v246 = vmax.f32 %v242, 0.0
  %v247 = vmax.f32 %v243, 0.0
  %v248 = vmax.f32 %v244, 0.0
  %v249 = vpack.c.bf16 %v246, %v245
  %v250 = vpack.c.bf16 %v248, %v247
  %v253 = vunpack.c.l.b16 %v249
  %v254 = vunpack.c.h.b16 %v249
  %v255 = vunpack.c.l.b16 %v250
  %v256 = vunpack.c.h.b16 %v250
  %v257 = vpack.c.b16 %v253, %v253
  %v258 = vpack.c.b16 %v254, %v254
  %v259 = vpack.c.b16 %v255, %v255
  %v260 = vpack.c.b16 %v256, %v256
  %265 = vst [vmem:[%s5] sm:$0xf] %v257
  %266 = vst [vmem:[%s5 + $0x4] sm:$0xf] %v258
  %267 = vst [vmem:[%s5 + $0x8] sm:$0xf] %v259
  %268 = vst [vmem:[%s5 + $0xc] sm:$0xf] %v260
  // Predicated region
  $region22: #{generator_forward.16} parent=0 // pred_check
    _
  $region23: #{generator_forward.16} parent=0 // pred_check_branch
    %270 = sbr.rel (0) target = $region25
  $region24: #{generator_forward.16} parent=0 // pred_region
    _
  $region25: #{generator_forward.16} parent=0 // pred_fallthru
    _
  // Predicated region
  $region26: #{generator_forward.16} parent=0 // pred_check
    _
  $region27: #{generator_forward.16} parent=0 // pred_check_branch
    %272 = sbr.rel (0) target = $region29
  $region28: #{generator_forward.16} parent=0 // pred_region
    _
  $region29: #{generator_forward.16} parent=0 // pred_fallthru
    _

// kernel: generator_forward.12
$region0: #{generator_forward.12}
  #allocation0 [shape = 'u32[]', space=smem, size = 0x4, offset = 0x4, fixed_abs, tag = 'smem constant byte address 0x4 - core index']
  #allocation1 [shape = 'u32[144,128]{1,0:T(1,128)}', space=vmem, size = 0x12000, scoped, tag = 'internal scratch']
  %s0 = inlined_call_operand.vmem [shape: bf16[256,128], index: 0, kind: input, shape index: {}]
  %s1 = inlined_call_operand.vmem [shape: bf16[256,128], index: 1, kind: input, shape index: {}]
  %s2 = inlined_call_operand.vmem [shape: bf16[80,256], index: 2, kind: input, shape index: {}]
  %s3 = inlined_call_operand.vmem [shape: bf16[80,256], index: 3, kind: input, shape index: {}]
  %s4 = inlined_call_operand.vmem [shape: bf16[80,80], index: 4, kind: input, shape index: {}]
  %s5 = inlined_call_operand.vmem [shape: bf16[80,80], index: 5, kind: input, shape index: {}]
  %s6 = inlined_call_operand.vmem [shape: f32[80,1], index: 6, kind: input, shape index: {}]
  %s7 = inlined_call_operand.vmem [shape: f32[80,1], index: 7, kind: input, shape index: {}]
  %s8 = inlined_call_operand.vmem [shape: f32[80,1], index: 8, kind: input, shape index: {}]
  %s9 = inlined_call_operand.vmem [shape: bf16[80,128], index: 9, kind: output, shape index: {}]
  %s10 = sld [smem:[#allocation0]]
  $region46: #{generator_forward.12} parent=0
    _
  %s12 = ssub.s32 1, %s10
  %s13 = scalar_select 0, %s12, %s10
  // Predicated region
  $region2: #{generator_forward.12} parent=0 // pred_check
    _
  $region3: #{generator_forward.12} parent=0 // pred_check_branch
    %15 = sbr.rel (0) target = $region5
  $region4: #{generator_forward.12} parent=0 // pred_region
    _
  $region5: #{generator_forward.12} parent=0 // pred_fallthru
    _
  // Predicated region
  $region6: #{generator_forward.12} parent=0 // pred_check
    _
  $region7: #{generator_forward.12} parent=0 // pred_check_branch
    %17 = sbr.rel (0) target = $region9
  $region8: #{generator_forward.12} parent=0 // pred_region
    _
  $region9: #{generator_forward.12} parent=0 // pred_fallthru
    _
  // Predicated region
  $region10: #{generator_forward.12} parent=0 // pred_check
    _
  $region11: #{generator_forward.12} parent=0 // pred_check_branch
    %19 = sbr.rel (0) target = $region13
  $region12: #{generator_forward.12} parent=0 // pred_region
    _
  $region13: #{generator_forward.12} parent=0 // pred_fallthru
    _
  // Predicated region
  $region14: #{generator_forward.12} parent=0 // pred_check
    _
  $region15: #{generator_forward.12} parent=0 // pred_check_branch
    %21 = sbr.rel (0) target = $region17
  $region16: #{generator_forward.12} parent=0 // pred_region
    _
  $region17: #{generator_forward.12} parent=0 // pred_fallthru
    _
  // Predicated region
  $region18: #{generator_forward.12} parent=0 // pred_check
    _
  $region19: #{generator_forward.12} parent=0 // pred_check_branch
    %23 = sbr.rel (0) target = $region21
  $region20: #{generator_forward.12} parent=0 // pred_region
    _
  $region21: #{generator_forward.12} parent=0 // pred_fallthru
    _
  // Predicated region
  $region22: #{generator_forward.12} parent=0 // pred_check
    _
  $region23: #{generator_forward.12} parent=0 // pred_check_branch
    %25 = sbr.rel (0) target = $region25
  $region24: #{generator_forward.12} parent=0 // pred_region
    _
  $region25: #{generator_forward.12} parent=0 // pred_fallthru
    _
  // Predicated region
  $region26: #{generator_forward.12} parent=0 // pred_check
    _
  $region27: #{generator_forward.12} parent=0 // pred_check_branch
    %27 = sbr.rel (0) target = $region29
  $region28: #{generator_forward.12} parent=0 // pred_region
    _
  $region29: #{generator_forward.12} parent=0 // pred_fallthru
    _
  // Predicated region
  $region30: #{generator_forward.12} parent=0 // pred_check
    _
  $region31: #{generator_forward.12} parent=0 // pred_check_branch
    %29 = sbr.rel (0) target = $region33
  $region32: #{generator_forward.12} parent=0 // pred_region
    _
  $region33: #{generator_forward.12} parent=0 // pred_fallthru
    _
  // Predicated region
  $region34: #{generator_forward.12} parent=0 // pred_check
    _
  $region35: #{generator_forward.12} parent=0 // pred_check_branch
    %31 = sbr.rel (0) target = $region37
  $region36: #{generator_forward.12} parent=0 // pred_region
    _
  $region37: #{generator_forward.12} parent=0 // pred_fallthru
    _
  %v33 = vld [vmem:[%s2] sm:$0xff]
  %v34 = vld [vmem:[%s2 + $0x8] sm:$0xff]
  %v35 = vld [vmem:[%s2 + $0x10] sm:$0xff]
  %v36 = vld [vmem:[%s2 + $0x18] sm:$0xff]
  %v37 = vld [vmem:[%s2 + $0x20] sm:$0xff]
  %v38 = vld [vmem:[%s2 + $0x28] sm:$0xff]
  %v39 = vld [vmem:[%s2 + $0x30] sm:$0xff]
  %v40 = vld [vmem:[%s2 + $0x38] sm:$0xff]
  %v41 = vld [vmem:[%s2 + $0x40] sm:$0xff]
  %v42 = vld [vmem:[%s2 + $0x48] sm:$0xff]
  %v43 = vld [vmem:[%s0] sm:$0xf]
  %v44 = vld [vmem:[%s0 + $0x4] sm:$0xf]
  %v45 = vld [vmem:[%s0 + $0x8] sm:$0xf]
  %v46 = vld [vmem:[%s0 + $0xc] sm:$0xf]
  %v47 = vld [vmem:[%s0 + $0x10] sm:$0xf]
  %v48 = vld [vmem:[%s0 + $0x14] sm:$0xf]
  %v49 = vld [vmem:[%s0 + $0x18] sm:$0xf]
  %v50 = vld [vmem:[%s0 + $0x1c] sm:$0xf]
  %v51 = vld [vmem:[%s0 + $0x20] sm:$0xf]
  %v52 = vld [vmem:[%s0 + $0x24] sm:$0xf]
  %v53 = vld [vmem:[%s0 + $0x28] sm:$0xf]
  %v54 = vld [vmem:[%s0 + $0x2c] sm:$0xf]
  %v55 = vld [vmem:[%s0 + $0x30] sm:$0xf]
  %v56 = vld [vmem:[%s0 + $0x34] sm:$0xf]
  %v57 = vld [vmem:[%s0 + $0x38] sm:$0xf]
  %v58 = vld [vmem:[%s0 + $0x3c] sm:$0xf]
  %v59 = vld [vmem:[%s0 + $0x40] sm:$0xf]
  %v60 = vld [vmem:[%s0 + $0x44] sm:$0xf]
  %v61 = vld [vmem:[%s0 + $0x48] sm:$0xf]
  %v62 = vld [vmem:[%s0 + $0x4c] sm:$0xf]
  %v63 = vld [vmem:[%s0 + $0x50] sm:$0xf]
  %v64 = vld [vmem:[%s0 + $0x54] sm:$0xf]
  %v65 = vld [vmem:[%s0 + $0x58] sm:$0xf]
  %v66 = vld [vmem:[%s0 + $0x5c] sm:$0xf]
  %v67 = vld [vmem:[%s0 + $0x60] sm:$0xf]
  %v68 = vld [vmem:[%s0 + $0x64] sm:$0xf]
  %v69 = vld [vmem:[%s0 + $0x68] sm:$0xf]
  %v70 = vld [vmem:[%s0 + $0x6c] sm:$0xf]
  %v71 = vld [vmem:[%s0 + $0x70] sm:$0xf]
  %v72 = vld [vmem:[%s0 + $0x74] sm:$0xf]
  %v73 = vld [vmem:[%s0 + $0x78] sm:$0xf]
  %v74 = vld [vmem:[%s0 + $0x7c] sm:$0xf]
  %v75 = vld [vmem:[%s6] sm:$0xff]
  %v76 = vld [vmem:[%s6 + $0x8] sm:$0xff]
  %v77 = vld [vmem:[%s6 + $0x10] sm:$0xff]
  %v78 = vld [vmem:[%s6 + $0x18] sm:$0xff]
  %v79 = vld [vmem:[%s6 + $0x20] sm:$0xff]
  %v80 = vld [vmem:[%s6 + $0x28] sm:$0xff]
  %v81 = vld [vmem:[%s6 + $0x30] sm:$0xff]
  %v82 = vld [vmem:[%s6 + $0x38] sm:$0xff]
  %v83 = vld [vmem:[%s6 + $0x40] sm:$0xff]
  %v84 = vld [vmem:[%s6 + $0x48] sm:$0xff]
  %86 = vset.pattern.permute.xlu0 0
  %87 = vperm.xlu0 %86, %v75
  %v88 = vpop.permute.xlu0 %87
  %91 = vset.pattern.permute.xlu0 0
  %92 = vperm.xlu0 %91, %v76
  %v93 = vpop.permute.xlu0 %92
  %96 = vset.pattern.permute.xlu0 0
  %97 = vperm.xlu0 %96, %v77
  %v98 = vpop.permute.xlu0 %97
  %101 = vset.pattern.permute.xlu0 0
  %102 = vperm.xlu0 %101, %v78
  %v103 = vpop.permute.xlu0 %102
  %106 = vset.pattern.permute.xlu0 0
  %107 = vperm.xlu0 %106, %v79
  %v108 = vpop.permute.xlu0 %107
  %111 = vset.pattern.permute.xlu0 0
  %112 = vperm.xlu0 %111, %v80
  %v113 = vpop.permute.xlu0 %112
  %116 = vset.pattern.permute.xlu0 0
  %117 = vperm.xlu0 %116, %v81
  %v118 = vpop.permute.xlu0 %117
  %121 = vset.pattern.permute.xlu0 0
  %122 = vperm.xlu0 %121, %v82
  %v123 = vpop.permute.xlu0 %122
  %126 = vset.pattern.permute.xlu0 0
  %127 = vperm.xlu0 %126, %v83
  %v128 = vpop.permute.xlu0 %127
  %131 = vset.pattern.permute.xlu0 0
  %132 = vperm.xlu0 %131, %v84
  %v133 = vpop.permute.xlu0 %132
  %v145 = vunpack.c.l.b16 %v33
  %v146 = vunpack.c.h.b16 %v33
  %v147 = vunpack.c.l.b16 %v34
  %v148 = vunpack.c.h.b16 %v34
  %v149 = vunpack.c.l.b16 %v35
  %v150 = vunpack.c.h.b16 %v35
  %v151 = vunpack.c.l.b16 %v36
  %v152 = vunpack.c.h.b16 %v36
  %v153 = vunpack.c.l.b16 %v37
  %v154 = vunpack.c.h.b16 %v37
  %v155 = vunpack.c.l.b16 %v38
  %v156 = vunpack.c.h.b16 %v38
  %v157 = vunpack.c.l.b16 %v39
  %v158 = vunpack.c.h.b16 %v39
  %v159 = vunpack.c.l.b16 %v40
  %v160 = vunpack.c.h.b16 %v40
  %v161 = vunpack.c.l.b16 %v41
  %v162 = vunpack.c.h.b16 %v41
  %v163 = vunpack.c.l.b16 %v42
  %v164 = vunpack.c.h.b16 %v42
  %v165 = vpack.c.b16 %v147, %v145
  %v166 = vpack.c.b16 %v148, %v146
  %v167 = vpack.c.b16 %v151, %v149
  %v168 = vpack.c.b16 %v152, %v150
  %v169 = vpack.c.b16 %v155, %v153
  %v170 = vpack.c.b16 %v156, %v154
  %v171 = vpack.c.b16 %v159, %v157
  %v172 = vpack.c.b16 %v160, %v158
  %v173 = vpack.c.b16 %v163, %v161
  %v174 = vpack.c.b16 %v164, %v162
  %v217 = vunpack.c.l.b16 %v43
  %v218 = vunpack.c.l.b16 %v44
  %v219 = vunpack.c.l.b16 %v45
  %v220 = vunpack.c.l.b16 %v46
  %v221 = vunpack.c.l.b16 %v47
  %v222 = vunpack.c.l.b16 %v48
  %v223 = vunpack.c.l.b16 %v49
  %v224 = vunpack.c.l.b16 %v50
  %v225 = vunpack.c.l.b16 %v51
  %v226 = vunpack.c.l.b16 %v52
  %v227 = vunpack.c.l.b16 %v53
  %v228 = vunpack.c.l.b16 %v54
  %v229 = vunpack.c.l.b16 %v55
  %v230 = vunpack.c.l.b16 %v56
  %v231 = vunpack.c.l.b16 %v57
  %v232 = vunpack.c.l.b16 %v58
  %v233 = vunpack.c.l.b16 %v59
  %v234 = vunpack.c.l.b16 %v60
  %v235 = vunpack.c.l.b16 %v61
  %v236 = vunpack.c.l.b16 %v62
  %v237 = vunpack.c.l.b16 %v63
  %v238 = vunpack.c.l.b16 %v64
  %v239 = vunpack.c.l.b16 %v65
  %v240 = vunpack.c.l.b16 %v66
  %v241 = vunpack.c.l.b16 %v67
  %v242 = vunpack.c.l.b16 %v68
  %v243 = vunpack.c.l.b16 %v69
  %v244 = vunpack.c.l.b16 %v70
  %v245 = vunpack.c.l.b16 %v71
  %v246 = vunpack.c.l.b16 %v72
  %v247 = vunpack.c.l.b16 %v73
  %v248 = vunpack.c.l.b16 %v74
  %v249 = vpack.c.b16 %v218, %v217
  %v250 = vpack.c.b16 %v220, %v219
  %v251 = vpack.c.b16 %v222, %v221
  %v252 = vpack.c.b16 %v224, %v223
  %v253 = vpack.c.b16 %v226, %v225
  %v254 = vpack.c.b16 %v228, %v227
  %v255 = vpack.c.b16 %v230, %v229
  %v256 = vpack.c.b16 %v232, %v231
  %v257 = vpack.c.b16 %v234, %v233
  %v258 = vpack.c.b16 %v236, %v235
  %v259 = vpack.c.b16 %v238, %v237
  %v260 = vpack.c.b16 %v240, %v239
  %v261 = vpack.c.b16 %v242, %v241
  %v262 = vpack.c.b16 %v244, %v243
  %v263 = vpack.c.b16 %v246, %v245
  %v264 = vpack.c.b16 %v248, %v247
  %281 = vmatprep.subr.bf16.mxu0 0
  %282 = vmatpush1.bf16.msra.mxu0 %v249
  %283 = vmatprep.subr.bf16.mxu0 0
  %284 = vmatpush1.bf16.msra.mxu0 %v250
  %285 = vmatprep.subr.bf16.mxu0 0
  %286 = vmatpush1.bf16.msra.mxu0 %v251
  %287 = vmatprep.subr.bf16.mxu0 0
  %288 = vmatpush1.bf16.msra.mxu0 %v252
  %289 = vmatprep.subr.bf16.mxu0 0
  %290 = vmatpush1.bf16.msra.mxu0 %v253
  %291 = vmatprep.subr.bf16.mxu0 0
  %292 = vmatpush1.bf16.msra.mxu0 %v254
  %293 = vmatprep.subr.bf16.mxu0 0
  %294 = vmatpush1.bf16.msra.mxu0 %v255
  %295 = vmatprep.subr.bf16.mxu0 0
  %296 = vmatpush1.bf16.msra.mxu0 %v256
  %297 = vmatprep.subr.bf16.mxu0 0
  %298 = vmatpush1.bf16.msra.mxu0 %v257
  %299 = vmatprep.subr.bf16.mxu0 0
  %300 = vmatpush1.bf16.msra.mxu0 %v258
  %301 = vmatprep.subr.bf16.mxu0 0
  %302 = vmatpush1.bf16.msra.mxu0 %v259
  %303 = vmatprep.subr.bf16.mxu0 0
  %304 = vmatpush1.bf16.msra.mxu0 %v260
  %305 = vmatprep.subr.bf16.mxu0 0
  %306 = vmatpush1.bf16.msra.mxu0 %v261
  %307 = vmatprep.subr.bf16.mxu0 0
  %308 = vmatpush1.bf16.msra.mxu0 %v262
  %309 = vmatprep.subr.bf16.mxu0 0
  %310 = vmatpush1.bf16.msra.mxu0 %v263
  %311 = vmatprep.subr.bf16.mxu0 0
  %312 = vmatpush1.bf16.msra.mxu0 %v264
  %313 = vmatprep.mubr.bf16.mxu0 %v166
  %314 = vmatmul.mubr.bf16.gmra.mrb[0].mxu0 %v165
  %v315 = vpop.f32.mrb[0].mxu0
  %v316 = vadd.f32 %v88, %v315
  %v317 = vpop.f32.mrb[0].mxu0
  %v318 = vpop.f32.mrb[0].mxu0
  %v319 = vadd.f32 %v93, %v318
  %v320 = vpop.f32.mrb[0].mxu0
  %321 = vmatprep.mubr.bf16.mxu0 %v168
  %322 = vmatmul.mubr.bf16.gmra.mrb[0].mxu0 %v167
  %v323 = vpop.f32.mrb[0].mxu0
  %v324 = vadd.f32 %v98, %v323
  %v325 = vpop.f32.mrb[0].mxu0
  %v326 = vpop.f32.mrb[0].mxu0
  %v327 = vadd.f32 %v103, %v326
  %v328 = vpop.f32.mrb[0].mxu0
  %329 = vmatprep.mubr.bf16.mxu0 %v170
  %330 = vmatmul.mubr.bf16.gmra.mrb[0].mxu0 %v169
  %v331 = vpop.f32.mrb[0].mxu0
  %v332 = vadd.f32 %v108, %v331
  %v333 = vpop.f32.mrb[0].mxu0
  %v334 = vpop.f32.mrb[0].mxu0
  %v335 = vadd.f32 %v113, %v334
  %v336 = vpop.f32.mrb[0].mxu0
  %337 = vmatprep.mubr.bf16.mxu0 %v172
  %338 = vmatmul.mubr.bf16.gmra.mrb[0].mxu0 %v171
  %v339 = vpop.f32.mrb[0].mxu0
  %v340 = vadd.f32 %v118, %v339
  %v341 = vpop.f32.mrb[0].mxu0
  %v342 = vpop.f32.mrb[0].mxu0
  %v343 = vadd.f32 %v123, %v342
  %v344 = vpop.f32.mrb[0].mxu0
  %345 = vmatprep.mubr.bf16.mxu0 %v174
  %346 = vmatmul.mubr.bf16.gmra.mrb[0].mxu0 %v173
  %v347 = vpop.f32.mrb[0].mxu0
  %v348 = vadd.f32 %v128, %v347
  %v349 = vpop.f32.mrb[0].mxu0
  %v350 = vpop.f32.mrb[0].mxu0
  %v351 = vadd.f32 %v133, %v350
  %v352 = vpop.f32.mrb[0].mxu0
  %353 = vdwg.mxu0
  %v354 = vmax.f32 %v316, 0.0
  %v355 = vmax.f32 %v319, 0.0
  %v356 = vmax.f32 %v324, 0.0
  %v357 = vmax.f32 %v327, 0.0
  %v358 = vmax.f32 %v332, 0.0
  %v359 = vmax.f32 %v335, 0.0
  %v360 = vmax.f32 %v340, 0.0
  %v361 = vmax.f32 %v343, 0.0
  %v362 = vmax.f32 %v348, 0.0
  %v363 = vmax.f32 %v351, 0.0
  %v364 = vpack.c.bf16 %v355, %v354
  %v365 = vpack.c.bf16 %v357, %v356
  %v366 = vpack.c.bf16 %v359, %v358
  %v367 = vpack.c.bf16 %v361, %v360
  %v368 = vpack.c.bf16 %v363, %v362
  %v369 = vld [vmem:[%s3] sm:$0xff]
  %v370 = vld [vmem:[%s3 + $0x8] sm:$0xff]
  %v371 = vld [vmem:[%s3 + $0x10] sm:$0xff]
  %v372 = vld [vmem:[%s3 + $0x18] sm:$0xff]
  %v373 = vld [vmem:[%s3 + $0x20] sm:$0xff]
  %v374 = vld [vmem:[%s3 + $0x28] sm:$0xff]
  %v375 = vld [vmem:[%s3 + $0x30] sm:$0xff]
  %v376 = vld [vmem:[%s3 + $0x38] sm:$0xff]
  %v377 = vld [vmem:[%s3 + $0x40] sm:$0xff]
  %v378 = vld [vmem:[%s3 + $0x48] sm:$0xff]
  %v379 = vld [vmem:[%s1] sm:$0xf]
  %v380 = vld [vmem:[%s1 + $0x4] sm:$0xf]
  %v381 = vld [vmem:[%s1 + $0x8] sm:$0xf]
  %v382 = vld [vmem:[%s1 + $0xc] sm:$0xf]
  %v383 = vld [vmem:[%s1 + $0x10] sm:$0xf]
  %v384 = vld [vmem:[%s1 + $0x14] sm:$0xf]
  %v385 = vld [vmem:[%s1 + $0x18] sm:$0xf]
  %v386 = vld [vmem:[%s1 + $0x1c] sm:$0xf]
  %v387 = vld [vmem:[%s1 + $0x20] sm:$0xf]
  %v388 = vld [vmem:[%s1 + $0x24] sm:$0xf]
  %v389 = vld [vmem:[%s1 + $0x28] sm:$0xf]
  %v390 = vld [vmem:[%s1 + $0x2c] sm:$0xf]
  %v391 = vld [vmem:[%s1 + $0x30] sm:$0xf]
  %v392 = vld [vmem:[%s1 + $0x34] sm:$0xf]
  %v393 = vld [vmem:[%s1 + $0x38] sm:$0xf]
  %v394 = vld [vmem:[%s1 + $0x3c] sm:$0xf]
  %v395 = vld [vmem:[%s1 + $0x40] sm:$0xf]
  %v396 = vld [vmem:[%s1 + $0x44] sm:$0xf]
  %v397 = vld [vmem:[%s1 + $0x48] sm:$0xf]
  %v398 = vld [vmem:[%s1 + $0x4c] sm:$0xf]
  %v399 = vld [vmem:[%s1 + $0x50] sm:$0xf]
  %v400 = vld [vmem:[%s1 + $0x54] sm:$0xf]
  %v401 = vld [vmem:[%s1 + $0x58] sm:$0xf]
  %v402 = vld [vmem:[%s1 + $0x5c] sm:$0xf]
  %v403 = vld [vmem:[%s1 + $0x60] sm:$0xf]
  %v404 = vld [vmem:[%s1 + $0x64] sm:$0xf]
  %v405 = vld [vmem:[%s1 + $0x68] sm:$0xf]
  %v406 = vld [vmem:[%s1 + $0x6c] sm:$0xf]
  %v407 = vld [vmem:[%s1 + $0x70] sm:$0xf]
  %v408 = vld [vmem:[%s1 + $0x74] sm:$0xf]
  %v409 = vld [vmem:[%s1 + $0x78] sm:$0xf]
  %v410 = vld [vmem:[%s1 + $0x7c] sm:$0xf]
  %v411 = vld [vmem:[%s7] sm:$0xff]
  %v412 = vld [vmem:[%s7 + $0x8] sm:$0xff]
  %v413 = vld [vmem:[%s7 + $0x10] sm:$0xff]
  %v414 = vld [vmem:[%s7 + $0x18] sm:$0xff]
  %v415 = vld [vmem:[%s7 + $0x20] sm:$0xff]
  %v416 = vld [vmem:[%s7 + $0x28] sm:$0xff]
  %v417 = vld [vmem:[%s7 + $0x30] sm:$0xff]
  %v418 = vld [vmem:[%s7 + $0x38] sm:$0xff]
  %v419 = vld [vmem:[%s7 + $0x40] sm:$0xff]
  %v420 = vld [vmem:[%s7 + $0x48] sm:$0xff]
  %422 = vset.pattern.permute.xlu0 0
  %423 = vperm.xlu0 %422, %v411
  %v424 = vpop.permute.xlu0 %423
  %427 = vset.pattern.permute.xlu0 0
  %428 = vperm.xlu0 %427, %v412
  %v429 = vpop.permute.xlu0 %428
  %432 = vset.pattern.permute.xlu0 0
  %433 = vperm.xlu0 %432, %v413
  %v434 = vpop.permute.xlu0 %433
  %437 = vset.pattern.permute.xlu0 0
  %438 = vperm.xlu0 %437, %v414
  %v439 = vpop.permute.xlu0 %438
  %442 = vset.pattern.permute.xlu0 0
  %443 = vperm.xlu0 %442, %v415
  %v444 = vpop.permute.xlu0 %443
  %447 = vset.pattern.permute.xlu0 0
  %448 = vperm.xlu0 %447, %v416
  %v449 = vpop.permute.xlu0 %448
  %452 = vset.pattern.permute.xlu0 0
  %453 = vperm.xlu0 %452, %v417
  %v454 = vpop.permute.xlu0 %453
  %457 = vset.pattern.permute.xlu0 0
  %458 = vperm.xlu0 %457, %v418
  %v459 = vpop.permute.xlu0 %458
  %462 = vset.pattern.permute.xlu0 0
  %463 = vperm.xlu0 %462, %v419
  %v464 = vpop.permute.xlu0 %463
  %467 = vset.pattern.permute.xlu0 0
  %468 = vperm.xlu0 %467, %v420
  %v469 = vpop.permute.xlu0 %468
  %v481 = vunpack.c.l.b16 %v369
  %v482 = vunpack.c.h.b16 %v369
  %v483 = vunpack.c.l.b16 %v370
  %v484 = vunpack.c.h.b16 %v370
  %v485 = vunpack.c.l.b16 %v371
  %v486 = vunpack.c.h.b16 %v371
  %v487 = vunpack.c.l.b16 %v372
  %v488 = vunpack.c.h.b16 %v372
  %v489 = vunpack.c.l.b16 %v373
  %v490 = vunpack.c.h.b16 %v373
  %v491 = vunpack.c.l.b16 %v374
  %v492 = vunpack.c.h.b16 %v374
  %v493 = vunpack.c.l.b16 %v375
  %v494 = vunpack.c.h.b16 %v375
  %v495 = vunpack.c.l.b16 %v376
  %v496 = vunpack.c.h.b16 %v376
  %v497 = vunpack.c.l.b16 %v377
  %v498 = vunpack.c.h.b16 %v377
  %v499 = vunpack.c.l.b16 %v378
  %v500 = vunpack.c.h.b16 %v378
  %v501 = vpack.c.b16 %v483, %v481
  %v502 = vpack.c.b16 %v484, %v482
  %v503 = vpack.c.b16 %v487, %v485
  %v504 = vpack.c.b16 %v488, %v486
  %v505 = vpack.c.b16 %v491, %v489
  %v506 = vpack.c.b16 %v492, %v490
  %v507 = vpack.c.b16 %v495, %v493
  %v508 = vpack.c.b16 %v496, %v494
  %v509 = vpack.c.b16 %v499, %v497
  %v510 = vpack.c.b16 %v500, %v498
  %v553 = vunpack.c.l.b16 %v379
  %v554 = vunpack.c.l.b16 %v380
  %v555 = vunpack.c.l.b16 %v381
  %v556 = vunpack.c.l.b16 %v382
  %v557 = vunpack.c.l.b16 %v383
  %v558 = vunpack.c.l.b16 %v384
  %v559 = vunpack.c.l.b16 %v385
  %v560 = vunpack.c.l.b16 %v386
  %v561 = vunpack.c.l.b16 %v387
  %v562 = vunpack.c.l.b16 %v388
  %v563 = vunpack.c.l.b16 %v389
  %v564 = vunpack.c.l.b16 %v390
  %v565 = vunpack.c.l.b16 %v391
  %v566 = vunpack.c.l.b16 %v392
  %v567 = vunpack.c.l.b16 %v393
  %v568 = vunpack.c.l.b16 %v394
  %v569 = vunpack.c.l.b16 %v395
  %v570 = vunpack.c.l.b16 %v396
  %v571 = vunpack.c.l.b16 %v397
  %v572 = vunpack.c.l.b16 %v398
  %v573 = vunpack.c.l.b16 %v399
  %v574 = vunpack.c.l.b16 %v400
  %v575 = vunpack.c.l.b16 %v401
  %v576 = vunpack.c.l.b16 %v402
  %v577 = vunpack.c.l.b16 %v403
  %v578 = vunpack.c.l.b16 %v404
  %v579 = vunpack.c.l.b16 %v405
  %v580 = vunpack.c.l.b16 %v406
  %v581 = vunpack.c.l.b16 %v407
  %v582 = vunpack.c.l.b16 %v408
  %v583 = vunpack.c.l.b16 %v409
  %v584 = vunpack.c.l.b16 %v410
  %v585 = vpack.c.b16 %v554, %v553
  %v586 = vpack.c.b16 %v556, %v555
  %v587 = vpack.c.b16 %v558, %v557
  %v588 = vpack.c.b16 %v560, %v559
  %v589 = vpack.c.b16 %v562, %v561
  %v590 = vpack.c.b16 %v564, %v563
  %v591 = vpack.c.b16 %v566, %v565
  %v592 = vpack.c.b16 %v568, %v567
  %v593 = vpack.c.b16 %v570, %v569
  %v594 = vpack.c.b16 %v572, %v571
  %v595 = vpack.c.b16 %v574, %v573
  %v596 = vpack.c.b16 %v576, %v575
  %v597 = vpack.c.b16 %v578, %v577
  %v598 = vpack.c.b16 %v580, %v579
  %v599 = vpack.c.b16 %v582, %v581
  %v600 = vpack.c.b16 %v584, %v583
  %617 = vmatprep.subr.bf16.mxu0 0
  %618 = vmatpush1.bf16.msra.mxu0 %v585
  %619 = vmatprep.subr.bf16.mxu0 0
  %620 = vmatpush1.bf16.msra.mxu0 %v586
  %621 = vmatprep.subr.bf16.mxu0 0
  %622 = vmatpush1.bf16.msra.mxu0 %v587
  %623 = vmatprep.subr.bf16.mxu0 0
  %624 = vmatpush1.bf16.msra.mxu0 %v588
  %625 = vmatprep.subr.bf16.mxu0 0
  %626 = vmatpush1.bf16.msra.mxu0 %v589
  %627 = vmatprep.subr.bf16.mxu0 0
  %628 = vmatpush1.bf16.msra.mxu0 %v590
  %629 = vmatprep.subr.bf16.mxu0 0
  %630 = vmatpush1.bf16.msra.mxu0 %v591
  %631 = vmatprep.subr.bf16.mxu0 0
  %632 = vmatpush1.bf16.msra.mxu0 %v592
  %633 = vmatprep.subr.bf16.mxu0 0
  %634 = vmatpush1.bf16.msra.mxu0 %v593
  %635 = vmatprep.subr.bf16.mxu0 0
  %636 = vmatpush1.bf16.msra.mxu0 %v594
  %637 = vmatprep.subr.bf16.mxu0 0
  %638 = vmatpush1.bf16.msra.mxu0 %v595
  %639 = vmatprep.subr.bf16.mxu0 0
  %640 = vmatpush1.bf16.msra.mxu0 %v596
  %641 = vmatprep.subr.bf16.mxu0 0
  %642 = vmatpush1.bf16.msra.mxu0 %v597
  %643 = vmatprep.subr.bf16.mxu0 0
  %644 = vmatpush1.bf16.msra.mxu0 %v598
  %645 = vmatprep.subr.bf16.mxu0 0
  %646 = vmatpush1.bf16.msra.mxu0 %v599
  %647 = vmatprep.subr.bf16.mxu0 0
  %648 = vmatpush1.bf16.msra.mxu0 %v600
  %649 = vmatprep.mubr.bf16.mxu0 %v502
  %650 = vmatmul.mubr.bf16.gmra.mrb[0].mxu0 %v501
  %v651 = vpop.f32.mrb[0].mxu0
  %v652 = vadd.f32 %v424, %v651
  %v653 = vpop.f32.mrb[0].mxu0
  %v654 = vpop.f32.mrb[0].mxu0
  %v655 = vadd.f32 %v429, %v654
  %v656 = vpop.f32.mrb[0].mxu0
  %657 = vmatprep.mubr.bf16.mxu0 %v504
  %658 = vmatmul.mubr.bf16.gmra.mrb[0].mxu0 %v503
  %v659 = vpop.f32.mrb[0].mxu0
  %v660 = vadd.f32 %v434, %v659
  %v661 = vpop.f32.mrb[0].mxu0
  %v662 = vpop.f32.mrb[0].mxu0
  %v663 = vadd.f32 %v439, %v662
  %v664 = vpop.f32.mrb[0].mxu0
  %665 = vmatprep.mubr.bf16.mxu0 %v506
  %666 = vmatmul.mubr.bf16.gmra.mrb[0].mxu0 %v505
  %v667 = vpop.f32.mrb[0].mxu0
  %v668 = vadd.f32 %v444, %v667
  %v669 = vpop.f32.mrb[0].mxu0
  %v670 = vpop.f32.mrb[0].mxu0
  %v671 = vadd.f32 %v449, %v670
  %v672 = vpop.f32.mrb[0].mxu0
  %673 = vmatprep.mubr.bf16.mxu0 %v508
  %674 = vmatmul.mubr.bf16.gmra.mrb[0].mxu0 %v507
  %v675 = vpop.f32.mrb[0].mxu0
  %v676 = vadd.f32 %v454, %v675
  %v677 = vpop.f32.mrb[0].mxu0
  %v678 = vpop.f32.mrb[0].mxu0
  %v679 = vadd.f32 %v459, %v678
  %v680 = vpop.f32.mrb[0].mxu0
  %681 = vmatprep.mubr.bf16.mxu0 %v510
  %682 = vmatmul.mubr.bf16.gmra.mrb[0].mxu0 %v509
  %v683 = vpop.f32.mrb[0].mxu0
  %v684 = vadd.f32 %v464, %v683
  %v685 = vpop.f32.mrb[0].mxu0
  %v686 = vpop.f32.mrb[0].mxu0
  %v687 = vadd.f32 %v469, %v686
  %v688 = vpop.f32.mrb[0].mxu0
  %689 = vdwg.mxu0
  %v690 = vmax.f32 %v652, 0.0
  %v691 = vmax.f32 %v655, 0.0
  %v692 = vmax.f32 %v660, 0.0
  %v693 = vmax.f32 %v663, 0.0
  %v694 = vmax.f32 %v668, 0.0
  %v695 = vmax.f32 %v671, 0.0
  %v696 = vmax.f32 %v676, 0.0
  %v697 = vmax.f32 %v679, 0.0
  %v698 = vmax.f32 %v684, 0.0
  %v699 = vmax.f32 %v687, 0.0
  %v700 = vpack.c.bf16 %v691, %v690
  %v701 = vpack.c.bf16 %v693, %v692
  %v702 = vpack.c.bf16 %v695, %v694
  %v703 = vpack.c.bf16 %v697, %v696
  %v704 = vpack.c.bf16 %v699, %v698
  %v705 = vld [vmem:[%s4] sm:$0xf]
  %v706 = vld [vmem:[%s4 + $0x4] sm:$0xf]
  %v707 = vld [vmem:[%s4 + $0x8] sm:$0xf]
  %v708 = vld [vmem:[%s4 + $0xc] sm:$0xf]
  %v709 = vld [vmem:[%s4 + $0x10] sm:$0xf]
  %v710 = vld [vmem:[%s4 + $0x14] sm:$0xf]
  %v711 = vld [vmem:[%s4 + $0x18] sm:$0xf]
  %v712 = vld [vmem:[%s4 + $0x1c] sm:$0xf]
  %v713 = vld [vmem:[%s4 + $0x20] sm:$0xf]
  %v714 = vld [vmem:[%s4 + $0x24] sm:$0xf]
  %v715 = vld [vmem:[%s5] sm:$0xf]
  %v716 = vld [vmem:[%s5 + $0x4] sm:$0xf]
  %v717 = vld [vmem:[%s5 + $0x8] sm:$0xf]
  %v718 = vld [vmem:[%s5 + $0xc] sm:$0xf]
  %v719 = vld [vmem:[%s5 + $0x10] sm:$0xf]
  %v720 = vld [vmem:[%s5 + $0x14] sm:$0xf]
  %v721 = vld [vmem:[%s5 + $0x18] sm:$0xf]
  %v722 = vld [vmem:[%s5 + $0x1c] sm:$0xf]
  %v723 = vld [vmem:[%s5 + $0x20] sm:$0xf]
  %v724 = vld [vmem:[%s5 + $0x24] sm:$0xf]
  %v735 = vunpack.c.l.b16 %v715
  %v736 = vunpack.c.l.b16 %v716
  %v737 = vunpack.c.l.b16 %v717
  %v738 = vunpack.c.l.b16 %v718
  %v739 = vunpack.c.l.b16 %v719
  %v740 = vunpack.c.l.b16 %v720
  %v741 = vunpack.c.l.b16 %v721
  %v742 = vunpack.c.l.b16 %v722
  %v743 = vunpack.c.l.b16 %v723
  %v744 = vunpack.c.l.b16 %v724
  %v745 = vpack.c.b16 %v736, %v735
  %v746 = vpack.c.b16 %v738, %v737
  %v747 = vpack.c.b16 %v740, %v739
  %v748 = vpack.c.b16 %v742, %v741
  %v749 = vpack.c.b16 %v744, %v743
  %vm750 = vcmask 654336
  %v752 = vsel %vm750, %v745, 0
  %v755 = vsel %vm750, %v746, 0
  %v758 = vsel %vm750, %v747, 0
  %v761 = vsel %vm750, %v748, 0
  %v764 = vsel %vm750, %v749, 0
  %766 = vmatprep.subr.bf16.mxu0 0
  %767 = vmatpush1.bf16.msra.mxu0 %v700
  %768 = vmatprep.subr.bf16.mxu0 0
  %769 = vmatpush1.bf16.msra.mxu0 %v701
  %770 = vmatprep.subr.bf16.mxu0 0
  %771 = vmatpush1.bf16.msra.mxu0 %v702
  %772 = vmatprep.subr.bf16.mxu0 0
  %773 = vmatpush1.bf16.msra.mxu0 %v703
  %774 = vmatprep.subr.bf16.mxu0 0
  %775 = vmatpush1.bf16.msra.mxu0 %v704
  %776 = vmatprep.subr.bf16.mxu0 0
  %777 = vmatpush1.bf16.msra.mxu0 0
  %778 = vmatprep.subr.bf16.mxu0 0
  %779 = vmatpush1.bf16.msra.mxu0 0
  %780 = vmatprep.subr.bf16.mxu0 0
  %781 = vmatpush1.bf16.msra.mxu0 0
  %782 = vmatprep.subr.bf16.mxu0 0
  %783 = vmatpush1.bf16.msra.mxu0 0
  %784 = vmatprep.subr.bf16.mxu0 0
  %785 = vmatpush1.bf16.msra.mxu0 0
  %786 = vmatprep.subr.bf16.mxu0 0
  %787 = vmatpush1.bf16.msra.mxu0 0
  %788 = vmatprep.subr.bf16.mxu0 0
  %789 = vmatpush1.bf16.msra.mxu0 0
  %790 = vmatprep.subr.bf16.mxu0 0
  %791 = vmatpush1.bf16.msra.mxu0 0
  %792 = vmatprep.subr.bf16.mxu0 0
  %793 = vmatpush1.bf16.msra.mxu0 0
  %794 = vmatprep.subr.bf16.mxu0 0
  %795 = vmatpush1.bf16.msra.mxu0 0
  %796 = vmatprep.subr.bf16.mxu0 0
  %797 = vmatpush1.bf16.msra.mxu0 0
  %798 = vmatprep.mubr.bf16.mxu0 0
  %799 = vmatmul.mubr.bf16.gmra.mrb[0].mxu0 %v752
  %v800 = vpop.f32.mrb[0].mxu0
  %v801 = vadd.f32 0.0, %v800
  %v802 = vpop.f32.mrb[0].mxu0
  %v803 = vpop.f32.mrb[0].mxu0
  %v804 = vadd.f32 0.0, %v803
  %v805 = vpop.f32.mrb[0].mxu0
  %806 = vmatprep.mubr.bf16.mxu0 0
  %807 = vmatmul.mubr.bf16.gmra.mrb[0].mxu0 %v755
  %v808 = vpop.f32.mrb[0].mxu0
  %v809 = vadd.f32 0.0, %v808
  %v810 = vpop.f32.mrb[0].mxu0
  %v811 = vpop.f32.mrb[0].mxu0
  %v812 = vadd.f32 0.0, %v811
  %v813 = vpop.f32.mrb[0].mxu0
  %814 = vmatprep.mubr.bf16.mxu0 0
  %815 = vmatmul.mubr.bf16.gmra.mrb[0].mxu0 %v758
  %v816 = vpop.f32.mrb[0].mxu0
  %v817 = vadd.f32 0.0, %v816
  %v818 = vpop.f32.mrb[0].mxu0
  %v819 = vpop.f32.mrb[0].mxu0
  %v820 = vadd.f32 0.0, %v819
  %v821 = vpop.f32.mrb[0].mxu0
  %822 = vmatprep.mubr.bf16.mxu0 0
  %823 = vmatmul.mubr.bf16.gmra.mrb[0].mxu0 %v761
  %v824 = vpop.f32.mrb[0].mxu0
  %v825 = vadd.f32 0.0, %v824
  %v826 = vpop.f32.mrb[0].mxu0
  %v827 = vpop.f32.mrb[0].mxu0
  %v828 = vadd.f32 0.0, %v827
  %v829 = vpop.f32.mrb[0].mxu0
  %830 = vmatprep.mubr.bf16.mxu0 0
  %831 = vmatmul.mubr.bf16.gmra.mrb[0].mxu0 %v764
  %v832 = vpop.f32.mrb[0].mxu0
  %v833 = vadd.f32 0.0, %v832
  %v834 = vpop.f32.mrb[0].mxu0
  %v835 = vpop.f32.mrb[0].mxu0
  %v836 = vadd.f32 0.0, %v835
  %v837 = vpop.f32.mrb[0].mxu0
  %838 = vdwg.mxu0
  %v849 = vunpack.c.l.b16 %v705
  %v850 = vunpack.c.l.b16 %v706
  %v851 = vunpack.c.l.b16 %v707
  %v852 = vunpack.c.l.b16 %v708
  %v853 = vunpack.c.l.b16 %v709
  %v854 = vunpack.c.l.b16 %v710
  %v855 = vunpack.c.l.b16 %v711
  %v856 = vunpack.c.l.b16 %v712
  %v857 = vunpack.c.l.b16 %v713
  %v858 = vunpack.c.l.b16 %v714
  %v859 = vpack.c.b16 %v850, %v849
  %v860 = vpack.c.b16 %v852, %v851
  %v861 = vpack.c.b16 %v854, %v853
  %v862 = vpack.c.b16 %v856, %v855
  %v863 = vpack.c.b16 %v858, %v857
  %v865 = vsel %vm750, %v859, 0
  %v868 = vsel %vm750, %v860, 0
  %v871 = vsel %vm750, %v861, 0
  %v874 = vsel %vm750, %v862, 0
  %v877 = vsel %vm750, %v863, 0
  %879 = vmatprep.subr.bf16.mxu0 0
  %880 = vmatpush1.bf16.msra.mxu0 %v364
  %881 = vmatprep.subr.bf16.mxu0 0
  %882 = vmatpush1.bf16.msra.mxu0 %v365
  %883 = vmatprep.subr.bf16.mxu0 0
  %884 = vmatpush1.bf16.msra.mxu0 %v366
  %885 = vmatprep.subr.bf16.mxu0 0
  %886 = vmatpush1.bf16.msra.mxu0 %v367
  %887 = vmatprep.subr.bf16.mxu0 0
  %888 = vmatpush1.bf16.msra.mxu0 %v368
  %889 = vmatprep.subr.bf16.mxu0 0
  %890 = vmatpush1.bf16.msra.mxu0 0
  %891 = vmatprep.subr.bf16.mxu0 0
  %892 = vmatpush1.bf16.msra.mxu0 0
  %893 = vmatprep.subr.bf16.mxu0 0
  %894 = vmatpush1.bf16.msra.mxu0 0
  %895 = vmatprep.subr.bf16.mxu0 0
  %896 = vmatpush1.bf16.msra.mxu0 0
  %897 = vmatprep.subr.bf16.mxu0 0
  %898 = vmatpush1.bf16.msra.mxu0 0
  %899 = vmatprep.subr.bf16.mxu0 0
  %900 = vmatpush1.bf16.msra.mxu0 0
  %901 = vmatprep.subr.bf16.mxu0 0
  %902 = vmatpush1.bf16.msra.mxu0 0
  %903 = vmatprep.subr.bf16.mxu0 0
  %904 = vmatpush1.bf16.msra.mxu0 0
  %905 = vmatprep.subr.bf16.mxu0 0
  %906 = vmatpush1.bf16.msra.mxu0 0
  %907 = vmatprep.subr.bf16.mxu0 0
  %908 = vmatpush1.bf16.msra.mxu0 0
  %909 = vmatprep.subr.bf16.mxu0 0
  %910 = vmatpush1.bf16.msra.mxu0 0
  %911 = vmatprep.mubr.bf16.mxu0 0
  %912 = vmatmul.mubr.bf16.gmra.mrb[0].mxu0 %v865
  %v913 = vpop.f32.mrb[0].mxu0
  %v914 = vadd.f32 %v801, %v913
  %v915 = vpop.f32.mrb[0].mxu0
  %v916 = vpop.f32.mrb[0].mxu0
  %v917 = vadd.f32 %v804, %v916
  %v918 = vpop.f32.mrb[0].mxu0
  %919 = vmatprep.mubr.bf16.mxu0 0
  %920 = vmatmul.mubr.bf16.gmra.mrb[0].mxu0 %v868
  %v921 = vpop.f32.mrb[0].mxu0
  %v922 = vadd.f32 %v809, %v921
  %v923 = vpop.f32.mrb[0].mxu0
  %v924 = vpop.f32.mrb[0].mxu0
  %v925 = vadd.f32 %v812, %v924
  %v926 = vpop.f32.mrb[0].mxu0
  %927 = vmatprep.mubr.bf16.mxu0 0
  %928 = vmatmul.mubr.bf16.gmra.mrb[0].mxu0 %v871
  %v929 = vpop.f32.mrb[0].mxu0
  %v930 = vadd.f32 %v817, %v929
  %v931 = vpop.f32.mrb[0].mxu0
  %v932 = vpop.f32.mrb[0].mxu0
  %v933 = vadd.f32 %v820, %v932
  %v934 = vpop.f32.mrb[0].mxu0
  %935 = vmatprep.mubr.bf16.mxu0 0
  %936 = vmatmul.mubr.bf16.gmra.mrb[0].mxu0 %v874
  %v937 = vpop.f32.mrb[0].mxu0
  %v938 = vadd.f32 %v825, %v937
  %v939 = vpop.f32.mrb[0].mxu0
  %v940 = vpop.f32.mrb[0].mxu0
  %v941 = vadd.f32 %v828, %v940
  %v942 = vpop.f32.mrb[0].mxu0
  %943 = vmatprep.mubr.bf16.mxu0 0
  %944 = vmatmul.mubr.bf16.gmra.mrb[0].mxu0 %v877
  %v945 = vpop.f32.mrb[0].mxu0
  %v946 = vadd.f32 %v833, %v945
  %v947 = vpop.f32.mrb[0].mxu0
  %v948 = vpop.f32.mrb[0].mxu0
  %v949 = vadd.f32 %v836, %v948
  %v950 = vpop.f32.mrb[0].mxu0
  %951 = vdwg.mxu0
  %v952 = vld [vmem:[%s8] sm:$0xff]
  %v953 = vld [vmem:[%s8 + $0x8] sm:$0xff]
  %v954 = vld [vmem:[%s8 + $0x10] sm:$0xff]
  %v955 = vld [vmem:[%s8 + $0x18] sm:$0xff]
  %v956 = vld [vmem:[%s8 + $0x20] sm:$0xff]
  %v957 = vld [vmem:[%s8 + $0x28] sm:$0xff]
  %v958 = vld [vmem:[%s8 + $0x30] sm:$0xff]
  %v959 = vld [vmem:[%s8 + $0x38] sm:$0xff]
  %v960 = vld [vmem:[%s8 + $0x40] sm:$0xff]
  %v961 = vld [vmem:[%s8 + $0x48] sm:$0xff]
  %963 = vset.pattern.permute.xlu0 0
  %964 = vperm.xlu0 %963, %v952
  %v965 = vpop.permute.xlu0 %964
  %968 = vset.pattern.permute.xlu0 0
  %969 = vperm.xlu0 %968, %v953
  %v970 = vpop.permute.xlu0 %969
  %973 = vset.pattern.permute.xlu0 0
  %974 = vperm.xlu0 %973, %v954
  %v975 = vpop.permute.xlu0 %974
  %978 = vset.pattern.permute.xlu0 0
  %979 = vperm.xlu0 %978, %v955
  %v980 = vpop.permute.xlu0 %979
  %983 = vset.pattern.permute.xlu0 0
  %984 = vperm.xlu0 %983, %v956
  %v985 = vpop.permute.xlu0 %984
  %988 = vset.pattern.permute.xlu0 0
  %989 = vperm.xlu0 %988, %v957
  %v990 = vpop.permute.xlu0 %989
  %993 = vset.pattern.permute.xlu0 0
  %994 = vperm.xlu0 %993, %v958
  %v995 = vpop.permute.xlu0 %994
  %998 = vset.pattern.permute.xlu0 0
  %999 = vperm.xlu0 %998, %v959
  %v1000 = vpop.permute.xlu0 %999
  %1003 = vset.pattern.permute.xlu0 0
  %1004 = vperm.xlu0 %1003, %v960
  %v1005 = vpop.permute.xlu0 %1004
  %1008 = vset.pattern.permute.xlu0 0
  %1009 = vperm.xlu0 %1008, %v961
  %v1010 = vpop.permute.xlu0 %1009
  %v1012 = vadd.f32 %v914, %v965
  %v1013 = vadd.f32 %v917, %v970
  %v1014 = vadd.f32 %v922, %v975
  %v1015 = vadd.f32 %v925, %v980
  %v1016 = vadd.f32 %v930, %v985
  %v1017 = vadd.f32 %v933, %v990
  %v1018 = vadd.f32 %v938, %v995
  %v1019 = vadd.f32 %v941, %v1000
  %v1020 = vadd.f32 %v946, %v1005
  %v1021 = vadd.f32 %v949, %v1010
  %v1022 = vpack.c.bf16 %v1013, %v1012
  %v1023 = vpack.c.bf16 %v1015, %v1014
  %v1024 = vpack.c.bf16 %v1017, %v1016
  %v1025 = vpack.c.bf16 %v1019, %v1018
  %v1026 = vpack.c.bf16 %v1021, %v1020
  %v1032 = vunpack.c.l.b16 %v1022
  %v1033 = vunpack.c.h.b16 %v1022
  %v1034 = vunpack.c.l.b16 %v1023
  %v1035 = vunpack.c.h.b16 %v1023
  %v1036 = vunpack.c.l.b16 %v1024
  %v1037 = vunpack.c.h.b16 %v1024
  %v1038 = vunpack.c.l.b16 %v1025
  %v1039 = vunpack.c.h.b16 %v1025
  %v1040 = vunpack.c.l.b16 %v1026
  %v1041 = vunpack.c.h.b16 %v1026
  %v1042 = vpack.c.b16 %v1032, %v1032
  %v1043 = vpack.c.b16 %v1033, %v1033
  %v1044 = vpack.c.b16 %v1034, %v1034
  %v1045 = vpack.c.b16 %v1035, %v1035
  %v1046 = vpack.c.b16 %v1036, %v1036
  %v1047 = vpack.c.b16 %v1037, %v1037
  %v1048 = vpack.c.b16 %v1038, %v1038
  %v1049 = vpack.c.b16 %v1039, %v1039
  %v1050 = vpack.c.b16 %v1040, %v1040
  %v1051 = vpack.c.b16 %v1041, %v1041
  %1062 = vst [vmem:[%s9] sm:$0xf] %v1042
  %1063 = vst [vmem:[%s9 + $0x4] sm:$0xf] %v1043
  %1064 = vst [vmem:[%s9 + $0x8] sm:$0xf] %v1044
  %1065 = vst [vmem:[%s9 + $0xc] sm:$0xf] %v1045
  %1066 = vst [vmem:[%s9 + $0x10] sm:$0xf] %v1046
  %1067 = vst [vmem:[%s9 + $0x14] sm:$0xf] %v1047
  %1068 = vst [vmem:[%s9 + $0x18] sm:$0xf] %v1048
  %1069 = vst [vmem:[%s9 + $0x1c] sm:$0xf] %v1049
  %1070 = vst [vmem:[%s9 + $0x20] sm:$0xf] %v1050
  %1071 = vst [vmem:[%s9 + $0x24] sm:$0xf] %v1051
  // Predicated region
  $region38: #{generator_forward.12} parent=0 // pred_check
    _
  $region39: #{generator_forward.12} parent=0 // pred_check_branch
    %1073 = sbr.rel (0) target = $region41
  $region40: #{generator_forward.12} parent=0 // pred_region
    _
  $region41: #{generator_forward.12} parent=0 // pred_fallthru
    _
  // Predicated region
  $region42: #{generator_forward.12} parent=0 // pred_check
    _
  $region43: #{generator_forward.12} parent=0 // pred_check_branch
    %1075 = sbr.rel (0) target = $region45
  $region44: #{generator_forward.12} parent=0 // pred_region
    _
  $region45: #{generator_forward.12} parent=0 // pred_fallthru
    _

// kernel: generator_forward.11
$region0: #{generator_forward.11}
  #allocation0 [shape = 'u32[]', space=smem, size = 0x4, offset = 0x4, fixed_abs, tag = 'smem constant byte address 0x4 - core index']
  #allocation1 [shape = 'u32[144,128]{1,0:T(1,128)}', space=vmem, size = 0x12000, scoped, tag = 'internal scratch']
  %s0 = inlined_call_operand.vmem [shape: bf16[64,128], index: 0, kind: input, shape index: {}]
  %s1 = inlined_call_operand.vmem [shape: bf16[64,128], index: 1, kind: input, shape index: {}]
  %s2 = inlined_call_operand.vmem [shape: bf16[40,64], index: 2, kind: input, shape index: {}]
  %s3 = inlined_call_operand.vmem [shape: bf16[40,64], index: 3, kind: input, shape index: {}]
  %s4 = inlined_call_operand.vmem [shape: bf16[40,40], index: 4, kind: input, shape index: {}]
  %s5 = inlined_call_operand.vmem [shape: bf16[40,40], index: 5, kind: input, shape index: {}]
  %s6 = inlined_call_operand.vmem [shape: f32[40,1], index: 6, kind: input, shape index: {}]
  %s7 = inlined_call_operand.vmem [shape: f32[40,1], index: 7, kind: input, shape index: {}]
  %s8 = inlined_call_operand.vmem [shape: f32[40,1], index: 8, kind: input, shape index: {}]
  %s9 = inlined_call_operand.vmem [shape: bf16[40,128], index: 9, kind: output, shape index: {}]
  %s10 = sld [smem:[#allocation0]]
  $region46: #{generator_forward.11} parent=0
    _
  %s12 = ssub.s32 1, %s10
  %s13 = scalar_select 0, %s12, %s10
  // Predicated region
  $region2: #{generator_forward.11} parent=0 // pred_check
    _
  $region3: #{generator_forward.11} parent=0 // pred_check_branch
    %15 = sbr.rel (0) target = $region5
  $region4: #{generator_forward.11} parent=0 // pred_region
    _
  $region5: #{generator_forward.11} parent=0 // pred_fallthru
    _
  // Predicated region
  $region6: #{generator_forward.11} parent=0 // pred_check
    _
  $region7: #{generator_forward.11} parent=0 // pred_check_branch
    %17 = sbr.rel (0) target = $region9
  $region8: #{generator_forward.11} parent=0 // pred_region
    _
  $region9: #{generator_forward.11} parent=0 // pred_fallthru
    _
  // Predicated region
  $region10: #{generator_forward.11} parent=0 // pred_check
    _
  $region11: #{generator_forward.11} parent=0 // pred_check_branch
    %19 = sbr.rel (0) target = $region13
  $region12: #{generator_forward.11} parent=0 // pred_region
    _
  $region13: #{generator_forward.11} parent=0 // pred_fallthru
    _
  // Predicated region
  $region14: #{generator_forward.11} parent=0 // pred_check
    _
  $region15: #{generator_forward.11} parent=0 // pred_check_branch
    %21 = sbr.rel (0) target = $region17
  $region16: #{generator_forward.11} parent=0 // pred_region
    _
  $region17: #{generator_forward.11} parent=0 // pred_fallthru
    _
  // Predicated region
  $region18: #{generator_forward.11} parent=0 // pred_check
    _
  $region19: #{generator_forward.11} parent=0 // pred_check_branch
    %23 = sbr.rel (0) target = $region21
  $region20: #{generator_forward.11} parent=0 // pred_region
    _
  $region21: #{generator_forward.11} parent=0 // pred_fallthru
    _
  // Predicated region
  $region22: #{generator_forward.11} parent=0 // pred_check
    _
  $region23: #{generator_forward.11} parent=0 // pred_check_branch
    %25 = sbr.rel (0) target = $region25
  $region24: #{generator_forward.11} parent=0 // pred_region
    _
  $region25: #{generator_forward.11} parent=0 // pred_fallthru
    _
  // Predicated region
  $region26: #{generator_forward.11} parent=0 // pred_check
    _
  $region27: #{generator_forward.11} parent=0 // pred_check_branch
    %27 = sbr.rel (0) target = $region29
  $region28: #{generator_forward.11} parent=0 // pred_region
    _
  $region29: #{generator_forward.11} parent=0 // pred_fallthru
    _
  // Predicated region
  $region30: #{generator_forward.11} parent=0 // pred_check
    _
  $region31: #{generator_forward.11} parent=0 // pred_check_branch
    %29 = sbr.rel (0) target = $region33
  $region32: #{generator_forward.11} parent=0 // pred_region
    _
  $region33: #{generator_forward.11} parent=0 // pred_fallthru
    _
  // Predicated region
  $region34: #{generator_forward.11} parent=0 // pred_check
    _
  $region35: #{generator_forward.11} parent=0 // pred_check_branch
    %31 = sbr.rel (0) target = $region37
  $region36: #{generator_forward.11} parent=0 // pred_region
    _
  $region37: #{generator_forward.11} parent=0 // pred_fallthru
    _
  %v33 = vld [vmem:[%s2] sm:$0xf]
  %v34 = vld [vmem:[%s2 + $0x4] sm:$0xf]
  %v35 = vld [vmem:[%s2 + $0x8] sm:$0xf]
  %v36 = vld [vmem:[%s2 + $0xc] sm:$0xf]
  %v37 = vld [vmem:[%s2 + $0x10] sm:$0xf]
  %v38 = vld [vmem:[%s0] sm:$0xf]
  %v39 = vld [vmem:[%s0 + $0x4] sm:$0xf]
  %v40 = vld [vmem:[%s0 + $0x8] sm:$0xf]
  %v41 = vld [vmem:[%s0 + $0xc] sm:$0xf]
  %v42 = vld [vmem:[%s0 + $0x10] sm:$0xf]
  %v43 = vld [vmem:[%s0 + $0x14] sm:$0xf]
  %v44 = vld [vmem:[%s0 + $0x18] sm:$0xf]
  %v45 = vld [vmem:[%s0 + $0x1c] sm:$0xf]
  %v46 = vld [vmem:[%s6] sm:$0xff]
  %v47 = vld [vmem:[%s6 + $0x8] sm:$0xff]
  %v48 = vld [vmem:[%s6 + $0x10] sm:$0xff]
  %v49 = vld [vmem:[%s6 + $0x18] sm:$0xff]
  %v50 = vld [vmem:[%s6 + $0x20] sm:$0xff]
  %52 = vset.pattern.permute.xlu0 0
  %53 = vperm.xlu0 %52, %v46
  %v54 = vpop.permute.xlu0 %53
  %57 = vset.pattern.permute.xlu0 0
  %58 = vperm.xlu0 %57, %v47
  %v59 = vpop.permute.xlu0 %58
  %62 = vset.pattern.permute.xlu0 0
  %63 = vperm.xlu0 %62, %v48
  %v64 = vpop.permute.xlu0 %63
  %67 = vset.pattern.permute.xlu0 0
  %68 = vperm.xlu0 %67, %v49
  %v69 = vpop.permute.xlu0 %68
  %72 = vset.pattern.permute.xlu0 0
  %73 = vperm.xlu0 %72, %v50
  %v74 = vpop.permute.xlu0 %73
  %v81 = vunpack.c.l.b16 %v33
  %v82 = vunpack.c.l.b16 %v34
  %v83 = vunpack.c.l.b16 %v35
  %v84 = vunpack.c.l.b16 %v36
  %v85 = vunpack.c.l.b16 %v37
  %v86 = vpack.c.b16 %v82, %v81
  %v87 = vpack.c.b16 %v84, %v83
  %v88 = vpack.c.b16 %v85, %v85
  %v97 = vunpack.c.l.b16 %v38
  %v98 = vunpack.c.l.b16 %v39
  %v99 = vunpack.c.l.b16 %v40
  %v100 = vunpack.c.l.b16 %v41
  %v101 = vunpack.c.l.b16 %v42
  %v102 = vunpack.c.l.b16 %v43
  %v103 = vunpack.c.l.b16 %v44
  %v104 = vunpack.c.l.b16 %v45
  %v105 = vpack.c.b16 %v98, %v97
  %v106 = vpack.c.b16 %v100, %v99
  %v107 = vpack.c.b16 %v102, %v101
  %v108 = vpack.c.b16 %v104, %v103
  %vm113 = vcmask 523264
  %v115 = vsel %vm113, %v86, 0
  %v118 = vsel %vm113, %v87, 0
  %v121 = vsel %vm113, %v88, 0
  %123 = vmatprep.subr.bf16.mxu0 0
  %124 = vmatpush1.bf16.msra.mxu0 %v105
  %125 = vmatprep.subr.bf16.mxu0 0
  %126 = vmatpush1.bf16.msra.mxu0 %v106
  %127 = vmatprep.subr.bf16.mxu0 0
  %128 = vmatpush1.bf16.msra.mxu0 %v107
  %129 = vmatprep.subr.bf16.mxu0 0
  %130 = vmatpush1.bf16.msra.mxu0 %v108
  %131 = vmatprep.subr.bf16.mxu0 0
  %132 = vmatpush1.bf16.msra.mxu0 0
  %133 = vmatprep.subr.bf16.mxu0 0
  %134 = vmatpush1.bf16.msra.mxu0 0
  %135 = vmatprep.subr.bf16.mxu0 0
  %136 = vmatpush1.bf16.msra.mxu0 0
  %137 = vmatprep.subr.bf16.mxu0 0
  %138 = vmatpush1.bf16.msra.mxu0 0
  %139 = vmatprep.subr.bf16.mxu0 0
  %140 = vmatpush1.bf16.msra.mxu0 0
  %141 = vmatprep.subr.bf16.mxu0 0
  %142 = vmatpush1.bf16.msra.mxu0 0
  %143 = vmatprep.subr.bf16.mxu0 0
  %144 = vmatpush1.bf16.msra.mxu0 0
  %145 = vmatprep.subr.bf16.mxu0 0
  %146 = vmatpush1.bf16.msra.mxu0 0
  %147 = vmatprep.subr.bf16.mxu0 0
  %148 = vmatpush1.bf16.msra.mxu0 0
  %149 = vmatprep.subr.bf16.mxu0 0
  %150 = vmatpush1.bf16.msra.mxu0 0
  %151 = vmatprep.subr.bf16.mxu0 0
  %152 = vmatpush1.bf16.msra.mxu0 0
  %153 = vmatprep.subr.bf16.mxu0 0
  %154 = vmatpush1.bf16.msra.mxu0 0
  %155 = vmatprep.mubr.bf16.mxu0 0
  %156 = vmatmul.mubr.bf16.gmra.mrb[0].mxu0 %v115
  %v157 = vpop.f32.mrb[0].mxu0
  %v158 = vadd.f32 %v54, %v157
  %v159 = vpop.f32.mrb[0].mxu0
  %v160 = vpop.f32.mrb[0].mxu0
  %v161 = vadd.f32 %v59, %v160
  %v162 = vpop.f32.mrb[0].mxu0
  %163 = vmatprep.mubr.bf16.mxu0 0
  %164 = vmatmul.mubr.bf16.gmra.mrb[0].mxu0 %v118
  %v165 = vpop.f32.mrb[0].mxu0
  %v166 = vadd.f32 %v64, %v165
  %v167 = vpop.f32.mrb[0].mxu0
  %v168 = vpop.f32.mrb[0].mxu0
  %v169 = vadd.f32 %v69, %v168
  %v170 = vpop.f32.mrb[0].mxu0
  %171 = vmatprep.mubr.bf16.mxu0 0
  %172 = vmatmul.mubr.bf16.gmra.mrb[0].mxu0 %v121
  %v173 = vpop.f32.mrb[0].mxu0
  %v174 = vadd.f32 %v74, %v173
  %v175 = vpop.f32.mrb[0].mxu0
  %v176 = vpop.f32.mrb[0].mxu0
  %v177 = vpop.f32.mrb[0].mxu0
  %178 = vdwg.mxu0
  %v179 = vmax.f32 %v158, 0.0
  %v180 = vmax.f32 %v161, 0.0
  %v181 = vmax.f32 %v166, 0.0
  %v182 = vmax.f32 %v169, 0.0
  %v183 = vmax.f32 %v174, 0.0
  %v184 = vpack.c.bf16 %v180, %v179
  %v185 = vpack.c.bf16 %v182, %v181
  %v186 = vpack.c.bf16 %v183, %v183
  %v187 = vld [vmem:[%s3] sm:$0xf]
  %v188 = vld [vmem:[%s3 + $0x4] sm:$0xf]
  %v189 = vld [vmem:[%s3 + $0x8] sm:$0xf]
  %v190 = vld [vmem:[%s3 + $0xc] sm:$0xf]
  %v191 = vld [vmem:[%s3 + $0x10] sm:$0xf]
  %v192 = vld [vmem:[%s1] sm:$0xf]
  %v193 = vld [vmem:[%s1 + $0x4] sm:$0xf]
  %v194 = vld [vmem:[%s1 + $0x8] sm:$0xf]
  %v195 = vld [vmem:[%s1 + $0xc] sm:$0xf]
  %v196 = vld [vmem:[%s1 + $0x10] sm:$0xf]
  %v197 = vld [vmem:[%s1 + $0x14] sm:$0xf]
  %v198 = vld [vmem:[%s1 + $0x18] sm:$0xf]
  %v199 = vld [vmem:[%s1 + $0x1c] sm:$0xf]
  %v200 = vld [vmem:[%s7] sm:$0xff]
  %v201 = vld [vmem:[%s7 + $0x8] sm:$0xff]
  %v202 = vld [vmem:[%s7 + $0x10] sm:$0xff]
  %v203 = vld [vmem:[%s7 + $0x18] sm:$0xff]
  %v204 = vld [vmem:[%s7 + $0x20] sm:$0xff]
  %206 = vset.pattern.permute.xlu0 0
  %207 = vperm.xlu0 %206, %v200
  %v208 = vpop.permute.xlu0 %207
  %211 = vset.pattern.permute.xlu0 0
  %212 = vperm.xlu0 %211, %v201
  %v213 = vpop.permute.xlu0 %212
  %216 = vset.pattern.permute.xlu0 0
  %217 = vperm.xlu0 %216, %v202
  %v218 = vpop.permute.xlu0 %217
  %221 = vset.pattern.permute.xlu0 0
  %222 = vperm.xlu0 %221, %v203
  %v223 = vpop.permute.xlu0 %222
  %226 = vset.pattern.permute.xlu0 0
  %227 = vperm.xlu0 %226, %v204
  %v228 = vpop.permute.xlu0 %227
  %v235 = vunpack.c.l.b16 %v187
  %v236 = vunpack.c.l.b16 %v188
  %v237 = vunpack.c.l.b16 %v189
  %v238 = vunpack.c.l.b16 %v190
  %v239 = vunpack.c.l.b16 %v191
  %v240 = vpack.c.b16 %v236, %v235
  %v241 = vpack.c.b16 %v238, %v237
  %v242 = vpack.c.b16 %v239, %v239
  %v251 = vunpack.c.l.b16 %v192
  %v252 = vunpack.c.l.b16 %v193
  %v253 = vunpack.c.l.b16 %v194
  %v254 = vunpack.c.l.b16 %v195
  %v255 = vunpack.c.l.b16 %v196
  %v256 = vunpack.c.l.b16 %v197
  %v257 = vunpack.c.l.b16 %v198
  %v258 = vunpack.c.l.b16 %v199
  %v259 = vpack.c.b16 %v252, %v251
  %v260 = vpack.c.b16 %v254, %v253
  %v261 = vpack.c.b16 %v256, %v255
  %v262 = vpack.c.b16 %v258, %v257
  %v268 = vsel %vm113, %v240, 0
  %v271 = vsel %vm113, %v241, 0
  %v274 = vsel %vm113, %v242, 0
  %276 = vmatprep.subr.bf16.mxu0 0
  %277 = vmatpush1.bf16.msra.mxu0 %v259
  %278 = vmatprep.subr.bf16.mxu0 0
  %279 = vmatpush1.bf16.msra.mxu0 %v260
  %280 = vmatprep.subr.bf16.mxu0 0
  %281 = vmatpush1.bf16.msra.mxu0 %v261
  %282 = vmatprep.subr.bf16.mxu0 0
  %283 = vmatpush1.bf16.msra.mxu0 %v262
  %284 = vmatprep.subr.bf16.mxu0 0
  %285 = vmatpush1.bf16.msra.mxu0 0
  %286 = vmatprep.subr.bf16.mxu0 0
  %287 = vmatpush1.bf16.msra.mxu0 0
  %288 = vmatprep.subr.bf16.mxu0 0
  %289 = vmatpush1.bf16.msra.mxu0 0
  %290 = vmatprep.subr.bf16.mxu0 0
  %291 = vmatpush1.bf16.msra.mxu0 0
  %292 = vmatprep.subr.bf16.mxu0 0
  %293 = vmatpush1.bf16.msra.mxu0 0
  %294 = vmatprep.subr.bf16.mxu0 0
  %295 = vmatpush1.bf16.msra.mxu0 0
  %296 = vmatprep.subr.bf16.mxu0 0
  %297 = vmatpush1.bf16.msra.mxu0 0
  %298 = vmatprep.subr.bf16.mxu0 0
  %299 = vmatpush1.bf16.msra.mxu0 0
  %300 = vmatprep.subr.bf16.mxu0 0
  %301 = vmatpush1.bf16.msra.mxu0 0
  %302 = vmatprep.subr.bf16.mxu0 0
  %303 = vmatpush1.bf16.msra.mxu0 0
  %304 = vmatprep.subr.bf16.mxu0 0
  %305 = vmatpush1.bf16.msra.mxu0 0
  %306 = vmatprep.subr.bf16.mxu0 0
  %307 = vmatpush1.bf16.msra.mxu0 0
  %308 = vmatprep.mubr.bf16.mxu0 0
  %309 = vmatmul.mubr.bf16.gmra.mrb[0].mxu0 %v268
  %v310 = vpop.f32.mrb[0].mxu0
  %v311 = vadd.f32 %v208, %v310
  %v312 = vpop.f32.mrb[0].mxu0
  %v313 = vpop.f32.mrb[0].mxu0
  %v314 = vadd.f32 %v213, %v313
  %v315 = vpop.f32.mrb[0].mxu0
  %316 = vmatprep.mubr.bf16.mxu0 0
  %317 = vmatmul.mubr.bf16.gmra.mrb[0].mxu0 %v271
  %v318 = vpop.f32.mrb[0].mxu0
  %v319 = vadd.f32 %v218, %v318
  %v320 = vpop.f32.mrb[0].mxu0
  %v321 = vpop.f32.mrb[0].mxu0
  %v322 = vadd.f32 %v223, %v321
  %v323 = vpop.f32.mrb[0].mxu0
  %324 = vmatprep.mubr.bf16.mxu0 0
  %325 = vmatmul.mubr.bf16.gmra.mrb[0].mxu0 %v274
  %v326 = vpop.f32.mrb[0].mxu0
  %v327 = vadd.f32 %v228, %v326
  %v328 = vpop.f32.mrb[0].mxu0
  %v329 = vpop.f32.mrb[0].mxu0
  %v330 = vpop.f32.mrb[0].mxu0
  %331 = vdwg.mxu0
  %v332 = vmax.f32 %v311, 0.0
  %v333 = vmax.f32 %v314, 0.0
  %v334 = vmax.f32 %v319, 0.0
  %v335 = vmax.f32 %v322, 0.0
  %v336 = vmax.f32 %v327, 0.0
  %v337 = vpack.c.bf16 %v333, %v332
  %v338 = vpack.c.bf16 %v335, %v334
  %v339 = vpack.c.bf16 %v336, %v336
  %v340 = vld [vmem:[%s4] sm:$0xf]
  %v341 = vld [vmem:[%s4 + $0x4] sm:$0xf]
  %v342 = vld [vmem:[%s4 + $0x8] sm:$0xf]
  %v343 = vld [vmem:[%s4 + $0xc] sm:$0xf]
  %v344 = vld [vmem:[%s4 + $0x10] sm:$0xf]
  %v345 = vld [vmem:[%s5] sm:$0xf]
  %v346 = vld [vmem:[%s5 + $0x4] sm:$0xf]
  %v347 = vld [vmem:[%s5 + $0x8] sm:$0xf]
  %v348 = vld [vmem:[%s5 + $0xc] sm:$0xf]
  %v349 = vld [vmem:[%s5 + $0x10] sm:$0xf]
  %v355 = vunpack.c.l.b16 %v345
  %v356 = vunpack.c.l.b16 %v346
  %v357 = vunpack.c.l.b16 %v347
  %v358 = vunpack.c.l.b16 %v348
  %v359 = vunpack.c.l.b16 %v349
  %v360 = vpack.c.b16 %v356, %v355
  %v361 = vpack.c.b16 %v358, %v357
  %v362 = vpack.c.b16 %v359, %v359
  %vm363 = vcmask 326656
  %v365 = vsel %vm363, %v360, 0
  %v368 = vsel %vm363, %v361, 0
  %v371 = vsel %vm363, %v362, 0
  %vm373 = vcmask 1043456
  %v375 = vsel %vm373, %v339, 0
  %377 = vmatprep.subr.bf16.mxu0 0
  %378 = vmatpush1.bf16.msra.mxu0 %v337
  %379 = vmatprep.subr.bf16.mxu0 0
  %380 = vmatpush1.bf16.msra.mxu0 %v338
  %381 = vmatprep.subr.bf16.mxu0 0
  %382 = vmatpush1.bf16.msra.mxu0 %v375
  %383 = vmatprep.subr.bf16.mxu0 0
  %384 = vmatpush1.bf16.msra.mxu0 0
  %385 = vmatprep.subr.bf16.mxu0 0
  %386 = vmatpush1.bf16.msra.mxu0 0
  %387 = vmatprep.subr.bf16.mxu0 0
  %388 = vmatpush1.bf16.msra.mxu0 0
  %389 = vmatprep.subr.bf16.mxu0 0
  %390 = vmatpush1.bf16.msra.mxu0 0
  %391 = vmatprep.subr.bf16.mxu0 0
  %392 = vmatpush1.bf16.msra.mxu0 0
  %393 = vmatprep.subr.bf16.mxu0 0
  %394 = vmatpush1.bf16.msra.mxu0 0
  %395 = vmatprep.subr.bf16.mxu0 0
  %396 = vmatpush1.bf16.msra.mxu0 0
  %397 = vmatprep.subr.bf16.mxu0 0
  %398 = vmatpush1.bf16.msra.mxu0 0
  %399 = vmatprep.subr.bf16.mxu0 0
  %400 = vmatpush1.bf16.msra.mxu0 0
  %401 = vmatprep.subr.bf16.mxu0 0
  %402 = vmatpush1.bf16.msra.mxu0 0
  %403 = vmatprep.subr.bf16.mxu0 0
  %404 = vmatpush1.bf16.msra.mxu0 0
  %405 = vmatprep.subr.bf16.mxu0 0
  %406 = vmatpush1.bf16.msra.mxu0 0
  %407 = vmatprep.subr.bf16.mxu0 0
  %408 = vmatpush1.bf16.msra.mxu0 0
  %409 = vmatprep.mubr.bf16.mxu0 0
  %410 = vmatmul.mubr.bf16.gmra.mrb[0].mxu0 %v365
  %v411 = vpop.f32.mrb[0].mxu0
  %v412 = vadd.f32 0.0, %v411
  %v413 = vpop.f32.mrb[0].mxu0
  %v414 = vpop.f32.mrb[0].mxu0
  %v415 = vadd.f32 0.0, %v414
  %v416 = vpop.f32.mrb[0].mxu0
  %417 = vmatprep.mubr.bf16.mxu0 0
  %418 = vmatmul.mubr.bf16.gmra.mrb[0].mxu0 %v368
  %v419 = vpop.f32.mrb[0].mxu0
  %v420 = vadd.f32 0.0, %v419
  %v421 = vpop.f32.mrb[0].mxu0
  %v422 = vpop.f32.mrb[0].mxu0
  %v423 = vadd.f32 0.0, %v422
  %v424 = vpop.f32.mrb[0].mxu0
  %425 = vmatprep.mubr.bf16.mxu0 0
  %426 = vmatmul.mubr.bf16.gmra.mrb[0].mxu0 %v371
  %v427 = vpop.f32.mrb[0].mxu0
  %v428 = vadd.f32 0.0, %v427
  %v429 = vpop.f32.mrb[0].mxu0
  %v430 = vpop.f32.mrb[0].mxu0
  %v431 = vpop.f32.mrb[0].mxu0
  %432 = vdwg.mxu0
  %v438 = vunpack.c.l.b16 %v340
  %v439 = vunpack.c.l.b16 %v341
  %v440 = vunpack.c.l.b16 %v342
  %v441 = vunpack.c.l.b16 %v343
  %v442 = vunpack.c.l.b16 %v344
  %v443 = vpack.c.b16 %v439, %v438
  %v444 = vpack.c.b16 %v441, %v440
  %v445 = vpack.c.b16 %v442, %v442
  %v447 = vsel %vm363, %v443, 0
  %v450 = vsel %vm363, %v444, 0
  %v453 = vsel %vm363, %v445, 0
  %v456 = vsel %vm373, %v186, 0
  %458 = vmatprep.subr.bf16.mxu0 0
  %459 = vmatpush1.bf16.msra.mxu0 %v184
  %460 = vmatprep.subr.bf16.mxu0 0
  %461 = vmatpush1.bf16.msra.mxu0 %v185
  %462 = vmatprep.subr.bf16.mxu0 0
  %463 = vmatpush1.bf16.msra.mxu0 %v456
  %464 = vmatprep.subr.bf16.mxu0 0
  %465 = vmatpush1.bf16.msra.mxu0 0
  %466 = vmatprep.subr.bf16.mxu0 0
  %467 = vmatpush1.bf16.msra.mxu0 0
  %468 = vmatprep.subr.bf16.mxu0 0
  %469 = vmatpush1.bf16.msra.mxu0 0
  %470 = vmatprep.subr.bf16.mxu0 0
  %471 = vmatpush1.bf16.msra.mxu0 0
  %472 = vmatprep.subr.bf16.mxu0 0
  %473 = vmatpush1.bf16.msra.mxu0 0
  %474 = vmatprep.subr.bf16.mxu0 0
  %475 = vmatpush1.bf16.msra.mxu0 0
  %476 = vmatprep.subr.bf16.mxu0 0
  %477 = vmatpush1.bf16.msra.mxu0 0
  %478 = vmatprep.subr.bf16.mxu0 0
  %479 = vmatpush1.bf16.msra.mxu0 0
  %480 = vmatprep.subr.bf16.mxu0 0
  %481 = vmatpush1.bf16.msra.mxu0 0
  %482 = vmatprep.subr.bf16.mxu0 0
  %483 = vmatpush1.bf16.msra.mxu0 0
  %484 = vmatprep.subr.bf16.mxu0 0
  %485 = vmatpush1.bf16.msra.mxu0 0
  %486 = vmatprep.subr.bf16.mxu0 0
  %487 = vmatpush1.bf16.msra.mxu0 0
  %488 = vmatprep.subr.bf16.mxu0 0
  %489 = vmatpush1.bf16.msra.mxu0 0
  %490 = vmatprep.mubr.bf16.mxu0 0
  %491 = vmatmul.mubr.bf16.gmra.mrb[0].mxu0 %v447
  %v492 = vpop.f32.mrb[0].mxu0
  %v493 = vadd.f32 %v412, %v492
  %v494 = vpop.f32.mrb[0].mxu0
  %v495 = vpop.f32.mrb[0].mxu0
  %v496 = vadd.f32 %v415, %v495
  %v497 = vpop.f32.mrb[0].mxu0
  %498 = vmatprep.mubr.bf16.mxu0 0
  %499 = vmatmul.mubr.bf16.gmra.mrb[0].mxu0 %v450
  %v500 = vpop.f32.mrb[0].mxu0
  %v501 = vadd.f32 %v420, %v500
  %v502 = vpop.f32.mrb[0].mxu0
  %v503 = vpop.f32.mrb[0].mxu0
  %v504 = vadd.f32 %v423, %v503
  %v505 = vpop.f32.mrb[0].mxu0
  %506 = vmatprep.mubr.bf16.mxu0 0
  %507 = vmatmul.mubr.bf16.gmra.mrb[0].mxu0 %v453
  %v508 = vpop.f32.mrb[0].mxu0
  %v509 = vadd.f32 %v428, %v508
  %v510 = vpop.f32.mrb[0].mxu0
  %v511 = vpop.f32.mrb[0].mxu0
  %v512 = vpop.f32.mrb[0].mxu0
  %513 = vdwg.mxu0
  %v514 = vld [vmem:[%s8] sm:$0xff]
  %v515 = vld [vmem:[%s8 + $0x8] sm:$0xff]
  %v516 = vld [vmem:[%s8 + $0x10] sm:$0xff]
  %v517 = vld [vmem:[%s8 + $0x18] sm:$0xff]
  %v518 = vld [vmem:[%s8 + $0x20] sm:$0xff]
  %520 = vset.pattern.permute.xlu0 0
  %521 = vperm.xlu0 %520, %v514
  %v522 = vpop.permute.xlu0 %521
  %525 = vset.pattern.permute.xlu0 0
  %526 = vperm.xlu0 %525, %v515
  %v527 = vpop.permute.xlu0 %526
  %530 = vset.pattern.permute.xlu0 0
  %531 = vperm.xlu0 %530, %v516
  %v532 = vpop.permute.xlu0 %531
  %535 = vset.pattern.permute.xlu0 0
  %536 = vperm.xlu0 %535, %v517
  %v537 = vpop.permute.xlu0 %536
  %540 = vset.pattern.permute.xlu0 0
  %541 = vperm.xlu0 %540, %v518
  %v542 = vpop.permute.xlu0 %541
  %v544 = vadd.f32 %v493, %v522
  %v545 = vadd.f32 %v496, %v527
  %v546 = vadd.f32 %v501, %v532
  %v547 = vadd.f32 %v504, %v537
  %v548 = vadd.f32 %v509, %v542
  %v549 = vpack.c.bf16 %v545, %v544
  %v550 = vpack.c.bf16 %v547, %v546
  %v551 = vpack.c.bf16 %v548, %v548
  %v555 = vunpack.c.l.b16 %v549
  %v556 = vunpack.c.h.b16 %v549
  %v557 = vunpack.c.l.b16 %v550
  %v558 = vunpack.c.h.b16 %v550
  %v559 = vunpack.c.l.b16 %v551
  %v560 = vpack.c.b16 %v555, %v555
  %v561 = vpack.c.b16 %v556, %v556
  %v562 = vpack.c.b16 %v557, %v557
  %v563 = vpack.c.b16 %v558, %v558
  %v564 = vpack.c.b16 %v559, %v559
  %570 = vst [vmem:[%s9] sm:$0xf] %v560
  %571 = vst [vmem:[%s9 + $0x4] sm:$0xf] %v561
  %572 = vst [vmem:[%s9 + $0x8] sm:$0xf] %v562
  %573 = vst [vmem:[%s9 + $0xc] sm:$0xf] %v563
  %574 = vst [vmem:[%s9 + $0x10] sm:$0xf] %v564
  // Predicated region
  $region38: #{generator_forward.11} parent=0 // pred_check
    _
  $region39: #{generator_forward.11} parent=0 // pred_check_branch
    %576 = sbr.rel (0) target = $region41
  $region40: #{generator_forward.11} parent=0 // pred_region
    _
  $region41: #{generator_forward.11} parent=0 // pred_fallthru
    _
  // Predicated region
  $region42: #{generator_forward.11} parent=0 // pred_check
    _
  $region43: #{generator_forward.11} parent=0 // pred_check_branch
    %578 = sbr.rel (0) target = $region45
  $region44: #{generator_forward.11} parent=0 // pred_region
    _
  $region45: #{generator_forward.11} parent=0 // pred_fallthru
    _

// kernel: generator_forward.17
$region0: #{generator_forward.17}
  #allocation0 [shape = 'u32[]', space=smem, size = 0x4, offset = 0x4, fixed_abs, tag = 'smem constant byte address 0x4 - core index']
  #allocation1 [shape = 'u32[144,128]{1,0:T(1,128)}', space=vmem, size = 0x12000, scoped, tag = 'internal scratch']
  %s0 = inlined_call_operand.vmem [shape: bf16[32,128], index: 0, kind: input, shape index: {}]
  %s1 = inlined_call_operand.vmem [shape: bf16[40,128], index: 1, kind: input, shape index: {}]
  %s2 = inlined_call_operand.vmem [shape: bf16[16,32], index: 2, kind: input, shape index: {}]
  %s3 = inlined_call_operand.vmem [shape: bf16[16,40], index: 3, kind: input, shape index: {}]
  %s4 = inlined_call_operand.vmem [shape: f32[16,1], index: 4, kind: input, shape index: {}]
  %s5 = inlined_call_operand.vmem [shape: bf16[16,128], index: 5, kind: output, shape index: {}]
  %s6 = sld [smem:[#allocation0]]
  $region30: #{generator_forward.17} parent=0
    _
  %s8 = ssub.s32 1, %s6
  %s9 = scalar_select 0, %s8, %s6
  // Predicated region
  $region2: #{generator_forward.17} parent=0 // pred_check
    _
  $region3: #{generator_forward.17} parent=0 // pred_check_branch
    %11 = sbr.rel (0) target = $region5
  $region4: #{generator_forward.17} parent=0 // pred_region
    _
  $region5: #{generator_forward.17} parent=0 // pred_fallthru
    _
  // Predicated region
  $region6: #{generator_forward.17} parent=0 // pred_check
    _
  $region7: #{generator_forward.17} parent=0 // pred_check_branch
    %13 = sbr.rel (0) target = $region9
  $region8: #{generator_forward.17} parent=0 // pred_region
    _
  $region9: #{generator_forward.17} parent=0 // pred_fallthru
    _
  // Predicated region
  $region10: #{generator_forward.17} parent=0 // pred_check
    _
  $region11: #{generator_forward.17} parent=0 // pred_check_branch
    %15 = sbr.rel (0) target = $region13
  $region12: #{generator_forward.17} parent=0 // pred_region
    _
  $region13: #{generator_forward.17} parent=0 // pred_fallthru
    _
  // Predicated region
  $region14: #{generator_forward.17} parent=0 // pred_check
    _
  $region15: #{generator_forward.17} parent=0 // pred_check_branch
    %17 = sbr.rel (0) target = $region17
  $region16: #{generator_forward.17} parent=0 // pred_region
    _
  $region17: #{generator_forward.17} parent=0 // pred_fallthru
    _
  // Predicated region
  $region18: #{generator_forward.17} parent=0 // pred_check
    _
  $region19: #{generator_forward.17} parent=0 // pred_check_branch
    %19 = sbr.rel (0) target = $region21
  $region20: #{generator_forward.17} parent=0 // pred_region
    _
  $region21: #{generator_forward.17} parent=0 // pred_fallthru
    _
  %v21 = vld [vmem:[%s2] sm:$0xf]
  %v22 = vld [vmem:[%s2 + $0x4] sm:$0xf]
  %v23 = vld [vmem:[%s0] sm:$0xf]
  %v24 = vld [vmem:[%s0 + $0x4] sm:$0xf]
  %v25 = vld [vmem:[%s0 + $0x8] sm:$0xf]
  %v26 = vld [vmem:[%s0 + $0xc] sm:$0xf]
  %v27 = vld [vmem:[%s3] sm:$0xf]
  %v28 = vld [vmem:[%s3 + $0x4] sm:$0xf]
  %v29 = vld [vmem:[%s1] sm:$0xf]
  %v30 = vld [vmem:[%s1 + $0x4] sm:$0xf]
  %v31 = vld [vmem:[%s1 + $0x8] sm:$0xf]
  %v32 = vld [vmem:[%s1 + $0xc] sm:$0xf]
  %v33 = vld [vmem:[%s1 + $0x10] sm:$0xf]
  %v36 = vunpack.c.l.b16 %v27
  %v37 = vunpack.c.l.b16 %v28
  %v38 = vpack.c.b16 %v37, %v36
  %v44 = vunpack.c.l.b16 %v29
  %v45 = vunpack.c.l.b16 %v30
  %v46 = vunpack.c.l.b16 %v31
  %v47 = vunpack.c.l.b16 %v32
  %v48 = vunpack.c.l.b16 %v33
  %v49 = vpack.c.b16 %v45, %v44
  %v50 = vpack.c.b16 %v47, %v46
  %v51 = vpack.c.b16 %v48, %v48
  %vm54 = vcmask 326656
  %v56 = vsel %vm54, %v38, 0
  %vm58 = vcmask 1043456
  %v60 = vsel %vm58, %v51, 0
  %62 = vmatprep.subr.bf16.mxu0 0
  %63 = vmatpush1.bf16.msra.mxu0 %v49
  %64 = vmatprep.subr.bf16.mxu0 0
  %65 = vmatpush1.bf16.msra.mxu0 %v50
  %66 = vmatprep.subr.bf16.mxu0 0
  %67 = vmatpush1.bf16.msra.mxu0 %v60
  %68 = vmatprep.subr.bf16.mxu0 0
  %69 = vmatpush1.bf16.msra.mxu0 0
  %70 = vmatprep.subr.bf16.mxu0 0
  %71 = vmatpush1.bf16.msra.mxu0 0
  %72 = vmatprep.subr.bf16.mxu0 0
  %73 = vmatpush1.bf16.msra.mxu0 0
  %74 = vmatprep.subr.bf16.mxu0 0
  %75 = vmatpush1.bf16.msra.mxu0 0
  %76 = vmatprep.subr.bf16.mxu0 0
  %77 = vmatpush1.bf16.msra.mxu0 0
  %78 = vmatprep.subr.bf16.mxu0 0
  %79 = vmatpush1.bf16.msra.mxu0 0
  %80 = vmatprep.subr.bf16.mxu0 0
  %81 = vmatpush1.bf16.msra.mxu0 0
  %82 = vmatprep.subr.bf16.mxu0 0
  %83 = vmatpush1.bf16.msra.mxu0 0
  %84 = vmatprep.subr.bf16.mxu0 0
  %85 = vmatpush1.bf16.msra.mxu0 0
  %86 = vmatprep.subr.bf16.mxu0 0
  %87 = vmatpush1.bf16.msra.mxu0 0
  %88 = vmatprep.subr.bf16.mxu0 0
  %89 = vmatpush1.bf16.msra.mxu0 0
  %90 = vmatprep.subr.bf16.mxu0 0
  %91 = vmatpush1.bf16.msra.mxu0 0
  %92 = vmatprep.subr.bf16.mxu0 0
  %93 = vmatpush1.bf16.msra.mxu0 0
  %94 = vmatprep.mubr.bf16.mxu0 0
  %95 = vmatmul.mubr.bf16.gmra.mrb[0].mxu0 %v56
  %v96 = vpop.f32.mrb[0].mxu0
  %v97 = vadd.f32 0.0, %v96
  %v98 = vpop.f32.mrb[0].mxu0
  %v99 = vpop.f32.mrb[0].mxu0
  %v100 = vadd.f32 0.0, %v99
  %v101 = vpop.f32.mrb[0].mxu0
  %102 = vdwg.mxu0
  %v105 = vunpack.c.l.b16 %v21
  %v106 = vunpack.c.l.b16 %v22
  %v107 = vpack.c.b16 %v106, %v105
  %v112 = vunpack.c.l.b16 %v23
  %v113 = vunpack.c.l.b16 %v24
  %v114 = vunpack.c.l.b16 %v25
  %v115 = vunpack.c.l.b16 %v26
  %v116 = vpack.c.b16 %v113, %v112
  %v117 = vpack.c.b16 %v115, %v114
  %vm120 = vcmask 261120
  %v122 = vsel %vm120, %v107, 0
  %124 = vmatprep.subr.bf16.mxu0 0
  %125 = vmatpush1.bf16.msra.mxu0 %v116
  %126 = vmatprep.subr.bf16.mxu0 0
  %127 = vmatpush1.bf16.msra.mxu0 %v117
  %128 = vmatprep.subr.bf16.mxu0 0
  %129 = vmatpush1.bf16.msra.mxu0 0
  %130 = vmatprep.subr.bf16.mxu0 0
  %131 = vmatpush1.bf16.msra.mxu0 0
  %132 = vmatprep.subr.bf16.mxu0 0
  %133 = vmatpush1.bf16.msra.mxu0 0
  %134 = vmatprep.subr.bf16.mxu0 0
  %135 = vmatpush1.bf16.msra.mxu0 0
  %136 = vmatprep.subr.bf16.mxu0 0
  %137 = vmatpush1.bf16.msra.mxu0 0
  %138 = vmatprep.subr.bf16.mxu0 0
  %139 = vmatpush1.bf16.msra.mxu0 0
  %140 = vmatprep.subr.bf16.mxu0 0
  %141 = vmatpush1.bf16.msra.mxu0 0
  %142 = vmatprep.subr.bf16.mxu0 0
  %143 = vmatpush1.bf16.msra.mxu0 0
  %144 = vmatprep.subr.bf16.mxu0 0
  %145 = vmatpush1.bf16.msra.mxu0 0
  %146 = vmatprep.subr.bf16.mxu0 0
  %147 = vmatpush1.bf16.msra.mxu0 0
  %148 = vmatprep.subr.bf16.mxu0 0
  %149 = vmatpush1.bf16.msra.mxu0 0
  %150 = vmatprep.subr.bf16.mxu0 0
  %151 = vmatpush1.bf16.msra.mxu0 0
  %152 = vmatprep.subr.bf16.mxu0 0
  %153 = vmatpush1.bf16.msra.mxu0 0
  %154 = vmatprep.subr.bf16.mxu0 0
  %155 = vmatpush1.bf16.msra.mxu0 0
  %156 = vmatprep.mubr.bf16.mxu0 0
  %157 = vmatmul.mubr.bf16.gmra.mrb[0].mxu0 %v122
  %v158 = vpop.f32.mrb[0].mxu0
  %v159 = vadd.f32 %v97, %v158
  %v160 = vpop.f32.mrb[0].mxu0
  %v161 = vpop.f32.mrb[0].mxu0
  %v162 = vadd.f32 %v100, %v161
  %v163 = vpop.f32.mrb[0].mxu0
  %164 = vdwg.mxu0
  %v165 = vld [vmem:[%s4] sm:$0xff]
  %v166 = vld [vmem:[%s4 + $0x8] sm:$0xff]
  %168 = vset.pattern.permute.xlu0 0
  %169 = vperm.xlu0 %168, %v165
  %v170 = vpop.permute.xlu0 %169
  %173 = vset.pattern.permute.xlu0 0
  %174 = vperm.xlu0 %173, %v166
  %v175 = vpop.permute.xlu0 %174
  %v177 = vadd.f32 %v159, %v170
  %v178 = vadd.f32 %v162, %v175
  %v179 = vmax.f32 %v177, 0.0
  %v180 = vmax.f32 %v178, 0.0
  %v181 = vpack.c.bf16 %v180, %v179
  %v183 = vunpack.c.l.b16 %v181
  %v184 = vunpack.c.h.b16 %v181
  %v185 = vpack.c.b16 %v183, %v183
  %v186 = vpack.c.b16 %v184, %v184
  %189 = vst [vmem:[%s5] sm:$0xf] %v185
  %190 = vst [vmem:[%s5 + $0x4] sm:$0xf] %v186
  // Predicated region
  $region22: #{generator_forward.17} parent=0 // pred_check
    _
  $region23: #{generator_forward.17} parent=0 // pred_check_branch
    %192 = sbr.rel (0) target = $region25
  $region24: #{generator_forward.17} parent=0 // pred_region
    _
  $region25: #{generator_forward.17} parent=0 // pred_fallthru
    _
  // Predicated region
  $region26: #{generator_forward.17} parent=0 // pred_check
    _
  $region27: #{generator_forward.17} parent=0 // pred_check_branch
    %194 = sbr.rel (0) target = $region29
  $region28: #{generator_forward.17} parent=0 // pred_region
    _
  $region29: #{generator_forward.17} parent=0 // pred_fallthru
    _

// kernel: generator_forward.10
$region0: #{generator_forward.10}
  #allocation0 [shape = 'u32[]', space=smem, size = 0x4, offset = 0x4, fixed_abs, tag = 'smem constant byte address 0x4 - core index']
  #allocation1 [shape = 'u32[144,128]{1,0:T(1,128)}', space=vmem, size = 0x12000, scoped, tag = 'internal scratch']
  %s0 = inlined_call_operand.vmem [shape: bf16[16,512], index: 0, kind: input, shape index: {}]
  %s1 = inlined_call_operand.vmem [shape: bf16[16,512], index: 1, kind: input, shape index: {}]
  %s2 = inlined_call_operand.vmem [shape: bf16[20,16], index: 2, kind: input, shape index: {}]
  %s3 = inlined_call_operand.vmem [shape: bf16[20,16], index: 3, kind: input, shape index: {}]
  %s4 = inlined_call_operand.vmem [shape: bf16[20,20], index: 4, kind: input, shape index: {}]
  %s5 = inlined_call_operand.vmem [shape: bf16[20,20], index: 5, kind: input, shape index: {}]
  %s6 = inlined_call_operand.vmem [shape: f32[20,1], index: 6, kind: input, shape index: {}]
  %s7 = inlined_call_operand.vmem [shape: f32[20,1], index: 7, kind: input, shape index: {}]
  %s8 = inlined_call_operand.vmem [shape: f32[20,1], index: 8, kind: input, shape index: {}]
  %s9 = inlined_call_operand.vmem [shape: bf16[20,512], index: 9, kind: output, shape index: {}]
  %s10 = sld [smem:[#allocation0]]
  $region179: #{generator_forward.10} parent=0
    _
  %s12 = ssub.s32 1, %s10
  %s13 = scalar_select 0, %s12, %s10
  $region1: #{generator_forward.10} parent=0
    #allocation2 [shape = 'u8[16384]{0}', space=vmem, size = 0x4000, scoped, tag = 'input window, operand 0']
    #allocation3 [shape = 'u8[16384]{0}', space=vmem, size = 0x4000, scoped, tag = 'input window, operand 1']
    #allocation4 [shape = 'u8[24576]{0}', space=vmem, size = 0x6000, scoped, tag = 'output window, operand 0']
    loop: start=0, step=1, limit=4
    $region2: #{generator_forward.10} parent=1 // loop_pre_header
      _
    $region3: #{generator_forward.10} parent=1 // loop_header
      %s15 = sphi 0, %s19
      %p16 = scmp.ge.s32.totalorder %s15, 4
      %s25 = sphi 0, %s27
      %s28 = sphi 0, %s25
      %s29 = sphi 0, %s28
      %s45 = sphi 0, %s29
      %s51 = sphi 0, %s53
      %s54 = sphi 0, %s51
      %s55 = sphi 0, %s54
      %s71 = sphi 0, %s55
      %s75 = sphi 0, %s75
      %s77 = sphi 0, %s75
      %s78 = sphi 0, %s77
      %s92 = sphi 0, %s78
      %s96 = sphi 0, %s96
      %s98 = sphi 0, %s96
      %s99 = sphi 0, %s98
      %s113 = sphi 0, %s99
      %s117 = sphi 0, %s117
      %s119 = sphi 0, %s117
      %s120 = sphi 0, %s119
      %s134 = sphi 0, %s120
      %s138 = sphi 0, %s138
      %s140 = sphi 0, %s138
      %s141 = sphi 0, %s140
      %s155 = sphi 0, %s141
      %s159 = sphi 0, %s159
      %s161 = sphi 0, %s159
      %s162 = sphi 0, %s161
      %s176 = sphi 0, %s162
      %s180 = sphi 0, %s180
      %s182 = sphi 0, %s180
      %s183 = sphi 0, %s182
      %s197 = sphi 0, %s183
      %s201 = sphi 0, %s201
      %s203 = sphi 0, %s201
      %s204 = sphi 0, %s203
      %s218 = sphi 0, %s204
      %s224 = sphi 0, %s226
      %s227 = sphi 0, %s224
      %s228 = sphi 0, %s227
      %s244 = sphi 0, %s228
    $region4: #{generator_forward.10} parent=1 // loop_header_branch
      %18 = sbr.rel (%p16) target = $region8
    $region5: #{generator_forward.10} parent=1 // loop_body
      %s20 = ssub.s32 %s15, 1
      %s21 = ssub.s32 %s15, 2
      %s22 = sadd.s32 %s15, 1
      %s23 = ssub.s32 %s15, %s22
      %p24 = scmp.eq.s32.totalorder %s23, 0
      %s26 = sadd.s32 %s25, 1
      %s27 = scalar_select %p24, %s25, %s26
      %p30 = pneg %p24
      %p31 = scmp.eq.s32.totalorder %s15, 1
      %p32 = por %p30, %p31
      %p33 = scmp.ne.s32.totalorder %s25, %s28
      %p34 = scmp.eq.s32.totalorder %s15, 0
      %p35 = por %p33, %p34
      %p36 = scmp.ne.s32.totalorder %s25, %s28
      %p37 = scmp.eq.s32.totalorder %s20, 1
      %p38 = por %p36, %p37
      %p39 = scmp.ne.s32.totalorder %s28, %s29
      %p40 = scmp.eq.s32.totalorder %s20, 0
      %p41 = por %p39, %p40
      %p42 = scmp.ne.s32.totalorder %s28, %s29
      %p43 = scmp.eq.s32.totalorder %s21, 1
      %p44 = por %p42, %p43
      %p46 = scmp.ne.s32.totalorder %s29, %s45
      %p47 = scmp.eq.s32.totalorder %s21, 0
      %p48 = por %p46, %p47
      %s49 = ssub.s32 %s15, %s22
      %p50 = scmp.eq.s32.totalorder %s49, 0
      %s52 = sadd.s32 %s51, 1
      %s53 = scalar_select %p50, %s51, %s52
      %p56 = pneg %p50
      %p57 = scmp.eq.s32.totalorder %s15, 1
      %p58 = por %p56, %p57
      %p59 = scmp.ne.s32.totalorder %s51, %s54
      %p60 = scmp.eq.s32.totalorder %s15, 0
      %p61 = por %p59, %p60
      %p62 = scmp.ne.s32.totalorder %s51, %s54
      %p63 = scmp.eq.s32.totalorder %s20, 1
      %p64 = por %p62, %p63
      %p65 = scmp.ne.s32.totalorder %s54, %s55
      %p66 = scmp.eq.s32.totalorder %s20, 0
      %p67 = por %p65, %p66
      %p68 = scmp.ne.s32.totalorder %s54, %s55
      %p69 = scmp.eq.s32.totalorder %s21, 1
      %p70 = por %p68, %p69
      %p72 = scmp.ne.s32.totalorder %s55, %s71
      %p73 = scmp.eq.s32.totalorder %s21, 0
      %p74 = por %p72, %p73
      %s76 = sadd.s32 %s75, 1
      %p79 = scmp.eq.s32.totalorder %s15, 1
      %p80 = scmp.ne.s32.totalorder %s75, %s77
      %p81 = scmp.eq.s32.totalorder %s15, 0
      %p82 = por %p80, %p81
      %p83 = scmp.ne.s32.totalorder %s75, %s77
      %p84 = scmp.eq.s32.totalorder %s20, 1
      %p85 = por %p83, %p84
      %p86 = scmp.ne.s32.totalorder %s77, %s78
      %p87 = scmp.eq.s32.totalorder %s20, 0
      %p88 = por %p86, %p87
      %p89 = scmp.ne.s32.totalorder %s77, %s78
      %p90 = scmp.eq.s32.totalorder %s21, 1
      %p91 = por %p89, %p90
      %p93 = scmp.ne.s32.totalorder %s78, %s92
      %p94 = scmp.eq.s32.totalorder %s21, 0
      %p95 = por %p93, %p94
      %s97 = sadd.s32 %s96, 1
      %p100 = scmp.eq.s32.totalorder %s15, 1
      %p101 = scmp.ne.s32.totalorder %s96, %s98
      %p102 = scmp.eq.s32.totalorder %s15, 0
      %p103 = por %p101, %p102
      %p104 = scmp.ne.s32.totalorder %s96, %s98
      %p105 = scmp.eq.s32.totalorder %s20, 1
      %p106 = por %p104, %p105
      %p107 = scmp.ne.s32.totalorder %s98, %s99
      %p108 = scmp.eq.s32.totalorder %s20, 0
      %p109 = por %p107, %p108
      %p110 = scmp.ne.s32.totalorder %s98, %s99
      %p111 = scmp.eq.s32.totalorder %s21, 1
      %p112 = por %p110, %p111
      %p114 = scmp.ne.s32.totalorder %s99, %s113
      %p115 = scmp.eq.s32.totalorder %s21, 0
      %p116 = por %p114, %p115
      %s118 = sadd.s32 %s117, 1
      %p121 = scmp.eq.s32.totalorder %s15, 1
      %p122 = scmp.ne.s32.totalorder %s117, %s119
      %p123 = scmp.eq.s32.totalorder %s15, 0
      %p124 = por %p122, %p123
      %p125 = scmp.ne.s32.totalorder %s117, %s119
      %p126 = scmp.eq.s32.totalorder %s20, 1
      %p127 = por %p125, %p126
      %p128 = scmp.ne.s32.totalorder %s119, %s120
      %p129 = scmp.eq.s32.totalorder %s20, 0
      %p130 = por %p128, %p129
      %p131 = scmp.ne.s32.totalorder %s119, %s120
      %p132 = scmp.eq.s32.totalorder %s21, 1
      %p133 = por %p131, %p132
      %p135 = scmp.ne.s32.totalorder %s120, %s134
      %p136 = scmp.eq.s32.totalorder %s21, 0
      %p137 = por %p135, %p136
      %s139 = sadd.s32 %s138, 1
      %p142 = scmp.eq.s32.totalorder %s15, 1
      %p143 = scmp.ne.s32.totalorder %s138, %s140
      %p144 = scmp.eq.s32.totalorder %s15, 0
      %p145 = por %p143, %p144
      %p146 = scmp.ne.s32.totalorder %s138, %s140
      %p147 = scmp.eq.s32.totalorder %s20, 1
      %p148 = por %p146, %p147
      %p149 = scmp.ne.s32.totalorder %s140, %s141
      %p150 = scmp.eq.s32.totalorder %s20, 0
      %p151 = por %p149, %p150
      %p152 = scmp.ne.s32.totalorder %s140, %s141
      %p153 = scmp.eq.s32.totalorder %s21, 1
      %p154 = por %p152, %p153
      %p156 = scmp.ne.s32.totalorder %s141, %s155
      %p157 = scmp.eq.s32.totalorder %s21, 0
      %p158 = por %p156, %p157
      %s160 = sadd.s32 %s159, 1
      %p163 = scmp.eq.s32.totalorder %s15, 1
      %p164 = scmp.ne.s32.totalorder %s159, %s161
      %p165 = scmp.eq.s32.totalorder %s15, 0
      %p166 = por %p164, %p165
      %p167 = scmp.ne.s32.totalorder %s159, %s161
      %p168 = scmp.eq.s32.totalorder %s20, 1
      %p169 = por %p167, %p168
      %p170 = scmp.ne.s32.totalorder %s161, %s162
      %p171 = scmp.eq.s32.totalorder %s20, 0
      %p172 = por %p170, %p171
      %p173 = scmp.ne.s32.totalorder %s161, %s162
      %p174 = scmp.eq.s32.totalorder %s21, 1
      %p175 = por %p173, %p174
      %p177 = scmp.ne.s32.totalorder %s162, %s176
      %p178 = scmp.eq.s32.totalorder %s21, 0
      %p179 = por %p177, %p178
      %s181 = sadd.s32 %s180, 1
      %p184 = scmp.eq.s32.totalorder %s15, 1
      %p185 = scmp.ne.s32.totalorder %s180, %s182
      %p186 = scmp.eq.s32.totalorder %s15, 0
      %p187 = por %p185, %p186
      %p188 = scmp.ne.s32.totalorder %s180, %s182
      %p189 = scmp.eq.s32.totalorder %s20, 1
      %p190 = por %p188, %p189
      %p191 = scmp.ne.s32.totalorder %s182, %s183
      %p192 = scmp.eq.s32.totalorder %s20, 0
      %p193 = por %p191, %p192
      %p194 = scmp.ne.s32.totalorder %s182, %s183
      %p195 = scmp.eq.s32.totalorder %s21, 1
      %p196 = por %p194, %p195
      %p198 = scmp.ne.s32.totalorder %s183, %s197
      %p199 = scmp.eq.s32.totalorder %s21, 0
      %p200 = por %p198, %p199
      %s202 = sadd.s32 %s201, 1
      %p205 = scmp.eq.s32.totalorder %s15, 1
      %p206 = scmp.ne.s32.totalorder %s201, %s203
      %p207 = scmp.eq.s32.totalorder %s15, 0
      %p208 = por %p206, %p207
      %p209 = scmp.ne.s32.totalorder %s201, %s203
      %p210 = scmp.eq.s32.totalorder %s20, 1
      %p211 = por %p209, %p210
      %p212 = scmp.ne.s32.totalorder %s203, %s204
      %p213 = scmp.eq.s32.totalorder %s20, 0
      %p214 = por %p212, %p213
      %p215 = scmp.ne.s32.totalorder %s203, %s204
      %p216 = scmp.eq.s32.totalorder %s21, 1
      %p217 = por %p215, %p216
      %p219 = scmp.ne.s32.totalorder %s204, %s218
      %p220 = scmp.eq.s32.totalorder %s21, 0
      %p221 = por %p219, %p220
      %s222 = ssub.s32 %s15, %s22
      %p223 = scmp.eq.s32.totalorder %s222, 0
      %s225 = sadd.s32 %s224, 1
      %s226 = scalar_select %p223, %s224, %s225
      %p229 = pneg %p223
      %p230 = scmp.eq.s32.totalorder %s15, 1
      %p231 = por %p229, %p230
      %p232 = scmp.ne.s32.totalorder %s224, %s227
      %p233 = scmp.eq.s32.totalorder %s15, 0
      %p234 = por %p232, %p233
      %p235 = scmp.ne.s32.totalorder %s224, %s227
      %p236 = scmp.eq.s32.totalorder %s20, 1
      %p237 = por %p235, %p236
      %p238 = scmp.ne.s32.totalorder %s227, %s228
      %p239 = scmp.eq.s32.totalorder %s20, 0
      %p240 = por %p238, %p239
      %p241 = scmp.ne.s32.totalorder %s227, %s228
      %p242 = scmp.eq.s32.totalorder %s21, 1
      %p243 = por %p241, %p242
      %p245 = scmp.ne.s32.totalorder %s228, %s244
      %p246 = scmp.eq.s32.totalorder %s21, 0
      %p247 = por %p245, %p246
      %p248 = scmp.le.s32.totalorder 1, %s15
      %p249 = scmp.lt.s32.totalorder %s15, 3
      %p250 = pnand %p248, %p249
      %p251 = pneg %p250
      // Predicated region
      $region9: #{generator_forward.10} parent=5 // pred_check
        _
      $region10: #{generator_forward.10} parent=5 // pred_check_branch
        %253 = sbr.rel (%p250) target = $region12
      $region11: #{generator_forward.10} parent=5 // pred_region
        %s254 = ssub.s32 %s15, 1
        // Predicated region
        $region13: #{generator_forward.10} parent=11 // pred_check
          %p255 = pneg %p88
        $region14: #{generator_forward.10} parent=11 // pred_check_branch
          %257 = sbr.rel (%p255) target = $region16
        $region15: #{generator_forward.10} parent=11 // pred_region
          _
        $region16: #{generator_forward.10} parent=11 // pred_fallthru
          _
        // Predicated region
        $region17: #{generator_forward.10} parent=11 // pred_check
          %p258 = pneg %p109
        $region18: #{generator_forward.10} parent=11 // pred_check_branch
          %260 = sbr.rel (%p258) target = $region20
        $region19: #{generator_forward.10} parent=11 // pred_region
          _
        $region20: #{generator_forward.10} parent=11 // pred_fallthru
          _
        // Predicated region
        $region21: #{generator_forward.10} parent=11 // pred_check
          %p261 = pneg %p130
        $region22: #{generator_forward.10} parent=11 // pred_check_branch
          %263 = sbr.rel (%p261) target = $region24
        $region23: #{generator_forward.10} parent=11 // pred_region
          _
        $region24: #{generator_forward.10} parent=11 // pred_fallthru
          _
        // Predicated region
        $region25: #{generator_forward.10} parent=11 // pred_check
          %p264 = pneg %p151
        $region26: #{generator_forward.10} parent=11 // pred_check_branch
          %266 = sbr.rel (%p264) target = $region28
        $region27: #{generator_forward.10} parent=11 // pred_region
          _
        $region28: #{generator_forward.10} parent=11 // pred_fallthru
          _
        // Predicated region
        $region29: #{generator_forward.10} parent=11 // pred_check
          %p267 = pneg %p172
        $region30: #{generator_forward.10} parent=11 // pred_check_branch
          %269 = sbr.rel (%p267) target = $region32
        $region31: #{generator_forward.10} parent=11 // pred_region
          _
        $region32: #{generator_forward.10} parent=11 // pred_fallthru
          _
        // Predicated region
        $region33: #{generator_forward.10} parent=11 // pred_check
          %p270 = pneg %p193
        $region34: #{generator_forward.10} parent=11 // pred_check_branch
          %272 = sbr.rel (%p270) target = $region36
        $region35: #{generator_forward.10} parent=11 // pred_region
          _
        $region36: #{generator_forward.10} parent=11 // pred_fallthru
          _
        // Predicated region
        $region37: #{generator_forward.10} parent=11 // pred_check
          %p273 = pneg %p214
        $region38: #{generator_forward.10} parent=11 // pred_check_branch
          %275 = sbr.rel (%p273) target = $region40
        $region39: #{generator_forward.10} parent=11 // pred_region
          _
        $region40: #{generator_forward.10} parent=11 // pred_fallthru
          _
      $region12: #{generator_forward.10} parent=5 // pred_fallthru
        _
      %p276 = scmp.lt.s32.totalorder %s15, 2
      // Predicated region
      $region41: #{generator_forward.10} parent=5 // pred_check
        %p277 = pneg %p276
      $region42: #{generator_forward.10} parent=5 // pred_check_branch
        %279 = sbr.rel (%p277) target = $region44
      $region43: #{generator_forward.10} parent=5 // pred_region
        // Predicated region
        $region45: #{generator_forward.10} parent=43 // pred_check
          %p280 = pneg %p35
        $region46: #{generator_forward.10} parent=43 // pred_check_branch
          %282 = sbr.rel (%p280) target = $region48
        $region47: #{generator_forward.10} parent=43 // pred_region
          %s283 = sand.u32 %s25, 1
          %s284 = sand.u32 %s25, 1
          %s285 = smul.addr %s284, 16
          %s286 = scalar_lea.vmem [#allocation2], %s285
          %s287 = smul.u32 2, %s15
          %s288 = smul.addr %s287, 4
          %s289 = scalar_lea.vmem %s0, %s288
          // Predicated region
          $region49: #{generator_forward.10} parent=47 // pred_check
            _
          $region50: #{generator_forward.10} parent=47 // pred_check_branch
            %291 = sbr.rel (0) target = $region52
          $region51: #{generator_forward.10} parent=47 // pred_region
            // Predicated region
            $region53: #{generator_forward.10} parent=51 // pred_check
              _
            $region54: #{generator_forward.10} parent=51 // pred_check_branch
              %293 = sbr.rel (0) target = $region56
            $region55: #{generator_forward.10} parent=51 // pred_region
              // Predicated region
              $region68: #{generator_forward.10} parent=55 // pred_check
                _
              $region69: #{generator_forward.10} parent=55 // pred_check_branch
                %310 = sbr.rel (0) target = $region71
              $region70: #{generator_forward.10} parent=55 // pred_region
                loop: start=0, step=1, limit=1
                $region72: #{generator_forward.10} parent=70 // loop_pre_header
                  _
                $region73: #{generator_forward.10} parent=70 // loop_header
                  %s312 = sphi 0, %s316
                  %p313 = scmp.ge.s32.totalorder %s312, 1
                  %s317 = sphi %s289, %s289
                  %s318 = sphi %s286, %s286
                $region74: #{generator_forward.10} parent=70 // loop_header_branch
                  %315 = sbr.rel (%p313) target = $region78
                $region75: #{generator_forward.10} parent=70 // loop_body
                  %v319 = vld [vmem:[%s317] sm:$0xff]
                  %320 = vst [vmem:[%s318] sm:$0xff] %v319
                  %v321 = vld [vmem:[%s317 + $0x10] sm:$0xff]
                  %322 = vst [vmem:[%s318 + $0x8] sm:$0xff] %v321
                $region76: #{generator_forward.10} parent=70 // loop_footer
                  %s316 = sadd.s32 1, %s312
                $region77: #{generator_forward.10} parent=70 // loop_footer_branch
                  %311 = sbr.rel target = $region73
                $region78: #{generator_forward.10} parent=70 // loop_exit
                  _
              $region71: #{generator_forward.10} parent=55 // pred_fallthru
                _
              // Predicated region
              $region79: #{generator_forward.10} parent=55 // pred_check
                _
              $region80: #{generator_forward.10} parent=55 // pred_check_branch
                %324 = sbr.rel target = $region82
              $region81: #{generator_forward.10} parent=55 // pred_region
                _
              $region82: #{generator_forward.10} parent=55 // pred_fallthru
                _
            $region56: #{generator_forward.10} parent=51 // pred_fallthru
              _
            // Predicated region
            $region57: #{generator_forward.10} parent=51 // pred_check
              _
            $region58: #{generator_forward.10} parent=51 // pred_check_branch
              %295 = sbr.rel target = $region60
            $region59: #{generator_forward.10} parent=51 // pred_region
              loop: start=0, step=1, limit=1
              $region61: #{generator_forward.10} parent=59 // loop_pre_header
                _
              $region62: #{generator_forward.10} parent=59 // loop_header
                %s298 = sphi 0, %s302
                %p299 = scmp.ge.s32.totalorder %s298, 1
                %s303 = sphi %s289, %s289
                %s304 = sphi %s286, %s286
              $region63: #{generator_forward.10} parent=59 // loop_header_branch
                %301 = sbr.rel (%p299) target = $region67
              $region64: #{generator_forward.10} parent=59 // loop_body
                %v305 = vld [vmem:[%s303] sm:$0xff]
                %306 = vst [vmem:[%s304] sm:$0xff] %v305
                %v307 = vld [vmem:[%s303 + $0x10] sm:$0xff]
                %308 = vst [vmem:[%s304 + $0x8] sm:$0xff] %v307
              $region65: #{generator_forward.10} parent=59 // loop_footer
                %s302 = sadd.s32 1, %s298
              $region66: #{generator_forward.10} parent=59 // loop_footer_branch
                %297 = sbr.rel target = $region62
              $region67: #{generator_forward.10} parent=59 // loop_exit
                _
            $region60: #{generator_forward.10} parent=51 // pred_fallthru
              _
          $region52: #{generator_forward.10} parent=47 // pred_fallthru
            _
          %325 = vnop
        $region48: #{generator_forward.10} parent=43 // pred_fallthru
          _
        // Predicated region
        $region83: #{generator_forward.10} parent=43 // pred_check
          %p326 = pneg %p61
        $region84: #{generator_forward.10} parent=43 // pred_check_branch
          %328 = sbr.rel (%p326) target = $region86
        $region85: #{generator_forward.10} parent=43 // pred_region
          %s329 = sand.u32 %s51, 1
          %s330 = sand.u32 %s51, 1
          %s331 = smul.addr %s330, 16
          %s332 = scalar_lea.vmem [#allocation3], %s331
          %s333 = smul.u32 2, %s15
          %s334 = smul.addr %s333, 4
          %s335 = scalar_lea.vmem %s1, %s334
          // Predicated region
          $region87: #{generator_forward.10} parent=85 // pred_check
            _
          $region88: #{generator_forward.10} parent=85 // pred_check_branch
            %337 = sbr.rel (0) target = $region90
          $region89: #{generator_forward.10} parent=85 // pred_region
            // Predicated region
            $region91: #{generator_forward.10} parent=89 // pred_check
              _
            $region92: #{generator_forward.10} parent=89 // pred_check_branch
              %339 = sbr.rel (0) target = $region94
            $region93: #{generator_forward.10} parent=89 // pred_region
              // Predicated region
              $region106: #{generator_forward.10} parent=93 // pred_check
                _
              $region107: #{generator_forward.10} parent=93 // pred_check_branch
                %356 = sbr.rel (0) target = $region109
              $region108: #{generator_forward.10} parent=93 // pred_region
                loop: start=0, step=1, limit=1
                $region110: #{generator_forward.10} parent=108 // loop_pre_header
                  _
                $region111: #{generator_forward.10} parent=108 // loop_header
                  %s358 = sphi 0, %s362
                  %p359 = scmp.ge.s32.totalorder %s358, 1
                  %s363 = sphi %s335, %s335
                  %s364 = sphi %s332, %s332
                $region112: #{generator_forward.10} parent=108 // loop_header_branch
                  %361 = sbr.rel (%p359) target = $region116
                $region113: #{generator_forward.10} parent=108 // loop_body
                  %v365 = vld [vmem:[%s363] sm:$0xff]
                  %366 = vst [vmem:[%s364] sm:$0xff] %v365
                  %v367 = vld [vmem:[%s363 + $0x10] sm:$0xff]
                  %368 = vst [vmem:[%s364 + $0x8] sm:$0xff] %v367
                $region114: #{generator_forward.10} parent=108 // loop_footer
                  %s362 = sadd.s32 1, %s358
                $region115: #{generator_forward.10} parent=108 // loop_footer_branch
                  %357 = sbr.rel target = $region111
                $region116: #{generator_forward.10} parent=108 // loop_exit
                  _
              $region109: #{generator_forward.10} parent=93 // pred_fallthru
                _
              // Predicated region
              $region117: #{generator_forward.10} parent=93 // pred_check
                _
              $region118: #{generator_forward.10} parent=93 // pred_check_branch
                %370 = sbr.rel target = $region120
              $region119: #{generator_forward.10} parent=93 // pred_region
                _
              $region120: #{generator_forward.10} parent=93 // pred_fallthru
                _
            $region94: #{generator_forward.10} parent=89 // pred_fallthru
              _
            // Predicated region
            $region95: #{generator_forward.10} parent=89 // pred_check
              _
            $region96: #{generator_forward.10} parent=89 // pred_check_branch
              %341 = sbr.rel target = $region98
            $region97: #{generator_forward.10} parent=89 // pred_region
              loop: start=0, step=1, limit=1
              $region99: #{generator_forward.10} parent=97 // loop_pre_header
                _
              $region100: #{generator_forward.10} parent=97 // loop_header
                %s344 = sphi 0, %s348
                %p345 = scmp.ge.s32.totalorder %s344, 1
                %s349 = sphi %s335, %s335
                %s350 = sphi %s332, %s332
              $region101: #{generator_forward.10} parent=97 // loop_header_branch
                %347 = sbr.rel (%p345) target = $region105
              $region102: #{generator_forward.10} parent=97 // loop_body
                %v351 = vld [vmem:[%s349] sm:$0xff]
                %352 = vst [vmem:[%s350] sm:$0xff] %v351
                %v353 = vld [vmem:[%s349 + $0x10] sm:$0xff]
                %354 = vst [vmem:[%s350 + $0x8] sm:$0xff] %v353
              $region103: #{generator_forward.10} parent=97 // loop_footer
                %s348 = sadd.s32 1, %s344
              $region104: #{generator_forward.10} parent=97 // loop_footer_branch
                %343 = sbr.rel target = $region100
              $region105: #{generator_forward.10} parent=97 // loop_exit
                _
            $region98: #{generator_forward.10} parent=89 // pred_fallthru
              _
          $region90: #{generator_forward.10} parent=85 // pred_fallthru
            _
          %371 = vnop
        $region86: #{generator_forward.10} parent=43 // pred_fallthru
          _
      $region44: #{generator_forward.10} parent=5 // pred_fallthru
        _
      %p372 = scmp.le.s32.totalorder 1, %s15
      %p373 = scmp.lt.s32.totalorder %s15, 3
      %p374 = pnand %p372, %p373
      %p375 = pneg %p374
      // Predicated region
      $region121: #{generator_forward.10} parent=5 // pred_check
        _
      $region122: #{generator_forward.10} parent=5 // pred_check_branch
        %377 = sbr.rel (%p374) target = $region124
      $region123: #{generator_forward.10} parent=5 // pred_region
        %s378 = ssub.s32 %s15, 1
        %s379 = sand.u32 %s28, 1
        %s380 = sand.u32 %s28, 1
        %s381 = smul.addr %s380, 16
        %s382 = scalar_lea.vmem [#allocation2], %s381
        // Predicated region
        $region125: #{generator_forward.10} parent=123 // pred_check
          %p383 = pneg %p41
        $region126: #{generator_forward.10} parent=123 // pred_check_branch
          %385 = sbr.rel (%p383) target = $region128
        $region127: #{generator_forward.10} parent=123 // pred_region
          _
        $region128: #{generator_forward.10} parent=123 // pred_fallthru
          _
        %s386 = sand.u32 %s54, 1
        %s387 = sand.u32 %s54, 1
        %s388 = smul.addr %s387, 16
        %s389 = scalar_lea.vmem [#allocation3], %s388
        // Predicated region
        $region129: #{generator_forward.10} parent=123 // pred_check
          %p390 = pneg %p67
        $region130: #{generator_forward.10} parent=123 // pred_check_branch
          %392 = sbr.rel (%p390) target = $region132
        $region131: #{generator_forward.10} parent=123 // pred_region
          _
        $region132: #{generator_forward.10} parent=123 // pred_fallthru
          _
        %s393 = sand.u32 %s28, 1
        %s394 = sand.u32 %s28, 1
        %s395 = smul.addr %s394, 16
        %s396 = scalar_lea.vmem [#allocation2], %s395
        %p397 = pneg %p41
        %p398 = pneg %p38
        %s399 = sand.u32 %s54, 1
        %s400 = sand.u32 %s54, 1
        %s401 = smul.addr %s400, 16
        %s402 = scalar_lea.vmem [#allocation3], %s401
        %p403 = pneg %p67
        %p404 = pneg %p64
        %p405 = pneg %p88
        %p406 = pneg %p85
        %p407 = pneg %p109
        %p408 = pneg %p106
        %p409 = pneg %p130
        %p410 = pneg %p127
        %p411 = pneg %p151
        %p412 = pneg %p148
        %p413 = pneg %p172
        %p414 = pneg %p169
        %p415 = pneg %p193
        %p416 = pneg %p190
        %p417 = pneg %p214
        %p418 = pneg %p211
        %p419 = pneg %p240
        %p420 = pneg %p237
        %s421 = sand.u32 %s227, 1
        %s422 = sand.u32 %s227, 1
        %s423 = smul.addr %s422, 24
        %s424 = scalar_lea.vmem [#allocation4], %s423
        %s425 = smul.u32 2, %s20
        %s426 = smul.u32 2, %s20
        %s427 = smul.u32 2, %s20
        %v429 = vld [vmem:[%s2] sm:$0xf]
        %v430 = vld [vmem:[%s2 + $0x4] sm:$0xf]
        %v431 = vld [vmem:[%s2 + $0x8] sm:$0x3]
        %v432 = vld [vmem:[%s382] sm:$0xff]
        %v433 = vld [vmem:[%s382 + $0x8] sm:$0xff]
        %v434 = vld [vmem:[%s6] sm:$0xff]
        %v435 = vld [vmem:[%s6 + $0x8] sm:$0xff]
        %v436 = vld [vmem:[%s6 + $0x10] sm:$0xf]
        %438 = vset.pattern.permute.xlu0 0
        %439 = vperm.xlu0 %438, %v434
        %v440 = vpop.permute.xlu0 %439
        %443 = vset.pattern.permute.xlu0 0
        %444 = vperm.xlu0 %443, %v435
        %v445 = vpop.permute.xlu0 %444
        %448 = vset.pattern.permute.xlu0 0
        %449 = vperm.xlu0 %448, %v436
        %v450 = vpop.permute.xlu0 %449
        %v455 = vunpack.c.l.b16 %v429
        %v456 = vunpack.c.l.b16 %v430
        %v457 = vunpack.c.l.b16 %v431
        %v458 = vpack.c.b16 %v456, %v455
        %v459 = vpack.c.b16 %v457, %v457
        %v462 = vunpack.c.l.b16 %v432
        %v463 = vunpack.c.h.b16 %v432
        %v464 = vunpack.c.l.b16 %v433
        %v465 = vunpack.c.h.b16 %v433
        %v466 = vpack.c.b16 %v464, %v462
        %v467 = vpack.c.b16 %v465, %v463
        %vm470 = vcmask 130048
        %v472 = vsel %vm470, %v458, 0
        %v475 = vsel %vm470, %v459, 0
        %477 = vmatprep.subr.bf16.mxu0 %v467
        %478 = vmatpush1.bf16.msra.mxu0 %v466
        %479 = vmatprep.subr.bf16.mxu0 0
        %480 = vmatpush1.bf16.msra.mxu0 0
        %481 = vmatprep.subr.bf16.mxu0 0
        %482 = vmatpush1.bf16.msra.mxu0 0
        %483 = vmatprep.subr.bf16.mxu0 0
        %484 = vmatpush1.bf16.msra.mxu0 0
        %485 = vmatprep.subr.bf16.mxu0 0
        %486 = vmatpush1.bf16.msra.mxu0 0
        %487 = vmatprep.subr.bf16.mxu0 0
        %488 = vmatpush1.bf16.msra.mxu0 0
        %489 = vmatprep.subr.bf16.mxu0 0
        %490 = vmatpush1.bf16.msra.mxu0 0
        %491 = vmatprep.subr.bf16.mxu0 0
        %492 = vmatpush1.bf16.msra.mxu0 0
        %493 = vmatprep.subr.bf16.mxu0 0
        %494 = vmatpush1.bf16.msra.mxu0 0
        %495 = vmatprep.subr.bf16.mxu0 0
        %496 = vmatpush1.bf16.msra.mxu0 0
        %497 = vmatprep.subr.bf16.mxu0 0
        %498 = vmatpush1.bf16.msra.mxu0 0
        %499 = vmatprep.subr.bf16.mxu0 0
        %500 = vmatpush1.bf16.msra.mxu0 0
        %501 = vmatprep.subr.bf16.mxu0 0
        %502 = vmatpush1.bf16.msra.mxu0 0
        %503 = vmatprep.subr.bf16.mxu0 0
        %504 = vmatpush1.bf16.msra.mxu0 0
        %505 = vmatprep.subr.bf16.mxu0 0
        %506 = vmatpush1.bf16.msra.mxu0 0
        %507 = vmatprep.subr.bf16.mxu0 0
        %508 = vmatpush1.bf16.msra.mxu0 0
        %509 = vmatprep.mubr.bf16.mxu0 0
        %510 = vmatmul.mubr.bf16.gmra.mrb[0].mxu0 %v472
        %v511 = vpop.f32.mrb[0].mxu0
        %v512 = vadd.f32 %v440, %v511
        %v513 = vpop.f32.mrb[0].mxu0
        %v514 = vadd.f32 %v440, %v513
        %v515 = vpop.f32.mrb[0].mxu0
        %v516 = vadd.f32 %v445, %v515
        %v517 = vpop.f32.mrb[0].mxu0
        %v518 = vadd.f32 %v445, %v517
        %519 = vmatprep.mubr.bf16.mxu0 0
        %520 = vmatmul.mubr.bf16.gmra.mrb[0].mxu0 %v475
        %v521 = vpop.f32.mrb[0].mxu0
        %v522 = vadd.f32 %v450, %v521
        %v523 = vpop.f32.mrb[0].mxu0
        %v524 = vadd.f32 %v450, %v523
        %v525 = vpop.f32.mrb[0].mxu0
        %v526 = vpop.f32.mrb[0].mxu0
        %527 = vdwg.mxu0
        %v528 = vmax.f32 %v512, 0.0
        %v529 = vmax.f32 %v514, 0.0
        %v530 = vmax.f32 %v516, 0.0
        %v531 = vmax.f32 %v518, 0.0
        %v532 = vmax.f32 %v522, 0.0
        %v533 = vmax.f32 %v524, 0.0
        %v534 = vpack.c.bf16 %v530, %v528
        %v535 = vpack.c.bf16 %v531, %v529
        %v536 = vpack.c.bf16 %v532, %v532
        %v537 = vpack.c.bf16 %v533, %v533
        %v538 = vld [vmem:[%s3] sm:$0xf]
        %v539 = vld [vmem:[%s3 + $0x4] sm:$0xf]
        %v540 = vld [vmem:[%s3 + $0x8] sm:$0x3]
        %v541 = vld [vmem:[%s389] sm:$0xff]
        %v542 = vld [vmem:[%s389 + $0x8] sm:$0xff]
        %v543 = vld [vmem:[%s7] sm:$0xff]
        %v544 = vld [vmem:[%s7 + $0x8] sm:$0xff]
        %v545 = vld [vmem:[%s7 + $0x10] sm:$0xf]
        %547 = vset.pattern.permute.xlu0 0
        %548 = vperm.xlu0 %547, %v543
        %v549 = vpop.permute.xlu0 %548
        %552 = vset.pattern.permute.xlu0 0
        %553 = vperm.xlu0 %552, %v544
        %v554 = vpop.permute.xlu0 %553
        %557 = vset.pattern.permute.xlu0 0
        %558 = vperm.xlu0 %557, %v545
        %v559 = vpop.permute.xlu0 %558
        %v564 = vunpack.c.l.b16 %v538
        %v565 = vunpack.c.l.b16 %v539
        %v566 = vunpack.c.l.b16 %v540
        %v567 = vpack.c.b16 %v565, %v564
        %v568 = vpack.c.b16 %v566, %v566
        %v571 = vunpack.c.l.b16 %v541
        %v572 = vunpack.c.h.b16 %v541
        %v573 = vunpack.c.l.b16 %v542
        %v574 = vunpack.c.h.b16 %v542
        %v575 = vpack.c.b16 %v573, %v571
        %v576 = vpack.c.b16 %v574, %v572
        %v580 = vsel %vm470, %v567, 0
        %v583 = vsel %vm470, %v568, 0
        %585 = vmatprep.subr.bf16.mxu0 %v576
        %586 = vmatpush1.bf16.msra.mxu0 %v575
        %587 = vmatprep.subr.bf16.mxu0 0
        %588 = vmatpush1.bf16.msra.mxu0 0
        %589 = vmatprep.subr.bf16.mxu0 0
        %590 = vmatpush1.bf16.msra.mxu0 0
        %591 = vmatprep.subr.bf16.mxu0 0
        %592 = vmatpush1.bf16.msra.mxu0 0
        %593 = vmatprep.subr.bf16.mxu0 0
        %594 = vmatpush1.bf16.msra.mxu0 0
        %595 = vmatprep.subr.bf16.mxu0 0
        %596 = vmatpush1.bf16.msra.mxu0 0
        %597 = vmatprep.subr.bf16.mxu0 0
        %598 = vmatpush1.bf16.msra.mxu0 0
        %599 = vmatprep.subr.bf16.mxu0 0
        %600 = vmatpush1.bf16.msra.mxu0 0
        %601 = vmatprep.subr.bf16.mxu0 0
        %602 = vmatpush1.bf16.msra.mxu0 0
        %603 = vmatprep.subr.bf16.mxu0 0
        %604 = vmatpush1.bf16.msra.mxu0 0
        %605 = vmatprep.subr.bf16.mxu0 0
        %606 = vmatpush1.bf16.msra.mxu0 0
        %607 = vmatprep.subr.bf16.mxu0 0
        %608 = vmatpush1.bf16.msra.mxu0 0
        %609 = vmatprep.subr.bf16.mxu0 0
        %610 = vmatpush1.bf16.msra.mxu0 0
        %611 = vmatprep.subr.bf16.mxu0 0
        %612 = vmatpush1.bf16.msra.mxu0 0
        %613 = vmatprep.subr.bf16.mxu0 0
        %614 = vmatpush1.bf16.msra.mxu0 0
        %615 = vmatprep.subr.bf16.mxu0 0
        %616 = vmatpush1.bf16.msra.mxu0 0
        %617 = vmatprep.mubr.bf16.mxu0 0
        %618 = vmatmul.mubr.bf16.gmra.mrb[0].mxu0 %v580
        %v619 = vpop.f32.mrb[0].mxu0
        %v620 = vadd.f32 %v549, %v619
        %v621 = vpop.f32.mrb[0].mxu0
        %v622 = vadd.f32 %v549, %v621
        %v623 = vpop.f32.mrb[0].mxu0
        %v624 = vadd.f32 %v554, %v623
        %v625 = vpop.f32.mrb[0].mxu0
        %v626 = vadd.f32 %v554, %v625
        %627 = vmatprep.mubr.bf16.mxu0 0
        %628 = vmatmul.mubr.bf16.gmra.mrb[0].mxu0 %v583
        %v629 = vpop.f32.mrb[0].mxu0
        %v630 = vadd.f32 %v559, %v629
        %v631 = vpop.f32.mrb[0].mxu0
        %v632 = vadd.f32 %v559, %v631
        %v633 = vpop.f32.mrb[0].mxu0
        %v634 = vpop.f32.mrb[0].mxu0
        %635 = vdwg.mxu0
        %v636 = vmax.f32 %v620, 0.0
        %v637 = vmax.f32 %v622, 0.0
        %v638 = vmax.f32 %v624, 0.0
        %v639 = vmax.f32 %v626, 0.0
        %v640 = vmax.f32 %v630, 0.0
        %v641 = vmax.f32 %v632, 0.0
        %v642 = vpack.c.bf16 %v638, %v636
        %v643 = vpack.c.bf16 %v639, %v637
        %v644 = vpack.c.bf16 %v640, %v640
        %v645 = vpack.c.bf16 %v641, %v641
        %v646 = vld [vmem:[%s4] sm:$0xf]
        %v647 = vld [vmem:[%s4 + $0x4] sm:$0xf]
        %v648 = vld [vmem:[%s4 + $0x8] sm:$0x3]
        %v649 = vld [vmem:[%s5] sm:$0xf]
        %v650 = vld [vmem:[%s5 + $0x4] sm:$0xf]
        %v651 = vld [vmem:[%s5 + $0x8] sm:$0x3]
        %v655 = vunpack.c.l.b16 %v649
        %v656 = vunpack.c.l.b16 %v650
        %v657 = vunpack.c.l.b16 %v651
        %v658 = vpack.c.b16 %v656, %v655
        %v659 = vpack.c.b16 %v657, %v657
        %vm660 = vcmask 162816
        %v662 = vsel %vm660, %v658, 0
        %v665 = vsel %vm660, %v659, 0
        %vm667 = vcmask 1041408
        %v669 = vsel %vm667, %v644, 0
        %v672 = vsel %vm667, %v645, 0
        %674 = vmatprep.subr.bf16.mxu0 %v643
        %675 = vmatpush1.bf16.msra.mxu0 %v642
        %676 = vmatprep.subr.bf16.mxu0 %v672
        %677 = vmatpush1.bf16.msra.mxu0 %v669
        %678 = vmatprep.subr.bf16.mxu0 0
        %679 = vmatpush1.bf16.msra.mxu0 0
        %680 = vmatprep.subr.bf16.mxu0 0
        %681 = vmatpush1.bf16.msra.mxu0 0
        %682 = vmatprep.subr.bf16.mxu0 0
        %683 = vmatpush1.bf16.msra.mxu0 0
        %684 = vmatprep.subr.bf16.mxu0 0
        %685 = vmatpush1.bf16.msra.mxu0 0
        %686 = vmatprep.subr.bf16.mxu0 0
        %687 = vmatpush1.bf16.msra.mxu0 0
        %688 = vmatprep.subr.bf16.mxu0 0
        %689 = vmatpush1.bf16.msra.mxu0 0
        %690 = vmatprep.subr.bf16.mxu0 0
        %691 = vmatpush1.bf16.msra.mxu0 0
        %692 = vmatprep.subr.bf16.mxu0 0
        %693 = vmatpush1.bf16.msra.mxu0 0
        %694 = vmatprep.subr.bf16.mxu0 0
        %695 = vmatpush1.bf16.msra.mxu0 0
        %696 = vmatprep.subr.bf16.mxu0 0
        %697 = vmatpush1.bf16.msra.mxu0 0
        %698 = vmatprep.subr.bf16.mxu0 0
        %699 = vmatpush1.bf16.msra.mxu0 0
        %700 = vmatprep.subr.bf16.mxu0 0
        %701 = vmatpush1.bf16.msra.mxu0 0
        %702 = vmatprep.subr.bf16.mxu0 0
        %703 = vmatpush1.bf16.msra.mxu0 0
        %704 = vmatprep.subr.bf16.mxu0 0
        %705 = vmatpush1.bf16.msra.mxu0 0
        %706 = vmatprep.mubr.bf16.mxu0 0
        %707 = vmatmul.mubr.bf16.gmra.mrb[0].mxu0 %v662
        %v708 = vpop.f32.mrb[0].mxu0
        %v709 = vadd.f32 0.0, %v708
        %v710 = vpop.f32.mrb[0].mxu0
        %v711 = vadd.f32 0.0, %v710
        %v712 = vpop.f32.mrb[0].mxu0
        %v713 = vadd.f32 0.0, %v712
        %v714 = vpop.f32.mrb[0].mxu0
        %v715 = vadd.f32 0.0, %v714
        %716 = vmatprep.mubr.bf16.mxu0 0
        %717 = vmatmul.mubr.bf16.gmra.mrb[0].mxu0 %v665
        %v718 = vpop.f32.mrb[0].mxu0
        %v719 = vadd.f32 0.0, %v718
        %v720 = vpop.f32.mrb[0].mxu0
        %v721 = vadd.f32 0.0, %v720
        %v722 = vpop.f32.mrb[0].mxu0
        %v723 = vpop.f32.mrb[0].mxu0
        %724 = vdwg.mxu0
        %v728 = vunpack.c.l.b16 %v646
        %v729 = vunpack.c.l.b16 %v647
        %v730 = vunpack.c.l.b16 %v648
        %v731 = vpack.c.b16 %v729, %v728
        %v732 = vpack.c.b16 %v730, %v730
        %v734 = vsel %vm660, %v731, 0
        %v737 = vsel %vm660, %v732, 0
        %v740 = vsel %vm667, %v536, 0
        %v743 = vsel %vm667, %v537, 0
        %745 = vmatprep.subr.bf16.mxu0 %v535
        %746 = vmatpush1.bf16.msra.mxu0 %v534
        %747 = vmatprep.subr.bf16.mxu0 %v743
        %748 = vmatpush1.bf16.msra.mxu0 %v740
        %749 = vmatprep.subr.bf16.mxu0 0
        %750 = vmatpush1.bf16.msra.mxu0 0
        %751 = vmatprep.subr.bf16.mxu0 0
        %752 = vmatpush1.bf16.msra.mxu0 0
        %753 = vmatprep.subr.bf16.mxu0 0
        %754 = vmatpush1.bf16.msra.mxu0 0
        %755 = vmatprep.subr.bf16.mxu0 0
        %756 = vmatpush1.bf16.msra.mxu0 0
        %757 = vmatprep.subr.bf16.mxu0 0
        %758 = vmatpush1.bf16.msra.mxu0 0
        %759 = vmatprep.subr.bf16.mxu0 0
        %760 = vmatpush1.bf16.msra.mxu0 0
        %761 = vmatprep.subr.bf16.mxu0 0
        %762 = vmatpush1.bf16.msra.mxu0 0
        %763 = vmatprep.subr.bf16.mxu0 0
        %764 = vmatpush1.bf16.msra.mxu0 0
        %765 = vmatprep.subr.bf16.mxu0 0
        %766 = vmatpush1.bf16.msra.mxu0 0
        %767 = vmatprep.subr.bf16.mxu0 0
        %768 = vmatpush1.bf16.msra.mxu0 0
        %769 = vmatprep.subr.bf16.mxu0 0
        %770 = vmatpush1.bf16.msra.mxu0 0
        %771 = vmatprep.subr.bf16.mxu0 0
        %772 = vmatpush1.bf16.msra.mxu0 0
        %773 = vmatprep.subr.bf16.mxu0 0
        %774 = vmatpush1.bf16.msra.mxu0 0
        %775 = vmatprep.subr.bf16.mxu0 0
        %776 = vmatpush1.bf16.msra.mxu0 0
        %777 = vmatprep.mubr.bf16.mxu0 0
        %778 = vmatmul.mubr.bf16.gmra.mrb[0].mxu0 %v734
        %v779 = vpop.f32.mrb[0].mxu0
        %v780 = vadd.f32 %v709, %v779
        %v781 = vpop.f32.mrb[0].mxu0
        %v782 = vadd.f32 %v711, %v781
        %v783 = vpop.f32.mrb[0].mxu0
        %v784 = vadd.f32 %v713, %v783
        %v785 = vpop.f32.mrb[0].mxu0
        %v786 = vadd.f32 %v715, %v785
        %787 = vmatprep.mubr.bf16.mxu0 0
        %788 = vmatmul.mubr.bf16.gmra.mrb[0].mxu0 %v737
        %v789 = vpop.f32.mrb[0].mxu0
        %v790 = vadd.f32 %v719, %v789
        %v791 = vpop.f32.mrb[0].mxu0
        %v792 = vadd.f32 %v721, %v791
        %v793 = vpop.f32.mrb[0].mxu0
        %v794 = vpop.f32.mrb[0].mxu0
        %795 = vdwg.mxu0
        %v796 = vld [vmem:[%s8] sm:$0xff]
        %v797 = vld [vmem:[%s8 + $0x8] sm:$0xff]
        %v798 = vld [vmem:[%s8 + $0x10] sm:$0xf]
        %800 = vset.pattern.permute.xlu0 0
        %801 = vperm.xlu0 %800, %v796
        %v802 = vpop.permute.xlu0 %801
        %805 = vset.pattern.permute.xlu0 0
        %806 = vperm.xlu0 %805, %v797
        %v807 = vpop.permute.xlu0 %806
        %810 = vset.pattern.permute.xlu0 0
        %811 = vperm.xlu0 %810, %v798
        %v812 = vpop.permute.xlu0 %811
        %v814 = vadd.f32 %v780, %v802
        %v815 = vadd.f32 %v782, %v802
        %v816 = vadd.f32 %v784, %v807
        %v817 = vadd.f32 %v786, %v807
        %v818 = vadd.f32 %v790, %v812
        %v819 = vadd.f32 %v792, %v812
        %v820 = vpack.c.bf16 %v816, %v814
        %v821 = vpack.c.bf16 %v817, %v815
        %v822 = vpack.c.bf16 %v818, %v818
        %v823 = vpack.c.bf16 %v819, %v819
        %v828 = vunpack.c.l.b16 %v820
        %v829 = vunpack.c.l.b16 %v821
        %v830 = vunpack.c.h.b16 %v820
        %v831 = vunpack.c.h.b16 %v821
        %v832 = vunpack.c.l.b16 %v822
        %v833 = vunpack.c.l.b16 %v823
        %v834 = vpack.c.b16 %v829, %v828
        %v835 = vpack.c.b16 %v831, %v830
        %v836 = vpack.c.b16 %v833, %v832
        %840 = vst [vmem:[%s424] sm:$0xff] %v834
        %841 = vst [vmem:[%s424 + $0x8] sm:$0xff] %v835
        %842 = vst [vmem:[%s424 + $0x10] sm:$0x33] %v836
        %s843 = sand.u32 %s227, 1
        %s844 = sand.u32 %s227, 1
        %s845 = smul.addr %s844, 24
        %s846 = scalar_lea.vmem [#allocation4], %s845
        // Predicated region
        $region133: #{generator_forward.10} parent=123 // pred_check
          %p847 = pneg %p237
        $region134: #{generator_forward.10} parent=123 // pred_check_branch
          %849 = sbr.rel (%p847) target = $region136
        $region135: #{generator_forward.10} parent=123 // pred_region
          %s850 = smul.u32 2, %s20
          %s851 = smul.addr %s850, 4
          %s852 = scalar_lea.vmem %s9, %s851
          // Predicated region
          $region137: #{generator_forward.10} parent=135 // pred_check
            _
          $region138: #{generator_forward.10} parent=135 // pred_check_branch
            %854 = sbr.rel (0) target = $region140
          $region139: #{generator_forward.10} parent=135 // pred_region
            // Predicated region
            $region141: #{generator_forward.10} parent=139 // pred_check
              _
            $region142: #{generator_forward.10} parent=139 // pred_check_branch
              %856 = sbr.rel (0) target = $region144
            $region143: #{generator_forward.10} parent=139 // pred_region
              // Predicated region
              $region156: #{generator_forward.10} parent=143 // pred_check
                _
              $region157: #{generator_forward.10} parent=143 // pred_check_branch
                %875 = sbr.rel (0) target = $region159
              $region158: #{generator_forward.10} parent=143 // pred_region
                loop: start=0, step=1, limit=1
                $region160: #{generator_forward.10} parent=158 // loop_pre_header
                  _
                $region161: #{generator_forward.10} parent=158 // loop_header
                  %s877 = sphi 0, %s881
                  %p878 = scmp.ge.s32.totalorder %s877, 1
                  %s882 = sphi %s846, %s846
                  %s883 = sphi %s852, %s852
                $region162: #{generator_forward.10} parent=158 // loop_header_branch
                  %880 = sbr.rel (%p878) target = $region166
                $region163: #{generator_forward.10} parent=158 // loop_body
                  %v884 = vld [vmem:[%s882] sm:$0xff]
                  %885 = vst [vmem:[%s883] sm:$0xff] %v884
                  %v886 = vld [vmem:[%s882 + $0x8] sm:$0xff]
                  %887 = vst [vmem:[%s883 + $0x10] sm:$0xff] %v886
                  %v888 = vld [vmem:[%s882 + $0x10] sm:$0xff]
                  %889 = vst [vmem:[%s883 + $0x20] sm:$0xff] %v888
                $region164: #{generator_forward.10} parent=158 // loop_footer
                  %s881 = sadd.s32 1, %s877
                $region165: #{generator_forward.10} parent=158 // loop_footer_branch
                  %876 = sbr.rel target = $region161
                $region166: #{generator_forward.10} parent=158 // loop_exit
                  _
              $region159: #{generator_forward.10} parent=143 // pred_fallthru
                _
              // Predicated region
              $region167: #{generator_forward.10} parent=143 // pred_check
                _
              $region168: #{generator_forward.10} parent=143 // pred_check_branch
                %891 = sbr.rel target = $region170
              $region169: #{generator_forward.10} parent=143 // pred_region
                _
              $region170: #{generator_forward.10} parent=143 // pred_fallthru
                _
            $region144: #{generator_forward.10} parent=139 // pred_fallthru
              _
            // Predicated region
            $region145: #{generator_forward.10} parent=139 // pred_check
              _
            $region146: #{generator_forward.10} parent=139 // pred_check_branch
              %858 = sbr.rel target = $region148
            $region147: #{generator_forward.10} parent=139 // pred_region
              loop: start=0, step=1, limit=1
              $region149: #{generator_forward.10} parent=147 // loop_pre_header
                _
              $region150: #{generator_forward.10} parent=147 // loop_header
                %s861 = sphi 0, %s865
                %p862 = scmp.ge.s32.totalorder %s861, 1
                %s866 = sphi %s846, %s846
                %s867 = sphi %s852, %s852
              $region151: #{generator_forward.10} parent=147 // loop_header_branch
                %864 = sbr.rel (%p862) target = $region155
              $region152: #{generator_forward.10} parent=147 // loop_body
                %v868 = vld [vmem:[%s866] sm:$0xff]
                %869 = vst [vmem:[%s867] sm:$0xff] %v868
                %v870 = vld [vmem:[%s866 + $0x8] sm:$0xff]
                %871 = vst [vmem:[%s867 + $0x10] sm:$0xff] %v870
                %v872 = vld [vmem:[%s866 + $0x10] sm:$0xff]
                %873 = vst [vmem:[%s867 + $0x20] sm:$0xff] %v872
              $region153: #{generator_forward.10} parent=147 // loop_footer
                %s865 = sadd.s32 1, %s861
              $region154: #{generator_forward.10} parent=147 // loop_footer_branch
                %860 = sbr.rel target = $region150
              $region155: #{generator_forward.10} parent=147 // loop_exit
                _
            $region148: #{generator_forward.10} parent=139 // pred_fallthru
              _
          $region140: #{generator_forward.10} parent=135 // pred_fallthru
            _
          %892 = vnop
        $region136: #{generator_forward.10} parent=123 // pred_fallthru
          _
      $region124: #{generator_forward.10} parent=5 // pred_fallthru
        _
      %p893 = scmp.le.s32.totalorder 2, %s15
      // Predicated region
      $region171: #{generator_forward.10} parent=5 // pred_check
        %p894 = pneg %p893
      $region172: #{generator_forward.10} parent=5 // pred_check_branch
        %896 = sbr.rel (%p894) target = $region174
      $region173: #{generator_forward.10} parent=5 // pred_region
        %s897 = ssub.s32 %s15, 2
        // Predicated region
        $region175: #{generator_forward.10} parent=173 // pred_check
          %p898 = pneg %p243
        $region176: #{generator_forward.10} parent=173 // pred_check_branch
          %900 = sbr.rel (%p898) target = $region178
        $region177: #{generator_forward.10} parent=173 // pred_region
          %s901 = sand.u32 %s228, 1
          %s902 = sand.u32 %s228, 1
          %s903 = smul.addr %s902, 24
          %s904 = scalar_lea.vmem [#allocation4], %s903
        $region178: #{generator_forward.10} parent=173 // pred_fallthru
          _
      $region174: #{generator_forward.10} parent=5 // pred_fallthru
        _
    $region6: #{generator_forward.10} parent=1 // loop_footer
      %s19 = sadd.s32 1, %s15
    $region7: #{generator_forward.10} parent=1 // loop_footer_branch
      %14 = sbr.rel target = $region3
    $region8: #{generator_forward.10} parent=1 // loop_exit
      _

// kernel: generator_forward.18
$region0: #{generator_forward.18}
  #allocation0 [shape = 'u32[]', space=smem, size = 0x4, offset = 0x4, fixed_abs, tag = 'smem constant byte address 0x4 - core index']
  #allocation1 [shape = 'u32[144,128]{1,0:T(1,128)}', space=vmem, size = 0x12000, scoped, tag = 'internal scratch']
  %s0 = inlined_call_operand.vmem [shape: bf16[16,512], index: 0, kind: input, shape index: {}]
  %s1 = inlined_call_operand.vmem [shape: bf16[20,512], index: 1, kind: input, shape index: {}]
  %s2 = inlined_call_operand.vmem [shape: bf16[16,16], index: 2, kind: input, shape index: {}]
  %s3 = inlined_call_operand.vmem [shape: bf16[16,20], index: 3, kind: input, shape index: {}]
  %s4 = inlined_call_operand.vmem [shape: f32[16,1], index: 4, kind: input, shape index: {}]
  %s5 = inlined_call_operand.vmem [shape: bf16[16,512], index: 5, kind: output, shape index: {}]
  %s6 = sld [smem:[#allocation0]]
  $region163: #{generator_forward.18} parent=0
    _
  %s8 = ssub.s32 1, %s6
  %s9 = scalar_select 0, %s8, %s6
  $region1: #{generator_forward.18} parent=0
    #allocation2 [shape = 'u8[16384]{0}', space=vmem, size = 0x4000, scoped, tag = 'input window, operand 0']
    #allocation3 [shape = 'u8[24576]{0}', space=vmem, size = 0x6000, scoped, tag = 'input window, operand 1']
    #allocation4 [shape = 'u8[16384]{0}', space=vmem, size = 0x4000, scoped, tag = 'output window, operand 0']
    loop: start=0, step=1, limit=4
    $region2: #{generator_forward.18} parent=1 // loop_pre_header
      _
    $region3: #{generator_forward.18} parent=1 // loop_header
      %s11 = sphi 0, %s15
      %p12 = scmp.ge.s32.totalorder %s11, 4
      %s21 = sphi 0, %s23
      %s24 = sphi 0, %s21
      %s25 = sphi 0, %s24
      %s41 = sphi 0, %s25
      %s47 = sphi 0, %s49
      %s50 = sphi 0, %s47
      %s51 = sphi 0, %s50
      %s67 = sphi 0, %s51
      %s71 = sphi 0, %s71
      %s73 = sphi 0, %s71
      %s74 = sphi 0, %s73
      %s88 = sphi 0, %s74
      %s92 = sphi 0, %s92
      %s94 = sphi 0, %s92
      %s95 = sphi 0, %s94
      %s109 = sphi 0, %s95
      %s113 = sphi 0, %s113
      %s115 = sphi 0, %s113
      %s116 = sphi 0, %s115
      %s130 = sphi 0, %s116
      %s136 = sphi 0, %s138
      %s139 = sphi 0, %s136
      %s140 = sphi 0, %s139
      %s156 = sphi 0, %s140
    $region4: #{generator_forward.18} parent=1 // loop_header_branch
      %14 = sbr.rel (%p12) target = $region8
    $region5: #{generator_forward.18} parent=1 // loop_body
      %s16 = ssub.s32 %s11, 1
      %s17 = ssub.s32 %s11, 2
      %s18 = sadd.s32 %s11, 1
      %s19 = ssub.s32 %s11, %s18
      %p20 = scmp.eq.s32.totalorder %s19, 0
      %s22 = sadd.s32 %s21, 1
      %s23 = scalar_select %p20, %s21, %s22
      %p26 = pneg %p20
      %p27 = scmp.eq.s32.totalorder %s11, 1
      %p28 = por %p26, %p27
      %p29 = scmp.ne.s32.totalorder %s21, %s24
      %p30 = scmp.eq.s32.totalorder %s11, 0
      %p31 = por %p29, %p30
      %p32 = scmp.ne.s32.totalorder %s21, %s24
      %p33 = scmp.eq.s32.totalorder %s16, 1
      %p34 = por %p32, %p33
      %p35 = scmp.ne.s32.totalorder %s24, %s25
      %p36 = scmp.eq.s32.totalorder %s16, 0
      %p37 = por %p35, %p36
      %p38 = scmp.ne.s32.totalorder %s24, %s25
      %p39 = scmp.eq.s32.totalorder %s17, 1
      %p40 = por %p38, %p39
      %p42 = scmp.ne.s32.totalorder %s25, %s41
      %p43 = scmp.eq.s32.totalorder %s17, 0
      %p44 = por %p42, %p43
      %s45 = ssub.s32 %s11, %s18
      %p46 = scmp.eq.s32.totalorder %s45, 0
      %s48 = sadd.s32 %s47, 1
      %s49 = scalar_select %p46, %s47, %s48
      %p52 = pneg %p46
      %p53 = scmp.eq.s32.totalorder %s11, 1
      %p54 = por %p52, %p53
      %p55 = scmp.ne.s32.totalorder %s47, %s50
      %p56 = scmp.eq.s32.totalorder %s11, 0
      %p57 = por %p55, %p56
      %p58 = scmp.ne.s32.totalorder %s47, %s50
      %p59 = scmp.eq.s32.totalorder %s16, 1
      %p60 = por %p58, %p59
      %p61 = scmp.ne.s32.totalorder %s50, %s51
      %p62 = scmp.eq.s32.totalorder %s16, 0
      %p63 = por %p61, %p62
      %p64 = scmp.ne.s32.totalorder %s50, %s51
      %p65 = scmp.eq.s32.totalorder %s17, 1
      %p66 = por %p64, %p65
      %p68 = scmp.ne.s32.totalorder %s51, %s67
      %p69 = scmp.eq.s32.totalorder %s17, 0
      %p70 = por %p68, %p69
      %s72 = sadd.s32 %s71, 1
      %p75 = scmp.eq.s32.totalorder %s11, 1
      %p76 = scmp.ne.s32.totalorder %s71, %s73
      %p77 = scmp.eq.s32.totalorder %s11, 0
      %p78 = por %p76, %p77
      %p79 = scmp.ne.s32.totalorder %s71, %s73
      %p80 = scmp.eq.s32.totalorder %s16, 1
      %p81 = por %p79, %p80
      %p82 = scmp.ne.s32.totalorder %s73, %s74
      %p83 = scmp.eq.s32.totalorder %s16, 0
      %p84 = por %p82, %p83
      %p85 = scmp.ne.s32.totalorder %s73, %s74
      %p86 = scmp.eq.s32.totalorder %s17, 1
      %p87 = por %p85, %p86
      %p89 = scmp.ne.s32.totalorder %s74, %s88
      %p90 = scmp.eq.s32.totalorder %s17, 0
      %p91 = por %p89, %p90
      %s93 = sadd.s32 %s92, 1
      %p96 = scmp.eq.s32.totalorder %s11, 1
      %p97 = scmp.ne.s32.totalorder %s92, %s94
      %p98 = scmp.eq.s32.totalorder %s11, 0
      %p99 = por %p97, %p98
      %p100 = scmp.ne.s32.totalorder %s92, %s94
      %p101 = scmp.eq.s32.totalorder %s16, 1
      %p102 = por %p100, %p101
      %p103 = scmp.ne.s32.totalorder %s94, %s95
      %p104 = scmp.eq.s32.totalorder %s16, 0
      %p105 = por %p103, %p104
      %p106 = scmp.ne.s32.totalorder %s94, %s95
      %p107 = scmp.eq.s32.totalorder %s17, 1
      %p108 = por %p106, %p107
      %p110 = scmp.ne.s32.totalorder %s95, %s109
      %p111 = scmp.eq.s32.totalorder %s17, 0
      %p112 = por %p110, %p111
      %s114 = sadd.s32 %s113, 1
      %p117 = scmp.eq.s32.totalorder %s11, 1
      %p118 = scmp.ne.s32.totalorder %s113, %s115
      %p119 = scmp.eq.s32.totalorder %s11, 0
      %p120 = por %p118, %p119
      %p121 = scmp.ne.s32.totalorder %s113, %s115
      %p122 = scmp.eq.s32.totalorder %s16, 1
      %p123 = por %p121, %p122
      %p124 = scmp.ne.s32.totalorder %s115, %s116
      %p125 = scmp.eq.s32.totalorder %s16, 0
      %p126 = por %p124, %p125
      %p127 = scmp.ne.s32.totalorder %s115, %s116
      %p128 = scmp.eq.s32.totalorder %s17, 1
      %p129 = por %p127, %p128
      %p131 = scmp.ne.s32.totalorder %s116, %s130
      %p132 = scmp.eq.s32.totalorder %s17, 0
      %p133 = por %p131, %p132
      %s134 = ssub.s32 %s11, %s18
      %p135 = scmp.eq.s32.totalorder %s134, 0
      %s137 = sadd.s32 %s136, 1
      %s138 = scalar_select %p135, %s136, %s137
      %p141 = pneg %p135
      %p142 = scmp.eq.s32.totalorder %s11, 1
      %p143 = por %p141, %p142
      %p144 = scmp.ne.s32.totalorder %s136, %s139
      %p145 = scmp.eq.s32.totalorder %s11, 0
      %p146 = por %p144, %p145
      %p147 = scmp.ne.s32.totalorder %s136, %s139
      %p148 = scmp.eq.s32.totalorder %s16, 1
      %p149 = por %p147, %p148
      %p150 = scmp.ne.s32.totalorder %s139, %s140
      %p151 = scmp.eq.s32.totalorder %s16, 0
      %p152 = por %p150, %p151
      %p153 = scmp.ne.s32.totalorder %s139, %s140
      %p154 = scmp.eq.s32.totalorder %s17, 1
      %p155 = por %p153, %p154
      %p157 = scmp.ne.s32.totalorder %s140, %s156
      %p158 = scmp.eq.s32.totalorder %s17, 0
      %p159 = por %p157, %p158
      %p160 = scmp.le.s32.totalorder 1, %s11
      %p161 = scmp.lt.s32.totalorder %s11, 3
      %p162 = pnand %p160, %p161
      %p163 = pneg %p162
      // Predicated region
      $region9: #{generator_forward.18} parent=5 // pred_check
        _
      $region10: #{generator_forward.18} parent=5 // pred_check_branch
        %165 = sbr.rel (%p162) target = $region12
      $region11: #{generator_forward.18} parent=5 // pred_region
        %s166 = ssub.s32 %s11, 1
        // Predicated region
        $region13: #{generator_forward.18} parent=11 // pred_check
          %p167 = pneg %p84
        $region14: #{generator_forward.18} parent=11 // pred_check_branch
          %169 = sbr.rel (%p167) target = $region16
        $region15: #{generator_forward.18} parent=11 // pred_region
          _
        $region16: #{generator_forward.18} parent=11 // pred_fallthru
          _
        // Predicated region
        $region17: #{generator_forward.18} parent=11 // pred_check
          %p170 = pneg %p105
        $region18: #{generator_forward.18} parent=11 // pred_check_branch
          %172 = sbr.rel (%p170) target = $region20
        $region19: #{generator_forward.18} parent=11 // pred_region
          _
        $region20: #{generator_forward.18} parent=11 // pred_fallthru
          _
        // Predicated region
        $region21: #{generator_forward.18} parent=11 // pred_check
          %p173 = pneg %p126
        $region22: #{generator_forward.18} parent=11 // pred_check_branch
          %175 = sbr.rel (%p173) target = $region24
        $region23: #{generator_forward.18} parent=11 // pred_region
          _
        $region24: #{generator_forward.18} parent=11 // pred_fallthru
          _
      $region12: #{generator_forward.18} parent=5 // pred_fallthru
        _
      %p176 = scmp.lt.s32.totalorder %s11, 2
      // Predicated region
      $region25: #{generator_forward.18} parent=5 // pred_check
        %p177 = pneg %p176
      $region26: #{generator_forward.18} parent=5 // pred_check_branch
        %179 = sbr.rel (%p177) target = $region28
      $region27: #{generator_forward.18} parent=5 // pred_region
        // Predicated region
        $region29: #{generator_forward.18} parent=27 // pred_check
          %p180 = pneg %p31
        $region30: #{generator_forward.18} parent=27 // pred_check_branch
          %182 = sbr.rel (%p180) target = $region32
        $region31: #{generator_forward.18} parent=27 // pred_region
          %s183 = sand.u32 %s21, 1
          %s184 = sand.u32 %s21, 1
          %s185 = smul.addr %s184, 16
          %s186 = scalar_lea.vmem [#allocation2], %s185
          %s187 = smul.u32 2, %s11
          %s188 = smul.addr %s187, 4
          %s189 = scalar_lea.vmem %s0, %s188
          // Predicated region
          $region33: #{generator_forward.18} parent=31 // pred_check
            _
          $region34: #{generator_forward.18} parent=31 // pred_check_branch
            %191 = sbr.rel (0) target = $region36
          $region35: #{generator_forward.18} parent=31 // pred_region
            // Predicated region
            $region37: #{generator_forward.18} parent=35 // pred_check
              _
            $region38: #{generator_forward.18} parent=35 // pred_check_branch
              %193 = sbr.rel (0) target = $region40
            $region39: #{generator_forward.18} parent=35 // pred_region
              // Predicated region
              $region52: #{generator_forward.18} parent=39 // pred_check
                _
              $region53: #{generator_forward.18} parent=39 // pred_check_branch
                %210 = sbr.rel (0) target = $region55
              $region54: #{generator_forward.18} parent=39 // pred_region
                loop: start=0, step=1, limit=1
                $region56: #{generator_forward.18} parent=54 // loop_pre_header
                  _
                $region57: #{generator_forward.18} parent=54 // loop_header
                  %s212 = sphi 0, %s216
                  %p213 = scmp.ge.s32.totalorder %s212, 1
                  %s217 = sphi %s189, %s189
                  %s218 = sphi %s186, %s186
                $region58: #{generator_forward.18} parent=54 // loop_header_branch
                  %215 = sbr.rel (%p213) target = $region62
                $region59: #{generator_forward.18} parent=54 // loop_body
                  %v219 = vld [vmem:[%s217] sm:$0xff]
                  %220 = vst [vmem:[%s218] sm:$0xff] %v219
                  %v221 = vld [vmem:[%s217 + $0x10] sm:$0xff]
                  %222 = vst [vmem:[%s218 + $0x8] sm:$0xff] %v221
                $region60: #{generator_forward.18} parent=54 // loop_footer
                  %s216 = sadd.s32 1, %s212
                $region61: #{generator_forward.18} parent=54 // loop_footer_branch
                  %211 = sbr.rel target = $region57
                $region62: #{generator_forward.18} parent=54 // loop_exit
                  _
              $region55: #{generator_forward.18} parent=39 // pred_fallthru
                _
              // Predicated region
              $region63: #{generator_forward.18} parent=39 // pred_check
                _
              $region64: #{generator_forward.18} parent=39 // pred_check_branch
                %224 = sbr.rel target = $region66
              $region65: #{generator_forward.18} parent=39 // pred_region
                _
              $region66: #{generator_forward.18} parent=39 // pred_fallthru
                _
            $region40: #{generator_forward.18} parent=35 // pred_fallthru
              _
            // Predicated region
            $region41: #{generator_forward.18} parent=35 // pred_check
              _
            $region42: #{generator_forward.18} parent=35 // pred_check_branch
              %195 = sbr.rel target = $region44
            $region43: #{generator_forward.18} parent=35 // pred_region
              loop: start=0, step=1, limit=1
              $region45: #{generator_forward.18} parent=43 // loop_pre_header
                _
              $region46: #{generator_forward.18} parent=43 // loop_header
                %s198 = sphi 0, %s202
                %p199 = scmp.ge.s32.totalorder %s198, 1
                %s203 = sphi %s189, %s189
                %s204 = sphi %s186, %s186
              $region47: #{generator_forward.18} parent=43 // loop_header_branch
                %201 = sbr.rel (%p199) target = $region51
              $region48: #{generator_forward.18} parent=43 // loop_body
                %v205 = vld [vmem:[%s203] sm:$0xff]
                %206 = vst [vmem:[%s204] sm:$0xff] %v205
                %v207 = vld [vmem:[%s203 + $0x10] sm:$0xff]
                %208 = vst [vmem:[%s204 + $0x8] sm:$0xff] %v207
              $region49: #{generator_forward.18} parent=43 // loop_footer
                %s202 = sadd.s32 1, %s198
              $region50: #{generator_forward.18} parent=43 // loop_footer_branch
                %197 = sbr.rel target = $region46
              $region51: #{generator_forward.18} parent=43 // loop_exit
                _
            $region44: #{generator_forward.18} parent=35 // pred_fallthru
              _
          $region36: #{generator_forward.18} parent=31 // pred_fallthru
            _
          %225 = vnop
        $region32: #{generator_forward.18} parent=27 // pred_fallthru
          _
        // Predicated region
        $region67: #{generator_forward.18} parent=27 // pred_check
          %p226 = pneg %p57
        $region68: #{generator_forward.18} parent=27 // pred_check_branch
          %228 = sbr.rel (%p226) target = $region70
        $region69: #{generator_forward.18} parent=27 // pred_region
          %s229 = sand.u32 %s47, 1
          %s230 = sand.u32 %s47, 1
          %s231 = smul.addr %s230, 24
          %s232 = scalar_lea.vmem [#allocation3], %s231
          %s233 = smul.u32 2, %s11
          %s234 = smul.addr %s233, 4
          %s235 = scalar_lea.vmem %s1, %s234
          // Predicated region
          $region71: #{generator_forward.18} parent=69 // pred_check
            _
          $region72: #{generator_forward.18} parent=69 // pred_check_branch
            %237 = sbr.rel (0) target = $region74
          $region73: #{generator_forward.18} parent=69 // pred_region
            // Predicated region
            $region75: #{generator_forward.18} parent=73 // pred_check
              _
            $region76: #{generator_forward.18} parent=73 // pred_check_branch
              %239 = sbr.rel (0) target = $region78
            $region77: #{generator_forward.18} parent=73 // pred_region
              // Predicated region
              $region90: #{generator_forward.18} parent=77 // pred_check
                _
              $region91: #{generator_forward.18} parent=77 // pred_check_branch
                %258 = sbr.rel (0) target = $region93
              $region92: #{generator_forward.18} parent=77 // pred_region
                loop: start=0, step=1, limit=1
                $region94: #{generator_forward.18} parent=92 // loop_pre_header
                  _
                $region95: #{generator_forward.18} parent=92 // loop_header
                  %s260 = sphi 0, %s264
                  %p261 = scmp.ge.s32.totalorder %s260, 1
                  %s265 = sphi %s235, %s235
                  %s266 = sphi %s232, %s232
                $region96: #{generator_forward.18} parent=92 // loop_header_branch
                  %263 = sbr.rel (%p261) target = $region100
                $region97: #{generator_forward.18} parent=92 // loop_body
                  %v267 = vld [vmem:[%s265] sm:$0xff]
                  %268 = vst [vmem:[%s266] sm:$0xff] %v267
                  %v269 = vld [vmem:[%s265 + $0x10] sm:$0xff]
                  %270 = vst [vmem:[%s266 + $0x8] sm:$0xff] %v269
                  %v271 = vld [vmem:[%s265 + $0x20] sm:$0xff]
                  %272 = vst [vmem:[%s266 + $0x10] sm:$0xff] %v271
                $region98: #{generator_forward.18} parent=92 // loop_footer
                  %s264 = sadd.s32 1, %s260
                $region99: #{generator_forward.18} parent=92 // loop_footer_branch
                  %259 = sbr.rel target = $region95
                $region100: #{generator_forward.18} parent=92 // loop_exit
                  _
              $region93: #{generator_forward.18} parent=77 // pred_fallthru
                _
              // Predicated region
              $region101: #{generator_forward.18} parent=77 // pred_check
                _
              $region102: #{generator_forward.18} parent=77 // pred_check_branch
                %274 = sbr.rel target = $region104
              $region103: #{generator_forward.18} parent=77 // pred_region
                _
              $region104: #{generator_forward.18} parent=77 // pred_fallthru
                _
            $region78: #{generator_forward.18} parent=73 // pred_fallthru
              _
            // Predicated region
            $region79: #{generator_forward.18} parent=73 // pred_check
              _
            $region80: #{generator_forward.18} parent=73 // pred_check_branch
              %241 = sbr.rel target = $region82
            $region81: #{generator_forward.18} parent=73 // pred_region
              loop: start=0, step=1, limit=1
              $region83: #{generator_forward.18} parent=81 // loop_pre_header
                _
              $region84: #{generator_forward.18} parent=81 // loop_header
                %s244 = sphi 0, %s248
                %p245 = scmp.ge.s32.totalorder %s244, 1
                %s249 = sphi %s235, %s235
                %s250 = sphi %s232, %s232
              $region85: #{generator_forward.18} parent=81 // loop_header_branch
                %247 = sbr.rel (%p245) target = $region89
              $region86: #{generator_forward.18} parent=81 // loop_body
                %v251 = vld [vmem:[%s249] sm:$0xff]
                %252 = vst [vmem:[%s250] sm:$0xff] %v251
                %v253 = vld [vmem:[%s249 + $0x10] sm:$0xff]
                %254 = vst [vmem:[%s250 + $0x8] sm:$0xff] %v253
                %v255 = vld [vmem:[%s249 + $0x20] sm:$0xff]
                %256 = vst [vmem:[%s250 + $0x10] sm:$0xff] %v255
              $region87: #{generator_forward.18} parent=81 // loop_footer
                %s248 = sadd.s32 1, %s244
              $region88: #{generator_forward.18} parent=81 // loop_footer_branch
                %243 = sbr.rel target = $region84
              $region89: #{generator_forward.18} parent=81 // loop_exit
                _
            $region82: #{generator_forward.18} parent=73 // pred_fallthru
              _
          $region74: #{generator_forward.18} parent=69 // pred_fallthru
            _
          %275 = vnop
        $region70: #{generator_forward.18} parent=27 // pred_fallthru
          _
      $region28: #{generator_forward.18} parent=5 // pred_fallthru
        _
      %p276 = scmp.le.s32.totalorder 1, %s11
      %p277 = scmp.lt.s32.totalorder %s11, 3
      %p278 = pnand %p276, %p277
      %p279 = pneg %p278
      // Predicated region
      $region105: #{generator_forward.18} parent=5 // pred_check
        _
      $region106: #{generator_forward.18} parent=5 // pred_check_branch
        %281 = sbr.rel (%p278) target = $region108
      $region107: #{generator_forward.18} parent=5 // pred_region
        %s282 = ssub.s32 %s11, 1
        %s283 = sand.u32 %s24, 1
        %s284 = sand.u32 %s24, 1
        %s285 = smul.addr %s284, 16
        %s286 = scalar_lea.vmem [#allocation2], %s285
        // Predicated region
        $region109: #{generator_forward.18} parent=107 // pred_check
          %p287 = pneg %p37
        $region110: #{generator_forward.18} parent=107 // pred_check_branch
          %289 = sbr.rel (%p287) target = $region112
        $region111: #{generator_forward.18} parent=107 // pred_region
          _
        $region112: #{generator_forward.18} parent=107 // pred_fallthru
          _
        %s290 = sand.u32 %s50, 1
        %s291 = sand.u32 %s50, 1
        %s292 = smul.addr %s291, 24
        %s293 = scalar_lea.vmem [#allocation3], %s292
        // Predicated region
        $region113: #{generator_forward.18} parent=107 // pred_check
          %p294 = pneg %p63
        $region114: #{generator_forward.18} parent=107 // pred_check_branch
          %296 = sbr.rel (%p294) target = $region116
        $region115: #{generator_forward.18} parent=107 // pred_region
          _
        $region116: #{generator_forward.18} parent=107 // pred_fallthru
          _
        %s297 = sand.u32 %s24, 1
        %s298 = sand.u32 %s24, 1
        %s299 = smul.addr %s298, 16
        %s300 = scalar_lea.vmem [#allocation2], %s299
        %p301 = pneg %p37
        %p302 = pneg %p34
        %s303 = sand.u32 %s50, 1
        %s304 = sand.u32 %s50, 1
        %s305 = smul.addr %s304, 24
        %s306 = scalar_lea.vmem [#allocation3], %s305
        %p307 = pneg %p63
        %p308 = pneg %p60
        %p309 = pneg %p84
        %p310 = pneg %p81
        %p311 = pneg %p105
        %p312 = pneg %p102
        %p313 = pneg %p126
        %p314 = pneg %p123
        %p315 = pneg %p152
        %p316 = pneg %p149
        %s317 = sand.u32 %s139, 1
        %s318 = sand.u32 %s139, 1
        %s319 = smul.addr %s318, 16
        %s320 = scalar_lea.vmem [#allocation4], %s319
        %s321 = smul.u32 2, %s16
        %s322 = smul.u32 2, %s16
        %s323 = smul.u32 2, %s16
        %v325 = vld [vmem:[%s2] sm:$0xf]
        %v326 = vld [vmem:[%s2 + $0x4] sm:$0xf]
        %v327 = vld [vmem:[%s286] sm:$0xff]
        %v328 = vld [vmem:[%s286 + $0x8] sm:$0xff]
        %v329 = vld [vmem:[%s3] sm:$0xf]
        %v330 = vld [vmem:[%s3 + $0x4] sm:$0xf]
        %v331 = vld [vmem:[%s293] sm:$0xff]
        %v332 = vld [vmem:[%s293 + $0x8] sm:$0xff]
        %v333 = vld [vmem:[%s293 + $0x10] sm:$0x33]
        %v336 = vunpack.c.l.b16 %v329
        %v337 = vunpack.c.l.b16 %v330
        %v338 = vpack.c.b16 %v337, %v336
        %v342 = vunpack.c.l.b16 %v331
        %v343 = vunpack.c.h.b16 %v331
        %v344 = vunpack.c.l.b16 %v332
        %v345 = vunpack.c.h.b16 %v332
        %v346 = vunpack.c.l.b16 %v333
        %v347 = vunpack.c.h.b16 %v333
        %v348 = vpack.c.b16 %v344, %v342
        %v349 = vpack.c.b16 %v345, %v343
        %v350 = vpack.c.b16 %v346, %v346
        %v351 = vpack.c.b16 %v347, %v347
        %vm354 = vcmask 162816
        %v356 = vsel %vm354, %v338, 0
        %vm358 = vcmask 1041408
        %v360 = vsel %vm358, %v350, 0
        %v363 = vsel %vm358, %v351, 0
        %365 = vmatprep.subr.bf16.mxu0 %v349
        %366 = vmatpush1.bf16.msra.mxu0 %v348
        %367 = vmatprep.subr.bf16.mxu0 %v363
        %368 = vmatpush1.bf16.msra.mxu0 %v360
        %369 = vmatprep.subr.bf16.mxu0 0
        %370 = vmatpush1.bf16.msra.mxu0 0
        %371 = vmatprep.subr.bf16.mxu0 0
        %372 = vmatpush1.bf16.msra.mxu0 0
        %373 = vmatprep.subr.bf16.mxu0 0
        %374 = vmatpush1.bf16.msra.mxu0 0
        %375 = vmatprep.subr.bf16.mxu0 0
        %376 = vmatpush1.bf16.msra.mxu0 0
        %377 = vmatprep.subr.bf16.mxu0 0
        %378 = vmatpush1.bf16.msra.mxu0 0
        %379 = vmatprep.subr.bf16.mxu0 0
        %380 = vmatpush1.bf16.msra.mxu0 0
        %381 = vmatprep.subr.bf16.mxu0 0
        %382 = vmatpush1.bf16.msra.mxu0 0
        %383 = vmatprep.subr.bf16.mxu0 0
        %384 = vmatpush1.bf16.msra.mxu0 0
        %385 = vmatprep.subr.bf16.mxu0 0
        %386 = vmatpush1.bf16.msra.mxu0 0
        %387 = vmatprep.subr.bf16.mxu0 0
        %388 = vmatpush1.bf16.msra.mxu0 0
        %389 = vmatprep.subr.bf16.mxu0 0
        %390 = vmatpush1.bf16.msra.mxu0 0
        %391 = vmatprep.subr.bf16.mxu0 0
        %392 = vmatpush1.bf16.msra.mxu0 0
        %393 = vmatprep.subr.bf16.mxu0 0
        %394 = vmatpush1.bf16.msra.mxu0 0
        %395 = vmatprep.subr.bf16.mxu0 0
        %396 = vmatpush1.bf16.msra.mxu0 0
        %397 = vmatprep.mubr.bf16.mxu0 0
        %398 = vmatmul.mubr.bf16.gmra.mrb[0].mxu0 %v356
        %v399 = vpop.f32.mrb[0].mxu0
        %v400 = vadd.f32 0.0, %v399
        %v401 = vpop.f32.mrb[0].mxu0
        %v402 = vadd.f32 0.0, %v401
        %v403 = vpop.f32.mrb[0].mxu0
        %v404 = vadd.f32 0.0, %v403
        %v405 = vpop.f32.mrb[0].mxu0
        %v406 = vadd.f32 0.0, %v405
        %407 = vdwg.mxu0
        %v410 = vunpack.c.l.b16 %v325
        %v411 = vunpack.c.l.b16 %v326
        %v412 = vpack.c.b16 %v411, %v410
        %v415 = vunpack.c.l.b16 %v327
        %v416 = vunpack.c.h.b16 %v327
        %v417 = vunpack.c.l.b16 %v328
        %v418 = vunpack.c.h.b16 %v328
        %v419 = vpack.c.b16 %v417, %v415
        %v420 = vpack.c.b16 %v418, %v416
        %vm423 = vcmask 130048
        %v425 = vsel %vm423, %v412, 0
        %427 = vmatprep.subr.bf16.mxu0 %v420
        %428 = vmatpush1.bf16.msra.mxu0 %v419
        %429 = vmatprep.subr.bf16.mxu0 0
        %430 = vmatpush1.bf16.msra.mxu0 0
        %431 = vmatprep.subr.bf16.mxu0 0
        %432 = vmatpush1.bf16.msra.mxu0 0
        %433 = vmatprep.subr.bf16.mxu0 0
        %434 = vmatpush1.bf16.msra.mxu0 0
        %435 = vmatprep.subr.bf16.mxu0 0
        %436 = vmatpush1.bf16.msra.mxu0 0
        %437 = vmatprep.subr.bf16.mxu0 0
        %438 = vmatpush1.bf16.msra.mxu0 0
        %439 = vmatprep.subr.bf16.mxu0 0
        %440 = vmatpush1.bf16.msra.mxu0 0
        %441 = vmatprep.subr.bf16.mxu0 0
        %442 = vmatpush1.bf16.msra.mxu0 0
        %443 = vmatprep.subr.bf16.mxu0 0
        %444 = vmatpush1.bf16.msra.mxu0 0
        %445 = vmatprep.subr.bf16.mxu0 0
        %446 = vmatpush1.bf16.msra.mxu0 0
        %447 = vmatprep.subr.bf16.mxu0 0
        %448 = vmatpush1.bf16.msra.mxu0 0
        %449 = vmatprep.subr.bf16.mxu0 0
        %450 = vmatpush1.bf16.msra.mxu0 0
        %451 = vmatprep.subr.bf16.mxu0 0
        %452 = vmatpush1.bf16.msra.mxu0 0
        %453 = vmatprep.subr.bf16.mxu0 0
        %454 = vmatpush1.bf16.msra.mxu0 0
        %455 = vmatprep.subr.bf16.mxu0 0
        %456 = vmatpush1.bf16.msra.mxu0 0
        %457 = vmatprep.subr.bf16.mxu0 0
        %458 = vmatpush1.bf16.msra.mxu0 0
        %459 = vmatprep.mubr.bf16.mxu0 0
        %460 = vmatmul.mubr.bf16.gmra.mrb[0].mxu0 %v425
        %v461 = vpop.f32.mrb[0].mxu0
        %v462 = vadd.f32 %v400, %v461
        %v463 = vpop.f32.mrb[0].mxu0
        %v464 = vadd.f32 %v402, %v463
        %v465 = vpop.f32.mrb[0].mxu0
        %v466 = vadd.f32 %v404, %v465
        %v467 = vpop.f32.mrb[0].mxu0
        %v468 = vadd.f32 %v406, %v467
        %469 = vdwg.mxu0
        %v470 = vld [vmem:[%s4] sm:$0xff]
        %v471 = vld [vmem:[%s4 + $0x8] sm:$0xff]
        %473 = vset.pattern.permute.xlu0 0
        %474 = vperm.xlu0 %473, %v470
        %v475 = vpop.permute.xlu0 %474
        %478 = vset.pattern.permute.xlu0 0
        %479 = vperm.xlu0 %478, %v471
        %v480 = vpop.permute.xlu0 %479
        %v482 = vadd.f32 %v462, %v475
        %v483 = vadd.f32 %v464, %v475
        %v484 = vadd.f32 %v466, %v480
        %v485 = vadd.f32 %v468, %v480
        %v486 = vmax.f32 %v482, 0.0
        %v487 = vmax.f32 %v483, 0.0
        %v488 = vmax.f32 %v484, 0.0
        %v489 = vmax.f32 %v485, 0.0
        %v490 = vpack.c.bf16 %v488, %v486
        %v491 = vpack.c.bf16 %v489, %v487
        %v494 = vunpack.c.l.b16 %v490
        %v495 = vunpack.c.l.b16 %v491
        %v496 = vunpack.c.h.b16 %v490
        %v497 = vunpack.c.h.b16 %v491
        %v498 = vpack.c.b16 %v495, %v494
        %v499 = vpack.c.b16 %v497, %v496
        %502 = vst [vmem:[%s320] sm:$0xff] %v498
        %503 = vst [vmem:[%s320 + $0x8] sm:$0xff] %v499
        %s504 = sand.u32 %s139, 1
        %s505 = sand.u32 %s139, 1
        %s506 = smul.addr %s505, 16
        %s507 = scalar_lea.vmem [#allocation4], %s506
        // Predicated region
        $region117: #{generator_forward.18} parent=107 // pred_check
          %p508 = pneg %p149
        $region118: #{generator_forward.18} parent=107 // pred_check_branch
          %510 = sbr.rel (%p508) target = $region120
        $region119: #{generator_forward.18} parent=107 // pred_region
          %s511 = smul.u32 2, %s16
          %s512 = smul.addr %s511, 4
          %s513 = scalar_lea.vmem %s5, %s512
          // Predicated region
          $region121: #{generator_forward.18} parent=119 // pred_check
            _
          $region122: #{generator_forward.18} parent=119 // pred_check_branch
            %515 = sbr.rel (0) target = $region124
          $region123: #{generator_forward.18} parent=119 // pred_region
            // Predicated region
            $region125: #{generator_forward.18} parent=123 // pred_check
              _
            $region126: #{generator_forward.18} parent=123 // pred_check_branch
              %517 = sbr.rel (0) target = $region128
            $region127: #{generator_forward.18} parent=123 // pred_region
              // Predicated region
              $region140: #{generator_forward.18} parent=127 // pred_check
                _
              $region141: #{generator_forward.18} parent=127 // pred_check_branch
                %534 = sbr.rel (0) target = $region143
              $region142: #{generator_forward.18} parent=127 // pred_region
                loop: start=0, step=1, limit=1
                $region144: #{generator_forward.18} parent=142 // loop_pre_header
                  _
                $region145: #{generator_forward.18} parent=142 // loop_header
                  %s536 = sphi 0, %s540
                  %p537 = scmp.ge.s32.totalorder %s536, 1
                  %s541 = sphi %s507, %s507
                  %s542 = sphi %s513, %s513
                $region146: #{generator_forward.18} parent=142 // loop_header_branch
                  %539 = sbr.rel (%p537) target = $region150
                $region147: #{generator_forward.18} parent=142 // loop_body
                  %v543 = vld [vmem:[%s541] sm:$0xff]
                  %544 = vst [vmem:[%s542] sm:$0xff] %v543
                  %v545 = vld [vmem:[%s541 + $0x8] sm:$0xff]
                  %546 = vst [vmem:[%s542 + $0x10] sm:$0xff] %v545
                $region148: #{generator_forward.18} parent=142 // loop_footer
                  %s540 = sadd.s32 1, %s536
                $region149: #{generator_forward.18} parent=142 // loop_footer_branch
                  %535 = sbr.rel target = $region145
                $region150: #{generator_forward.18} parent=142 // loop_exit
                  _
              $region143: #{generator_forward.18} parent=127 // pred_fallthru
                _
              // Predicated region
              $region151: #{generator_forward.18} parent=127 // pred_check
                _
              $region152: #{generator_forward.18} parent=127 // pred_check_branch
                %548 = sbr.rel target = $region154
              $region153: #{generator_forward.18} parent=127 // pred_region
                _
              $region154: #{generator_forward.18} parent=127 // pred_fallthru
                _
            $region128: #{generator_forward.18} parent=123 // pred_fallthru
              _
            // Predicated region
            $region129: #{generator_forward.18} parent=123 // pred_check
              _
            $region130: #{generator_forward.18} parent=123 // pred_check_branch
              %519 = sbr.rel target = $region132
            $region131: #{generator_forward.18} parent=123 // pred_region
              loop: start=0, step=1, limit=1
              $region133: #{generator_forward.18} parent=131 // loop_pre_header
                _
              $region134: #{generator_forward.18} parent=131 // loop_header
                %s522 = sphi 0, %s526
                %p523 = scmp.ge.s32.totalorder %s522, 1
                %s527 = sphi %s507, %s507
                %s528 = sphi %s513, %s513
              $region135: #{generator_forward.18} parent=131 // loop_header_branch
                %525 = sbr.rel (%p523) target = $region139
              $region136: #{generator_forward.18} parent=131 // loop_body
                %v529 = vld [vmem:[%s527] sm:$0xff]
                %530 = vst [vmem:[%s528] sm:$0xff] %v529
                %v531 = vld [vmem:[%s527 + $0x8] sm:$0xff]
                %532 = vst [vmem:[%s528 + $0x10] sm:$0xff] %v531
              $region137: #{generator_forward.18} parent=131 // loop_footer
                %s526 = sadd.s32 1, %s522
              $region138: #{generator_forward.18} parent=131 // loop_footer_branch
                %521 = sbr.rel target = $region134
              $region139: #{generator_forward.18} parent=131 // loop_exit
                _
            $region132: #{generator_forward.18} parent=123 // pred_fallthru
              _
          $region124: #{generator_forward.18} parent=119 // pred_fallthru
            _
          %549 = vnop
        $region120: #{generator_forward.18} parent=107 // pred_fallthru
          _
      $region108: #{generator_forward.18} parent=5 // pred_fallthru
        _
      %p550 = scmp.le.s32.totalorder 2, %s11
      // Predicated region
      $region155: #{generator_forward.18} parent=5 // pred_check
        %p551 = pneg %p550
      $region156: #{generator_forward.18} parent=5 // pred_check_branch
        %553 = sbr.rel (%p551) target = $region158
      $region157: #{generator_forward.18} parent=5 // pred_region
        %s554 = ssub.s32 %s11, 2
        // Predicated region
        $region159: #{generator_forward.18} parent=157 // pred_check
          %p555 = pneg %p155
        $region160: #{generator_forward.18} parent=157 // pred_check_branch
          %557 = sbr.rel (%p555) target = $region162
        $region161: #{generator_forward.18} parent=157 // pred_region
          %s558 = sand.u32 %s140, 1
          %s559 = sand.u32 %s140, 1
          %s560 = smul.addr %s559, 16
          %s561 = scalar_lea.vmem [#allocation4], %s560
        $region162: #{generator_forward.18} parent=157 // pred_fallthru
          _
      $region158: #{generator_forward.18} parent=5 // pred_fallthru
        _
    $region6: #{generator_forward.18} parent=1 // loop_footer
      %s15 = sadd.s32 1, %s11
    $region7: #{generator_forward.18} parent=1 // loop_footer_branch
      %10 = sbr.rel target = $region3
    $region8: #{generator_forward.18} parent=1 // loop_exit
      _

// kernel: generator_forward.19
$region0: #{generator_forward.19}
  #allocation0 [shape = 'u32[]', space=smem, size = 0x4, offset = 0x4, fixed_abs, tag = 'smem constant byte address 0x4 - core index']
  #allocation1 [shape = 'u32[144,128]{1,0:T(1,128)}', space=vmem, size = 0x12000, scoped, tag = 'internal scratch']
  %s0 = inlined_call_operand.vmem [shape: bf16[16,2048], index: 0, kind: input, shape index: {}]
  %s1 = inlined_call_operand.vmem [shape: bf16[2,16], index: 1, kind: input, shape index: {}]
  %s2 = inlined_call_operand.vmem [shape: f32[2,1], index: 2, kind: input, shape index: {}]
  %s3 = inlined_call_operand.vmem [shape: f32[2,2048], index: 3, kind: output, shape index: {}]
  %s4 = sld [smem:[#allocation0]]
  $region68: #{generator_forward.19} parent=0
    _
  %s6 = ssub.s32 1, %s4
  %s7 = scalar_select 0, %s6, %s4
  $region1: #{generator_forward.19} parent=0
    #allocation2 [shape = 'u8[65536]{0}', space=vmem, size = 0x10000, scoped, tag = 'input window, operand 0']
    loop: start=0, step=1, limit=4
    $region2: #{generator_forward.19} parent=1 // loop_pre_header
      _
    $region3: #{generator_forward.19} parent=1 // loop_header
      %s9 = sphi 0, %s13
      %p10 = scmp.ge.s32.totalorder %s9, 4
      %s19 = sphi 0, %s21
      %s22 = sphi 0, %s19
      %s23 = sphi 0, %s22
      %s39 = sphi 0, %s23
      %s43 = sphi 0, %s43
      %s45 = sphi 0, %s43
      %s46 = sphi 0, %s45
      %s60 = sphi 0, %s46
      %s64 = sphi 0, %s64
      %s66 = sphi 0, %s64
      %s67 = sphi 0, %s66
      %s81 = sphi 0, %s67
      %s87 = sphi 0, %s89
      %s90 = sphi 0, %s87
      %s91 = sphi 0, %s90
      %s107 = sphi 0, %s91
    $region4: #{generator_forward.19} parent=1 // loop_header_branch
      %12 = sbr.rel (%p10) target = $region8
    $region5: #{generator_forward.19} parent=1 // loop_body
      %s14 = ssub.s32 %s9, 1
      %s15 = ssub.s32 %s9, 2
      %s16 = sadd.s32 %s9, 1
      %s17 = ssub.s32 %s9, %s16
      %p18 = scmp.eq.s32.totalorder %s17, 0
      %s20 = sadd.s32 %s19, 1
      %s21 = scalar_select %p18, %s19, %s20
      %p24 = pneg %p18
      %p25 = scmp.eq.s32.totalorder %s9, 1
      %p26 = por %p24, %p25
      %p27 = scmp.ne.s32.totalorder %s19, %s22
      %p28 = scmp.eq.s32.totalorder %s9, 0
      %p29 = por %p27, %p28
      %p30 = scmp.ne.s32.totalorder %s19, %s22
      %p31 = scmp.eq.s32.totalorder %s14, 1
      %p32 = por %p30, %p31
      %p33 = scmp.ne.s32.totalorder %s22, %s23
      %p34 = scmp.eq.s32.totalorder %s14, 0
      %p35 = por %p33, %p34
      %p36 = scmp.ne.s32.totalorder %s22, %s23
      %p37 = scmp.eq.s32.totalorder %s15, 1
      %p38 = por %p36, %p37
      %p40 = scmp.ne.s32.totalorder %s23, %s39
      %p41 = scmp.eq.s32.totalorder %s15, 0
      %p42 = por %p40, %p41
      %s44 = sadd.s32 %s43, 1
      %p47 = scmp.eq.s32.totalorder %s9, 1
      %p48 = scmp.ne.s32.totalorder %s43, %s45
      %p49 = scmp.eq.s32.totalorder %s9, 0
      %p50 = por %p48, %p49
      %p51 = scmp.ne.s32.totalorder %s43, %s45
      %p52 = scmp.eq.s32.totalorder %s14, 1
      %p53 = por %p51, %p52
      %p54 = scmp.ne.s32.totalorder %s45, %s46
      %p55 = scmp.eq.s32.totalorder %s14, 0
      %p56 = por %p54, %p55
      %p57 = scmp.ne.s32.totalorder %s45, %s46
      %p58 = scmp.eq.s32.totalorder %s15, 1
      %p59 = por %p57, %p58
      %p61 = scmp.ne.s32.totalorder %s46, %s60
      %p62 = scmp.eq.s32.totalorder %s15, 0
      %p63 = por %p61, %p62
      %s65 = sadd.s32 %s64, 1
      %p68 = scmp.eq.s32.totalorder %s9, 1
      %p69 = scmp.ne.s32.totalorder %s64, %s66
      %p70 = scmp.eq.s32.totalorder %s9, 0
      %p71 = por %p69, %p70
      %p72 = scmp.ne.s32.totalorder %s64, %s66
      %p73 = scmp.eq.s32.totalorder %s14, 1
      %p74 = por %p72, %p73
      %p75 = scmp.ne.s32.totalorder %s66, %s67
      %p76 = scmp.eq.s32.totalorder %s14, 0
      %p77 = por %p75, %p76
      %p78 = scmp.ne.s32.totalorder %s66, %s67
      %p79 = scmp.eq.s32.totalorder %s15, 1
      %p80 = por %p78, %p79
      %p82 = scmp.ne.s32.totalorder %s67, %s81
      %p83 = scmp.eq.s32.totalorder %s15, 0
      %p84 = por %p82, %p83
      %s85 = ssub.s32 %s9, %s16
      %p86 = scmp.eq.s32.totalorder %s85, 0
      %s88 = sadd.s32 %s87, 1
      %s89 = scalar_select %p86, %s87, %s88
      %p92 = pneg %p86
      %p93 = scmp.eq.s32.totalorder %s9, 1
      %p94 = por %p92, %p93
      %p95 = scmp.ne.s32.totalorder %s87, %s90
      %p96 = scmp.eq.s32.totalorder %s9, 0
      %p97 = por %p95, %p96
      %p98 = scmp.ne.s32.totalorder %s87, %s90
      %p99 = scmp.eq.s32.totalorder %s14, 1
      %p100 = por %p98, %p99
      %p101 = scmp.ne.s32.totalorder %s90, %s91
      %p102 = scmp.eq.s32.totalorder %s14, 0
      %p103 = por %p101, %p102
      %p104 = scmp.ne.s32.totalorder %s90, %s91
      %p105 = scmp.eq.s32.totalorder %s15, 1
      %p106 = por %p104, %p105
      %p108 = scmp.ne.s32.totalorder %s91, %s107
      %p109 = scmp.eq.s32.totalorder %s15, 0
      %p110 = por %p108, %p109
      %p111 = scmp.le.s32.totalorder 1, %s9
      %p112 = scmp.lt.s32.totalorder %s9, 3
      %p113 = pnand %p111, %p112
      %p114 = pneg %p113
      // Predicated region
      $region9: #{generator_forward.19} parent=5 // pred_check
        _
      $region10: #{generator_forward.19} parent=5 // pred_check_branch
        %116 = sbr.rel (%p113) target = $region12
      $region11: #{generator_forward.19} parent=5 // pred_region
        %s117 = ssub.s32 %s9, 1
        // Predicated region
        $region13: #{generator_forward.19} parent=11 // pred_check
          %p118 = pneg %p56
        $region14: #{generator_forward.19} parent=11 // pred_check_branch
          %120 = sbr.rel (%p118) target = $region16
        $region15: #{generator_forward.19} parent=11 // pred_region
          _
        $region16: #{generator_forward.19} parent=11 // pred_fallthru
          _
        // Predicated region
        $region17: #{generator_forward.19} parent=11 // pred_check
          %p121 = pneg %p77
        $region18: #{generator_forward.19} parent=11 // pred_check_branch
          %123 = sbr.rel (%p121) target = $region20
        $region19: #{generator_forward.19} parent=11 // pred_region
          _
        $region20: #{generator_forward.19} parent=11 // pred_fallthru
          _
      $region12: #{generator_forward.19} parent=5 // pred_fallthru
        _
      %p124 = scmp.lt.s32.totalorder %s9, 2
      // Predicated region
      $region21: #{generator_forward.19} parent=5 // pred_check
        %p125 = pneg %p124
      $region22: #{generator_forward.19} parent=5 // pred_check_branch
        %127 = sbr.rel (%p125) target = $region24
      $region23: #{generator_forward.19} parent=5 // pred_region
        // Predicated region
        $region25: #{generator_forward.19} parent=23 // pred_check
          %p128 = pneg %p29
        $region26: #{generator_forward.19} parent=23 // pred_check_branch
          %130 = sbr.rel (%p128) target = $region28
        $region27: #{generator_forward.19} parent=23 // pred_region
          %s131 = sand.u32 %s19, 1
          %s132 = sand.u32 %s19, 1
          %s133 = smul.addr %s132, 64
          %s134 = scalar_lea.vmem [#allocation2], %s133
          %s135 = smul.u32 8, %s9
          %s136 = smul.addr %s135, 4
          %s137 = scalar_lea.vmem %s0, %s136
          // Predicated region
          $region29: #{generator_forward.19} parent=27 // pred_check
            _
          $region30: #{generator_forward.19} parent=27 // pred_check_branch
            %139 = sbr.rel (0) target = $region32
          $region31: #{generator_forward.19} parent=27 // pred_region
            // Predicated region
            $region33: #{generator_forward.19} parent=31 // pred_check
              _
            $region34: #{generator_forward.19} parent=31 // pred_check_branch
              %141 = sbr.rel (0) target = $region36
            $region35: #{generator_forward.19} parent=31 // pred_region
              loop: start=0, step=1, limit=1
              $region37: #{generator_forward.19} parent=35 // loop_pre_header
                _
              $region38: #{generator_forward.19} parent=35 // loop_header
                %s143 = sphi 0, %s147
                %p144 = scmp.ge.s32.totalorder %s143, 1
                %s148 = sphi %s137, %s137
                %s149 = sphi %s134, %s134
              $region39: #{generator_forward.19} parent=35 // loop_header_branch
                %146 = sbr.rel (%p144) target = $region43
              $region40: #{generator_forward.19} parent=35 // loop_body
                %v150 = vld [vmem:[%s148] sm:$0xff]
                %151 = vst [vmem:[%s149] sm:$0xff] %v150
                %v152 = vld [vmem:[%s148 + $0x8] sm:$0xff]
                %153 = vst [vmem:[%s149 + $0x8] sm:$0xff] %v152
                %v154 = vld [vmem:[%s148 + $0x10] sm:$0xff]
                %155 = vst [vmem:[%s149 + $0x10] sm:$0xff] %v154
                %v156 = vld [vmem:[%s148 + $0x18] sm:$0xff]
                %157 = vst [vmem:[%s149 + $0x18] sm:$0xff] %v156
                %v158 = vld [vmem:[%s148 + $0x40] sm:$0xff]
                %159 = vst [vmem:[%s149 + $0x20] sm:$0xff] %v158
                %v160 = vld [vmem:[%s148 + $0x48] sm:$0xff]
                %161 = vst [vmem:[%s149 + $0x28] sm:$0xff] %v160
                %v162 = vld [vmem:[%s148 + $0x50] sm:$0xff]
                %163 = vst [vmem:[%s149 + $0x30] sm:$0xff] %v162
                %v164 = vld [vmem:[%s148 + $0x58] sm:$0xff]
                %165 = vst [vmem:[%s149 + $0x38] sm:$0xff] %v164
              $region41: #{generator_forward.19} parent=35 // loop_footer
                %s147 = sadd.s32 1, %s143
              $region42: #{generator_forward.19} parent=35 // loop_footer_branch
                %142 = sbr.rel target = $region38
              $region43: #{generator_forward.19} parent=35 // loop_exit
                _
            $region36: #{generator_forward.19} parent=31 // pred_fallthru
              _
            // Predicated region
            $region44: #{generator_forward.19} parent=31 // pred_check
              _
            $region45: #{generator_forward.19} parent=31 // pred_check_branch
              %167 = sbr.rel target = $region47
            $region46: #{generator_forward.19} parent=31 // pred_region
              _
            $region47: #{generator_forward.19} parent=31 // pred_fallthru
              _
          $region32: #{generator_forward.19} parent=27 // pred_fallthru
            _
          %168 = vnop
        $region28: #{generator_forward.19} parent=23 // pred_fallthru
          _
      $region24: #{generator_forward.19} parent=5 // pred_fallthru
        _
      %p169 = scmp.le.s32.totalorder 1, %s9
      %p170 = scmp.lt.s32.totalorder %s9, 3
      %p171 = pnand %p169, %p170
      %p172 = pneg %p171
      // Predicated region
      $region48: #{generator_forward.19} parent=5 // pred_check
        _
      $region49: #{generator_forward.19} parent=5 // pred_check_branch
        %174 = sbr.rel (%p171) target = $region51
      $region50: #{generator_forward.19} parent=5 // pred_region
        %s175 = ssub.s32 %s9, 1
        %s176 = sand.u32 %s22, 1
        %s177 = sand.u32 %s22, 1
        %s178 = smul.addr %s177, 64
        %s179 = scalar_lea.vmem [#allocation2], %s178
        // Predicated region
        $region52: #{generator_forward.19} parent=50 // pred_check
          %p180 = pneg %p35
        $region53: #{generator_forward.19} parent=50 // pred_check_branch
          %182 = sbr.rel (%p180) target = $region55
        $region54: #{generator_forward.19} parent=50 // pred_region
          _
        $region55: #{generator_forward.19} parent=50 // pred_fallthru
          _
        %s183 = sand.u32 %s22, 1
        %s184 = sand.u32 %s22, 1
        %s185 = smul.addr %s184, 64
        %s186 = scalar_lea.vmem [#allocation2], %s185
        %p187 = pneg %p35
        %p188 = pneg %p32
        %p189 = pneg %p56
        %p190 = pneg %p53
        %p191 = pneg %p77
        %p192 = pneg %p74
        %p193 = pneg %p103
        %p194 = pneg %p100
        %s195 = smul.u32 8, %s14
        %p196 = scmp.lt.s32.totalorder %s195, 15
        %s197 = scalar_select %p196, %s195, 15
        %s198 = smul.addr %s197, 2
        %s199 = scalar_lea.vmem %s3, %s198
        %s200 = smul.u32 8, %s14
        %s201 = smul.u32 8, %s14
        %p202 = scmp.lt.s32.totalorder %s201, 15
        %s203 = scalar_select %p202, %s201, 15
        %s204 = smul.addr %s203, 2
        %s205 = scalar_lea.vmem %s3, %s204
        %s206 = smul.u32 8, %s14
        %v208 = vld [vmem:[%s1] sm:$0x1]
        %v209 = vld [vmem:[%s179] sm:$0xff]
        %v210 = vld [vmem:[%s179 + $0x8] sm:$0xff]
        %v211 = vld [vmem:[%s179 + $0x10] sm:$0xff]
        %v212 = vld [vmem:[%s179 + $0x18] sm:$0xff]
        %v213 = vld [vmem:[%s179 + $0x20] sm:$0xff]
        %v214 = vld [vmem:[%s179 + $0x28] sm:$0xff]
        %v215 = vld [vmem:[%s179 + $0x30] sm:$0xff]
        %v216 = vld [vmem:[%s179 + $0x38] sm:$0xff]
        %v217 = vld [vmem:[%s2] sm:$0x3]
        %219 = vset.pattern.permute.xlu0 0
        %220 = vperm.xlu0 %219, %v217
        %v221 = vpop.permute.xlu0 %220
        %v231 = vunpack.c.l.b16 %v209
        %v232 = vunpack.c.h.b16 %v209
        %v233 = vunpack.c.l.b16 %v210
        %v234 = vunpack.c.h.b16 %v210
        %v235 = vunpack.c.l.b16 %v211
        %v236 = vunpack.c.h.b16 %v211
        %v237 = vunpack.c.l.b16 %v212
        %v238 = vunpack.c.h.b16 %v212
        %v239 = vunpack.c.l.b16 %v213
        %v240 = vunpack.c.h.b16 %v213
        %v241 = vunpack.c.l.b16 %v214
        %v242 = vunpack.c.h.b16 %v214
        %v243 = vunpack.c.l.b16 %v215
        %v244 = vunpack.c.h.b16 %v215
        %v245 = vunpack.c.l.b16 %v216
        %v246 = vunpack.c.h.b16 %v216
        %v247 = vpack.c.b16 %v239, %v231
        %v248 = vpack.c.b16 %v240, %v232
        %v249 = vpack.c.b16 %v241, %v233
        %v250 = vpack.c.b16 %v242, %v234
        %v251 = vpack.c.b16 %v243, %v235
        %v252 = vpack.c.b16 %v244, %v236
        %v253 = vpack.c.b16 %v245, %v237
        %v254 = vpack.c.b16 %v246, %v238
        %vm263 = vcmask 130048
        %v265 = vsel %vm263, %v208, 0
        %267 = vmatprep.subr.bf16.mxu0 %v248
        %268 = vmatpush1.bf16.msra.mxu0 %v247
        %269 = vmatprep.subr.bf16.mxu0 0
        %270 = vmatpush1.bf16.msra.mxu0 0
        %271 = vmatprep.subr.bf16.mxu0 0
        %272 = vmatpush1.bf16.msra.mxu0 0
        %273 = vmatprep.subr.bf16.mxu0 0
        %274 = vmatpush1.bf16.msra.mxu0 0
        %275 = vmatprep.subr.bf16.mxu0 0
        %276 = vmatpush1.bf16.msra.mxu0 0
        %277 = vmatprep.subr.bf16.mxu0 0
        %278 = vmatpush1.bf16.msra.mxu0 0
        %279 = vmatprep.subr.bf16.mxu0 0
        %280 = vmatpush1.bf16.msra.mxu0 0
        %281 = vmatprep.subr.bf16.mxu0 0
        %282 = vmatpush1.bf16.msra.mxu0 0
        %283 = vmatprep.subr.bf16.mxu0 0
        %284 = vmatpush1.bf16.msra.mxu0 0
        %285 = vmatprep.subr.bf16.mxu0 0
        %286 = vmatpush1.bf16.msra.mxu0 0
        %287 = vmatprep.subr.bf16.mxu0 0
        %288 = vmatpush1.bf16.msra.mxu0 0
        %289 = vmatprep.subr.bf16.mxu0 0
        %290 = vmatpush1.bf16.msra.mxu0 0
        %291 = vmatprep.subr.bf16.mxu0 0
        %292 = vmatpush1.bf16.msra.mxu0 0
        %293 = vmatprep.subr.bf16.mxu0 0
        %294 = vmatpush1.bf16.msra.mxu0 0
        %295 = vmatprep.subr.bf16.mxu0 0
        %296 = vmatpush1.bf16.msra.mxu0 0
        %297 = vmatprep.subr.bf16.mxu0 0
        %298 = vmatpush1.bf16.msra.mxu0 0
        %299 = vmatprep.mubr.bf16.mxu0 0
        %300 = vmatmul.mubr.bf16.gmra.mrb[0].mxu0 %v265
        %v301 = vpop.f32.mrb[0].mxu0
        %v302 = vadd.f32 %v221, %v301
        %v303 = vpop.f32.mrb[0].mxu0
        %v304 = vadd.f32 %v221, %v303
        %v305 = vpop.f32.mrb[0].mxu0
        %v306 = vpop.f32.mrb[0].mxu0
        %307 = vdwg.mxu0
        %308 = vmatprep.subr.bf16.mxu0 %v250
        %309 = vmatpush1.bf16.msra.mxu0 %v249
        %310 = vmatprep.subr.bf16.mxu0 0
        %311 = vmatpush1.bf16.msra.mxu0 0
        %312 = vmatprep.subr.bf16.mxu0 0
        %313 = vmatpush1.bf16.msra.mxu0 0
        %314 = vmatprep.subr.bf16.mxu0 0
        %315 = vmatpush1.bf16.msra.mxu0 0
        %316 = vmatprep.subr.bf16.mxu0 0
        %317 = vmatpush1.bf16.msra.mxu0 0
        %318 = vmatprep.subr.bf16.mxu0 0
        %319 = vmatpush1.bf16.msra.mxu0 0
        %320 = vmatprep.subr.bf16.mxu0 0
        %321 = vmatpush1.bf16.msra.mxu0 0
        %322 = vmatprep.subr.bf16.mxu0 0
        %323 = vmatpush1.bf16.msra.mxu0 0
        %324 = vmatprep.subr.bf16.mxu0 0
        %325 = vmatpush1.bf16.msra.mxu0 0
        %326 = vmatprep.subr.bf16.mxu0 0
        %327 = vmatpush1.bf16.msra.mxu0 0
        %328 = vmatprep.subr.bf16.mxu0 0
        %329 = vmatpush1.bf16.msra.mxu0 0
        %330 = vmatprep.subr.bf16.mxu0 0
        %331 = vmatpush1.bf16.msra.mxu0 0
        %332 = vmatprep.subr.bf16.mxu0 0
        %333 = vmatpush1.bf16.msra.mxu0 0
        %334 = vmatprep.subr.bf16.mxu0 0
        %335 = vmatpush1.bf16.msra.mxu0 0
        %336 = vmatprep.subr.bf16.mxu0 0
        %337 = vmatpush1.bf16.msra.mxu0 0
        %338 = vmatprep.subr.bf16.mxu0 0
        %339 = vmatpush1.bf16.msra.mxu0 0
        %340 = vmatprep.mubr.bf16.mxu0 0
        %341 = vmatmul.mubr.bf16.gmra.mrb[0].mxu0 %v265
        %v342 = vpop.f32.mrb[0].mxu0
        %v343 = vadd.f32 %v221, %v342
        %v344 = vpop.f32.mrb[0].mxu0
        %v345 = vadd.f32 %v221, %v344
        %v346 = vpop.f32.mrb[0].mxu0
        %v347 = vpop.f32.mrb[0].mxu0
        %348 = vdwg.mxu0
        %349 = vmatprep.subr.bf16.mxu0 %v252
        %350 = vmatpush1.bf16.msra.mxu0 %v251
        %351 = vmatprep.subr.bf16.mxu0 0
        %352 = vmatpush1.bf16.msra.mxu0 0
        %353 = vmatprep.subr.bf16.mxu0 0
        %354 = vmatpush1.bf16.msra.mxu0 0
        %355 = vmatprep.subr.bf16.mxu0 0
        %356 = vmatpush1.bf16.msra.mxu0 0
        %357 = vmatprep.subr.bf16.mxu0 0
        %358 = vmatpush1.bf16.msra.mxu0 0
        %359 = vmatprep.subr.bf16.mxu0 0
        %360 = vmatpush1.bf16.msra.mxu0 0
        %361 = vmatprep.subr.bf16.mxu0 0
        %362 = vmatpush1.bf16.msra.mxu0 0
        %363 = vmatprep.subr.bf16.mxu0 0
        %364 = vmatpush1.bf16.msra.mxu0 0
        %365 = vmatprep.subr.bf16.mxu0 0
        %366 = vmatpush1.bf16.msra.mxu0 0
        %367 = vmatprep.subr.bf16.mxu0 0
        %368 = vmatpush1.bf16.msra.mxu0 0
        %369 = vmatprep.subr.bf16.mxu0 0
        %370 = vmatpush1.bf16.msra.mxu0 0
        %371 = vmatprep.subr.bf16.mxu0 0
        %372 = vmatpush1.bf16.msra.mxu0 0
        %373 = vmatprep.subr.bf16.mxu0 0
        %374 = vmatpush1.bf16.msra.mxu0 0
        %375 = vmatprep.subr.bf16.mxu0 0
        %376 = vmatpush1.bf16.msra.mxu0 0
        %377 = vmatprep.subr.bf16.mxu0 0
        %378 = vmatpush1.bf16.msra.mxu0 0
        %379 = vmatprep.subr.bf16.mxu0 0
        %380 = vmatpush1.bf16.msra.mxu0 0
        %381 = vmatprep.mubr.bf16.mxu0 0
        %382 = vmatmul.mubr.bf16.gmra.mrb[0].mxu0 %v265
        %v383 = vpop.f32.mrb[0].mxu0
        %v384 = vadd.f32 %v221, %v383
        %v385 = vpop.f32.mrb[0].mxu0
        %v386 = vadd.f32 %v221, %v385
        %v387 = vpop.f32.mrb[0].mxu0
        %v388 = vpop.f32.mrb[0].mxu0
        %389 = vdwg.mxu0
        %390 = vmatprep.subr.bf16.mxu0 %v254
        %391 = vmatpush1.bf16.msra.mxu0 %v253
        %392 = vmatprep.subr.bf16.mxu0 0
        %393 = vmatpush1.bf16.msra.mxu0 0
        %394 = vmatprep.subr.bf16.mxu0 0
        %395 = vmatpush1.bf16.msra.mxu0 0
        %396 = vmatprep.subr.bf16.mxu0 0
        %397 = vmatpush1.bf16.msra.mxu0 0
        %398 = vmatprep.subr.bf16.mxu0 0
        %399 = vmatpush1.bf16.msra.mxu0 0
        %400 = vmatprep.subr.bf16.mxu0 0
        %401 = vmatpush1.bf16.msra.mxu0 0
        %402 = vmatprep.subr.bf16.mxu0 0
        %403 = vmatpush1.bf16.msra.mxu0 0
        %404 = vmatprep.subr.bf16.mxu0 0
        %405 = vmatpush1.bf16.msra.mxu0 0
        %406 = vmatprep.subr.bf16.mxu0 0
        %407 = vmatpush1.bf16.msra.mxu0 0
        %408 = vmatprep.subr.bf16.mxu0 0
        %409 = vmatpush1.bf16.msra.mxu0 0
        %410 = vmatprep.subr.bf16.mxu0 0
        %411 = vmatpush1.bf16.msra.mxu0 0
        %412 = vmatprep.subr.bf16.mxu0 0
        %413 = vmatpush1.bf16.msra.mxu0 0
        %414 = vmatprep.subr.bf16.mxu0 0
        %415 = vmatpush1.bf16.msra.mxu0 0
        %416 = vmatprep.subr.bf16.mxu0 0
        %417 = vmatpush1.bf16.msra.mxu0 0
        %418 = vmatprep.subr.bf16.mxu0 0
        %419 = vmatpush1.bf16.msra.mxu0 0
        %420 = vmatprep.subr.bf16.mxu0 0
        %421 = vmatpush1.bf16.msra.mxu0 0
        %422 = vmatprep.mubr.bf16.mxu0 0
        %423 = vmatmul.mubr.bf16.gmra.mrb[0].mxu0 %v265
        %v424 = vpop.f32.mrb[0].mxu0
        %v425 = vadd.f32 %v221, %v424
        %v426 = vpop.f32.mrb[0].mxu0
        %v427 = vadd.f32 %v221, %v426
        %v428 = vpop.f32.mrb[0].mxu0
        %v429 = vpop.f32.mrb[0].mxu0
        %430 = vdwg.mxu0
        %v431 = vmax.f32 %v302, 0.0
        %v432 = vmax.f32 %v304, 0.0
        %v433 = vmax.f32 %v343, 0.0
        %v434 = vmax.f32 %v345, 0.0
        %v435 = vmax.f32 %v384, 0.0
        %v436 = vmax.f32 %v386, 0.0
        %v437 = vmax.f32 %v425, 0.0
        %v438 = vmax.f32 %v427, 0.0
        %v439 = vmin.f32 %v431, 6.0
        %v440 = vmin.f32 %v432, 6.0
        %v441 = vmin.f32 %v433, 6.0
        %v442 = vmin.f32 %v434, 6.0
        %v443 = vmin.f32 %v435, 6.0
        %v444 = vmin.f32 %v436, 6.0
        %v445 = vmin.f32 %v437, 6.0
        %v446 = vmin.f32 %v438, 6.0
        %v447 = vmul.f32 %v439, 0.16666667
        %v448 = vmul.f32 %v440, 0.16666667
        %v449 = vmul.f32 %v441, 0.16666667
        %v450 = vmul.f32 %v442, 0.16666667
        %v451 = vmul.f32 %v443, 0.16666667
        %v452 = vmul.f32 %v444, 0.16666667
        %v453 = vmul.f32 %v445, 0.16666667
        %v454 = vmul.f32 %v446, 0.16666667
        %v463 = vcombine.low %v447, %v448
        %v464 = vcombine.low %v449, %v450
        %v466 = vunpack.c.l.s4 1983009808
        %v467 = vunpack.c.0.s8 %v466
        %v468 = vlaneseq
        %v469 = vshrl.u32 %v468, 7
        %v470 = vsub.s32 %v467, %v469
        %v471 = vrot.slane %v463, %v470
        %v473 = vunpack.c.l.s4 1983009808
        %v474 = vunpack.c.0.s8 %v473
        %v475 = vlaneseq
        %v476 = vshrl.u32 %v475, 7
        %v477 = vsub.s32 %v474, %v476
        %v478 = vrot.slane %v464, %v477
        %v479 = vcombine.low %v471, %v478
        %v480 = vcombine.low %v451, %v452
        %v481 = vcombine.low %v453, %v454
        %v483 = vunpack.c.l.s4 1983009808
        %v484 = vunpack.c.0.s8 %v483
        %v485 = vlaneseq
        %v486 = vshrl.u32 %v485, 7
        %v487 = vsub.s32 %v484, %v486
        %v488 = vrot.slane %v480, %v487
        %v490 = vunpack.c.l.s4 1983009808
        %v491 = vunpack.c.0.s8 %v490
        %v492 = vlaneseq
        %v493 = vshrl.u32 %v492, 7
        %v494 = vsub.s32 %v491, %v493
        %v495 = vrot.slane %v481, %v494
        %v496 = vcombine.low %v488, %v495
        %499 = vst [vmem:[%s205] sm:$0xff] %v479
        %500 = vst [vmem:[%s205 + $0x8] sm:$0xff] %v496
        %s501 = smul.u32 8, %s14
        %p502 = scmp.lt.s32.totalorder %s501, 15
        %s503 = scalar_select %p502, %s501, 15
        %s504 = smul.addr %s503, 2
        %s505 = scalar_lea.vmem %s3, %s504
        // Predicated region
        $region56: #{generator_forward.19} parent=50 // pred_check
          %p506 = pneg %p100
        $region57: #{generator_forward.19} parent=50 // pred_check_branch
          %508 = sbr.rel (%p506) target = $region59
        $region58: #{generator_forward.19} parent=50 // pred_region
          %s509 = smul.u32 8, %s14
        $region59: #{generator_forward.19} parent=50 // pred_fallthru
          _
      $region51: #{generator_forward.19} parent=5 // pred_fallthru
        _
      %p510 = scmp.le.s32.totalorder 2, %s9
      // Predicated region
      $region60: #{generator_forward.19} parent=5 // pred_check
        %p511 = pneg %p510
      $region61: #{generator_forward.19} parent=5 // pred_check_branch
        %513 = sbr.rel (%p511) target = $region63
      $region62: #{generator_forward.19} parent=5 // pred_region
        %s514 = ssub.s32 %s9, 2
        // Predicated region
        $region64: #{generator_forward.19} parent=62 // pred_check
          %p515 = pneg %p106
        $region65: #{generator_forward.19} parent=62 // pred_check_branch
          %517 = sbr.rel (%p515) target = $region67
        $region66: #{generator_forward.19} parent=62 // pred_region
          %s518 = smul.u32 8, %s15
          %p519 = scmp.lt.s32.totalorder %s518, 15
          %s520 = scalar_select %p519, %s518, 15
          %s521 = smul.addr %s520, 2
          %s522 = scalar_lea.vmem %s3, %s521
        $region67: #{generator_forward.19} parent=62 // pred_fallthru
          _
      $region63: #{generator_forward.19} parent=5 // pred_fallthru
        _
    $region6: #{generator_forward.19} parent=1 // loop_footer
      %s13 = sadd.s32 1, %s9
    $region7: #{generator_forward.19} parent=1 // loop_footer_branch
      %8 = sbr.rel target = $region3
    $region8: #{generator_forward.19} parent=1 // loop_exit
      _

</llo_original>
